<compile_context>
chip_gen: v7x
topology: tpu7x:2x2x1
jax: 0.10.0
libtpu: 0.0.40
codegen_flags: <defaults>
</compile_context>

<pallas_src>
import functools

import jax
import jax.numpy as jnp
from jax import lax
from jax.experimental import pallas as pl
from jax.experimental.pallas import tpu as pltpu


def _bn_kernel(x_ref, gamma_ref, beta_ref, o_ref, *, eps, inv_r):
    # x_ref: (N, CBLK, HW)   gamma_ref/beta_ref: (1, CBLK, 1)
    x = x_ref[...].astype(jnp.float32)
    # Single-pass statistics over N and H*W (f32 accumulation).
    s = jnp.sum(x, axis=(0, 2), keepdims=True)            # (1, CBLK, 1)
    ss = jnp.sum(x * x, axis=(0, 2), keepdims=True)       # (1, CBLK, 1)
    mean = s * inv_r
    var = ss * inv_r - mean * mean                        # biased var (training-mode norm)
    inv = lax.rsqrt(var + eps)
    scale = inv * gamma_ref[...].astype(jnp.float32)      # (1, CBLK, 1)
    bias = beta_ref[...].astype(jnp.float32) - mean * scale
    # Fused per-element FMA.
    o_ref[...] = (x * scale + bias).astype(o_ref.dtype)


def _pick_cblk(c):
    # Prefer two channel blocks so v7x's two TensorCores both get work
    # (grid=(2,), "parallel"); fall back to a single full-extent block.
    half = c // 2
    if c % 2 == 0 and half % 8 == 0:
        return half
    return c


def batchnorm2d_pallas(x_nchw, gamma, beta, eps=1e-3):
    """Training-mode BatchNorm2d forward over an NCHW input (batch statistics)."""
    n, c, h, w = x_nchw.shape
    hw = h * w
    r = n * hw

    # Free views only — no HBM transposes.
    x3 = x_nchw.reshape(n, c, hw)       # channels -> sublanes, H*W -> lanes
    g3 = gamma.reshape(1, c, 1)
    b3 = beta.reshape(1, c, 1)

    cblk = _pick_cblk(c)
    grid = (c // cblk,)

    # VMEM budget: in + out blocks, double-buffered, with lane/sublane padding.
    padded_hw = max(128, ((hw + 127) // 128) * 128)
    block_bytes = n * cblk * padded_hw * 4
    vmem_limit = int(4 * block_bytes + (2 << 20))

    cost = pl.CostEstimate(
        flops=5 * n * c * hw,
        transcendentals=c,
        bytes_accessed=2 * x_nchw.size * x_nchw.dtype.itemsize + 2 * c * 4,
    )

    # TODO(synk): if N*H*W ever grows large, split into an R-tiled stats pass
    # ("arbitrary" grid axis + pl.when finalize) instead of one full-R block.
    out3 = pl.pallas_call(
        functools.partial(_bn_kernel, eps=eps, inv_r=1.0 / r),
        out_shape=jax.ShapeDtypeStruct((n, c, hw), x_nchw.dtype),
        grid_spec=pltpu.PrefetchScalarGridSpec(
            num_scalar_prefetch=0,
            grid=grid,
            in_specs=[
                pl.BlockSpec((n, cblk, hw), lambda j: (0, j, 0)),
                pl.BlockSpec((1, cblk, 1), lambda j: (0, j, 0)),
                pl.BlockSpec((1, cblk, 1), lambda j: (0, j, 0)),
            ],
            out_specs=pl.BlockSpec((n, cblk, hw), lambda j: (0, j, 0)),
        ),
        compiler_params=pltpu.CompilerParams(
            dimension_semantics=("parallel",),
            vmem_limit_bytes=vmem_limit,
        ),
        cost_estimate=cost,
    )(x3, g3, b3)

    return out3.reshape(n, c, h, w)


def batchnorm2d_ref(x_nchw, gamma, beta, eps=1e-3):
    x = x_nchw.astype(jnp.float32)
    mean = jnp.mean(x, axis=(0, 2, 3), keepdims=True)
    var = jnp.mean((x - mean) ** 2, axis=(0, 2, 3), keepdims=True)
    g = gamma.reshape(1, -1, 1, 1)
    b = beta.reshape(1, -1, 1, 1)
    return ((x - mean) * lax.rsqrt(var + eps) * g + b).astype(x_nchw.dtype)


if __name__ == "__main__":
    # Shapes from the module: BatchNorm2d(3840) on [1, 3840, 7, 7].
    N, C, H, W = 1, 3840, 7, 7
    key = jax.random.PRNGKey(0)
    kx, kg, kb = jax.random.split(key, 3)

    x = jax.random.normal(kx, (N, C, H, W), dtype=jnp.float32)
    # Deterministic, non-trivial affine parameters (shapes from __init__).
    gamma = 1.0 + 0.1 * jax.random.normal(kg, (C,), dtype=jnp.float32)
    beta = 0.1 * jax.random.normal(kb, (C,), dtype=jnp.float32)

    # TODO(synk): running_mean/running_var update (momentum=0.01) is a training
    # side effect; it does not affect the returned tensor and is not emitted.
    out = batchnorm2d_pallas(x, gamma, beta, eps=1e-3)
    out = jax.block_until_ready(out)

    ref = batchnorm2d_ref(x, gamma, beta, eps=1e-3)
    assert out.shape == (N, C, H, W)
    assert jnp.allclose(out, ref, atol=1e-4, rtol=1e-4)

    print("KERNEL_OK")
</pallas_src>

<mosaic_0001>
module attributes {stable_mosaic.version = 11 : i64} {
  func.func @_bn_kernel(%arg0: i32, %arg1: memref<1x1920x49xf32, #tpu.memory_space<vmem>>, %arg2: memref<1x1920x1xf32, #tpu.memory_space<vmem>>, %arg3: memref<1x1920x1xf32, #tpu.memory_space<vmem>>, %arg4: memref<1x1920x49xf32, #tpu.memory_space<vmem>>) attributes {dimension_semantics = [#tpu.dimension_semantics<parallel>], iteration_bounds = array<i64: 2>, scalar_prefetch = 0 : i64, scratch_operands = 0 : i64, tpu.core_type = #tpu.core_type<tc>, window_params = [{transform_indices = @transform_0, window_bounds = array<i64: 1, 1920, 49>}, {transform_indices = @transform_1, window_bounds = array<i64: 1, 1920, 1>}, {transform_indices = @transform_2, window_bounds = array<i64: 1, 1920, 1>}, {transform_indices = @transform_3, window_bounds = array<i64: 1, 1920, 49>}]} {
    %c0 = arith.constant 0 : index
    %c0_0 = arith.constant 0 : index
    %c0_1 = arith.constant 0 : index
    %0 = vector.load %arg1[%c0, %c0_0, %c0_1] : memref<1x1920x49xf32, #tpu.memory_space<vmem>>, vector<1x1920x49xf32>
    %cst = arith.constant dense<0.000000e+00> : vector<1920xf32>
    %1 = vector.multi_reduction <add>, %0, %cst [0, 2] : vector<1x1920x49xf32> to vector<1920xf32>
    %2 = vector.shape_cast %1 : vector<1920xf32> to vector<1x1920x1xf32>
    %3 = arith.mulf %0, %0 : vector<1x1920x49xf32>
    %cst_2 = arith.constant dense<0.000000e+00> : vector<1920xf32>
    %4 = vector.multi_reduction <add>, %3, %cst_2 [0, 2] : vector<1x1920x49xf32> to vector<1920xf32>
    %5 = vector.shape_cast %4 : vector<1920xf32> to vector<1x1920x1xf32>
    %cst_3 = arith.constant 0.0204081628 : f32
    %6 = vector.broadcast %cst_3 : f32 to vector<1x1920x1xf32>
    %7 = arith.mulf %2, %6 : vector<1x1920x1xf32>
    %cst_4 = arith.constant 0.0204081628 : f32
    %8 = vector.broadcast %cst_4 : f32 to vector<1x1920x1xf32>
    %9 = arith.mulf %5, %8 : vector<1x1920x1xf32>
    %10 = arith.mulf %7, %7 : vector<1x1920x1xf32>
    %11 = arith.subf %9, %10 : vector<1x1920x1xf32>
    %cst_5 = arith.constant 1.000000e-03 : f32
    %12 = vector.broadcast %cst_5 : f32 to vector<1x1920x1xf32>
    %13 = arith.addf %11, %12 : vector<1x1920x1xf32>
    %14 = math.rsqrt %13 : vector<1x1920x1xf32>
    %c0_6 = arith.constant 0 : index
    %c0_7 = arith.constant 0 : index
    %c0_8 = arith.constant 0 : index
    %15 = vector.load %arg2[%c0_6, %c0_7, %c0_8] : memref<1x1920x1xf32, #tpu.memory_space<vmem>>, vector<1x1920x1xf32>
    %16 = arith.mulf %14, %15 : vector<1x1920x1xf32>
    %c0_9 = arith.constant 0 : index
    %c0_10 = arith.constant 0 : index
    %c0_11 = arith.constant 0 : index
    %17 = vector.load %arg3[%c0_9, %c0_10, %c0_11] : memref<1x1920x1xf32, #tpu.memory_space<vmem>>, vector<1x1920x1xf32>
    %18 = arith.mulf %7, %16 : vector<1x1920x1xf32>
    %19 = arith.subf %17, %18 : vector<1x1920x1xf32>
    %20 = vector.broadcast %16 : vector<1x1920x1xf32> to vector<1x1920x49xf32>
    %21 = arith.mulf %0, %20 : vector<1x1920x49xf32>
    %22 = vector.broadcast %19 : vector<1x1920x1xf32> to vector<1x1920x49xf32>
    %23 = arith.addf %21, %22 : vector<1x1920x49xf32>
    %c0_12 = arith.constant 0 : index
    %c0_13 = arith.constant 0 : index
    %c0_14 = arith.constant 0 : index
    %24 = vector.load %arg4[%c0_12, %c0_13, %c0_14] : memref<1x1920x49xf32, #tpu.memory_space<vmem>>, vector<1x1920x49xf32>
    tpu.vector_store %arg4[%c0_12, %c0_13, %c0_14], %23 {strides = array<i32>} : memref<1x1920x49xf32, #tpu.memory_space<vmem>>, vector<1x1920x49xf32>,
    return
  }
  func.func @transform_0(%arg0: i32) -> (i32, i32, i32) {
    %c0_i32 = arith.constant 0 : i32
    %c0_i32_0 = arith.constant 0 : i32
    %c0_i32_1 = arith.constant 0 : i32
    return %c0_i32, %arg0, %c0_i32_0 : i32, i32, i32
  }
  func.func @transform_1(%arg0: i32) -> (i32, i32, i32) {
    %c0_i32 = arith.constant 0 : i32
    %c0_i32_0 = arith.constant 0 : i32
    %c0_i32_1 = arith.constant 0 : i32
    return %c0_i32, %arg0, %c0_i32_0 : i32, i32, i32
  }
  func.func @transform_2(%arg0: i32) -> (i32, i32, i32) {
    %c0_i32 = arith.constant 0 : i32
    %c0_i32_0 = arith.constant 0 : i32
    %c0_i32_1 = arith.constant 0 : i32
    return %c0_i32, %arg0, %c0_i32_0 : i32, i32, i32
  }
  func.func @transform_3(%arg0: i32) -> (i32, i32, i32) {
    %c0_i32 = arith.constant 0 : i32
    %c0_i32_0 = arith.constant 0 : i32
    %c0_i32_1 = arith.constant 0 : i32
    return %c0_i32, %arg0, %c0_i32_0 : i32, i32, i32
  }
}

</mosaic_0001>

<llo_original>
// kernel: tpu_custom_call.1
$region0: #{tpu_custom_call.1}
  #allocation0 [shape = 'u32[]', space=smem, size = 0x4, offset = 0x4, fixed_abs, tag = 'smem constant byte address 0x4 - core index']
  #allocation1 [shape = 'u32[144,128]{1,0:T(1,128)}', space=vmem, size = 0x12000, scoped, tag = 'internal scratch']
  %s0 = inlined_call_operand.vmem [shape: f32[1,3840,49], index: 0, kind: input, shape index: {}]
  %s1 = inlined_call_operand.vmem [shape: f32[1,3840,1], index: 1, kind: input, shape index: {}]
  %s2 = inlined_call_operand.vmem [shape: f32[1,3840,1], index: 2, kind: input, shape index: {}]
  %s3 = inlined_call_operand.vmem [shape: f32[1,3840,49], index: 3, kind: output, shape index: {}]
  %s4 = sld [smem:[#allocation0]]
  $region45: #{tpu_custom_call.1} parent=0
    _
  %s6 = ssub.s32 1, %s4
  %s7 = scalar_select 0, %s6, %s4
  loop: start=0, step=1, limit=4
  $region2: #{tpu_custom_call.1} parent=0 // loop_pre_header
    _
  $region3: #{tpu_custom_call.1} parent=0 // loop_header
    %s9 = sphi 0, %s13
    %p10 = scmp.ge.s32.totalorder %s9, 4
    %s19 = sphi 0, %s21
    %s22 = sphi 0, %s19
    %s23 = sphi 0, %s22
    %s39 = sphi 0, %s23
    %s45 = sphi 0, %s47
    %s48 = sphi 0, %s45
    %s49 = sphi 0, %s48
    %s65 = sphi 0, %s49
    %s71 = sphi 0, %s73
    %s74 = sphi 0, %s71
    %s75 = sphi 0, %s74
    %s91 = sphi 0, %s75
    %s97 = sphi 0, %s99
    %s100 = sphi 0, %s97
    %s101 = sphi 0, %s100
    %s117 = sphi 0, %s101
  $region4: #{tpu_custom_call.1} parent=0 // loop_header_branch
    %12 = sbr.rel (%p10) target = $region8
  $region5: #{tpu_custom_call.1} parent=0 // loop_body
    %s14 = ssub.s32 %s9, 1
    %s15 = ssub.s32 %s9, 2
    %s16 = sadd.s32 %s9, 1
    %s17 = ssub.s32 %s9, %s16
    %p18 = scmp.eq.s32.totalorder %s17, 0
    %s20 = sadd.s32 %s19, 1
    %s21 = scalar_select %p18, %s19, %s20
    %p24 = pneg %p18
    %p25 = scmp.eq.s32.totalorder %s9, 1
    %p26 = por %p24, %p25
    %p27 = scmp.ne.s32.totalorder %s19, %s22
    %p28 = scmp.eq.s32.totalorder %s9, 0
    %p29 = por %p27, %p28
    %p30 = scmp.ne.s32.totalorder %s19, %s22
    %p31 = scmp.eq.s32.totalorder %s14, 1
    %p32 = por %p30, %p31
    %p33 = scmp.ne.s32.totalorder %s22, %s23
    %p34 = scmp.eq.s32.totalorder %s14, 0
    %p35 = por %p33, %p34
    %p36 = scmp.ne.s32.totalorder %s22, %s23
    %p37 = scmp.eq.s32.totalorder %s15, 1
    %p38 = por %p36, %p37
    %p40 = scmp.ne.s32.totalorder %s23, %s39
    %p41 = scmp.eq.s32.totalorder %s15, 0
    %p42 = por %p40, %p41
    %s43 = ssub.s32 %s9, %s16
    %p44 = scmp.eq.s32.totalorder %s43, 0
    %s46 = sadd.s32 %s45, 1
    %s47 = scalar_select %p44, %s45, %s46
    %p50 = pneg %p44
    %p51 = scmp.eq.s32.totalorder %s9, 1
    %p52 = por %p50, %p51
    %p53 = scmp.ne.s32.totalorder %s45, %s48
    %p54 = scmp.eq.s32.totalorder %s9, 0
    %p55 = por %p53, %p54
    %p56 = scmp.ne.s32.totalorder %s45, %s48
    %p57 = scmp.eq.s32.totalorder %s14, 1
    %p58 = por %p56, %p57
    %p59 = scmp.ne.s32.totalorder %s48, %s49
    %p60 = scmp.eq.s32.totalorder %s14, 0
    %p61 = por %p59, %p60
    %p62 = scmp.ne.s32.totalorder %s48, %s49
    %p63 = scmp.eq.s32.totalorder %s15, 1
    %p64 = por %p62, %p63
    %p66 = scmp.ne.s32.totalorder %s49, %s65
    %p67 = scmp.eq.s32.totalorder %s15, 0
    %p68 = por %p66, %p67
    %s69 = ssub.s32 %s9, %s16
    %p70 = scmp.eq.s32.totalorder %s69, 0
    %s72 = sadd.s32 %s71, 1
    %s73 = scalar_select %p70, %s71, %s72
    %p76 = pneg %p70
    %p77 = scmp.eq.s32.totalorder %s9, 1
    %p78 = por %p76, %p77
    %p79 = scmp.ne.s32.totalorder %s71, %s74
    %p80 = scmp.eq.s32.totalorder %s9, 0
    %p81 = por %p79, %p80
    %p82 = scmp.ne.s32.totalorder %s71, %s74
    %p83 = scmp.eq.s32.totalorder %s14, 1
    %p84 = por %p82, %p83
    %p85 = scmp.ne.s32.totalorder %s74, %s75
    %p86 = scmp.eq.s32.totalorder %s14, 0
    %p87 = por %p85, %p86
    %p88 = scmp.ne.s32.totalorder %s74, %s75
    %p89 = scmp.eq.s32.totalorder %s15, 1
    %p90 = por %p88, %p89
    %p92 = scmp.ne.s32.totalorder %s75, %s91
    %p93 = scmp.eq.s32.totalorder %s15, 0
    %p94 = por %p92, %p93
    %s95 = ssub.s32 %s9, %s16
    %p96 = scmp.eq.s32.totalorder %s95, 0
    %s98 = sadd.s32 %s97, 1
    %s99 = scalar_select %p96, %s97, %s98
    %p102 = pneg %p96
    %p103 = scmp.eq.s32.totalorder %s9, 1
    %p104 = por %p102, %p103
    %p105 = scmp.ne.s32.totalorder %s97, %s100
    %p106 = scmp.eq.s32.totalorder %s9, 0
    %p107 = por %p105, %p106
    %p108 = scmp.ne.s32.totalorder %s97, %s100
    %p109 = scmp.eq.s32.totalorder %s14, 1
    %p110 = por %p108, %p109
    %p111 = scmp.ne.s32.totalorder %s100, %s101
    %p112 = scmp.eq.s32.totalorder %s14, 0
    %p113 = por %p111, %p112
    %p114 = scmp.ne.s32.totalorder %s100, %s101
    %p115 = scmp.eq.s32.totalorder %s15, 1
    %p116 = por %p114, %p115
    %p118 = scmp.ne.s32.totalorder %s101, %s117
    %p119 = scmp.eq.s32.totalorder %s15, 0
    %p120 = por %p118, %p119
    %p121 = scmp.le.s32.totalorder 1, %s9
    %p122 = scmp.lt.s32.totalorder %s9, 3
    %p123 = pnand %p121, %p122
    %p124 = pneg %p123
    // Predicated region
    $region9: #{tpu_custom_call.1} parent=5 // pred_check
      _
    $region10: #{tpu_custom_call.1} parent=5 // pred_check_branch
      %126 = sbr.rel (%p123) target = $region12
    $region11: #{tpu_custom_call.1} parent=5 // pred_region
      %s127 = ssub.s32 %s9, 1
    $region12: #{tpu_custom_call.1} parent=5 // pred_fallthru
      _
    %p128 = scmp.lt.s32.totalorder %s9, 2
    // Predicated region
    $region13: #{tpu_custom_call.1} parent=5 // pred_check
      %p129 = pneg %p128
    $region14: #{tpu_custom_call.1} parent=5 // pred_check_branch
      %131 = sbr.rel (%p129) target = $region16
    $region15: #{tpu_custom_call.1} parent=5 // pred_region
      // Predicated region
      $region17: #{tpu_custom_call.1} parent=15 // pred_check
        %p132 = pneg %p29
      $region18: #{tpu_custom_call.1} parent=15 // pred_check_branch
        %134 = sbr.rel (%p132) target = $region20
      $region19: #{tpu_custom_call.1} parent=15 // pred_region
        %s135 = smul.u32 240, %s9
        %p136 = scmp.lt.s32.totalorder %s135, 479
        %s137 = scalar_select %p136, %s135, 479
        %s138 = smul.addr %s137, 8
        %s139 = scalar_lea.vmem %s0, %s138
        %s140 = smul.u32 240, %s9
      $region20: #{tpu_custom_call.1} parent=15 // pred_fallthru
        _
      // Predicated region
      $region21: #{tpu_custom_call.1} parent=15 // pred_check
        %p141 = pneg %p55
      $region22: #{tpu_custom_call.1} parent=15 // pred_check_branch
        %143 = sbr.rel (%p141) target = $region24
      $region23: #{tpu_custom_call.1} parent=15 // pred_region
        %s144 = smul.u32 240, %s9
        %p145 = scmp.lt.s32.totalorder %s144, 479
        %s146 = scalar_select %p145, %s144, 479
        %s147 = smul.addr %s146, 8
        %s148 = scalar_lea.vmem %s1, %s147
        %s149 = smul.u32 240, %s9
      $region24: #{tpu_custom_call.1} parent=15 // pred_fallthru
        _
      // Predicated region
      $region25: #{tpu_custom_call.1} parent=15 // pred_check
        %p150 = pneg %p81
      $region26: #{tpu_custom_call.1} parent=15 // pred_check_branch
        %152 = sbr.rel (%p150) target = $region28
      $region27: #{tpu_custom_call.1} parent=15 // pred_region
        %s153 = smul.u32 240, %s9
        %p154 = scmp.lt.s32.totalorder %s153, 479
        %s155 = scalar_select %p154, %s153, 479
        %s156 = smul.addr %s155, 8
        %s157 = scalar_lea.vmem %s2, %s156
        %s158 = smul.u32 240, %s9
      $region28: #{tpu_custom_call.1} parent=15 // pred_fallthru
        _
    $region16: #{tpu_custom_call.1} parent=5 // pred_fallthru
      _
    %p159 = scmp.le.s32.totalorder 1, %s9
    %p160 = scmp.lt.s32.totalorder %s9, 3
    %p161 = pnand %p159, %p160
    %p162 = pneg %p161
    // Predicated region
    $region29: #{tpu_custom_call.1} parent=5 // pred_check
      _
    $region30: #{tpu_custom_call.1} parent=5 // pred_check_branch
      %164 = sbr.rel (%p161) target = $region32
    $region31: #{tpu_custom_call.1} parent=5 // pred_region
      %s165 = ssub.s32 %s9, 1
      %s166 = smul.u32 240, %s14
      %p167 = scmp.lt.s32.totalorder %s166, 479
      %s168 = scalar_select %p167, %s166, 479
      %s169 = smul.addr %s168, 8
      %s170 = scalar_lea.vmem %s0, %s169
      %p171 = pneg %p35
      %p172 = pneg %p32
      %s173 = smul.u32 240, %s14
      %p174 = scmp.lt.s32.totalorder %s173, 479
      %s175 = scalar_select %p174, %s173, 479
      %s176 = smul.addr %s175, 8
      %s177 = scalar_lea.vmem %s1, %s176
      %p178 = pneg %p61
      %p179 = pneg %p58
      %s180 = smul.u32 240, %s14
      %p181 = scmp.lt.s32.totalorder %s180, 479
      %s182 = scalar_select %p181, %s180, 479
      %s183 = smul.addr %s182, 8
      %s184 = scalar_lea.vmem %s2, %s183
      %p185 = pneg %p87
      %p186 = pneg %p84
      %p187 = pneg %p113
      %p188 = pneg %p110
      %s189 = smul.u32 240, %s14
      %p190 = scmp.lt.s32.totalorder %s189, 479
      %s191 = scalar_select %p190, %s189, 479
      %s192 = smul.addr %s191, 8
      %s193 = scalar_lea.vmem %s3, %s192
      %s194 = smul.u32 240, %s14
      %p195 = scmp.lt.s32.totalorder %s194, 479
      %s196 = scalar_select %p195, %s194, 479
      %s197 = smul.addr %s196, 8
      %s198 = scalar_lea.vmem %s0, %s197
      %s199 = smul.u32 240, %s14
      %s200 = smul.u32 240, %s14
      %p201 = scmp.lt.s32.totalorder %s200, 479
      %s202 = scalar_select %p201, %s200, 479
      %s203 = smul.addr %s202, 8
      %s204 = scalar_lea.vmem %s1, %s203
      %s205 = smul.u32 240, %s14
      %s206 = smul.u32 240, %s14
      %p207 = scmp.lt.s32.totalorder %s206, 479
      %s208 = scalar_select %p207, %s206, 479
      %s209 = smul.addr %s208, 8
      %s210 = scalar_lea.vmem %s2, %s209
      %s211 = smul.u32 240, %s14
      %s212 = smul.u32 240, %s14
      %p213 = scmp.lt.s32.totalorder %s212, 479
      %s214 = scalar_select %p213, %s212, 479
      %s215 = smul.addr %s214, 8
      %s216 = scalar_lea.vmem %s3, %s215
      %s217 = smul.u32 240, %s14
      %v218 = vld [vmem:[%s198] sm:$0xff]
      %v219 = vld [vmem:[%s198 + $0x8] sm:$0xff]
      %v220 = vld [vmem:[%s198 + $0x10] sm:$0xff]
      %v221 = vld [vmem:[%s198 + $0x18] sm:$0xff]
      %v222 = vld [vmem:[%s198 + $0x20] sm:$0xff]
      %v223 = vld [vmem:[%s198 + $0x28] sm:$0xff]
      %v224 = vld [vmem:[%s198 + $0x30] sm:$0xff]
      %v225 = vld [vmem:[%s198 + $0x38] sm:$0xff]
      %v226 = vld [vmem:[%s198 + $0x40] sm:$0xff]
      %v227 = vld [vmem:[%s198 + $0x48] sm:$0xff]
      %v228 = vld [vmem:[%s198 + $0x50] sm:$0xff]
      %v229 = vld [vmem:[%s198 + $0x58] sm:$0xff]
      %v230 = vld [vmem:[%s198 + $0x60] sm:$0xff]
      %v231 = vld [vmem:[%s198 + $0x68] sm:$0xff]
      %v232 = vld [vmem:[%s198 + $0x70] sm:$0xff]
      %v233 = vld [vmem:[%s198 + $0x78] sm:$0xff]
      %v234 = vld [vmem:[%s198 + $0x80] sm:$0xff]
      %v235 = vld [vmem:[%s198 + $0x88] sm:$0xff]
      %v236 = vld [vmem:[%s198 + $0x90] sm:$0xff]
      %v237 = vld [vmem:[%s198 + $0x98] sm:$0xff]
      %v238 = vld [vmem:[%s198 + $0xa0] sm:$0xff]
      %v239 = vld [vmem:[%s198 + $0xa8] sm:$0xff]
      %v240 = vld [vmem:[%s198 + $0xb0] sm:$0xff]
      %v241 = vld [vmem:[%s198 + $0xb8] sm:$0xff]
      %v242 = vld [vmem:[%s198 + $0xc0] sm:$0xff]
      %v243 = vld [vmem:[%s198 + $0xc8] sm:$0xff]
      %v244 = vld [vmem:[%s198 + $0xd0] sm:$0xff]
      %v245 = vld [vmem:[%s198 + $0xd8] sm:$0xff]
      %v246 = vld [vmem:[%s198 + $0xe0] sm:$0xff]
      %v247 = vld [vmem:[%s198 + $0xe8] sm:$0xff]
      %v248 = vld [vmem:[%s198 + $0xf0] sm:$0xff]
      %v249 = vld [vmem:[%s198 + $0xf8] sm:$0xff]
      %v250 = vld [vmem:[%s198 + $0x100] sm:$0xff]
      %v251 = vld [vmem:[%s198 + $0x108] sm:$0xff]
      %v252 = vld [vmem:[%s198 + $0x110] sm:$0xff]
      %v253 = vld [vmem:[%s198 + $0x118] sm:$0xff]
      %v254 = vld [vmem:[%s198 + $0x120] sm:$0xff]
      %v255 = vld [vmem:[%s198 + $0x128] sm:$0xff]
      %v256 = vld [vmem:[%s198 + $0x130] sm:$0xff]
      %v257 = vld [vmem:[%s198 + $0x138] sm:$0xff]
      %v258 = vld [vmem:[%s198 + $0x140] sm:$0xff]
      %v259 = vld [vmem:[%s198 + $0x148] sm:$0xff]
      %v260 = vld [vmem:[%s198 + $0x150] sm:$0xff]
      %v261 = vld [vmem:[%s198 + $0x158] sm:$0xff]
      %v262 = vld [vmem:[%s198 + $0x160] sm:$0xff]
      %v263 = vld [vmem:[%s198 + $0x168] sm:$0xff]
      %v264 = vld [vmem:[%s198 + $0x170] sm:$0xff]
      %v265 = vld [vmem:[%s198 + $0x178] sm:$0xff]
      %v266 = vld [vmem:[%s198 + $0x180] sm:$0xff]
      %v267 = vld [vmem:[%s198 + $0x188] sm:$0xff]
      %v268 = vld [vmem:[%s198 + $0x190] sm:$0xff]
      %v269 = vld [vmem:[%s198 + $0x198] sm:$0xff]
      %v270 = vld [vmem:[%s198 + $0x1a0] sm:$0xff]
      %v271 = vld [vmem:[%s198 + $0x1a8] sm:$0xff]
      %v272 = vld [vmem:[%s198 + $0x1b0] sm:$0xff]
      %v273 = vld [vmem:[%s198 + $0x1b8] sm:$0xff]
      %v274 = vld [vmem:[%s198 + $0x1c0] sm:$0xff]
      %v275 = vld [vmem:[%s198 + $0x1c8] sm:$0xff]
      %v276 = vld [vmem:[%s198 + $0x1d0] sm:$0xff]
      %v277 = vld [vmem:[%s198 + $0x1d8] sm:$0xff]
      %v278 = vld [vmem:[%s198 + $0x1e0] sm:$0xff]
      %v279 = vld [vmem:[%s198 + $0x1e8] sm:$0xff]
      %v280 = vld [vmem:[%s198 + $0x1f0] sm:$0xff]
      %v281 = vld [vmem:[%s198 + $0x1f8] sm:$0xff]
      %v282 = vld [vmem:[%s198 + $0x200] sm:$0xff]
      %v283 = vld [vmem:[%s198 + $0x208] sm:$0xff]
      %v284 = vld [vmem:[%s198 + $0x210] sm:$0xff]
      %v285 = vld [vmem:[%s198 + $0x218] sm:$0xff]
      %v286 = vld [vmem:[%s198 + $0x220] sm:$0xff]
      %v287 = vld [vmem:[%s198 + $0x228] sm:$0xff]
      %v288 = vld [vmem:[%s198 + $0x230] sm:$0xff]
      %v289 = vld [vmem:[%s198 + $0x238] sm:$0xff]
      %v290 = vld [vmem:[%s198 + $0x240] sm:$0xff]
      %v291 = vld [vmem:[%s198 + $0x248] sm:$0xff]
      %v292 = vld [vmem:[%s198 + $0x250] sm:$0xff]
      %v293 = vld [vmem:[%s198 + $0x258] sm:$0xff]
      %v294 = vld [vmem:[%s198 + $0x260] sm:$0xff]
      %v295 = vld [vmem:[%s198 + $0x268] sm:$0xff]
      %v296 = vld [vmem:[%s198 + $0x270] sm:$0xff]
      %v297 = vld [vmem:[%s198 + $0x278] sm:$0xff]
      %v298 = vld [vmem:[%s198 + $0x280] sm:$0xff]
      %v299 = vld [vmem:[%s198 + $0x288] sm:$0xff]
      %v300 = vld [vmem:[%s198 + $0x290] sm:$0xff]
      %v301 = vld [vmem:[%s198 + $0x298] sm:$0xff]
      %v302 = vld [vmem:[%s198 + $0x2a0] sm:$0xff]
      %v303 = vld [vmem:[%s198 + $0x2a8] sm:$0xff]
      %v304 = vld [vmem:[%s198 + $0x2b0] sm:$0xff]
      %v305 = vld [vmem:[%s198 + $0x2b8] sm:$0xff]
      %v306 = vld [vmem:[%s198 + $0x2c0] sm:$0xff]
      %v307 = vld [vmem:[%s198 + $0x2c8] sm:$0xff]
      %v308 = vld [vmem:[%s198 + $0x2d0] sm:$0xff]
      %v309 = vld [vmem:[%s198 + $0x2d8] sm:$0xff]
      %v310 = vld [vmem:[%s198 + $0x2e0] sm:$0xff]
      %v311 = vld [vmem:[%s198 + $0x2e8] sm:$0xff]
      %v312 = vld [vmem:[%s198 + $0x2f0] sm:$0xff]
      %v313 = vld [vmem:[%s198 + $0x2f8] sm:$0xff]
      %v314 = vld [vmem:[%s198 + $0x300] sm:$0xff]
      %v315 = vld [vmem:[%s198 + $0x308] sm:$0xff]
      %v316 = vld [vmem:[%s198 + $0x310] sm:$0xff]
      %v317 = vld [vmem:[%s198 + $0x318] sm:$0xff]
      %v318 = vld [vmem:[%s198 + $0x320] sm:$0xff]
      %v319 = vld [vmem:[%s198 + $0x328] sm:$0xff]
      %v320 = vld [vmem:[%s198 + $0x330] sm:$0xff]
      %v321 = vld [vmem:[%s198 + $0x338] sm:$0xff]
      %v322 = vld [vmem:[%s198 + $0x340] sm:$0xff]
      %v323 = vld [vmem:[%s198 + $0x348] sm:$0xff]
      %v324 = vld [vmem:[%s198 + $0x350] sm:$0xff]
      %v325 = vld [vmem:[%s198 + $0x358] sm:$0xff]
      %v326 = vld [vmem:[%s198 + $0x360] sm:$0xff]
      %v327 = vld [vmem:[%s198 + $0x368] sm:$0xff]
      %v328 = vld [vmem:[%s198 + $0x370] sm:$0xff]
      %v329 = vld [vmem:[%s198 + $0x378] sm:$0xff]
      %v330 = vld [vmem:[%s198 + $0x380] sm:$0xff]
      %v331 = vld [vmem:[%s198 + $0x388] sm:$0xff]
      %v332 = vld [vmem:[%s198 + $0x390] sm:$0xff]
      %v333 = vld [vmem:[%s198 + $0x398] sm:$0xff]
      %v334 = vld [vmem:[%s198 + $0x3a0] sm:$0xff]
      %v335 = vld [vmem:[%s198 + $0x3a8] sm:$0xff]
      %v336 = vld [vmem:[%s198 + $0x3b0] sm:$0xff]
      %v337 = vld [vmem:[%s198 + $0x3b8] sm:$0xff]
      %v338 = vld [vmem:[%s198 + $0x3c0] sm:$0xff]
      %v339 = vld [vmem:[%s198 + $0x3c8] sm:$0xff]
      %v340 = vld [vmem:[%s198 + $0x3d0] sm:$0xff]
      %v341 = vld [vmem:[%s198 + $0x3d8] sm:$0xff]
      %v342 = vld [vmem:[%s198 + $0x3e0] sm:$0xff]
      %v343 = vld [vmem:[%s198 + $0x3e8] sm:$0xff]
      %v344 = vld [vmem:[%s198 + $0x3f0] sm:$0xff]
      %v345 = vld [vmem:[%s198 + $0x3f8] sm:$0xff]
      %v346 = vld [vmem:[%s198 + $0x400] sm:$0xff]
      %v347 = vld [vmem:[%s198 + $0x408] sm:$0xff]
      %v348 = vld [vmem:[%s198 + $0x410] sm:$0xff]
      %v349 = vld [vmem:[%s198 + $0x418] sm:$0xff]
      %v350 = vld [vmem:[%s198 + $0x420] sm:$0xff]
      %v351 = vld [vmem:[%s198 + $0x428] sm:$0xff]
      %v352 = vld [vmem:[%s198 + $0x430] sm:$0xff]
      %v353 = vld [vmem:[%s198 + $0x438] sm:$0xff]
      %v354 = vld [vmem:[%s198 + $0x440] sm:$0xff]
      %v355 = vld [vmem:[%s198 + $0x448] sm:$0xff]
      %v356 = vld [vmem:[%s198 + $0x450] sm:$0xff]
      %v357 = vld [vmem:[%s198 + $0x458] sm:$0xff]
      %v358 = vld [vmem:[%s198 + $0x460] sm:$0xff]
      %v359 = vld [vmem:[%s198 + $0x468] sm:$0xff]
      %v360 = vld [vmem:[%s198 + $0x470] sm:$0xff]
      %v361 = vld [vmem:[%s198 + $0x478] sm:$0xff]
      %v362 = vld [vmem:[%s198 + $0x480] sm:$0xff]
      %v363 = vld [vmem:[%s198 + $0x488] sm:$0xff]
      %v364 = vld [vmem:[%s198 + $0x490] sm:$0xff]
      %v365 = vld [vmem:[%s198 + $0x498] sm:$0xff]
      %v366 = vld [vmem:[%s198 + $0x4a0] sm:$0xff]
      %v367 = vld [vmem:[%s198 + $0x4a8] sm:$0xff]
      %v368 = vld [vmem:[%s198 + $0x4b0] sm:$0xff]
      %v369 = vld [vmem:[%s198 + $0x4b8] sm:$0xff]
      %v370 = vld [vmem:[%s198 + $0x4c0] sm:$0xff]
      %v371 = vld [vmem:[%s198 + $0x4c8] sm:$0xff]
      %v372 = vld [vmem:[%s198 + $0x4d0] sm:$0xff]
      %v373 = vld [vmem:[%s198 + $0x4d8] sm:$0xff]
      %v374 = vld [vmem:[%s198 + $0x4e0] sm:$0xff]
      %v375 = vld [vmem:[%s198 + $0x4e8] sm:$0xff]
      %v376 = vld [vmem:[%s198 + $0x4f0] sm:$0xff]
      %v377 = vld [vmem:[%s198 + $0x4f8] sm:$0xff]
      %v378 = vld [vmem:[%s198 + $0x500] sm:$0xff]
      %v379 = vld [vmem:[%s198 + $0x508] sm:$0xff]
      %v380 = vld [vmem:[%s198 + $0x510] sm:$0xff]
      %v381 = vld [vmem:[%s198 + $0x518] sm:$0xff]
      %v382 = vld [vmem:[%s198 + $0x520] sm:$0xff]
      %v383 = vld [vmem:[%s198 + $0x528] sm:$0xff]
      %v384 = vld [vmem:[%s198 + $0x530] sm:$0xff]
      %v385 = vld [vmem:[%s198 + $0x538] sm:$0xff]
      %v386 = vld [vmem:[%s198 + $0x540] sm:$0xff]
      %v387 = vld [vmem:[%s198 + $0x548] sm:$0xff]
      %v388 = vld [vmem:[%s198 + $0x550] sm:$0xff]
      %v389 = vld [vmem:[%s198 + $0x558] sm:$0xff]
      %v390 = vld [vmem:[%s198 + $0x560] sm:$0xff]
      %v391 = vld [vmem:[%s198 + $0x568] sm:$0xff]
      %v392 = vld [vmem:[%s198 + $0x570] sm:$0xff]
      %v393 = vld [vmem:[%s198 + $0x578] sm:$0xff]
      %v394 = vld [vmem:[%s198 + $0x580] sm:$0xff]
      %v395 = vld [vmem:[%s198 + $0x588] sm:$0xff]
      %v396 = vld [vmem:[%s198 + $0x590] sm:$0xff]
      %v397 = vld [vmem:[%s198 + $0x598] sm:$0xff]
      %v398 = vld [vmem:[%s198 + $0x5a0] sm:$0xff]
      %v399 = vld [vmem:[%s198 + $0x5a8] sm:$0xff]
      %v400 = vld [vmem:[%s198 + $0x5b0] sm:$0xff]
      %v401 = vld [vmem:[%s198 + $0x5b8] sm:$0xff]
      %v402 = vld [vmem:[%s198 + $0x5c0] sm:$0xff]
      %v403 = vld [vmem:[%s198 + $0x5c8] sm:$0xff]
      %v404 = vld [vmem:[%s198 + $0x5d0] sm:$0xff]
      %v405 = vld [vmem:[%s198 + $0x5d8] sm:$0xff]
      %v406 = vld [vmem:[%s198 + $0x5e0] sm:$0xff]
      %v407 = vld [vmem:[%s198 + $0x5e8] sm:$0xff]
      %v408 = vld [vmem:[%s198 + $0x5f0] sm:$0xff]
      %v409 = vld [vmem:[%s198 + $0x5f8] sm:$0xff]
      %v410 = vld [vmem:[%s198 + $0x600] sm:$0xff]
      %v411 = vld [vmem:[%s198 + $0x608] sm:$0xff]
      %v412 = vld [vmem:[%s198 + $0x610] sm:$0xff]
      %v413 = vld [vmem:[%s198 + $0x618] sm:$0xff]
      %v414 = vld [vmem:[%s198 + $0x620] sm:$0xff]
      %v415 = vld [vmem:[%s198 + $0x628] sm:$0xff]
      %v416 = vld [vmem:[%s198 + $0x630] sm:$0xff]
      %v417 = vld [vmem:[%s198 + $0x638] sm:$0xff]
      %v418 = vld [vmem:[%s198 + $0x640] sm:$0xff]
      %v419 = vld [vmem:[%s198 + $0x648] sm:$0xff]
      %v420 = vld [vmem:[%s198 + $0x650] sm:$0xff]
      %v421 = vld [vmem:[%s198 + $0x658] sm:$0xff]
      %v422 = vld [vmem:[%s198 + $0x660] sm:$0xff]
      %v423 = vld [vmem:[%s198 + $0x668] sm:$0xff]
      %v424 = vld [vmem:[%s198 + $0x670] sm:$0xff]
      %v425 = vld [vmem:[%s198 + $0x678] sm:$0xff]
      %v426 = vld [vmem:[%s198 + $0x680] sm:$0xff]
      %v427 = vld [vmem:[%s198 + $0x688] sm:$0xff]
      %v428 = vld [vmem:[%s198 + $0x690] sm:$0xff]
      %v429 = vld [vmem:[%s198 + $0x698] sm:$0xff]
      %v430 = vld [vmem:[%s198 + $0x6a0] sm:$0xff]
      %v431 = vld [vmem:[%s198 + $0x6a8] sm:$0xff]
      %v432 = vld [vmem:[%s198 + $0x6b0] sm:$0xff]
      %v433 = vld [vmem:[%s198 + $0x6b8] sm:$0xff]
      %v434 = vld [vmem:[%s198 + $0x6c0] sm:$0xff]
      %v435 = vld [vmem:[%s198 + $0x6c8] sm:$0xff]
      %v436 = vld [vmem:[%s198 + $0x6d0] sm:$0xff]
      %v437 = vld [vmem:[%s198 + $0x6d8] sm:$0xff]
      %v438 = vld [vmem:[%s198 + $0x6e0] sm:$0xff]
      %v439 = vld [vmem:[%s198 + $0x6e8] sm:$0xff]
      %v440 = vld [vmem:[%s198 + $0x6f0] sm:$0xff]
      %v441 = vld [vmem:[%s198 + $0x6f8] sm:$0xff]
      %v442 = vld [vmem:[%s198 + $0x700] sm:$0xff]
      %v443 = vld [vmem:[%s198 + $0x708] sm:$0xff]
      %v444 = vld [vmem:[%s198 + $0x710] sm:$0xff]
      %v445 = vld [vmem:[%s198 + $0x718] sm:$0xff]
      %v446 = vld [vmem:[%s198 + $0x720] sm:$0xff]
      %v447 = vld [vmem:[%s198 + $0x728] sm:$0xff]
      %v448 = vld [vmem:[%s198 + $0x730] sm:$0xff]
      %v449 = vld [vmem:[%s198 + $0x738] sm:$0xff]
      %v450 = vld [vmem:[%s198 + $0x740] sm:$0xff]
      %v451 = vld [vmem:[%s198 + $0x748] sm:$0xff]
      %v452 = vld [vmem:[%s198 + $0x750] sm:$0xff]
      %v453 = vld [vmem:[%s198 + $0x758] sm:$0xff]
      %v454 = vld [vmem:[%s198 + $0x760] sm:$0xff]
      %v455 = vld [vmem:[%s198 + $0x768] sm:$0xff]
      %v456 = vld [vmem:[%s198 + $0x770] sm:$0xff]
      %v457 = vld [vmem:[%s198 + $0x778] sm:$0xff]
      %vm458 = vcmask 400384
      %v459 = vsel %vm458, %v218, 0.0
      %460 = vadd.xlane.f32.xlu0 %v459
      %v461 = vpop.xlane.xlu0 %460
      %v462 = vsel %vm458, %v219, 0.0
      %463 = vadd.xlane.f32.xlu0 %v462
      %v464 = vpop.xlane.xlu0 %463
      %v465 = vsel %vm458, %v220, 0.0
      %466 = vadd.xlane.f32.xlu0 %v465
      %v467 = vpop.xlane.xlu0 %466
      %v468 = vsel %vm458, %v221, 0.0
      %469 = vadd.xlane.f32.xlu0 %v468
      %v470 = vpop.xlane.xlu0 %469
      %v471 = vsel %vm458, %v222, 0.0
      %472 = vadd.xlane.f32.xlu0 %v471
      %v473 = vpop.xlane.xlu0 %472
      %v474 = vsel %vm458, %v223, 0.0
      %475 = vadd.xlane.f32.xlu0 %v474
      %v476 = vpop.xlane.xlu0 %475
      %v477 = vsel %vm458, %v224, 0.0
      %478 = vadd.xlane.f32.xlu0 %v477
      %v479 = vpop.xlane.xlu0 %478
      %v480 = vsel %vm458, %v225, 0.0
      %481 = vadd.xlane.f32.xlu0 %v480
      %v482 = vpop.xlane.xlu0 %481
      %v483 = vsel %vm458, %v226, 0.0
      %484 = vadd.xlane.f32.xlu0 %v483
      %v485 = vpop.xlane.xlu0 %484
      %v486 = vsel %vm458, %v227, 0.0
      %487 = vadd.xlane.f32.xlu0 %v486
      %v488 = vpop.xlane.xlu0 %487
      %v489 = vsel %vm458, %v228, 0.0
      %490 = vadd.xlane.f32.xlu0 %v489
      %v491 = vpop.xlane.xlu0 %490
      %v492 = vsel %vm458, %v229, 0.0
      %493 = vadd.xlane.f32.xlu0 %v492
      %v494 = vpop.xlane.xlu0 %493
      %v495 = vsel %vm458, %v230, 0.0
      %496 = vadd.xlane.f32.xlu0 %v495
      %v497 = vpop.xlane.xlu0 %496
      %v498 = vsel %vm458, %v231, 0.0
      %499 = vadd.xlane.f32.xlu0 %v498
      %v500 = vpop.xlane.xlu0 %499
      %v501 = vsel %vm458, %v232, 0.0
      %502 = vadd.xlane.f32.xlu0 %v501
      %v503 = vpop.xlane.xlu0 %502
      %v504 = vsel %vm458, %v233, 0.0
      %505 = vadd.xlane.f32.xlu0 %v504
      %v506 = vpop.xlane.xlu0 %505
      %v507 = vsel %vm458, %v234, 0.0
      %508 = vadd.xlane.f32.xlu0 %v507
      %v509 = vpop.xlane.xlu0 %508
      %v510 = vsel %vm458, %v235, 0.0
      %511 = vadd.xlane.f32.xlu0 %v510
      %v512 = vpop.xlane.xlu0 %511
      %v513 = vsel %vm458, %v236, 0.0
      %514 = vadd.xlane.f32.xlu0 %v513
      %v515 = vpop.xlane.xlu0 %514
      %v516 = vsel %vm458, %v237, 0.0
      %517 = vadd.xlane.f32.xlu0 %v516
      %v518 = vpop.xlane.xlu0 %517
      %v519 = vsel %vm458, %v238, 0.0
      %520 = vadd.xlane.f32.xlu0 %v519
      %v521 = vpop.xlane.xlu0 %520
      %v522 = vsel %vm458, %v239, 0.0
      %523 = vadd.xlane.f32.xlu0 %v522
      %v524 = vpop.xlane.xlu0 %523
      %v525 = vsel %vm458, %v240, 0.0
      %526 = vadd.xlane.f32.xlu0 %v525
      %v527 = vpop.xlane.xlu0 %526
      %v528 = vsel %vm458, %v241, 0.0
      %529 = vadd.xlane.f32.xlu0 %v528
      %v530 = vpop.xlane.xlu0 %529
      %v531 = vsel %vm458, %v242, 0.0
      %532 = vadd.xlane.f32.xlu0 %v531
      %v533 = vpop.xlane.xlu0 %532
      %v534 = vsel %vm458, %v243, 0.0
      %535 = vadd.xlane.f32.xlu0 %v534
      %v536 = vpop.xlane.xlu0 %535
      %v537 = vsel %vm458, %v244, 0.0
      %538 = vadd.xlane.f32.xlu0 %v537
      %v539 = vpop.xlane.xlu0 %538
      %v540 = vsel %vm458, %v245, 0.0
      %541 = vadd.xlane.f32.xlu0 %v540
      %v542 = vpop.xlane.xlu0 %541
      %v543 = vsel %vm458, %v246, 0.0
      %544 = vadd.xlane.f32.xlu0 %v543
      %v545 = vpop.xlane.xlu0 %544
      %v546 = vsel %vm458, %v247, 0.0
      %547 = vadd.xlane.f32.xlu0 %v546
      %v548 = vpop.xlane.xlu0 %547
      %v549 = vsel %vm458, %v248, 0.0
      %550 = vadd.xlane.f32.xlu0 %v549
      %v551 = vpop.xlane.xlu0 %550
      %v552 = vsel %vm458, %v249, 0.0
      %553 = vadd.xlane.f32.xlu0 %v552
      %v554 = vpop.xlane.xlu0 %553
      %v555 = vsel %vm458, %v250, 0.0
      %556 = vadd.xlane.f32.xlu0 %v555
      %v557 = vpop.xlane.xlu0 %556
      %v558 = vsel %vm458, %v251, 0.0
      %559 = vadd.xlane.f32.xlu0 %v558
      %v560 = vpop.xlane.xlu0 %559
      %v561 = vsel %vm458, %v252, 0.0
      %562 = vadd.xlane.f32.xlu0 %v561
      %v563 = vpop.xlane.xlu0 %562
      %v564 = vsel %vm458, %v253, 0.0
      %565 = vadd.xlane.f32.xlu0 %v564
      %v566 = vpop.xlane.xlu0 %565
      %v567 = vsel %vm458, %v254, 0.0
      %568 = vadd.xlane.f32.xlu0 %v567
      %v569 = vpop.xlane.xlu0 %568
      %v570 = vsel %vm458, %v255, 0.0
      %571 = vadd.xlane.f32.xlu0 %v570
      %v572 = vpop.xlane.xlu0 %571
      %v573 = vsel %vm458, %v256, 0.0
      %574 = vadd.xlane.f32.xlu0 %v573
      %v575 = vpop.xlane.xlu0 %574
      %v576 = vsel %vm458, %v257, 0.0
      %577 = vadd.xlane.f32.xlu0 %v576
      %v578 = vpop.xlane.xlu0 %577
      %v579 = vsel %vm458, %v258, 0.0
      %580 = vadd.xlane.f32.xlu0 %v579
      %v581 = vpop.xlane.xlu0 %580
      %v582 = vsel %vm458, %v259, 0.0
      %583 = vadd.xlane.f32.xlu0 %v582
      %v584 = vpop.xlane.xlu0 %583
      %v585 = vsel %vm458, %v260, 0.0
      %586 = vadd.xlane.f32.xlu0 %v585
      %v587 = vpop.xlane.xlu0 %586
      %v588 = vsel %vm458, %v261, 0.0
      %589 = vadd.xlane.f32.xlu0 %v588
      %v590 = vpop.xlane.xlu0 %589
      %v591 = vsel %vm458, %v262, 0.0
      %592 = vadd.xlane.f32.xlu0 %v591
      %v593 = vpop.xlane.xlu0 %592
      %v594 = vsel %vm458, %v263, 0.0
      %595 = vadd.xlane.f32.xlu0 %v594
      %v596 = vpop.xlane.xlu0 %595
      %v597 = vsel %vm458, %v264, 0.0
      %598 = vadd.xlane.f32.xlu0 %v597
      %v599 = vpop.xlane.xlu0 %598
      %v600 = vsel %vm458, %v265, 0.0
      %601 = vadd.xlane.f32.xlu0 %v600
      %v602 = vpop.xlane.xlu0 %601
      %v603 = vsel %vm458, %v266, 0.0
      %604 = vadd.xlane.f32.xlu0 %v603
      %v605 = vpop.xlane.xlu0 %604
      %v606 = vsel %vm458, %v267, 0.0
      %607 = vadd.xlane.f32.xlu0 %v606
      %v608 = vpop.xlane.xlu0 %607
      %v609 = vsel %vm458, %v268, 0.0
      %610 = vadd.xlane.f32.xlu0 %v609
      %v611 = vpop.xlane.xlu0 %610
      %v612 = vsel %vm458, %v269, 0.0
      %613 = vadd.xlane.f32.xlu0 %v612
      %v614 = vpop.xlane.xlu0 %613
      %v615 = vsel %vm458, %v270, 0.0
      %616 = vadd.xlane.f32.xlu0 %v615
      %v617 = vpop.xlane.xlu0 %616
      %v618 = vsel %vm458, %v271, 0.0
      %619 = vadd.xlane.f32.xlu0 %v618
      %v620 = vpop.xlane.xlu0 %619
      %v621 = vsel %vm458, %v272, 0.0
      %622 = vadd.xlane.f32.xlu0 %v621
      %v623 = vpop.xlane.xlu0 %622
      %v624 = vsel %vm458, %v273, 0.0
      %625 = vadd.xlane.f32.xlu0 %v624
      %v626 = vpop.xlane.xlu0 %625
      %v627 = vsel %vm458, %v274, 0.0
      %628 = vadd.xlane.f32.xlu0 %v627
      %v629 = vpop.xlane.xlu0 %628
      %v630 = vsel %vm458, %v275, 0.0
      %631 = vadd.xlane.f32.xlu0 %v630
      %v632 = vpop.xlane.xlu0 %631
      %v633 = vsel %vm458, %v276, 0.0
      %634 = vadd.xlane.f32.xlu0 %v633
      %v635 = vpop.xlane.xlu0 %634
      %v636 = vsel %vm458, %v277, 0.0
      %637 = vadd.xlane.f32.xlu0 %v636
      %v638 = vpop.xlane.xlu0 %637
      %v639 = vsel %vm458, %v278, 0.0
      %640 = vadd.xlane.f32.xlu0 %v639
      %v641 = vpop.xlane.xlu0 %640
      %v642 = vsel %vm458, %v279, 0.0
      %643 = vadd.xlane.f32.xlu0 %v642
      %v644 = vpop.xlane.xlu0 %643
      %v645 = vsel %vm458, %v280, 0.0
      %646 = vadd.xlane.f32.xlu0 %v645
      %v647 = vpop.xlane.xlu0 %646
      %v648 = vsel %vm458, %v281, 0.0
      %649 = vadd.xlane.f32.xlu0 %v648
      %v650 = vpop.xlane.xlu0 %649
      %v651 = vsel %vm458, %v282, 0.0
      %652 = vadd.xlane.f32.xlu0 %v651
      %v653 = vpop.xlane.xlu0 %652
      %v654 = vsel %vm458, %v283, 0.0
      %655 = vadd.xlane.f32.xlu0 %v654
      %v656 = vpop.xlane.xlu0 %655
      %v657 = vsel %vm458, %v284, 0.0
      %658 = vadd.xlane.f32.xlu0 %v657
      %v659 = vpop.xlane.xlu0 %658
      %v660 = vsel %vm458, %v285, 0.0
      %661 = vadd.xlane.f32.xlu0 %v660
      %v662 = vpop.xlane.xlu0 %661
      %v663 = vsel %vm458, %v286, 0.0
      %664 = vadd.xlane.f32.xlu0 %v663
      %v665 = vpop.xlane.xlu0 %664
      %v666 = vsel %vm458, %v287, 0.0
      %667 = vadd.xlane.f32.xlu0 %v666
      %v668 = vpop.xlane.xlu0 %667
      %v669 = vsel %vm458, %v288, 0.0
      %670 = vadd.xlane.f32.xlu0 %v669
      %v671 = vpop.xlane.xlu0 %670
      %v672 = vsel %vm458, %v289, 0.0
      %673 = vadd.xlane.f32.xlu0 %v672
      %v674 = vpop.xlane.xlu0 %673
      %v675 = vsel %vm458, %v290, 0.0
      %676 = vadd.xlane.f32.xlu0 %v675
      %v677 = vpop.xlane.xlu0 %676
      %v678 = vsel %vm458, %v291, 0.0
      %679 = vadd.xlane.f32.xlu0 %v678
      %v680 = vpop.xlane.xlu0 %679
      %v681 = vsel %vm458, %v292, 0.0
      %682 = vadd.xlane.f32.xlu0 %v681
      %v683 = vpop.xlane.xlu0 %682
      %v684 = vsel %vm458, %v293, 0.0
      %685 = vadd.xlane.f32.xlu0 %v684
      %v686 = vpop.xlane.xlu0 %685
      %v687 = vsel %vm458, %v294, 0.0
      %688 = vadd.xlane.f32.xlu0 %v687
      %v689 = vpop.xlane.xlu0 %688
      %v690 = vsel %vm458, %v295, 0.0
      %691 = vadd.xlane.f32.xlu0 %v690
      %v692 = vpop.xlane.xlu0 %691
      %v693 = vsel %vm458, %v296, 0.0
      %694 = vadd.xlane.f32.xlu0 %v693
      %v695 = vpop.xlane.xlu0 %694
      %v696 = vsel %vm458, %v297, 0.0
      %697 = vadd.xlane.f32.xlu0 %v696
      %v698 = vpop.xlane.xlu0 %697
      %v699 = vsel %vm458, %v298, 0.0
      %700 = vadd.xlane.f32.xlu0 %v699
      %v701 = vpop.xlane.xlu0 %700
      %v702 = vsel %vm458, %v299, 0.0
      %703 = vadd.xlane.f32.xlu0 %v702
      %v704 = vpop.xlane.xlu0 %703
      %v705 = vsel %vm458, %v300, 0.0
      %706 = vadd.xlane.f32.xlu0 %v705
      %v707 = vpop.xlane.xlu0 %706
      %v708 = vsel %vm458, %v301, 0.0
      %709 = vadd.xlane.f32.xlu0 %v708
      %v710 = vpop.xlane.xlu0 %709
      %v711 = vsel %vm458, %v302, 0.0
      %712 = vadd.xlane.f32.xlu0 %v711
      %v713 = vpop.xlane.xlu0 %712
      %v714 = vsel %vm458, %v303, 0.0
      %715 = vadd.xlane.f32.xlu0 %v714
      %v716 = vpop.xlane.xlu0 %715
      %v717 = vsel %vm458, %v304, 0.0
      %718 = vadd.xlane.f32.xlu0 %v717
      %v719 = vpop.xlane.xlu0 %718
      %v720 = vsel %vm458, %v305, 0.0
      %721 = vadd.xlane.f32.xlu0 %v720
      %v722 = vpop.xlane.xlu0 %721
      %v723 = vsel %vm458, %v306, 0.0
      %724 = vadd.xlane.f32.xlu0 %v723
      %v725 = vpop.xlane.xlu0 %724
      %v726 = vsel %vm458, %v307, 0.0
      %727 = vadd.xlane.f32.xlu0 %v726
      %v728 = vpop.xlane.xlu0 %727
      %v729 = vsel %vm458, %v308, 0.0
      %730 = vadd.xlane.f32.xlu0 %v729
      %v731 = vpop.xlane.xlu0 %730
      %v732 = vsel %vm458, %v309, 0.0
      %733 = vadd.xlane.f32.xlu0 %v732
      %v734 = vpop.xlane.xlu0 %733
      %v735 = vsel %vm458, %v310, 0.0
      %736 = vadd.xlane.f32.xlu0 %v735
      %v737 = vpop.xlane.xlu0 %736
      %v738 = vsel %vm458, %v311, 0.0
      %739 = vadd.xlane.f32.xlu0 %v738
      %v740 = vpop.xlane.xlu0 %739
      %v741 = vsel %vm458, %v312, 0.0
      %742 = vadd.xlane.f32.xlu0 %v741
      %v743 = vpop.xlane.xlu0 %742
      %v744 = vsel %vm458, %v313, 0.0
      %745 = vadd.xlane.f32.xlu0 %v744
      %v746 = vpop.xlane.xlu0 %745
      %v747 = vsel %vm458, %v314, 0.0
      %748 = vadd.xlane.f32.xlu0 %v747
      %v749 = vpop.xlane.xlu0 %748
      %v750 = vsel %vm458, %v315, 0.0
      %751 = vadd.xlane.f32.xlu0 %v750
      %v752 = vpop.xlane.xlu0 %751
      %v753 = vsel %vm458, %v316, 0.0
      %754 = vadd.xlane.f32.xlu0 %v753
      %v755 = vpop.xlane.xlu0 %754
      %v756 = vsel %vm458, %v317, 0.0
      %757 = vadd.xlane.f32.xlu0 %v756
      %v758 = vpop.xlane.xlu0 %757
      %v759 = vsel %vm458, %v318, 0.0
      %760 = vadd.xlane.f32.xlu0 %v759
      %v761 = vpop.xlane.xlu0 %760
      %v762 = vsel %vm458, %v319, 0.0
      %763 = vadd.xlane.f32.xlu0 %v762
      %v764 = vpop.xlane.xlu0 %763
      %v765 = vsel %vm458, %v320, 0.0
      %766 = vadd.xlane.f32.xlu0 %v765
      %v767 = vpop.xlane.xlu0 %766
      %v768 = vsel %vm458, %v321, 0.0
      %769 = vadd.xlane.f32.xlu0 %v768
      %v770 = vpop.xlane.xlu0 %769
      %v771 = vsel %vm458, %v322, 0.0
      %772 = vadd.xlane.f32.xlu0 %v771
      %v773 = vpop.xlane.xlu0 %772
      %v774 = vsel %vm458, %v323, 0.0
      %775 = vadd.xlane.f32.xlu0 %v774
      %v776 = vpop.xlane.xlu0 %775
      %v777 = vsel %vm458, %v324, 0.0
      %778 = vadd.xlane.f32.xlu0 %v777
      %v779 = vpop.xlane.xlu0 %778
      %v780 = vsel %vm458, %v325, 0.0
      %781 = vadd.xlane.f32.xlu0 %v780
      %v782 = vpop.xlane.xlu0 %781
      %v783 = vsel %vm458, %v326, 0.0
      %784 = vadd.xlane.f32.xlu0 %v783
      %v785 = vpop.xlane.xlu0 %784
      %v786 = vsel %vm458, %v327, 0.0
      %787 = vadd.xlane.f32.xlu0 %v786
      %v788 = vpop.xlane.xlu0 %787
      %v789 = vsel %vm458, %v328, 0.0
      %790 = vadd.xlane.f32.xlu0 %v789
      %v791 = vpop.xlane.xlu0 %790
      %v792 = vsel %vm458, %v329, 0.0
      %793 = vadd.xlane.f32.xlu0 %v792
      %v794 = vpop.xlane.xlu0 %793
      %v795 = vsel %vm458, %v330, 0.0
      %796 = vadd.xlane.f32.xlu0 %v795
      %v797 = vpop.xlane.xlu0 %796
      %v798 = vsel %vm458, %v331, 0.0
      %799 = vadd.xlane.f32.xlu0 %v798
      %v800 = vpop.xlane.xlu0 %799
      %v801 = vsel %vm458, %v332, 0.0
      %802 = vadd.xlane.f32.xlu0 %v801
      %v803 = vpop.xlane.xlu0 %802
      %v804 = vsel %vm458, %v333, 0.0
      %805 = vadd.xlane.f32.xlu0 %v804
      %v806 = vpop.xlane.xlu0 %805
      %v807 = vsel %vm458, %v334, 0.0
      %808 = vadd.xlane.f32.xlu0 %v807
      %v809 = vpop.xlane.xlu0 %808
      %v810 = vsel %vm458, %v335, 0.0
      %811 = vadd.xlane.f32.xlu0 %v810
      %v812 = vpop.xlane.xlu0 %811
      %v813 = vsel %vm458, %v336, 0.0
      %814 = vadd.xlane.f32.xlu0 %v813
      %v815 = vpop.xlane.xlu0 %814
      %v816 = vsel %vm458, %v337, 0.0
      %817 = vadd.xlane.f32.xlu0 %v816
      %v818 = vpop.xlane.xlu0 %817
      %v819 = vsel %vm458, %v338, 0.0
      %820 = vadd.xlane.f32.xlu0 %v819
      %v821 = vpop.xlane.xlu0 %820
      %v822 = vsel %vm458, %v339, 0.0
      %823 = vadd.xlane.f32.xlu0 %v822
      %v824 = vpop.xlane.xlu0 %823
      %v825 = vsel %vm458, %v340, 0.0
      %826 = vadd.xlane.f32.xlu0 %v825
      %v827 = vpop.xlane.xlu0 %826
      %v828 = vsel %vm458, %v341, 0.0
      %829 = vadd.xlane.f32.xlu0 %v828
      %v830 = vpop.xlane.xlu0 %829
      %v831 = vsel %vm458, %v342, 0.0
      %832 = vadd.xlane.f32.xlu0 %v831
      %v833 = vpop.xlane.xlu0 %832
      %v834 = vsel %vm458, %v343, 0.0
      %835 = vadd.xlane.f32.xlu0 %v834
      %v836 = vpop.xlane.xlu0 %835
      %v837 = vsel %vm458, %v344, 0.0
      %838 = vadd.xlane.f32.xlu0 %v837
      %v839 = vpop.xlane.xlu0 %838
      %v840 = vsel %vm458, %v345, 0.0
      %841 = vadd.xlane.f32.xlu0 %v840
      %v842 = vpop.xlane.xlu0 %841
      %v843 = vsel %vm458, %v346, 0.0
      %844 = vadd.xlane.f32.xlu0 %v843
      %v845 = vpop.xlane.xlu0 %844
      %v846 = vsel %vm458, %v347, 0.0
      %847 = vadd.xlane.f32.xlu0 %v846
      %v848 = vpop.xlane.xlu0 %847
      %v849 = vsel %vm458, %v348, 0.0
      %850 = vadd.xlane.f32.xlu0 %v849
      %v851 = vpop.xlane.xlu0 %850
      %v852 = vsel %vm458, %v349, 0.0
      %853 = vadd.xlane.f32.xlu0 %v852
      %v854 = vpop.xlane.xlu0 %853
      %v855 = vsel %vm458, %v350, 0.0
      %856 = vadd.xlane.f32.xlu0 %v855
      %v857 = vpop.xlane.xlu0 %856
      %v858 = vsel %vm458, %v351, 0.0
      %859 = vadd.xlane.f32.xlu0 %v858
      %v860 = vpop.xlane.xlu0 %859
      %v861 = vsel %vm458, %v352, 0.0
      %862 = vadd.xlane.f32.xlu0 %v861
      %v863 = vpop.xlane.xlu0 %862
      %v864 = vsel %vm458, %v353, 0.0
      %865 = vadd.xlane.f32.xlu0 %v864
      %v866 = vpop.xlane.xlu0 %865
      %v867 = vsel %vm458, %v354, 0.0
      %868 = vadd.xlane.f32.xlu0 %v867
      %v869 = vpop.xlane.xlu0 %868
      %v870 = vsel %vm458, %v355, 0.0
      %871 = vadd.xlane.f32.xlu0 %v870
      %v872 = vpop.xlane.xlu0 %871
      %v873 = vsel %vm458, %v356, 0.0
      %874 = vadd.xlane.f32.xlu0 %v873
      %v875 = vpop.xlane.xlu0 %874
      %v876 = vsel %vm458, %v357, 0.0
      %877 = vadd.xlane.f32.xlu0 %v876
      %v878 = vpop.xlane.xlu0 %877
      %v879 = vsel %vm458, %v358, 0.0
      %880 = vadd.xlane.f32.xlu0 %v879
      %v881 = vpop.xlane.xlu0 %880
      %v882 = vsel %vm458, %v359, 0.0
      %883 = vadd.xlane.f32.xlu0 %v882
      %v884 = vpop.xlane.xlu0 %883
      %v885 = vsel %vm458, %v360, 0.0
      %886 = vadd.xlane.f32.xlu0 %v885
      %v887 = vpop.xlane.xlu0 %886
      %v888 = vsel %vm458, %v361, 0.0
      %889 = vadd.xlane.f32.xlu0 %v888
      %v890 = vpop.xlane.xlu0 %889
      %v891 = vsel %vm458, %v362, 0.0
      %892 = vadd.xlane.f32.xlu0 %v891
      %v893 = vpop.xlane.xlu0 %892
      %v894 = vsel %vm458, %v363, 0.0
      %895 = vadd.xlane.f32.xlu0 %v894
      %v896 = vpop.xlane.xlu0 %895
      %v897 = vsel %vm458, %v364, 0.0
      %898 = vadd.xlane.f32.xlu0 %v897
      %v899 = vpop.xlane.xlu0 %898
      %v900 = vsel %vm458, %v365, 0.0
      %901 = vadd.xlane.f32.xlu0 %v900
      %v902 = vpop.xlane.xlu0 %901
      %v903 = vsel %vm458, %v366, 0.0
      %904 = vadd.xlane.f32.xlu0 %v903
      %v905 = vpop.xlane.xlu0 %904
      %v906 = vsel %vm458, %v367, 0.0
      %907 = vadd.xlane.f32.xlu0 %v906
      %v908 = vpop.xlane.xlu0 %907
      %v909 = vsel %vm458, %v368, 0.0
      %910 = vadd.xlane.f32.xlu0 %v909
      %v911 = vpop.xlane.xlu0 %910
      %v912 = vsel %vm458, %v369, 0.0
      %913 = vadd.xlane.f32.xlu0 %v912
      %v914 = vpop.xlane.xlu0 %913
      %v915 = vsel %vm458, %v370, 0.0
      %916 = vadd.xlane.f32.xlu0 %v915
      %v917 = vpop.xlane.xlu0 %916
      %v918 = vsel %vm458, %v371, 0.0
      %919 = vadd.xlane.f32.xlu0 %v918
      %v920 = vpop.xlane.xlu0 %919
      %v921 = vsel %vm458, %v372, 0.0
      %922 = vadd.xlane.f32.xlu0 %v921
      %v923 = vpop.xlane.xlu0 %922
      %v924 = vsel %vm458, %v373, 0.0
      %925 = vadd.xlane.f32.xlu0 %v924
      %v926 = vpop.xlane.xlu0 %925
      %v927 = vsel %vm458, %v374, 0.0
      %928 = vadd.xlane.f32.xlu0 %v927
      %v929 = vpop.xlane.xlu0 %928
      %v930 = vsel %vm458, %v375, 0.0
      %931 = vadd.xlane.f32.xlu0 %v930
      %v932 = vpop.xlane.xlu0 %931
      %v933 = vsel %vm458, %v376, 0.0
      %934 = vadd.xlane.f32.xlu0 %v933
      %v935 = vpop.xlane.xlu0 %934
      %v936 = vsel %vm458, %v377, 0.0
      %937 = vadd.xlane.f32.xlu0 %v936
      %v938 = vpop.xlane.xlu0 %937
      %v939 = vsel %vm458, %v378, 0.0
      %940 = vadd.xlane.f32.xlu0 %v939
      %v941 = vpop.xlane.xlu0 %940
      %v942 = vsel %vm458, %v379, 0.0
      %943 = vadd.xlane.f32.xlu0 %v942
      %v944 = vpop.xlane.xlu0 %943
      %v945 = vsel %vm458, %v380, 0.0
      %946 = vadd.xlane.f32.xlu0 %v945
      %v947 = vpop.xlane.xlu0 %946
      %v948 = vsel %vm458, %v381, 0.0
      %949 = vadd.xlane.f32.xlu0 %v948
      %v950 = vpop.xlane.xlu0 %949
      %v951 = vsel %vm458, %v382, 0.0
      %952 = vadd.xlane.f32.xlu0 %v951
      %v953 = vpop.xlane.xlu0 %952
      %v954 = vsel %vm458, %v383, 0.0
      %955 = vadd.xlane.f32.xlu0 %v954
      %v956 = vpop.xlane.xlu0 %955
      %v957 = vsel %vm458, %v384, 0.0
      %958 = vadd.xlane.f32.xlu0 %v957
      %v959 = vpop.xlane.xlu0 %958
      %v960 = vsel %vm458, %v385, 0.0
      %961 = vadd.xlane.f32.xlu0 %v960
      %v962 = vpop.xlane.xlu0 %961
      %v963 = vsel %vm458, %v386, 0.0
      %964 = vadd.xlane.f32.xlu0 %v963
      %v965 = vpop.xlane.xlu0 %964
      %v966 = vsel %vm458, %v387, 0.0
      %967 = vadd.xlane.f32.xlu0 %v966
      %v968 = vpop.xlane.xlu0 %967
      %v969 = vsel %vm458, %v388, 0.0
      %970 = vadd.xlane.f32.xlu0 %v969
      %v971 = vpop.xlane.xlu0 %970
      %v972 = vsel %vm458, %v389, 0.0
      %973 = vadd.xlane.f32.xlu0 %v972
      %v974 = vpop.xlane.xlu0 %973
      %v975 = vsel %vm458, %v390, 0.0
      %976 = vadd.xlane.f32.xlu0 %v975
      %v977 = vpop.xlane.xlu0 %976
      %v978 = vsel %vm458, %v391, 0.0
      %979 = vadd.xlane.f32.xlu0 %v978
      %v980 = vpop.xlane.xlu0 %979
      %v981 = vsel %vm458, %v392, 0.0
      %982 = vadd.xlane.f32.xlu0 %v981
      %v983 = vpop.xlane.xlu0 %982
      %v984 = vsel %vm458, %v393, 0.0
      %985 = vadd.xlane.f32.xlu0 %v984
      %v986 = vpop.xlane.xlu0 %985
      %v987 = vsel %vm458, %v394, 0.0
      %988 = vadd.xlane.f32.xlu0 %v987
      %v989 = vpop.xlane.xlu0 %988
      %v990 = vsel %vm458, %v395, 0.0
      %991 = vadd.xlane.f32.xlu0 %v990
      %v992 = vpop.xlane.xlu0 %991
      %v993 = vsel %vm458, %v396, 0.0
      %994 = vadd.xlane.f32.xlu0 %v993
      %v995 = vpop.xlane.xlu0 %994
      %v996 = vsel %vm458, %v397, 0.0
      %997 = vadd.xlane.f32.xlu0 %v996
      %v998 = vpop.xlane.xlu0 %997
      %v999 = vsel %vm458, %v398, 0.0
      %1000 = vadd.xlane.f32.xlu0 %v999
      %v1001 = vpop.xlane.xlu0 %1000
      %v1002 = vsel %vm458, %v399, 0.0
      %1003 = vadd.xlane.f32.xlu0 %v1002
      %v1004 = vpop.xlane.xlu0 %1003
      %v1005 = vsel %vm458, %v400, 0.0
      %1006 = vadd.xlane.f32.xlu0 %v1005
      %v1007 = vpop.xlane.xlu0 %1006
      %v1008 = vsel %vm458, %v401, 0.0
      %1009 = vadd.xlane.f32.xlu0 %v1008
      %v1010 = vpop.xlane.xlu0 %1009
      %v1011 = vsel %vm458, %v402, 0.0
      %1012 = vadd.xlane.f32.xlu0 %v1011
      %v1013 = vpop.xlane.xlu0 %1012
      %v1014 = vsel %vm458, %v403, 0.0
      %1015 = vadd.xlane.f32.xlu0 %v1014
      %v1016 = vpop.xlane.xlu0 %1015
      %v1017 = vsel %vm458, %v404, 0.0
      %1018 = vadd.xlane.f32.xlu0 %v1017
      %v1019 = vpop.xlane.xlu0 %1018
      %v1020 = vsel %vm458, %v405, 0.0
      %1021 = vadd.xlane.f32.xlu0 %v1020
      %v1022 = vpop.xlane.xlu0 %1021
      %v1023 = vsel %vm458, %v406, 0.0
      %1024 = vadd.xlane.f32.xlu0 %v1023
      %v1025 = vpop.xlane.xlu0 %1024
      %v1026 = vsel %vm458, %v407, 0.0
      %1027 = vadd.xlane.f32.xlu0 %v1026
      %v1028 = vpop.xlane.xlu0 %1027
      %v1029 = vsel %vm458, %v408, 0.0
      %1030 = vadd.xlane.f32.xlu0 %v1029
      %v1031 = vpop.xlane.xlu0 %1030
      %v1032 = vsel %vm458, %v409, 0.0
      %1033 = vadd.xlane.f32.xlu0 %v1032
      %v1034 = vpop.xlane.xlu0 %1033
      %v1035 = vsel %vm458, %v410, 0.0
      %1036 = vadd.xlane.f32.xlu0 %v1035
      %v1037 = vpop.xlane.xlu0 %1036
      %v1038 = vsel %vm458, %v411, 0.0
      %1039 = vadd.xlane.f32.xlu0 %v1038
      %v1040 = vpop.xlane.xlu0 %1039
      %v1041 = vsel %vm458, %v412, 0.0
      %1042 = vadd.xlane.f32.xlu0 %v1041
      %v1043 = vpop.xlane.xlu0 %1042
      %v1044 = vsel %vm458, %v413, 0.0
      %1045 = vadd.xlane.f32.xlu0 %v1044
      %v1046 = vpop.xlane.xlu0 %1045
      %v1047 = vsel %vm458, %v414, 0.0
      %1048 = vadd.xlane.f32.xlu0 %v1047
      %v1049 = vpop.xlane.xlu0 %1048
      %v1050 = vsel %vm458, %v415, 0.0
      %1051 = vadd.xlane.f32.xlu0 %v1050
      %v1052 = vpop.xlane.xlu0 %1051
      %v1053 = vsel %vm458, %v416, 0.0
      %1054 = vadd.xlane.f32.xlu0 %v1053
      %v1055 = vpop.xlane.xlu0 %1054
      %v1056 = vsel %vm458, %v417, 0.0
      %1057 = vadd.xlane.f32.xlu0 %v1056
      %v1058 = vpop.xlane.xlu0 %1057
      %v1059 = vsel %vm458, %v418, 0.0
      %1060 = vadd.xlane.f32.xlu0 %v1059
      %v1061 = vpop.xlane.xlu0 %1060
      %v1062 = vsel %vm458, %v419, 0.0
      %1063 = vadd.xlane.f32.xlu0 %v1062
      %v1064 = vpop.xlane.xlu0 %1063
      %v1065 = vsel %vm458, %v420, 0.0
      %1066 = vadd.xlane.f32.xlu0 %v1065
      %v1067 = vpop.xlane.xlu0 %1066
      %v1068 = vsel %vm458, %v421, 0.0
      %1069 = vadd.xlane.f32.xlu0 %v1068
      %v1070 = vpop.xlane.xlu0 %1069
      %v1071 = vsel %vm458, %v422, 0.0
      %1072 = vadd.xlane.f32.xlu0 %v1071
      %v1073 = vpop.xlane.xlu0 %1072
      %v1074 = vsel %vm458, %v423, 0.0
      %1075 = vadd.xlane.f32.xlu0 %v1074
      %v1076 = vpop.xlane.xlu0 %1075
      %v1077 = vsel %vm458, %v424, 0.0
      %1078 = vadd.xlane.f32.xlu0 %v1077
      %v1079 = vpop.xlane.xlu0 %1078
      %v1080 = vsel %vm458, %v425, 0.0
      %1081 = vadd.xlane.f32.xlu0 %v1080
      %v1082 = vpop.xlane.xlu0 %1081
      %v1083 = vsel %vm458, %v426, 0.0
      %1084 = vadd.xlane.f32.xlu0 %v1083
      %v1085 = vpop.xlane.xlu0 %1084
      %v1086 = vsel %vm458, %v427, 0.0
      %1087 = vadd.xlane.f32.xlu0 %v1086
      %v1088 = vpop.xlane.xlu0 %1087
      %v1089 = vsel %vm458, %v428, 0.0
      %1090 = vadd.xlane.f32.xlu0 %v1089
      %v1091 = vpop.xlane.xlu0 %1090
      %v1092 = vsel %vm458, %v429, 0.0
      %1093 = vadd.xlane.f32.xlu0 %v1092
      %v1094 = vpop.xlane.xlu0 %1093
      %v1095 = vsel %vm458, %v430, 0.0
      %1096 = vadd.xlane.f32.xlu0 %v1095
      %v1097 = vpop.xlane.xlu0 %1096
      %v1098 = vsel %vm458, %v431, 0.0
      %1099 = vadd.xlane.f32.xlu0 %v1098
      %v1100 = vpop.xlane.xlu0 %1099
      %v1101 = vsel %vm458, %v432, 0.0
      %1102 = vadd.xlane.f32.xlu0 %v1101
      %v1103 = vpop.xlane.xlu0 %1102
      %v1104 = vsel %vm458, %v433, 0.0
      %1105 = vadd.xlane.f32.xlu0 %v1104
      %v1106 = vpop.xlane.xlu0 %1105
      %v1107 = vsel %vm458, %v434, 0.0
      %1108 = vadd.xlane.f32.xlu0 %v1107
      %v1109 = vpop.xlane.xlu0 %1108
      %v1110 = vsel %vm458, %v435, 0.0
      %1111 = vadd.xlane.f32.xlu0 %v1110
      %v1112 = vpop.xlane.xlu0 %1111
      %v1113 = vsel %vm458, %v436, 0.0
      %1114 = vadd.xlane.f32.xlu0 %v1113
      %v1115 = vpop.xlane.xlu0 %1114
      %v1116 = vsel %vm458, %v437, 0.0
      %1117 = vadd.xlane.f32.xlu0 %v1116
      %v1118 = vpop.xlane.xlu0 %1117
      %v1119 = vsel %vm458, %v438, 0.0
      %1120 = vadd.xlane.f32.xlu0 %v1119
      %v1121 = vpop.xlane.xlu0 %1120
      %v1122 = vsel %vm458, %v439, 0.0
      %1123 = vadd.xlane.f32.xlu0 %v1122
      %v1124 = vpop.xlane.xlu0 %1123
      %v1125 = vsel %vm458, %v440, 0.0
      %1126 = vadd.xlane.f32.xlu0 %v1125
      %v1127 = vpop.xlane.xlu0 %1126
      %v1128 = vsel %vm458, %v441, 0.0
      %1129 = vadd.xlane.f32.xlu0 %v1128
      %v1130 = vpop.xlane.xlu0 %1129
      %v1131 = vsel %vm458, %v442, 0.0
      %1132 = vadd.xlane.f32.xlu0 %v1131
      %v1133 = vpop.xlane.xlu0 %1132
      %v1134 = vsel %vm458, %v443, 0.0
      %1135 = vadd.xlane.f32.xlu0 %v1134
      %v1136 = vpop.xlane.xlu0 %1135
      %v1137 = vsel %vm458, %v444, 0.0
      %1138 = vadd.xlane.f32.xlu0 %v1137
      %v1139 = vpop.xlane.xlu0 %1138
      %v1140 = vsel %vm458, %v445, 0.0
      %1141 = vadd.xlane.f32.xlu0 %v1140
      %v1142 = vpop.xlane.xlu0 %1141
      %v1143 = vsel %vm458, %v446, 0.0
      %1144 = vadd.xlane.f32.xlu0 %v1143
      %v1145 = vpop.xlane.xlu0 %1144
      %v1146 = vsel %vm458, %v447, 0.0
      %1147 = vadd.xlane.f32.xlu0 %v1146
      %v1148 = vpop.xlane.xlu0 %1147
      %v1149 = vsel %vm458, %v448, 0.0
      %1150 = vadd.xlane.f32.xlu0 %v1149
      %v1151 = vpop.xlane.xlu0 %1150
      %v1152 = vsel %vm458, %v449, 0.0
      %1153 = vadd.xlane.f32.xlu0 %v1152
      %v1154 = vpop.xlane.xlu0 %1153
      %v1155 = vsel %vm458, %v450, 0.0
      %1156 = vadd.xlane.f32.xlu0 %v1155
      %v1157 = vpop.xlane.xlu0 %1156
      %v1158 = vsel %vm458, %v451, 0.0
      %1159 = vadd.xlane.f32.xlu0 %v1158
      %v1160 = vpop.xlane.xlu0 %1159
      %v1161 = vsel %vm458, %v452, 0.0
      %1162 = vadd.xlane.f32.xlu0 %v1161
      %v1163 = vpop.xlane.xlu0 %1162
      %v1164 = vsel %vm458, %v453, 0.0
      %1165 = vadd.xlane.f32.xlu0 %v1164
      %v1166 = vpop.xlane.xlu0 %1165
      %v1167 = vsel %vm458, %v454, 0.0
      %1168 = vadd.xlane.f32.xlu0 %v1167
      %v1169 = vpop.xlane.xlu0 %1168
      %v1170 = vsel %vm458, %v455, 0.0
      %1171 = vadd.xlane.f32.xlu0 %v1170
      %v1172 = vpop.xlane.xlu0 %1171
      %v1173 = vsel %vm458, %v456, 0.0
      %1174 = vadd.xlane.f32.xlu0 %v1173
      %v1175 = vpop.xlane.xlu0 %1174
      %v1176 = vsel %vm458, %v457, 0.0
      %1177 = vadd.xlane.f32.xlu0 %v1176
      %v1178 = vpop.xlane.xlu0 %1177
      %v1179 = vmul.f32 %v218, %v218
      %v1180 = vmul.f32 %v219, %v219
      %v1181 = vmul.f32 %v220, %v220
      %v1182 = vmul.f32 %v221, %v221
      %v1183 = vmul.f32 %v222, %v222
      %v1184 = vmul.f32 %v223, %v223
      %v1185 = vmul.f32 %v224, %v224
      %v1186 = vmul.f32 %v225, %v225
      %v1187 = vmul.f32 %v226, %v226
      %v1188 = vmul.f32 %v227, %v227
      %v1189 = vmul.f32 %v228, %v228
      %v1190 = vmul.f32 %v229, %v229
      %v1191 = vmul.f32 %v230, %v230
      %v1192 = vmul.f32 %v231, %v231
      %v1193 = vmul.f32 %v232, %v232
      %v1194 = vmul.f32 %v233, %v233
      %v1195 = vmul.f32 %v234, %v234
      %v1196 = vmul.f32 %v235, %v235
      %v1197 = vmul.f32 %v236, %v236
      %v1198 = vmul.f32 %v237, %v237
      %v1199 = vmul.f32 %v238, %v238
      %v1200 = vmul.f32 %v239, %v239
      %v1201 = vmul.f32 %v240, %v240
      %v1202 = vmul.f32 %v241, %v241
      %v1203 = vmul.f32 %v242, %v242
      %v1204 = vmul.f32 %v243, %v243
      %v1205 = vmul.f32 %v244, %v244
      %v1206 = vmul.f32 %v245, %v245
      %v1207 = vmul.f32 %v246, %v246
      %v1208 = vmul.f32 %v247, %v247
      %v1209 = vmul.f32 %v248, %v248
      %v1210 = vmul.f32 %v249, %v249
      %v1211 = vmul.f32 %v250, %v250
      %v1212 = vmul.f32 %v251, %v251
      %v1213 = vmul.f32 %v252, %v252
      %v1214 = vmul.f32 %v253, %v253
      %v1215 = vmul.f32 %v254, %v254
      %v1216 = vmul.f32 %v255, %v255
      %v1217 = vmul.f32 %v256, %v256
      %v1218 = vmul.f32 %v257, %v257
      %v1219 = vmul.f32 %v258, %v258
      %v1220 = vmul.f32 %v259, %v259
      %v1221 = vmul.f32 %v260, %v260
      %v1222 = vmul.f32 %v261, %v261
      %v1223 = vmul.f32 %v262, %v262
      %v1224 = vmul.f32 %v263, %v263
      %v1225 = vmul.f32 %v264, %v264
      %v1226 = vmul.f32 %v265, %v265
      %v1227 = vmul.f32 %v266, %v266
      %v1228 = vmul.f32 %v267, %v267
      %v1229 = vmul.f32 %v268, %v268
      %v1230 = vmul.f32 %v269, %v269
      %v1231 = vmul.f32 %v270, %v270
      %v1232 = vmul.f32 %v271, %v271
      %v1233 = vmul.f32 %v272, %v272
      %v1234 = vmul.f32 %v273, %v273
      %v1235 = vmul.f32 %v274, %v274
      %v1236 = vmul.f32 %v275, %v275
      %v1237 = vmul.f32 %v276, %v276
      %v1238 = vmul.f32 %v277, %v277
      %v1239 = vmul.f32 %v278, %v278
      %v1240 = vmul.f32 %v279, %v279
      %v1241 = vmul.f32 %v280, %v280
      %v1242 = vmul.f32 %v281, %v281
      %v1243 = vmul.f32 %v282, %v282
      %v1244 = vmul.f32 %v283, %v283
      %v1245 = vmul.f32 %v284, %v284
      %v1246 = vmul.f32 %v285, %v285
      %v1247 = vmul.f32 %v286, %v286
      %v1248 = vmul.f32 %v287, %v287
      %v1249 = vmul.f32 %v288, %v288
      %v1250 = vmul.f32 %v289, %v289
      %v1251 = vmul.f32 %v290, %v290
      %v1252 = vmul.f32 %v291, %v291
      %v1253 = vmul.f32 %v292, %v292
      %v1254 = vmul.f32 %v293, %v293
      %v1255 = vmul.f32 %v294, %v294
      %v1256 = vmul.f32 %v295, %v295
      %v1257 = vmul.f32 %v296, %v296
      %v1258 = vmul.f32 %v297, %v297
      %v1259 = vmul.f32 %v298, %v298
      %v1260 = vmul.f32 %v299, %v299
      %v1261 = vmul.f32 %v300, %v300
      %v1262 = vmul.f32 %v301, %v301
      %v1263 = vmul.f32 %v302, %v302
      %v1264 = vmul.f32 %v303, %v303
      %v1265 = vmul.f32 %v304, %v304
      %v1266 = vmul.f32 %v305, %v305
      %v1267 = vmul.f32 %v306, %v306
      %v1268 = vmul.f32 %v307, %v307
      %v1269 = vmul.f32 %v308, %v308
      %v1270 = vmul.f32 %v309, %v309
      %v1271 = vmul.f32 %v310, %v310
      %v1272 = vmul.f32 %v311, %v311
      %v1273 = vmul.f32 %v312, %v312
      %v1274 = vmul.f32 %v313, %v313
      %v1275 = vmul.f32 %v314, %v314
      %v1276 = vmul.f32 %v315, %v315
      %v1277 = vmul.f32 %v316, %v316
      %v1278 = vmul.f32 %v317, %v317
      %v1279 = vmul.f32 %v318, %v318
      %v1280 = vmul.f32 %v319, %v319
      %v1281 = vmul.f32 %v320, %v320
      %v1282 = vmul.f32 %v321, %v321
      %v1283 = vmul.f32 %v322, %v322
      %v1284 = vmul.f32 %v323, %v323
      %v1285 = vmul.f32 %v324, %v324
      %v1286 = vmul.f32 %v325, %v325
      %v1287 = vmul.f32 %v326, %v326
      %v1288 = vmul.f32 %v327, %v327
      %v1289 = vmul.f32 %v328, %v328
      %v1290 = vmul.f32 %v329, %v329
      %v1291 = vmul.f32 %v330, %v330
      %v1292 = vmul.f32 %v331, %v331
      %v1293 = vmul.f32 %v332, %v332
      %v1294 = vmul.f32 %v333, %v333
      %v1295 = vmul.f32 %v334, %v334
      %v1296 = vmul.f32 %v335, %v335
      %v1297 = vmul.f32 %v336, %v336
      %v1298 = vmul.f32 %v337, %v337
      %v1299 = vmul.f32 %v338, %v338
      %v1300 = vmul.f32 %v339, %v339
      %v1301 = vmul.f32 %v340, %v340
      %v1302 = vmul.f32 %v341, %v341
      %v1303 = vmul.f32 %v342, %v342
      %v1304 = vmul.f32 %v343, %v343
      %v1305 = vmul.f32 %v344, %v344
      %v1306 = vmul.f32 %v345, %v345
      %v1307 = vmul.f32 %v346, %v346
      %v1308 = vmul.f32 %v347, %v347
      %v1309 = vmul.f32 %v348, %v348
      %v1310 = vmul.f32 %v349, %v349
      %v1311 = vmul.f32 %v350, %v350
      %v1312 = vmul.f32 %v351, %v351
      %v1313 = vmul.f32 %v352, %v352
      %v1314 = vmul.f32 %v353, %v353
      %v1315 = vmul.f32 %v354, %v354
      %v1316 = vmul.f32 %v355, %v355
      %v1317 = vmul.f32 %v356, %v356
      %v1318 = vmul.f32 %v357, %v357
      %v1319 = vmul.f32 %v358, %v358
      %v1320 = vmul.f32 %v359, %v359
      %v1321 = vmul.f32 %v360, %v360
      %v1322 = vmul.f32 %v361, %v361
      %v1323 = vmul.f32 %v362, %v362
      %v1324 = vmul.f32 %v363, %v363
      %v1325 = vmul.f32 %v364, %v364
      %v1326 = vmul.f32 %v365, %v365
      %v1327 = vmul.f32 %v366, %v366
      %v1328 = vmul.f32 %v367, %v367
      %v1329 = vmul.f32 %v368, %v368
      %v1330 = vmul.f32 %v369, %v369
      %v1331 = vmul.f32 %v370, %v370
      %v1332 = vmul.f32 %v371, %v371
      %v1333 = vmul.f32 %v372, %v372
      %v1334 = vmul.f32 %v373, %v373
      %v1335 = vmul.f32 %v374, %v374
      %v1336 = vmul.f32 %v375, %v375
      %v1337 = vmul.f32 %v376, %v376
      %v1338 = vmul.f32 %v377, %v377
      %v1339 = vmul.f32 %v378, %v378
      %v1340 = vmul.f32 %v379, %v379
      %v1341 = vmul.f32 %v380, %v380
      %v1342 = vmul.f32 %v381, %v381
      %v1343 = vmul.f32 %v382, %v382
      %v1344 = vmul.f32 %v383, %v383
      %v1345 = vmul.f32 %v384, %v384
      %v1346 = vmul.f32 %v385, %v385
      %v1347 = vmul.f32 %v386, %v386
      %v1348 = vmul.f32 %v387, %v387
      %v1349 = vmul.f32 %v388, %v388
      %v1350 = vmul.f32 %v389, %v389
      %v1351 = vmul.f32 %v390, %v390
      %v1352 = vmul.f32 %v391, %v391
      %v1353 = vmul.f32 %v392, %v392
      %v1354 = vmul.f32 %v393, %v393
      %v1355 = vmul.f32 %v394, %v394
      %v1356 = vmul.f32 %v395, %v395
      %v1357 = vmul.f32 %v396, %v396
      %v1358 = vmul.f32 %v397, %v397
      %v1359 = vmul.f32 %v398, %v398
      %v1360 = vmul.f32 %v399, %v399
      %v1361 = vmul.f32 %v400, %v400
      %v1362 = vmul.f32 %v401, %v401
      %v1363 = vmul.f32 %v402, %v402
      %v1364 = vmul.f32 %v403, %v403
      %v1365 = vmul.f32 %v404, %v404
      %v1366 = vmul.f32 %v405, %v405
      %v1367 = vmul.f32 %v406, %v406
      %v1368 = vmul.f32 %v407, %v407
      %v1369 = vmul.f32 %v408, %v408
      %v1370 = vmul.f32 %v409, %v409
      %v1371 = vmul.f32 %v410, %v410
      %v1372 = vmul.f32 %v411, %v411
      %v1373 = vmul.f32 %v412, %v412
      %v1374 = vmul.f32 %v413, %v413
      %v1375 = vmul.f32 %v414, %v414
      %v1376 = vmul.f32 %v415, %v415
      %v1377 = vmul.f32 %v416, %v416
      %v1378 = vmul.f32 %v417, %v417
      %v1379 = vmul.f32 %v418, %v418
      %v1380 = vmul.f32 %v419, %v419
      %v1381 = vmul.f32 %v420, %v420
      %v1382 = vmul.f32 %v421, %v421
      %v1383 = vmul.f32 %v422, %v422
      %v1384 = vmul.f32 %v423, %v423
      %v1385 = vmul.f32 %v424, %v424
      %v1386 = vmul.f32 %v425, %v425
      %v1387 = vmul.f32 %v426, %v426
      %v1388 = vmul.f32 %v427, %v427
      %v1389 = vmul.f32 %v428, %v428
      %v1390 = vmul.f32 %v429, %v429
      %v1391 = vmul.f32 %v430, %v430
      %v1392 = vmul.f32 %v431, %v431
      %v1393 = vmul.f32 %v432, %v432
      %v1394 = vmul.f32 %v433, %v433
      %v1395 = vmul.f32 %v434, %v434
      %v1396 = vmul.f32 %v435, %v435
      %v1397 = vmul.f32 %v436, %v436
      %v1398 = vmul.f32 %v437, %v437
      %v1399 = vmul.f32 %v438, %v438
      %v1400 = vmul.f32 %v439, %v439
      %v1401 = vmul.f32 %v440, %v440
      %v1402 = vmul.f32 %v441, %v441
      %v1403 = vmul.f32 %v442, %v442
      %v1404 = vmul.f32 %v443, %v443
      %v1405 = vmul.f32 %v444, %v444
      %v1406 = vmul.f32 %v445, %v445
      %v1407 = vmul.f32 %v446, %v446
      %v1408 = vmul.f32 %v447, %v447
      %v1409 = vmul.f32 %v448, %v448
      %v1410 = vmul.f32 %v449, %v449
      %v1411 = vmul.f32 %v450, %v450
      %v1412 = vmul.f32 %v451, %v451
      %v1413 = vmul.f32 %v452, %v452
      %v1414 = vmul.f32 %v453, %v453
      %v1415 = vmul.f32 %v454, %v454
      %v1416 = vmul.f32 %v455, %v455
      %v1417 = vmul.f32 %v456, %v456
      %v1418 = vmul.f32 %v457, %v457
      %v1419 = vsel %vm458, %v1179, 0.0
      %1420 = vadd.xlane.f32.xlu0 %v1419
      %v1421 = vpop.xlane.xlu0 %1420
      %v1422 = vsel %vm458, %v1180, 0.0
      %1423 = vadd.xlane.f32.xlu0 %v1422
      %v1424 = vpop.xlane.xlu0 %1423
      %v1425 = vsel %vm458, %v1181, 0.0
      %1426 = vadd.xlane.f32.xlu0 %v1425
      %v1427 = vpop.xlane.xlu0 %1426
      %v1428 = vsel %vm458, %v1182, 0.0
      %1429 = vadd.xlane.f32.xlu0 %v1428
      %v1430 = vpop.xlane.xlu0 %1429
      %v1431 = vsel %vm458, %v1183, 0.0
      %1432 = vadd.xlane.f32.xlu0 %v1431
      %v1433 = vpop.xlane.xlu0 %1432
      %v1434 = vsel %vm458, %v1184, 0.0
      %1435 = vadd.xlane.f32.xlu0 %v1434
      %v1436 = vpop.xlane.xlu0 %1435
      %v1437 = vsel %vm458, %v1185, 0.0
      %1438 = vadd.xlane.f32.xlu0 %v1437
      %v1439 = vpop.xlane.xlu0 %1438
      %v1440 = vsel %vm458, %v1186, 0.0
      %1441 = vadd.xlane.f32.xlu0 %v1440
      %v1442 = vpop.xlane.xlu0 %1441
      %v1443 = vsel %vm458, %v1187, 0.0
      %1444 = vadd.xlane.f32.xlu0 %v1443
      %v1445 = vpop.xlane.xlu0 %1444
      %v1446 = vsel %vm458, %v1188, 0.0
      %1447 = vadd.xlane.f32.xlu0 %v1446
      %v1448 = vpop.xlane.xlu0 %1447
      %v1449 = vsel %vm458, %v1189, 0.0
      %1450 = vadd.xlane.f32.xlu0 %v1449
      %v1451 = vpop.xlane.xlu0 %1450
      %v1452 = vsel %vm458, %v1190, 0.0
      %1453 = vadd.xlane.f32.xlu0 %v1452
      %v1454 = vpop.xlane.xlu0 %1453
      %v1455 = vsel %vm458, %v1191, 0.0
      %1456 = vadd.xlane.f32.xlu0 %v1455
      %v1457 = vpop.xlane.xlu0 %1456
      %v1458 = vsel %vm458, %v1192, 0.0
      %1459 = vadd.xlane.f32.xlu0 %v1458
      %v1460 = vpop.xlane.xlu0 %1459
      %v1461 = vsel %vm458, %v1193, 0.0
      %1462 = vadd.xlane.f32.xlu0 %v1461
      %v1463 = vpop.xlane.xlu0 %1462
      %v1464 = vsel %vm458, %v1194, 0.0
      %1465 = vadd.xlane.f32.xlu0 %v1464
      %v1466 = vpop.xlane.xlu0 %1465
      %v1467 = vsel %vm458, %v1195, 0.0
      %1468 = vadd.xlane.f32.xlu0 %v1467
      %v1469 = vpop.xlane.xlu0 %1468
      %v1470 = vsel %vm458, %v1196, 0.0
      %1471 = vadd.xlane.f32.xlu0 %v1470
      %v1472 = vpop.xlane.xlu0 %1471
      %v1473 = vsel %vm458, %v1197, 0.0
      %1474 = vadd.xlane.f32.xlu0 %v1473
      %v1475 = vpop.xlane.xlu0 %1474
      %v1476 = vsel %vm458, %v1198, 0.0
      %1477 = vadd.xlane.f32.xlu0 %v1476
      %v1478 = vpop.xlane.xlu0 %1477
      %v1479 = vsel %vm458, %v1199, 0.0
      %1480 = vadd.xlane.f32.xlu0 %v1479
      %v1481 = vpop.xlane.xlu0 %1480
      %v1482 = vsel %vm458, %v1200, 0.0
      %1483 = vadd.xlane.f32.xlu0 %v1482
      %v1484 = vpop.xlane.xlu0 %1483
      %v1485 = vsel %vm458, %v1201, 0.0
      %1486 = vadd.xlane.f32.xlu0 %v1485
      %v1487 = vpop.xlane.xlu0 %1486
      %v1488 = vsel %vm458, %v1202, 0.0
      %1489 = vadd.xlane.f32.xlu0 %v1488
      %v1490 = vpop.xlane.xlu0 %1489
      %v1491 = vsel %vm458, %v1203, 0.0
      %1492 = vadd.xlane.f32.xlu0 %v1491
      %v1493 = vpop.xlane.xlu0 %1492
      %v1494 = vsel %vm458, %v1204, 0.0
      %1495 = vadd.xlane.f32.xlu0 %v1494
      %v1496 = vpop.xlane.xlu0 %1495
      %v1497 = vsel %vm458, %v1205, 0.0
      %1498 = vadd.xlane.f32.xlu0 %v1497
      %v1499 = vpop.xlane.xlu0 %1498
      %v1500 = vsel %vm458, %v1206, 0.0
      %1501 = vadd.xlane.f32.xlu0 %v1500
      %v1502 = vpop.xlane.xlu0 %1501
      %v1503 = vsel %vm458, %v1207, 0.0
      %1504 = vadd.xlane.f32.xlu0 %v1503
      %v1505 = vpop.xlane.xlu0 %1504
      %v1506 = vsel %vm458, %v1208, 0.0
      %1507 = vadd.xlane.f32.xlu0 %v1506
      %v1508 = vpop.xlane.xlu0 %1507
      %v1509 = vsel %vm458, %v1209, 0.0
      %1510 = vadd.xlane.f32.xlu0 %v1509
      %v1511 = vpop.xlane.xlu0 %1510
      %v1512 = vsel %vm458, %v1210, 0.0
      %1513 = vadd.xlane.f32.xlu0 %v1512
      %v1514 = vpop.xlane.xlu0 %1513
      %v1515 = vsel %vm458, %v1211, 0.0
      %1516 = vadd.xlane.f32.xlu0 %v1515
      %v1517 = vpop.xlane.xlu0 %1516
      %v1518 = vsel %vm458, %v1212, 0.0
      %1519 = vadd.xlane.f32.xlu0 %v1518
      %v1520 = vpop.xlane.xlu0 %1519
      %v1521 = vsel %vm458, %v1213, 0.0
      %1522 = vadd.xlane.f32.xlu0 %v1521
      %v1523 = vpop.xlane.xlu0 %1522
      %v1524 = vsel %vm458, %v1214, 0.0
      %1525 = vadd.xlane.f32.xlu0 %v1524
      %v1526 = vpop.xlane.xlu0 %1525
      %v1527 = vsel %vm458, %v1215, 0.0
      %1528 = vadd.xlane.f32.xlu0 %v1527
      %v1529 = vpop.xlane.xlu0 %1528
      %v1530 = vsel %vm458, %v1216, 0.0
      %1531 = vadd.xlane.f32.xlu0 %v1530
      %v1532 = vpop.xlane.xlu0 %1531
      %v1533 = vsel %vm458, %v1217, 0.0
      %1534 = vadd.xlane.f32.xlu0 %v1533
      %v1535 = vpop.xlane.xlu0 %1534
      %v1536 = vsel %vm458, %v1218, 0.0
      %1537 = vadd.xlane.f32.xlu0 %v1536
      %v1538 = vpop.xlane.xlu0 %1537
      %v1539 = vsel %vm458, %v1219, 0.0
      %1540 = vadd.xlane.f32.xlu0 %v1539
      %v1541 = vpop.xlane.xlu0 %1540
      %v1542 = vsel %vm458, %v1220, 0.0
      %1543 = vadd.xlane.f32.xlu0 %v1542
      %v1544 = vpop.xlane.xlu0 %1543
      %v1545 = vsel %vm458, %v1221, 0.0
      %1546 = vadd.xlane.f32.xlu0 %v1545
      %v1547 = vpop.xlane.xlu0 %1546
      %v1548 = vsel %vm458, %v1222, 0.0
      %1549 = vadd.xlane.f32.xlu0 %v1548
      %v1550 = vpop.xlane.xlu0 %1549
      %v1551 = vsel %vm458, %v1223, 0.0
      %1552 = vadd.xlane.f32.xlu0 %v1551
      %v1553 = vpop.xlane.xlu0 %1552
      %v1554 = vsel %vm458, %v1224, 0.0
      %1555 = vadd.xlane.f32.xlu0 %v1554
      %v1556 = vpop.xlane.xlu0 %1555
      %v1557 = vsel %vm458, %v1225, 0.0
      %1558 = vadd.xlane.f32.xlu0 %v1557
      %v1559 = vpop.xlane.xlu0 %1558
      %v1560 = vsel %vm458, %v1226, 0.0
      %1561 = vadd.xlane.f32.xlu0 %v1560
      %v1562 = vpop.xlane.xlu0 %1561
      %v1563 = vsel %vm458, %v1227, 0.0
      %1564 = vadd.xlane.f32.xlu0 %v1563
      %v1565 = vpop.xlane.xlu0 %1564
      %v1566 = vsel %vm458, %v1228, 0.0
      %1567 = vadd.xlane.f32.xlu0 %v1566
      %v1568 = vpop.xlane.xlu0 %1567
      %v1569 = vsel %vm458, %v1229, 0.0
      %1570 = vadd.xlane.f32.xlu0 %v1569
      %v1571 = vpop.xlane.xlu0 %1570
      %v1572 = vsel %vm458, %v1230, 0.0
      %1573 = vadd.xlane.f32.xlu0 %v1572
      %v1574 = vpop.xlane.xlu0 %1573
      %v1575 = vsel %vm458, %v1231, 0.0
      %1576 = vadd.xlane.f32.xlu0 %v1575
      %v1577 = vpop.xlane.xlu0 %1576
      %v1578 = vsel %vm458, %v1232, 0.0
      %1579 = vadd.xlane.f32.xlu0 %v1578
      %v1580 = vpop.xlane.xlu0 %1579
      %v1581 = vsel %vm458, %v1233, 0.0
      %1582 = vadd.xlane.f32.xlu0 %v1581
      %v1583 = vpop.xlane.xlu0 %1582
      %v1584 = vsel %vm458, %v1234, 0.0
      %1585 = vadd.xlane.f32.xlu0 %v1584
      %v1586 = vpop.xlane.xlu0 %1585
      %v1587 = vsel %vm458, %v1235, 0.0
      %1588 = vadd.xlane.f32.xlu0 %v1587
      %v1589 = vpop.xlane.xlu0 %1588
      %v1590 = vsel %vm458, %v1236, 0.0
      %1591 = vadd.xlane.f32.xlu0 %v1590
      %v1592 = vpop.xlane.xlu0 %1591
      %v1593 = vsel %vm458, %v1237, 0.0
      %1594 = vadd.xlane.f32.xlu0 %v1593
      %v1595 = vpop.xlane.xlu0 %1594
      %v1596 = vsel %vm458, %v1238, 0.0
      %1597 = vadd.xlane.f32.xlu0 %v1596
      %v1598 = vpop.xlane.xlu0 %1597
      %v1599 = vsel %vm458, %v1239, 0.0
      %1600 = vadd.xlane.f32.xlu0 %v1599
      %v1601 = vpop.xlane.xlu0 %1600
      %v1602 = vsel %vm458, %v1240, 0.0
      %1603 = vadd.xlane.f32.xlu0 %v1602
      %v1604 = vpop.xlane.xlu0 %1603
      %v1605 = vsel %vm458, %v1241, 0.0
      %1606 = vadd.xlane.f32.xlu0 %v1605
      %v1607 = vpop.xlane.xlu0 %1606
      %v1608 = vsel %vm458, %v1242, 0.0
      %1609 = vadd.xlane.f32.xlu0 %v1608
      %v1610 = vpop.xlane.xlu0 %1609
      %v1611 = vsel %vm458, %v1243, 0.0
      %1612 = vadd.xlane.f32.xlu0 %v1611
      %v1613 = vpop.xlane.xlu0 %1612
      %v1614 = vsel %vm458, %v1244, 0.0
      %1615 = vadd.xlane.f32.xlu0 %v1614
      %v1616 = vpop.xlane.xlu0 %1615
      %v1617 = vsel %vm458, %v1245, 0.0
      %1618 = vadd.xlane.f32.xlu0 %v1617
      %v1619 = vpop.xlane.xlu0 %1618
      %v1620 = vsel %vm458, %v1246, 0.0
      %1621 = vadd.xlane.f32.xlu0 %v1620
      %v1622 = vpop.xlane.xlu0 %1621
      %v1623 = vsel %vm458, %v1247, 0.0
      %1624 = vadd.xlane.f32.xlu0 %v1623
      %v1625 = vpop.xlane.xlu0 %1624
      %v1626 = vsel %vm458, %v1248, 0.0
      %1627 = vadd.xlane.f32.xlu0 %v1626
      %v1628 = vpop.xlane.xlu0 %1627
      %v1629 = vsel %vm458, %v1249, 0.0
      %1630 = vadd.xlane.f32.xlu0 %v1629
      %v1631 = vpop.xlane.xlu0 %1630
      %v1632 = vsel %vm458, %v1250, 0.0
      %1633 = vadd.xlane.f32.xlu0 %v1632
      %v1634 = vpop.xlane.xlu0 %1633
      %v1635 = vsel %vm458, %v1251, 0.0
      %1636 = vadd.xlane.f32.xlu0 %v1635
      %v1637 = vpop.xlane.xlu0 %1636
      %v1638 = vsel %vm458, %v1252, 0.0
      %1639 = vadd.xlane.f32.xlu0 %v1638
      %v1640 = vpop.xlane.xlu0 %1639
      %v1641 = vsel %vm458, %v1253, 0.0
      %1642 = vadd.xlane.f32.xlu0 %v1641
      %v1643 = vpop.xlane.xlu0 %1642
      %v1644 = vsel %vm458, %v1254, 0.0
      %1645 = vadd.xlane.f32.xlu0 %v1644
      %v1646 = vpop.xlane.xlu0 %1645
      %v1647 = vsel %vm458, %v1255, 0.0
      %1648 = vadd.xlane.f32.xlu0 %v1647
      %v1649 = vpop.xlane.xlu0 %1648
      %v1650 = vsel %vm458, %v1256, 0.0
      %1651 = vadd.xlane.f32.xlu0 %v1650
      %v1652 = vpop.xlane.xlu0 %1651
      %v1653 = vsel %vm458, %v1257, 0.0
      %1654 = vadd.xlane.f32.xlu0 %v1653
      %v1655 = vpop.xlane.xlu0 %1654
      %v1656 = vsel %vm458, %v1258, 0.0
      %1657 = vadd.xlane.f32.xlu0 %v1656
      %v1658 = vpop.xlane.xlu0 %1657
      %v1659 = vsel %vm458, %v1259, 0.0
      %1660 = vadd.xlane.f32.xlu0 %v1659
      %v1661 = vpop.xlane.xlu0 %1660
      %v1662 = vsel %vm458, %v1260, 0.0
      %1663 = vadd.xlane.f32.xlu0 %v1662
      %v1664 = vpop.xlane.xlu0 %1663
      %v1665 = vsel %vm458, %v1261, 0.0
      %1666 = vadd.xlane.f32.xlu0 %v1665
      %v1667 = vpop.xlane.xlu0 %1666
      %v1668 = vsel %vm458, %v1262, 0.0
      %1669 = vadd.xlane.f32.xlu0 %v1668
      %v1670 = vpop.xlane.xlu0 %1669
      %v1671 = vsel %vm458, %v1263, 0.0
      %1672 = vadd.xlane.f32.xlu0 %v1671
      %v1673 = vpop.xlane.xlu0 %1672
      %v1674 = vsel %vm458, %v1264, 0.0
      %1675 = vadd.xlane.f32.xlu0 %v1674
      %v1676 = vpop.xlane.xlu0 %1675
      %v1677 = vsel %vm458, %v1265, 0.0
      %1678 = vadd.xlane.f32.xlu0 %v1677
      %v1679 = vpop.xlane.xlu0 %1678
      %v1680 = vsel %vm458, %v1266, 0.0
      %1681 = vadd.xlane.f32.xlu0 %v1680
      %v1682 = vpop.xlane.xlu0 %1681
      %v1683 = vsel %vm458, %v1267, 0.0
      %1684 = vadd.xlane.f32.xlu0 %v1683
      %v1685 = vpop.xlane.xlu0 %1684
      %v1686 = vsel %vm458, %v1268, 0.0
      %1687 = vadd.xlane.f32.xlu0 %v1686
      %v1688 = vpop.xlane.xlu0 %1687
      %v1689 = vsel %vm458, %v1269, 0.0
      %1690 = vadd.xlane.f32.xlu0 %v1689
      %v1691 = vpop.xlane.xlu0 %1690
      %v1692 = vsel %vm458, %v1270, 0.0
      %1693 = vadd.xlane.f32.xlu0 %v1692
      %v1694 = vpop.xlane.xlu0 %1693
      %v1695 = vsel %vm458, %v1271, 0.0
      %1696 = vadd.xlane.f32.xlu0 %v1695
      %v1697 = vpop.xlane.xlu0 %1696
      %v1698 = vsel %vm458, %v1272, 0.0
      %1699 = vadd.xlane.f32.xlu0 %v1698
      %v1700 = vpop.xlane.xlu0 %1699
      %v1701 = vsel %vm458, %v1273, 0.0
      %1702 = vadd.xlane.f32.xlu0 %v1701
      %v1703 = vpop.xlane.xlu0 %1702
      %v1704 = vsel %vm458, %v1274, 0.0
      %1705 = vadd.xlane.f32.xlu0 %v1704
      %v1706 = vpop.xlane.xlu0 %1705
      %v1707 = vsel %vm458, %v1275, 0.0
      %1708 = vadd.xlane.f32.xlu0 %v1707
      %v1709 = vpop.xlane.xlu0 %1708
      %v1710 = vsel %vm458, %v1276, 0.0
      %1711 = vadd.xlane.f32.xlu0 %v1710
      %v1712 = vpop.xlane.xlu0 %1711
      %v1713 = vsel %vm458, %v1277, 0.0
      %1714 = vadd.xlane.f32.xlu0 %v1713
      %v1715 = vpop.xlane.xlu0 %1714
      %v1716 = vsel %vm458, %v1278, 0.0
      %1717 = vadd.xlane.f32.xlu0 %v1716
      %v1718 = vpop.xlane.xlu0 %1717
      %v1719 = vsel %vm458, %v1279, 0.0
      %1720 = vadd.xlane.f32.xlu0 %v1719
      %v1721 = vpop.xlane.xlu0 %1720
      %v1722 = vsel %vm458, %v1280, 0.0
      %1723 = vadd.xlane.f32.xlu0 %v1722
      %v1724 = vpop.xlane.xlu0 %1723
      %v1725 = vsel %vm458, %v1281, 0.0
      %1726 = vadd.xlane.f32.xlu0 %v1725
      %v1727 = vpop.xlane.xlu0 %1726
      %v1728 = vsel %vm458, %v1282, 0.0
      %1729 = vadd.xlane.f32.xlu0 %v1728
      %v1730 = vpop.xlane.xlu0 %1729
      %v1731 = vsel %vm458, %v1283, 0.0
      %1732 = vadd.xlane.f32.xlu0 %v1731
      %v1733 = vpop.xlane.xlu0 %1732
      %v1734 = vsel %vm458, %v1284, 0.0
      %1735 = vadd.xlane.f32.xlu0 %v1734
      %v1736 = vpop.xlane.xlu0 %1735
      %v1737 = vsel %vm458, %v1285, 0.0
      %1738 = vadd.xlane.f32.xlu0 %v1737
      %v1739 = vpop.xlane.xlu0 %1738
      %v1740 = vsel %vm458, %v1286, 0.0
      %1741 = vadd.xlane.f32.xlu0 %v1740
      %v1742 = vpop.xlane.xlu0 %1741
      %v1743 = vsel %vm458, %v1287, 0.0
      %1744 = vadd.xlane.f32.xlu0 %v1743
      %v1745 = vpop.xlane.xlu0 %1744
      %v1746 = vsel %vm458, %v1288, 0.0
      %1747 = vadd.xlane.f32.xlu0 %v1746
      %v1748 = vpop.xlane.xlu0 %1747
      %v1749 = vsel %vm458, %v1289, 0.0
      %1750 = vadd.xlane.f32.xlu0 %v1749
      %v1751 = vpop.xlane.xlu0 %1750
      %v1752 = vsel %vm458, %v1290, 0.0
      %1753 = vadd.xlane.f32.xlu0 %v1752
      %v1754 = vpop.xlane.xlu0 %1753
      %v1755 = vsel %vm458, %v1291, 0.0
      %1756 = vadd.xlane.f32.xlu0 %v1755
      %v1757 = vpop.xlane.xlu0 %1756
      %v1758 = vsel %vm458, %v1292, 0.0
      %1759 = vadd.xlane.f32.xlu0 %v1758
      %v1760 = vpop.xlane.xlu0 %1759
      %v1761 = vsel %vm458, %v1293, 0.0
      %1762 = vadd.xlane.f32.xlu0 %v1761
      %v1763 = vpop.xlane.xlu0 %1762
      %v1764 = vsel %vm458, %v1294, 0.0
      %1765 = vadd.xlane.f32.xlu0 %v1764
      %v1766 = vpop.xlane.xlu0 %1765
      %v1767 = vsel %vm458, %v1295, 0.0
      %1768 = vadd.xlane.f32.xlu0 %v1767
      %v1769 = vpop.xlane.xlu0 %1768
      %v1770 = vsel %vm458, %v1296, 0.0
      %1771 = vadd.xlane.f32.xlu0 %v1770
      %v1772 = vpop.xlane.xlu0 %1771
      %v1773 = vsel %vm458, %v1297, 0.0
      %1774 = vadd.xlane.f32.xlu0 %v1773
      %v1775 = vpop.xlane.xlu0 %1774
      %v1776 = vsel %vm458, %v1298, 0.0
      %1777 = vadd.xlane.f32.xlu0 %v1776
      %v1778 = vpop.xlane.xlu0 %1777
      %v1779 = vsel %vm458, %v1299, 0.0
      %1780 = vadd.xlane.f32.xlu0 %v1779
      %v1781 = vpop.xlane.xlu0 %1780
      %v1782 = vsel %vm458, %v1300, 0.0
      %1783 = vadd.xlane.f32.xlu0 %v1782
      %v1784 = vpop.xlane.xlu0 %1783
      %v1785 = vsel %vm458, %v1301, 0.0
      %1786 = vadd.xlane.f32.xlu0 %v1785
      %v1787 = vpop.xlane.xlu0 %1786
      %v1788 = vsel %vm458, %v1302, 0.0
      %1789 = vadd.xlane.f32.xlu0 %v1788
      %v1790 = vpop.xlane.xlu0 %1789
      %v1791 = vsel %vm458, %v1303, 0.0
      %1792 = vadd.xlane.f32.xlu0 %v1791
      %v1793 = vpop.xlane.xlu0 %1792
      %v1794 = vsel %vm458, %v1304, 0.0
      %1795 = vadd.xlane.f32.xlu0 %v1794
      %v1796 = vpop.xlane.xlu0 %1795
      %v1797 = vsel %vm458, %v1305, 0.0
      %1798 = vadd.xlane.f32.xlu0 %v1797
      %v1799 = vpop.xlane.xlu0 %1798
      %v1800 = vsel %vm458, %v1306, 0.0
      %1801 = vadd.xlane.f32.xlu0 %v1800
      %v1802 = vpop.xlane.xlu0 %1801
      %v1803 = vsel %vm458, %v1307, 0.0
      %1804 = vadd.xlane.f32.xlu0 %v1803
      %v1805 = vpop.xlane.xlu0 %1804
      %v1806 = vsel %vm458, %v1308, 0.0
      %1807 = vadd.xlane.f32.xlu0 %v1806
      %v1808 = vpop.xlane.xlu0 %1807
      %v1809 = vsel %vm458, %v1309, 0.0
      %1810 = vadd.xlane.f32.xlu0 %v1809
      %v1811 = vpop.xlane.xlu0 %1810
      %v1812 = vsel %vm458, %v1310, 0.0
      %1813 = vadd.xlane.f32.xlu0 %v1812
      %v1814 = vpop.xlane.xlu0 %1813
      %v1815 = vsel %vm458, %v1311, 0.0
      %1816 = vadd.xlane.f32.xlu0 %v1815
      %v1817 = vpop.xlane.xlu0 %1816
      %v1818 = vsel %vm458, %v1312, 0.0
      %1819 = vadd.xlane.f32.xlu0 %v1818
      %v1820 = vpop.xlane.xlu0 %1819
      %v1821 = vsel %vm458, %v1313, 0.0
      %1822 = vadd.xlane.f32.xlu0 %v1821
      %v1823 = vpop.xlane.xlu0 %1822
      %v1824 = vsel %vm458, %v1314, 0.0
      %1825 = vadd.xlane.f32.xlu0 %v1824
      %v1826 = vpop.xlane.xlu0 %1825
      %v1827 = vsel %vm458, %v1315, 0.0
      %1828 = vadd.xlane.f32.xlu0 %v1827
      %v1829 = vpop.xlane.xlu0 %1828
      %v1830 = vsel %vm458, %v1316, 0.0
      %1831 = vadd.xlane.f32.xlu0 %v1830
      %v1832 = vpop.xlane.xlu0 %1831
      %v1833 = vsel %vm458, %v1317, 0.0
      %1834 = vadd.xlane.f32.xlu0 %v1833
      %v1835 = vpop.xlane.xlu0 %1834
      %v1836 = vsel %vm458, %v1318, 0.0
      %1837 = vadd.xlane.f32.xlu0 %v1836
      %v1838 = vpop.xlane.xlu0 %1837
      %v1839 = vsel %vm458, %v1319, 0.0
      %1840 = vadd.xlane.f32.xlu0 %v1839
      %v1841 = vpop.xlane.xlu0 %1840
      %v1842 = vsel %vm458, %v1320, 0.0
      %1843 = vadd.xlane.f32.xlu0 %v1842
      %v1844 = vpop.xlane.xlu0 %1843
      %v1845 = vsel %vm458, %v1321, 0.0
      %1846 = vadd.xlane.f32.xlu0 %v1845
      %v1847 = vpop.xlane.xlu0 %1846
      %v1848 = vsel %vm458, %v1322, 0.0
      %1849 = vadd.xlane.f32.xlu0 %v1848
      %v1850 = vpop.xlane.xlu0 %1849
      %v1851 = vsel %vm458, %v1323, 0.0
      %1852 = vadd.xlane.f32.xlu0 %v1851
      %v1853 = vpop.xlane.xlu0 %1852
      %v1854 = vsel %vm458, %v1324, 0.0
      %1855 = vadd.xlane.f32.xlu0 %v1854
      %v1856 = vpop.xlane.xlu0 %1855
      %v1857 = vsel %vm458, %v1325, 0.0
      %1858 = vadd.xlane.f32.xlu0 %v1857
      %v1859 = vpop.xlane.xlu0 %1858
      %v1860 = vsel %vm458, %v1326, 0.0
      %1861 = vadd.xlane.f32.xlu0 %v1860
      %v1862 = vpop.xlane.xlu0 %1861
      %v1863 = vsel %vm458, %v1327, 0.0
      %1864 = vadd.xlane.f32.xlu0 %v1863
      %v1865 = vpop.xlane.xlu0 %1864
      %v1866 = vsel %vm458, %v1328, 0.0
      %1867 = vadd.xlane.f32.xlu0 %v1866
      %v1868 = vpop.xlane.xlu0 %1867
      %v1869 = vsel %vm458, %v1329, 0.0
      %1870 = vadd.xlane.f32.xlu0 %v1869
      %v1871 = vpop.xlane.xlu0 %1870
      %v1872 = vsel %vm458, %v1330, 0.0
      %1873 = vadd.xlane.f32.xlu0 %v1872
      %v1874 = vpop.xlane.xlu0 %1873
      %v1875 = vsel %vm458, %v1331, 0.0
      %1876 = vadd.xlane.f32.xlu0 %v1875
      %v1877 = vpop.xlane.xlu0 %1876
      %v1878 = vsel %vm458, %v1332, 0.0
      %1879 = vadd.xlane.f32.xlu0 %v1878
      %v1880 = vpop.xlane.xlu0 %1879
      %v1881 = vsel %vm458, %v1333, 0.0
      %1882 = vadd.xlane.f32.xlu0 %v1881
      %v1883 = vpop.xlane.xlu0 %1882
      %v1884 = vsel %vm458, %v1334, 0.0
      %1885 = vadd.xlane.f32.xlu0 %v1884
      %v1886 = vpop.xlane.xlu0 %1885
      %v1887 = vsel %vm458, %v1335, 0.0
      %1888 = vadd.xlane.f32.xlu0 %v1887
      %v1889 = vpop.xlane.xlu0 %1888
      %v1890 = vsel %vm458, %v1336, 0.0
      %1891 = vadd.xlane.f32.xlu0 %v1890
      %v1892 = vpop.xlane.xlu0 %1891
      %v1893 = vsel %vm458, %v1337, 0.0
      %1894 = vadd.xlane.f32.xlu0 %v1893
      %v1895 = vpop.xlane.xlu0 %1894
      %v1896 = vsel %vm458, %v1338, 0.0
      %1897 = vadd.xlane.f32.xlu0 %v1896
      %v1898 = vpop.xlane.xlu0 %1897
      %v1899 = vsel %vm458, %v1339, 0.0
      %1900 = vadd.xlane.f32.xlu0 %v1899
      %v1901 = vpop.xlane.xlu0 %1900
      %v1902 = vsel %vm458, %v1340, 0.0
      %1903 = vadd.xlane.f32.xlu0 %v1902
      %v1904 = vpop.xlane.xlu0 %1903
      %v1905 = vsel %vm458, %v1341, 0.0
      %1906 = vadd.xlane.f32.xlu0 %v1905
      %v1907 = vpop.xlane.xlu0 %1906
      %v1908 = vsel %vm458, %v1342, 0.0
      %1909 = vadd.xlane.f32.xlu0 %v1908
      %v1910 = vpop.xlane.xlu0 %1909
      %v1911 = vsel %vm458, %v1343, 0.0
      %1912 = vadd.xlane.f32.xlu0 %v1911
      %v1913 = vpop.xlane.xlu0 %1912
      %v1914 = vsel %vm458, %v1344, 0.0
      %1915 = vadd.xlane.f32.xlu0 %v1914
      %v1916 = vpop.xlane.xlu0 %1915
      %v1917 = vsel %vm458, %v1345, 0.0
      %1918 = vadd.xlane.f32.xlu0 %v1917
      %v1919 = vpop.xlane.xlu0 %1918
      %v1920 = vsel %vm458, %v1346, 0.0
      %1921 = vadd.xlane.f32.xlu0 %v1920
      %v1922 = vpop.xlane.xlu0 %1921
      %v1923 = vsel %vm458, %v1347, 0.0
      %1924 = vadd.xlane.f32.xlu0 %v1923
      %v1925 = vpop.xlane.xlu0 %1924
      %v1926 = vsel %vm458, %v1348, 0.0
      %1927 = vadd.xlane.f32.xlu0 %v1926
      %v1928 = vpop.xlane.xlu0 %1927
      %v1929 = vsel %vm458, %v1349, 0.0
      %1930 = vadd.xlane.f32.xlu0 %v1929
      %v1931 = vpop.xlane.xlu0 %1930
      %v1932 = vsel %vm458, %v1350, 0.0
      %1933 = vadd.xlane.f32.xlu0 %v1932
      %v1934 = vpop.xlane.xlu0 %1933
      %v1935 = vsel %vm458, %v1351, 0.0
      %1936 = vadd.xlane.f32.xlu0 %v1935
      %v1937 = vpop.xlane.xlu0 %1936
      %v1938 = vsel %vm458, %v1352, 0.0
      %1939 = vadd.xlane.f32.xlu0 %v1938
      %v1940 = vpop.xlane.xlu0 %1939
      %v1941 = vsel %vm458, %v1353, 0.0
      %1942 = vadd.xlane.f32.xlu0 %v1941
      %v1943 = vpop.xlane.xlu0 %1942
      %v1944 = vsel %vm458, %v1354, 0.0
      %1945 = vadd.xlane.f32.xlu0 %v1944
      %v1946 = vpop.xlane.xlu0 %1945
      %v1947 = vsel %vm458, %v1355, 0.0
      %1948 = vadd.xlane.f32.xlu0 %v1947
      %v1949 = vpop.xlane.xlu0 %1948
      %v1950 = vsel %vm458, %v1356, 0.0
      %1951 = vadd.xlane.f32.xlu0 %v1950
      %v1952 = vpop.xlane.xlu0 %1951
      %v1953 = vsel %vm458, %v1357, 0.0
      %1954 = vadd.xlane.f32.xlu0 %v1953
      %v1955 = vpop.xlane.xlu0 %1954
      %v1956 = vsel %vm458, %v1358, 0.0
      %1957 = vadd.xlane.f32.xlu0 %v1956
      %v1958 = vpop.xlane.xlu0 %1957
      %v1959 = vsel %vm458, %v1359, 0.0
      %1960 = vadd.xlane.f32.xlu0 %v1959
      %v1961 = vpop.xlane.xlu0 %1960
      %v1962 = vsel %vm458, %v1360, 0.0
      %1963 = vadd.xlane.f32.xlu0 %v1962
      %v1964 = vpop.xlane.xlu0 %1963
      %v1965 = vsel %vm458, %v1361, 0.0
      %1966 = vadd.xlane.f32.xlu0 %v1965
      %v1967 = vpop.xlane.xlu0 %1966
      %v1968 = vsel %vm458, %v1362, 0.0
      %1969 = vadd.xlane.f32.xlu0 %v1968
      %v1970 = vpop.xlane.xlu0 %1969
      %v1971 = vsel %vm458, %v1363, 0.0
      %1972 = vadd.xlane.f32.xlu0 %v1971
      %v1973 = vpop.xlane.xlu0 %1972
      %v1974 = vsel %vm458, %v1364, 0.0
      %1975 = vadd.xlane.f32.xlu0 %v1974
      %v1976 = vpop.xlane.xlu0 %1975
      %v1977 = vsel %vm458, %v1365, 0.0
      %1978 = vadd.xlane.f32.xlu0 %v1977
      %v1979 = vpop.xlane.xlu0 %1978
      %v1980 = vsel %vm458, %v1366, 0.0
      %1981 = vadd.xlane.f32.xlu0 %v1980
      %v1982 = vpop.xlane.xlu0 %1981
      %v1983 = vsel %vm458, %v1367, 0.0
      %1984 = vadd.xlane.f32.xlu0 %v1983
      %v1985 = vpop.xlane.xlu0 %1984
      %v1986 = vsel %vm458, %v1368, 0.0
      %1987 = vadd.xlane.f32.xlu0 %v1986
      %v1988 = vpop.xlane.xlu0 %1987
      %v1989 = vsel %vm458, %v1369, 0.0
      %1990 = vadd.xlane.f32.xlu0 %v1989
      %v1991 = vpop.xlane.xlu0 %1990
      %v1992 = vsel %vm458, %v1370, 0.0
      %1993 = vadd.xlane.f32.xlu0 %v1992
      %v1994 = vpop.xlane.xlu0 %1993
      %v1995 = vsel %vm458, %v1371, 0.0
      %1996 = vadd.xlane.f32.xlu0 %v1995
      %v1997 = vpop.xlane.xlu0 %1996
      %v1998 = vsel %vm458, %v1372, 0.0
      %1999 = vadd.xlane.f32.xlu0 %v1998
      %v2000 = vpop.xlane.xlu0 %1999
      %v2001 = vsel %vm458, %v1373, 0.0
      %2002 = vadd.xlane.f32.xlu0 %v2001
      %v2003 = vpop.xlane.xlu0 %2002
      %v2004 = vsel %vm458, %v1374, 0.0
      %2005 = vadd.xlane.f32.xlu0 %v2004
      %v2006 = vpop.xlane.xlu0 %2005
      %v2007 = vsel %vm458, %v1375, 0.0
      %2008 = vadd.xlane.f32.xlu0 %v2007
      %v2009 = vpop.xlane.xlu0 %2008
      %v2010 = vsel %vm458, %v1376, 0.0
      %2011 = vadd.xlane.f32.xlu0 %v2010
      %v2012 = vpop.xlane.xlu0 %2011
      %v2013 = vsel %vm458, %v1377, 0.0
      %2014 = vadd.xlane.f32.xlu0 %v2013
      %v2015 = vpop.xlane.xlu0 %2014
      %v2016 = vsel %vm458, %v1378, 0.0
      %2017 = vadd.xlane.f32.xlu0 %v2016
      %v2018 = vpop.xlane.xlu0 %2017
      %v2019 = vsel %vm458, %v1379, 0.0
      %2020 = vadd.xlane.f32.xlu0 %v2019
      %v2021 = vpop.xlane.xlu0 %2020
      %v2022 = vsel %vm458, %v1380, 0.0
      %2023 = vadd.xlane.f32.xlu0 %v2022
      %v2024 = vpop.xlane.xlu0 %2023
      %v2025 = vsel %vm458, %v1381, 0.0
      %2026 = vadd.xlane.f32.xlu0 %v2025
      %v2027 = vpop.xlane.xlu0 %2026
      %v2028 = vsel %vm458, %v1382, 0.0
      %2029 = vadd.xlane.f32.xlu0 %v2028
      %v2030 = vpop.xlane.xlu0 %2029
      %v2031 = vsel %vm458, %v1383, 0.0
      %2032 = vadd.xlane.f32.xlu0 %v2031
      %v2033 = vpop.xlane.xlu0 %2032
      %v2034 = vsel %vm458, %v1384, 0.0
      %2035 = vadd.xlane.f32.xlu0 %v2034
      %v2036 = vpop.xlane.xlu0 %2035
      %v2037 = vsel %vm458, %v1385, 0.0
      %2038 = vadd.xlane.f32.xlu0 %v2037
      %v2039 = vpop.xlane.xlu0 %2038
      %v2040 = vsel %vm458, %v1386, 0.0
      %2041 = vadd.xlane.f32.xlu0 %v2040
      %v2042 = vpop.xlane.xlu0 %2041
      %v2043 = vsel %vm458, %v1387, 0.0
      %2044 = vadd.xlane.f32.xlu0 %v2043
      %v2045 = vpop.xlane.xlu0 %2044
      %v2046 = vsel %vm458, %v1388, 0.0
      %2047 = vadd.xlane.f32.xlu0 %v2046
      %v2048 = vpop.xlane.xlu0 %2047
      %v2049 = vsel %vm458, %v1389, 0.0
      %2050 = vadd.xlane.f32.xlu0 %v2049
      %v2051 = vpop.xlane.xlu0 %2050
      %v2052 = vsel %vm458, %v1390, 0.0
      %2053 = vadd.xlane.f32.xlu0 %v2052
      %v2054 = vpop.xlane.xlu0 %2053
      %v2055 = vsel %vm458, %v1391, 0.0
      %2056 = vadd.xlane.f32.xlu0 %v2055
      %v2057 = vpop.xlane.xlu0 %2056
      %v2058 = vsel %vm458, %v1392, 0.0
      %2059 = vadd.xlane.f32.xlu0 %v2058
      %v2060 = vpop.xlane.xlu0 %2059
      %v2061 = vsel %vm458, %v1393, 0.0
      %2062 = vadd.xlane.f32.xlu0 %v2061
      %v2063 = vpop.xlane.xlu0 %2062
      %v2064 = vsel %vm458, %v1394, 0.0
      %2065 = vadd.xlane.f32.xlu0 %v2064
      %v2066 = vpop.xlane.xlu0 %2065
      %v2067 = vsel %vm458, %v1395, 0.0
      %2068 = vadd.xlane.f32.xlu0 %v2067
      %v2069 = vpop.xlane.xlu0 %2068
      %v2070 = vsel %vm458, %v1396, 0.0
      %2071 = vadd.xlane.f32.xlu0 %v2070
      %v2072 = vpop.xlane.xlu0 %2071
      %v2073 = vsel %vm458, %v1397, 0.0
      %2074 = vadd.xlane.f32.xlu0 %v2073
      %v2075 = vpop.xlane.xlu0 %2074
      %v2076 = vsel %vm458, %v1398, 0.0
      %2077 = vadd.xlane.f32.xlu0 %v2076
      %v2078 = vpop.xlane.xlu0 %2077
      %v2079 = vsel %vm458, %v1399, 0.0
      %2080 = vadd.xlane.f32.xlu0 %v2079
      %v2081 = vpop.xlane.xlu0 %2080
      %v2082 = vsel %vm458, %v1400, 0.0
      %2083 = vadd.xlane.f32.xlu0 %v2082
      %v2084 = vpop.xlane.xlu0 %2083
      %v2085 = vsel %vm458, %v1401, 0.0
      %2086 = vadd.xlane.f32.xlu0 %v2085
      %v2087 = vpop.xlane.xlu0 %2086
      %v2088 = vsel %vm458, %v1402, 0.0
      %2089 = vadd.xlane.f32.xlu0 %v2088
      %v2090 = vpop.xlane.xlu0 %2089
      %v2091 = vsel %vm458, %v1403, 0.0
      %2092 = vadd.xlane.f32.xlu0 %v2091
      %v2093 = vpop.xlane.xlu0 %2092
      %v2094 = vsel %vm458, %v1404, 0.0
      %2095 = vadd.xlane.f32.xlu0 %v2094
      %v2096 = vpop.xlane.xlu0 %2095
      %v2097 = vsel %vm458, %v1405, 0.0
      %2098 = vadd.xlane.f32.xlu0 %v2097
      %v2099 = vpop.xlane.xlu0 %2098
      %v2100 = vsel %vm458, %v1406, 0.0
      %2101 = vadd.xlane.f32.xlu0 %v2100
      %v2102 = vpop.xlane.xlu0 %2101
      %v2103 = vsel %vm458, %v1407, 0.0
      %2104 = vadd.xlane.f32.xlu0 %v2103
      %v2105 = vpop.xlane.xlu0 %2104
      %v2106 = vsel %vm458, %v1408, 0.0
      %2107 = vadd.xlane.f32.xlu0 %v2106
      %v2108 = vpop.xlane.xlu0 %2107
      %v2109 = vsel %vm458, %v1409, 0.0
      %2110 = vadd.xlane.f32.xlu0 %v2109
      %v2111 = vpop.xlane.xlu0 %2110
      %v2112 = vsel %vm458, %v1410, 0.0
      %2113 = vadd.xlane.f32.xlu0 %v2112
      %v2114 = vpop.xlane.xlu0 %2113
      %v2115 = vsel %vm458, %v1411, 0.0
      %2116 = vadd.xlane.f32.xlu0 %v2115
      %v2117 = vpop.xlane.xlu0 %2116
      %v2118 = vsel %vm458, %v1412, 0.0
      %2119 = vadd.xlane.f32.xlu0 %v2118
      %v2120 = vpop.xlane.xlu0 %2119
      %v2121 = vsel %vm458, %v1413, 0.0
      %2122 = vadd.xlane.f32.xlu0 %v2121
      %v2123 = vpop.xlane.xlu0 %2122
      %v2124 = vsel %vm458, %v1414, 0.0
      %2125 = vadd.xlane.f32.xlu0 %v2124
      %v2126 = vpop.xlane.xlu0 %2125
      %v2127 = vsel %vm458, %v1415, 0.0
      %2128 = vadd.xlane.f32.xlu0 %v2127
      %v2129 = vpop.xlane.xlu0 %2128
      %v2130 = vsel %vm458, %v1416, 0.0
      %2131 = vadd.xlane.f32.xlu0 %v2130
      %v2132 = vpop.xlane.xlu0 %2131
      %v2133 = vsel %vm458, %v1417, 0.0
      %2134 = vadd.xlane.f32.xlu0 %v2133
      %v2135 = vpop.xlane.xlu0 %2134
      %v2136 = vsel %vm458, %v1418, 0.0
      %2137 = vadd.xlane.f32.xlu0 %v2136
      %v2138 = vpop.xlane.xlu0 %2137
      %v2139 = vmul.f32 %v461, 0.020408163
      %v2140 = vmul.f32 %v464, 0.020408163
      %v2141 = vmul.f32 %v467, 0.020408163
      %v2142 = vmul.f32 %v470, 0.020408163
      %v2143 = vmul.f32 %v473, 0.020408163
      %v2144 = vmul.f32 %v476, 0.020408163
      %v2145 = vmul.f32 %v479, 0.020408163
      %v2146 = vmul.f32 %v482, 0.020408163
      %v2147 = vmul.f32 %v485, 0.020408163
      %v2148 = vmul.f32 %v488, 0.020408163
      %v2149 = vmul.f32 %v491, 0.020408163
      %v2150 = vmul.f32 %v494, 0.020408163
      %v2151 = vmul.f32 %v497, 0.020408163
      %v2152 = vmul.f32 %v500, 0.020408163
      %v2153 = vmul.f32 %v503, 0.020408163
      %v2154 = vmul.f32 %v506, 0.020408163
      %v2155 = vmul.f32 %v509, 0.020408163
      %v2156 = vmul.f32 %v512, 0.020408163
      %v2157 = vmul.f32 %v515, 0.020408163
      %v2158 = vmul.f32 %v518, 0.020408163
      %v2159 = vmul.f32 %v521, 0.020408163
      %v2160 = vmul.f32 %v524, 0.020408163
      %v2161 = vmul.f32 %v527, 0.020408163
      %v2162 = vmul.f32 %v530, 0.020408163
      %v2163 = vmul.f32 %v533, 0.020408163
      %v2164 = vmul.f32 %v536, 0.020408163
      %v2165 = vmul.f32 %v539, 0.020408163
      %v2166 = vmul.f32 %v542, 0.020408163
      %v2167 = vmul.f32 %v545, 0.020408163
      %v2168 = vmul.f32 %v548, 0.020408163
      %v2169 = vmul.f32 %v551, 0.020408163
      %v2170 = vmul.f32 %v554, 0.020408163
      %v2171 = vmul.f32 %v557, 0.020408163
      %v2172 = vmul.f32 %v560, 0.020408163
      %v2173 = vmul.f32 %v563, 0.020408163
      %v2174 = vmul.f32 %v566, 0.020408163
      %v2175 = vmul.f32 %v569, 0.020408163
      %v2176 = vmul.f32 %v572, 0.020408163
      %v2177 = vmul.f32 %v575, 0.020408163
      %v2178 = vmul.f32 %v578, 0.020408163
      %v2179 = vmul.f32 %v581, 0.020408163
      %v2180 = vmul.f32 %v584, 0.020408163
      %v2181 = vmul.f32 %v587, 0.020408163
      %v2182 = vmul.f32 %v590, 0.020408163
      %v2183 = vmul.f32 %v593, 0.020408163
      %v2184 = vmul.f32 %v596, 0.020408163
      %v2185 = vmul.f32 %v599, 0.020408163
      %v2186 = vmul.f32 %v602, 0.020408163
      %v2187 = vmul.f32 %v605, 0.020408163
      %v2188 = vmul.f32 %v608, 0.020408163
      %v2189 = vmul.f32 %v611, 0.020408163
      %v2190 = vmul.f32 %v614, 0.020408163
      %v2191 = vmul.f32 %v617, 0.020408163
      %v2192 = vmul.f32 %v620, 0.020408163
      %v2193 = vmul.f32 %v623, 0.020408163
      %v2194 = vmul.f32 %v626, 0.020408163
      %v2195 = vmul.f32 %v629, 0.020408163
      %v2196 = vmul.f32 %v632, 0.020408163
      %v2197 = vmul.f32 %v635, 0.020408163
      %v2198 = vmul.f32 %v638, 0.020408163
      %v2199 = vmul.f32 %v641, 0.020408163
      %v2200 = vmul.f32 %v644, 0.020408163
      %v2201 = vmul.f32 %v647, 0.020408163
      %v2202 = vmul.f32 %v650, 0.020408163
      %v2203 = vmul.f32 %v653, 0.020408163
      %v2204 = vmul.f32 %v656, 0.020408163
      %v2205 = vmul.f32 %v659, 0.020408163
      %v2206 = vmul.f32 %v662, 0.020408163
      %v2207 = vmul.f32 %v665, 0.020408163
      %v2208 = vmul.f32 %v668, 0.020408163
      %v2209 = vmul.f32 %v671, 0.020408163
      %v2210 = vmul.f32 %v674, 0.020408163
      %v2211 = vmul.f32 %v677, 0.020408163
      %v2212 = vmul.f32 %v680, 0.020408163
      %v2213 = vmul.f32 %v683, 0.020408163
      %v2214 = vmul.f32 %v686, 0.020408163
      %v2215 = vmul.f32 %v689, 0.020408163
      %v2216 = vmul.f32 %v692, 0.020408163
      %v2217 = vmul.f32 %v695, 0.020408163
      %v2218 = vmul.f32 %v698, 0.020408163
      %v2219 = vmul.f32 %v701, 0.020408163
      %v2220 = vmul.f32 %v704, 0.020408163
      %v2221 = vmul.f32 %v707, 0.020408163
      %v2222 = vmul.f32 %v710, 0.020408163
      %v2223 = vmul.f32 %v713, 0.020408163
      %v2224 = vmul.f32 %v716, 0.020408163
      %v2225 = vmul.f32 %v719, 0.020408163
      %v2226 = vmul.f32 %v722, 0.020408163
      %v2227 = vmul.f32 %v725, 0.020408163
      %v2228 = vmul.f32 %v728, 0.020408163
      %v2229 = vmul.f32 %v731, 0.020408163
      %v2230 = vmul.f32 %v734, 0.020408163
      %v2231 = vmul.f32 %v737, 0.020408163
      %v2232 = vmul.f32 %v740, 0.020408163
      %v2233 = vmul.f32 %v743, 0.020408163
      %v2234 = vmul.f32 %v746, 0.020408163
      %v2235 = vmul.f32 %v749, 0.020408163
      %v2236 = vmul.f32 %v752, 0.020408163
      %v2237 = vmul.f32 %v755, 0.020408163
      %v2238 = vmul.f32 %v758, 0.020408163
      %v2239 = vmul.f32 %v761, 0.020408163
      %v2240 = vmul.f32 %v764, 0.020408163
      %v2241 = vmul.f32 %v767, 0.020408163
      %v2242 = vmul.f32 %v770, 0.020408163
      %v2243 = vmul.f32 %v773, 0.020408163
      %v2244 = vmul.f32 %v776, 0.020408163
      %v2245 = vmul.f32 %v779, 0.020408163
      %v2246 = vmul.f32 %v782, 0.020408163
      %v2247 = vmul.f32 %v785, 0.020408163
      %v2248 = vmul.f32 %v788, 0.020408163
      %v2249 = vmul.f32 %v791, 0.020408163
      %v2250 = vmul.f32 %v794, 0.020408163
      %v2251 = vmul.f32 %v797, 0.020408163
      %v2252 = vmul.f32 %v800, 0.020408163
      %v2253 = vmul.f32 %v803, 0.020408163
      %v2254 = vmul.f32 %v806, 0.020408163
      %v2255 = vmul.f32 %v809, 0.020408163
      %v2256 = vmul.f32 %v812, 0.020408163
      %v2257 = vmul.f32 %v815, 0.020408163
      %v2258 = vmul.f32 %v818, 0.020408163
      %v2259 = vmul.f32 %v821, 0.020408163
      %v2260 = vmul.f32 %v824, 0.020408163
      %v2261 = vmul.f32 %v827, 0.020408163
      %v2262 = vmul.f32 %v830, 0.020408163
      %v2263 = vmul.f32 %v833, 0.020408163
      %v2264 = vmul.f32 %v836, 0.020408163
      %v2265 = vmul.f32 %v839, 0.020408163
      %v2266 = vmul.f32 %v842, 0.020408163
      %v2267 = vmul.f32 %v845, 0.020408163
      %v2268 = vmul.f32 %v848, 0.020408163
      %v2269 = vmul.f32 %v851, 0.020408163
      %v2270 = vmul.f32 %v854, 0.020408163
      %v2271 = vmul.f32 %v857, 0.020408163
      %v2272 = vmul.f32 %v860, 0.020408163
      %v2273 = vmul.f32 %v863, 0.020408163
      %v2274 = vmul.f32 %v866, 0.020408163
      %v2275 = vmul.f32 %v869, 0.020408163
      %v2276 = vmul.f32 %v872, 0.020408163
      %v2277 = vmul.f32 %v875, 0.020408163
      %v2278 = vmul.f32 %v878, 0.020408163
      %v2279 = vmul.f32 %v881, 0.020408163
      %v2280 = vmul.f32 %v884, 0.020408163
      %v2281 = vmul.f32 %v887, 0.020408163
      %v2282 = vmul.f32 %v890, 0.020408163
      %v2283 = vmul.f32 %v893, 0.020408163
      %v2284 = vmul.f32 %v896, 0.020408163
      %v2285 = vmul.f32 %v899, 0.020408163
      %v2286 = vmul.f32 %v902, 0.020408163
      %v2287 = vmul.f32 %v905, 0.020408163
      %v2288 = vmul.f32 %v908, 0.020408163
      %v2289 = vmul.f32 %v911, 0.020408163
      %v2290 = vmul.f32 %v914, 0.020408163
      %v2291 = vmul.f32 %v917, 0.020408163
      %v2292 = vmul.f32 %v920, 0.020408163
      %v2293 = vmul.f32 %v923, 0.020408163
      %v2294 = vmul.f32 %v926, 0.020408163
      %v2295 = vmul.f32 %v929, 0.020408163
      %v2296 = vmul.f32 %v932, 0.020408163
      %v2297 = vmul.f32 %v935, 0.020408163
      %v2298 = vmul.f32 %v938, 0.020408163
      %v2299 = vmul.f32 %v941, 0.020408163
      %v2300 = vmul.f32 %v944, 0.020408163
      %v2301 = vmul.f32 %v947, 0.020408163
      %v2302 = vmul.f32 %v950, 0.020408163
      %v2303 = vmul.f32 %v953, 0.020408163
      %v2304 = vmul.f32 %v956, 0.020408163
      %v2305 = vmul.f32 %v959, 0.020408163
      %v2306 = vmul.f32 %v962, 0.020408163
      %v2307 = vmul.f32 %v965, 0.020408163
      %v2308 = vmul.f32 %v968, 0.020408163
      %v2309 = vmul.f32 %v971, 0.020408163
      %v2310 = vmul.f32 %v974, 0.020408163
      %v2311 = vmul.f32 %v977, 0.020408163
      %v2312 = vmul.f32 %v980, 0.020408163
      %v2313 = vmul.f32 %v983, 0.020408163
      %v2314 = vmul.f32 %v986, 0.020408163
      %v2315 = vmul.f32 %v989, 0.020408163
      %v2316 = vmul.f32 %v992, 0.020408163
      %v2317 = vmul.f32 %v995, 0.020408163
      %v2318 = vmul.f32 %v998, 0.020408163
      %v2319 = vmul.f32 %v1001, 0.020408163
      %v2320 = vmul.f32 %v1004, 0.020408163
      %v2321 = vmul.f32 %v1007, 0.020408163
      %v2322 = vmul.f32 %v1010, 0.020408163
      %v2323 = vmul.f32 %v1013, 0.020408163
      %v2324 = vmul.f32 %v1016, 0.020408163
      %v2325 = vmul.f32 %v1019, 0.020408163
      %v2326 = vmul.f32 %v1022, 0.020408163
      %v2327 = vmul.f32 %v1025, 0.020408163
      %v2328 = vmul.f32 %v1028, 0.020408163
      %v2329 = vmul.f32 %v1031, 0.020408163
      %v2330 = vmul.f32 %v1034, 0.020408163
      %v2331 = vmul.f32 %v1037, 0.020408163
      %v2332 = vmul.f32 %v1040, 0.020408163
      %v2333 = vmul.f32 %v1043, 0.020408163
      %v2334 = vmul.f32 %v1046, 0.020408163
      %v2335 = vmul.f32 %v1049, 0.020408163
      %v2336 = vmul.f32 %v1052, 0.020408163
      %v2337 = vmul.f32 %v1055, 0.020408163
      %v2338 = vmul.f32 %v1058, 0.020408163
      %v2339 = vmul.f32 %v1061, 0.020408163
      %v2340 = vmul.f32 %v1064, 0.020408163
      %v2341 = vmul.f32 %v1067, 0.020408163
      %v2342 = vmul.f32 %v1070, 0.020408163
      %v2343 = vmul.f32 %v1073, 0.020408163
      %v2344 = vmul.f32 %v1076, 0.020408163
      %v2345 = vmul.f32 %v1079, 0.020408163
      %v2346 = vmul.f32 %v1082, 0.020408163
      %v2347 = vmul.f32 %v1085, 0.020408163
      %v2348 = vmul.f32 %v1088, 0.020408163
      %v2349 = vmul.f32 %v1091, 0.020408163
      %v2350 = vmul.f32 %v1094, 0.020408163
      %v2351 = vmul.f32 %v1097, 0.020408163
      %v2352 = vmul.f32 %v1100, 0.020408163
      %v2353 = vmul.f32 %v1103, 0.020408163
      %v2354 = vmul.f32 %v1106, 0.020408163
      %v2355 = vmul.f32 %v1109, 0.020408163
      %v2356 = vmul.f32 %v1112, 0.020408163
      %v2357 = vmul.f32 %v1115, 0.020408163
      %v2358 = vmul.f32 %v1118, 0.020408163
      %v2359 = vmul.f32 %v1121, 0.020408163
      %v2360 = vmul.f32 %v1124, 0.020408163
      %v2361 = vmul.f32 %v1127, 0.020408163
      %v2362 = vmul.f32 %v1130, 0.020408163
      %v2363 = vmul.f32 %v1133, 0.020408163
      %v2364 = vmul.f32 %v1136, 0.020408163
      %v2365 = vmul.f32 %v1139, 0.020408163
      %v2366 = vmul.f32 %v1142, 0.020408163
      %v2367 = vmul.f32 %v1145, 0.020408163
      %v2368 = vmul.f32 %v1148, 0.020408163
      %v2369 = vmul.f32 %v1151, 0.020408163
      %v2370 = vmul.f32 %v1154, 0.020408163
      %v2371 = vmul.f32 %v1157, 0.020408163
      %v2372 = vmul.f32 %v1160, 0.020408163
      %v2373 = vmul.f32 %v1163, 0.020408163
      %v2374 = vmul.f32 %v1166, 0.020408163
      %v2375 = vmul.f32 %v1169, 0.020408163
      %v2376 = vmul.f32 %v1172, 0.020408163
      %v2377 = vmul.f32 %v1175, 0.020408163
      %v2378 = vmul.f32 %v1178, 0.020408163
      %v2379 = vmul.f32 %v1421, 0.020408163
      %v2380 = vmul.f32 %v1424, 0.020408163
      %v2381 = vmul.f32 %v1427, 0.020408163
      %v2382 = vmul.f32 %v1430, 0.020408163
      %v2383 = vmul.f32 %v1433, 0.020408163
      %v2384 = vmul.f32 %v1436, 0.020408163
      %v2385 = vmul.f32 %v1439, 0.020408163
      %v2386 = vmul.f32 %v1442, 0.020408163
      %v2387 = vmul.f32 %v1445, 0.020408163
      %v2388 = vmul.f32 %v1448, 0.020408163
      %v2389 = vmul.f32 %v1451, 0.020408163
      %v2390 = vmul.f32 %v1454, 0.020408163
      %v2391 = vmul.f32 %v1457, 0.020408163
      %v2392 = vmul.f32 %v1460, 0.020408163
      %v2393 = vmul.f32 %v1463, 0.020408163
      %v2394 = vmul.f32 %v1466, 0.020408163
      %v2395 = vmul.f32 %v1469, 0.020408163
      %v2396 = vmul.f32 %v1472, 0.020408163
      %v2397 = vmul.f32 %v1475, 0.020408163
      %v2398 = vmul.f32 %v1478, 0.020408163
      %v2399 = vmul.f32 %v1481, 0.020408163
      %v2400 = vmul.f32 %v1484, 0.020408163
      %v2401 = vmul.f32 %v1487, 0.020408163
      %v2402 = vmul.f32 %v1490, 0.020408163
      %v2403 = vmul.f32 %v1493, 0.020408163
      %v2404 = vmul.f32 %v1496, 0.020408163
      %v2405 = vmul.f32 %v1499, 0.020408163
      %v2406 = vmul.f32 %v1502, 0.020408163
      %v2407 = vmul.f32 %v1505, 0.020408163
      %v2408 = vmul.f32 %v1508, 0.020408163
      %v2409 = vmul.f32 %v1511, 0.020408163
      %v2410 = vmul.f32 %v1514, 0.020408163
      %v2411 = vmul.f32 %v1517, 0.020408163
      %v2412 = vmul.f32 %v1520, 0.020408163
      %v2413 = vmul.f32 %v1523, 0.020408163
      %v2414 = vmul.f32 %v1526, 0.020408163
      %v2415 = vmul.f32 %v1529, 0.020408163
      %v2416 = vmul.f32 %v1532, 0.020408163
      %v2417 = vmul.f32 %v1535, 0.020408163
      %v2418 = vmul.f32 %v1538, 0.020408163
      %v2419 = vmul.f32 %v1541, 0.020408163
      %v2420 = vmul.f32 %v1544, 0.020408163
      %v2421 = vmul.f32 %v1547, 0.020408163
      %v2422 = vmul.f32 %v1550, 0.020408163
      %v2423 = vmul.f32 %v1553, 0.020408163
      %v2424 = vmul.f32 %v1556, 0.020408163
      %v2425 = vmul.f32 %v1559, 0.020408163
      %v2426 = vmul.f32 %v1562, 0.020408163
      %v2427 = vmul.f32 %v1565, 0.020408163
      %v2428 = vmul.f32 %v1568, 0.020408163
      %v2429 = vmul.f32 %v1571, 0.020408163
      %v2430 = vmul.f32 %v1574, 0.020408163
      %v2431 = vmul.f32 %v1577, 0.020408163
      %v2432 = vmul.f32 %v1580, 0.020408163
      %v2433 = vmul.f32 %v1583, 0.020408163
      %v2434 = vmul.f32 %v1586, 0.020408163
      %v2435 = vmul.f32 %v1589, 0.020408163
      %v2436 = vmul.f32 %v1592, 0.020408163
      %v2437 = vmul.f32 %v1595, 0.020408163
      %v2438 = vmul.f32 %v1598, 0.020408163
      %v2439 = vmul.f32 %v1601, 0.020408163
      %v2440 = vmul.f32 %v1604, 0.020408163
      %v2441 = vmul.f32 %v1607, 0.020408163
      %v2442 = vmul.f32 %v1610, 0.020408163
      %v2443 = vmul.f32 %v1613, 0.020408163
      %v2444 = vmul.f32 %v1616, 0.020408163
      %v2445 = vmul.f32 %v1619, 0.020408163
      %v2446 = vmul.f32 %v1622, 0.020408163
      %v2447 = vmul.f32 %v1625, 0.020408163
      %v2448 = vmul.f32 %v1628, 0.020408163
      %v2449 = vmul.f32 %v1631, 0.020408163
      %v2450 = vmul.f32 %v1634, 0.020408163
      %v2451 = vmul.f32 %v1637, 0.020408163
      %v2452 = vmul.f32 %v1640, 0.020408163
      %v2453 = vmul.f32 %v1643, 0.020408163
      %v2454 = vmul.f32 %v1646, 0.020408163
      %v2455 = vmul.f32 %v1649, 0.020408163
      %v2456 = vmul.f32 %v1652, 0.020408163
      %v2457 = vmul.f32 %v1655, 0.020408163
      %v2458 = vmul.f32 %v1658, 0.020408163
      %v2459 = vmul.f32 %v1661, 0.020408163
      %v2460 = vmul.f32 %v1664, 0.020408163
      %v2461 = vmul.f32 %v1667, 0.020408163
      %v2462 = vmul.f32 %v1670, 0.020408163
      %v2463 = vmul.f32 %v1673, 0.020408163
      %v2464 = vmul.f32 %v1676, 0.020408163
      %v2465 = vmul.f32 %v1679, 0.020408163
      %v2466 = vmul.f32 %v1682, 0.020408163
      %v2467 = vmul.f32 %v1685, 0.020408163
      %v2468 = vmul.f32 %v1688, 0.020408163
      %v2469 = vmul.f32 %v1691, 0.020408163
      %v2470 = vmul.f32 %v1694, 0.020408163
      %v2471 = vmul.f32 %v1697, 0.020408163
      %v2472 = vmul.f32 %v1700, 0.020408163
      %v2473 = vmul.f32 %v1703, 0.020408163
      %v2474 = vmul.f32 %v1706, 0.020408163
      %v2475 = vmul.f32 %v1709, 0.020408163
      %v2476 = vmul.f32 %v1712, 0.020408163
      %v2477 = vmul.f32 %v1715, 0.020408163
      %v2478 = vmul.f32 %v1718, 0.020408163
      %v2479 = vmul.f32 %v1721, 0.020408163
      %v2480 = vmul.f32 %v1724, 0.020408163
      %v2481 = vmul.f32 %v1727, 0.020408163
      %v2482 = vmul.f32 %v1730, 0.020408163
      %v2483 = vmul.f32 %v1733, 0.020408163
      %v2484 = vmul.f32 %v1736, 0.020408163
      %v2485 = vmul.f32 %v1739, 0.020408163
      %v2486 = vmul.f32 %v1742, 0.020408163
      %v2487 = vmul.f32 %v1745, 0.020408163
      %v2488 = vmul.f32 %v1748, 0.020408163
      %v2489 = vmul.f32 %v1751, 0.020408163
      %v2490 = vmul.f32 %v1754, 0.020408163
      %v2491 = vmul.f32 %v1757, 0.020408163
      %v2492 = vmul.f32 %v1760, 0.020408163
      %v2493 = vmul.f32 %v1763, 0.020408163
      %v2494 = vmul.f32 %v1766, 0.020408163
      %v2495 = vmul.f32 %v1769, 0.020408163
      %v2496 = vmul.f32 %v1772, 0.020408163
      %v2497 = vmul.f32 %v1775, 0.020408163
      %v2498 = vmul.f32 %v1778, 0.020408163
      %v2499 = vmul.f32 %v1781, 0.020408163
      %v2500 = vmul.f32 %v1784, 0.020408163
      %v2501 = vmul.f32 %v1787, 0.020408163
      %v2502 = vmul.f32 %v1790, 0.020408163
      %v2503 = vmul.f32 %v1793, 0.020408163
      %v2504 = vmul.f32 %v1796, 0.020408163
      %v2505 = vmul.f32 %v1799, 0.020408163
      %v2506 = vmul.f32 %v1802, 0.020408163
      %v2507 = vmul.f32 %v1805, 0.020408163
      %v2508 = vmul.f32 %v1808, 0.020408163
      %v2509 = vmul.f32 %v1811, 0.020408163
      %v2510 = vmul.f32 %v1814, 0.020408163
      %v2511 = vmul.f32 %v1817, 0.020408163
      %v2512 = vmul.f32 %v1820, 0.020408163
      %v2513 = vmul.f32 %v1823, 0.020408163
      %v2514 = vmul.f32 %v1826, 0.020408163
      %v2515 = vmul.f32 %v1829, 0.020408163
      %v2516 = vmul.f32 %v1832, 0.020408163
      %v2517 = vmul.f32 %v1835, 0.020408163
      %v2518 = vmul.f32 %v1838, 0.020408163
      %v2519 = vmul.f32 %v1841, 0.020408163
      %v2520 = vmul.f32 %v1844, 0.020408163
      %v2521 = vmul.f32 %v1847, 0.020408163
      %v2522 = vmul.f32 %v1850, 0.020408163
      %v2523 = vmul.f32 %v1853, 0.020408163
      %v2524 = vmul.f32 %v1856, 0.020408163
      %v2525 = vmul.f32 %v1859, 0.020408163
      %v2526 = vmul.f32 %v1862, 0.020408163
      %v2527 = vmul.f32 %v1865, 0.020408163
      %v2528 = vmul.f32 %v1868, 0.020408163
      %v2529 = vmul.f32 %v1871, 0.020408163
      %v2530 = vmul.f32 %v1874, 0.020408163
      %v2531 = vmul.f32 %v1877, 0.020408163
      %v2532 = vmul.f32 %v1880, 0.020408163
      %v2533 = vmul.f32 %v1883, 0.020408163
      %v2534 = vmul.f32 %v1886, 0.020408163
      %v2535 = vmul.f32 %v1889, 0.020408163
      %v2536 = vmul.f32 %v1892, 0.020408163
      %v2537 = vmul.f32 %v1895, 0.020408163
      %v2538 = vmul.f32 %v1898, 0.020408163
      %v2539 = vmul.f32 %v1901, 0.020408163
      %v2540 = vmul.f32 %v1904, 0.020408163
      %v2541 = vmul.f32 %v1907, 0.020408163
      %v2542 = vmul.f32 %v1910, 0.020408163
      %v2543 = vmul.f32 %v1913, 0.020408163
      %v2544 = vmul.f32 %v1916, 0.020408163
      %v2545 = vmul.f32 %v1919, 0.020408163
      %v2546 = vmul.f32 %v1922, 0.020408163
      %v2547 = vmul.f32 %v1925, 0.020408163
      %v2548 = vmul.f32 %v1928, 0.020408163
      %v2549 = vmul.f32 %v1931, 0.020408163
      %v2550 = vmul.f32 %v1934, 0.020408163
      %v2551 = vmul.f32 %v1937, 0.020408163
      %v2552 = vmul.f32 %v1940, 0.020408163
      %v2553 = vmul.f32 %v1943, 0.020408163
      %v2554 = vmul.f32 %v1946, 0.020408163
      %v2555 = vmul.f32 %v1949, 0.020408163
      %v2556 = vmul.f32 %v1952, 0.020408163
      %v2557 = vmul.f32 %v1955, 0.020408163
      %v2558 = vmul.f32 %v1958, 0.020408163
      %v2559 = vmul.f32 %v1961, 0.020408163
      %v2560 = vmul.f32 %v1964, 0.020408163
      %v2561 = vmul.f32 %v1967, 0.020408163
      %v2562 = vmul.f32 %v1970, 0.020408163
      %v2563 = vmul.f32 %v1973, 0.020408163
      %v2564 = vmul.f32 %v1976, 0.020408163
      %v2565 = vmul.f32 %v1979, 0.020408163
      %v2566 = vmul.f32 %v1982, 0.020408163
      %v2567 = vmul.f32 %v1985, 0.020408163
      %v2568 = vmul.f32 %v1988, 0.020408163
      %v2569 = vmul.f32 %v1991, 0.020408163
      %v2570 = vmul.f32 %v1994, 0.020408163
      %v2571 = vmul.f32 %v1997, 0.020408163
      %v2572 = vmul.f32 %v2000, 0.020408163
      %v2573 = vmul.f32 %v2003, 0.020408163
      %v2574 = vmul.f32 %v2006, 0.020408163
      %v2575 = vmul.f32 %v2009, 0.020408163
      %v2576 = vmul.f32 %v2012, 0.020408163
      %v2577 = vmul.f32 %v2015, 0.020408163
      %v2578 = vmul.f32 %v2018, 0.020408163
      %v2579 = vmul.f32 %v2021, 0.020408163
      %v2580 = vmul.f32 %v2024, 0.020408163
      %v2581 = vmul.f32 %v2027, 0.020408163
      %v2582 = vmul.f32 %v2030, 0.020408163
      %v2583 = vmul.f32 %v2033, 0.020408163
      %v2584 = vmul.f32 %v2036, 0.020408163
      %v2585 = vmul.f32 %v2039, 0.020408163
      %v2586 = vmul.f32 %v2042, 0.020408163
      %v2587 = vmul.f32 %v2045, 0.020408163
      %v2588 = vmul.f32 %v2048, 0.020408163
      %v2589 = vmul.f32 %v2051, 0.020408163
      %v2590 = vmul.f32 %v2054, 0.020408163
      %v2591 = vmul.f32 %v2057, 0.020408163
      %v2592 = vmul.f32 %v2060, 0.020408163
      %v2593 = vmul.f32 %v2063, 0.020408163
      %v2594 = vmul.f32 %v2066, 0.020408163
      %v2595 = vmul.f32 %v2069, 0.020408163
      %v2596 = vmul.f32 %v2072, 0.020408163
      %v2597 = vmul.f32 %v2075, 0.020408163
      %v2598 = vmul.f32 %v2078, 0.020408163
      %v2599 = vmul.f32 %v2081, 0.020408163
      %v2600 = vmul.f32 %v2084, 0.020408163
      %v2601 = vmul.f32 %v2087, 0.020408163
      %v2602 = vmul.f32 %v2090, 0.020408163
      %v2603 = vmul.f32 %v2093, 0.020408163
      %v2604 = vmul.f32 %v2096, 0.020408163
      %v2605 = vmul.f32 %v2099, 0.020408163
      %v2606 = vmul.f32 %v2102, 0.020408163
      %v2607 = vmul.f32 %v2105, 0.020408163
      %v2608 = vmul.f32 %v2108, 0.020408163
      %v2609 = vmul.f32 %v2111, 0.020408163
      %v2610 = vmul.f32 %v2114, 0.020408163
      %v2611 = vmul.f32 %v2117, 0.020408163
      %v2612 = vmul.f32 %v2120, 0.020408163
      %v2613 = vmul.f32 %v2123, 0.020408163
      %v2614 = vmul.f32 %v2126, 0.020408163
      %v2615 = vmul.f32 %v2129, 0.020408163
      %v2616 = vmul.f32 %v2132, 0.020408163
      %v2617 = vmul.f32 %v2135, 0.020408163
      %v2618 = vmul.f32 %v2138, 0.020408163
      %v2619 = vmul.f32 %v2139, %v2139
      %v2620 = vmul.f32 %v2140, %v2140
      %v2621 = vmul.f32 %v2141, %v2141
      %v2622 = vmul.f32 %v2142, %v2142
      %v2623 = vmul.f32 %v2143, %v2143
      %v2624 = vmul.f32 %v2144, %v2144
      %v2625 = vmul.f32 %v2145, %v2145
      %v2626 = vmul.f32 %v2146, %v2146
      %v2627 = vmul.f32 %v2147, %v2147
      %v2628 = vmul.f32 %v2148, %v2148
      %v2629 = vmul.f32 %v2149, %v2149
      %v2630 = vmul.f32 %v2150, %v2150
      %v2631 = vmul.f32 %v2151, %v2151
      %v2632 = vmul.f32 %v2152, %v2152
      %v2633 = vmul.f32 %v2153, %v2153
      %v2634 = vmul.f32 %v2154, %v2154
      %v2635 = vmul.f32 %v2155, %v2155
      %v2636 = vmul.f32 %v2156, %v2156
      %v2637 = vmul.f32 %v2157, %v2157
      %v2638 = vmul.f32 %v2158, %v2158
      %v2639 = vmul.f32 %v2159, %v2159
      %v2640 = vmul.f32 %v2160, %v2160
      %v2641 = vmul.f32 %v2161, %v2161
      %v2642 = vmul.f32 %v2162, %v2162
      %v2643 = vmul.f32 %v2163, %v2163
      %v2644 = vmul.f32 %v2164, %v2164
      %v2645 = vmul.f32 %v2165, %v2165
      %v2646 = vmul.f32 %v2166, %v2166
      %v2647 = vmul.f32 %v2167, %v2167
      %v2648 = vmul.f32 %v2168, %v2168
      %v2649 = vmul.f32 %v2169, %v2169
      %v2650 = vmul.f32 %v2170, %v2170
      %v2651 = vmul.f32 %v2171, %v2171
      %v2652 = vmul.f32 %v2172, %v2172
      %v2653 = vmul.f32 %v2173, %v2173
      %v2654 = vmul.f32 %v2174, %v2174
      %v2655 = vmul.f32 %v2175, %v2175
      %v2656 = vmul.f32 %v2176, %v2176
      %v2657 = vmul.f32 %v2177, %v2177
      %v2658 = vmul.f32 %v2178, %v2178
      %v2659 = vmul.f32 %v2179, %v2179
      %v2660 = vmul.f32 %v2180, %v2180
      %v2661 = vmul.f32 %v2181, %v2181
      %v2662 = vmul.f32 %v2182, %v2182
      %v2663 = vmul.f32 %v2183, %v2183
      %v2664 = vmul.f32 %v2184, %v2184
      %v2665 = vmul.f32 %v2185, %v2185
      %v2666 = vmul.f32 %v2186, %v2186
      %v2667 = vmul.f32 %v2187, %v2187
      %v2668 = vmul.f32 %v2188, %v2188
      %v2669 = vmul.f32 %v2189, %v2189
      %v2670 = vmul.f32 %v2190, %v2190
      %v2671 = vmul.f32 %v2191, %v2191
      %v2672 = vmul.f32 %v2192, %v2192
      %v2673 = vmul.f32 %v2193, %v2193
      %v2674 = vmul.f32 %v2194, %v2194
      %v2675 = vmul.f32 %v2195, %v2195
      %v2676 = vmul.f32 %v2196, %v2196
      %v2677 = vmul.f32 %v2197, %v2197
      %v2678 = vmul.f32 %v2198, %v2198
      %v2679 = vmul.f32 %v2199, %v2199
      %v2680 = vmul.f32 %v2200, %v2200
      %v2681 = vmul.f32 %v2201, %v2201
      %v2682 = vmul.f32 %v2202, %v2202
      %v2683 = vmul.f32 %v2203, %v2203
      %v2684 = vmul.f32 %v2204, %v2204
      %v2685 = vmul.f32 %v2205, %v2205
      %v2686 = vmul.f32 %v2206, %v2206
      %v2687 = vmul.f32 %v2207, %v2207
      %v2688 = vmul.f32 %v2208, %v2208
      %v2689 = vmul.f32 %v2209, %v2209
      %v2690 = vmul.f32 %v2210, %v2210
      %v2691 = vmul.f32 %v2211, %v2211
      %v2692 = vmul.f32 %v2212, %v2212
      %v2693 = vmul.f32 %v2213, %v2213
      %v2694 = vmul.f32 %v2214, %v2214
      %v2695 = vmul.f32 %v2215, %v2215
      %v2696 = vmul.f32 %v2216, %v2216
      %v2697 = vmul.f32 %v2217, %v2217
      %v2698 = vmul.f32 %v2218, %v2218
      %v2699 = vmul.f32 %v2219, %v2219
      %v2700 = vmul.f32 %v2220, %v2220
      %v2701 = vmul.f32 %v2221, %v2221
      %v2702 = vmul.f32 %v2222, %v2222
      %v2703 = vmul.f32 %v2223, %v2223
      %v2704 = vmul.f32 %v2224, %v2224
      %v2705 = vmul.f32 %v2225, %v2225
      %v2706 = vmul.f32 %v2226, %v2226
      %v2707 = vmul.f32 %v2227, %v2227
      %v2708 = vmul.f32 %v2228, %v2228
      %v2709 = vmul.f32 %v2229, %v2229
      %v2710 = vmul.f32 %v2230, %v2230
      %v2711 = vmul.f32 %v2231, %v2231
      %v2712 = vmul.f32 %v2232, %v2232
      %v2713 = vmul.f32 %v2233, %v2233
      %v2714 = vmul.f32 %v2234, %v2234
      %v2715 = vmul.f32 %v2235, %v2235
      %v2716 = vmul.f32 %v2236, %v2236
      %v2717 = vmul.f32 %v2237, %v2237
      %v2718 = vmul.f32 %v2238, %v2238
      %v2719 = vmul.f32 %v2239, %v2239
      %v2720 = vmul.f32 %v2240, %v2240
      %v2721 = vmul.f32 %v2241, %v2241
      %v2722 = vmul.f32 %v2242, %v2242
      %v2723 = vmul.f32 %v2243, %v2243
      %v2724 = vmul.f32 %v2244, %v2244
      %v2725 = vmul.f32 %v2245, %v2245
      %v2726 = vmul.f32 %v2246, %v2246
      %v2727 = vmul.f32 %v2247, %v2247
      %v2728 = vmul.f32 %v2248, %v2248
      %v2729 = vmul.f32 %v2249, %v2249
      %v2730 = vmul.f32 %v2250, %v2250
      %v2731 = vmul.f32 %v2251, %v2251
      %v2732 = vmul.f32 %v2252, %v2252
      %v2733 = vmul.f32 %v2253, %v2253
      %v2734 = vmul.f32 %v2254, %v2254
      %v2735 = vmul.f32 %v2255, %v2255
      %v2736 = vmul.f32 %v2256, %v2256
      %v2737 = vmul.f32 %v2257, %v2257
      %v2738 = vmul.f32 %v2258, %v2258
      %v2739 = vmul.f32 %v2259, %v2259
      %v2740 = vmul.f32 %v2260, %v2260
      %v2741 = vmul.f32 %v2261, %v2261
      %v2742 = vmul.f32 %v2262, %v2262
      %v2743 = vmul.f32 %v2263, %v2263
      %v2744 = vmul.f32 %v2264, %v2264
      %v2745 = vmul.f32 %v2265, %v2265
      %v2746 = vmul.f32 %v2266, %v2266
      %v2747 = vmul.f32 %v2267, %v2267
      %v2748 = vmul.f32 %v2268, %v2268
      %v2749 = vmul.f32 %v2269, %v2269
      %v2750 = vmul.f32 %v2270, %v2270
      %v2751 = vmul.f32 %v2271, %v2271
      %v2752 = vmul.f32 %v2272, %v2272
      %v2753 = vmul.f32 %v2273, %v2273
      %v2754 = vmul.f32 %v2274, %v2274
      %v2755 = vmul.f32 %v2275, %v2275
      %v2756 = vmul.f32 %v2276, %v2276
      %v2757 = vmul.f32 %v2277, %v2277
      %v2758 = vmul.f32 %v2278, %v2278
      %v2759 = vmul.f32 %v2279, %v2279
      %v2760 = vmul.f32 %v2280, %v2280
      %v2761 = vmul.f32 %v2281, %v2281
      %v2762 = vmul.f32 %v2282, %v2282
      %v2763 = vmul.f32 %v2283, %v2283
      %v2764 = vmul.f32 %v2284, %v2284
      %v2765 = vmul.f32 %v2285, %v2285
      %v2766 = vmul.f32 %v2286, %v2286
      %v2767 = vmul.f32 %v2287, %v2287
      %v2768 = vmul.f32 %v2288, %v2288
      %v2769 = vmul.f32 %v2289, %v2289
      %v2770 = vmul.f32 %v2290, %v2290
      %v2771 = vmul.f32 %v2291, %v2291
      %v2772 = vmul.f32 %v2292, %v2292
      %v2773 = vmul.f32 %v2293, %v2293
      %v2774 = vmul.f32 %v2294, %v2294
      %v2775 = vmul.f32 %v2295, %v2295
      %v2776 = vmul.f32 %v2296, %v2296
      %v2777 = vmul.f32 %v2297, %v2297
      %v2778 = vmul.f32 %v2298, %v2298
      %v2779 = vmul.f32 %v2299, %v2299
      %v2780 = vmul.f32 %v2300, %v2300
      %v2781 = vmul.f32 %v2301, %v2301
      %v2782 = vmul.f32 %v2302, %v2302
      %v2783 = vmul.f32 %v2303, %v2303
      %v2784 = vmul.f32 %v2304, %v2304
      %v2785 = vmul.f32 %v2305, %v2305
      %v2786 = vmul.f32 %v2306, %v2306
      %v2787 = vmul.f32 %v2307, %v2307
      %v2788 = vmul.f32 %v2308, %v2308
      %v2789 = vmul.f32 %v2309, %v2309
      %v2790 = vmul.f32 %v2310, %v2310
      %v2791 = vmul.f32 %v2311, %v2311
      %v2792 = vmul.f32 %v2312, %v2312
      %v2793 = vmul.f32 %v2313, %v2313
      %v2794 = vmul.f32 %v2314, %v2314
      %v2795 = vmul.f32 %v2315, %v2315
      %v2796 = vmul.f32 %v2316, %v2316
      %v2797 = vmul.f32 %v2317, %v2317
      %v2798 = vmul.f32 %v2318, %v2318
      %v2799 = vmul.f32 %v2319, %v2319
      %v2800 = vmul.f32 %v2320, %v2320
      %v2801 = vmul.f32 %v2321, %v2321
      %v2802 = vmul.f32 %v2322, %v2322
      %v2803 = vmul.f32 %v2323, %v2323
      %v2804 = vmul.f32 %v2324, %v2324
      %v2805 = vmul.f32 %v2325, %v2325
      %v2806 = vmul.f32 %v2326, %v2326
      %v2807 = vmul.f32 %v2327, %v2327
      %v2808 = vmul.f32 %v2328, %v2328
      %v2809 = vmul.f32 %v2329, %v2329
      %v2810 = vmul.f32 %v2330, %v2330
      %v2811 = vmul.f32 %v2331, %v2331
      %v2812 = vmul.f32 %v2332, %v2332
      %v2813 = vmul.f32 %v2333, %v2333
      %v2814 = vmul.f32 %v2334, %v2334
      %v2815 = vmul.f32 %v2335, %v2335
      %v2816 = vmul.f32 %v2336, %v2336
      %v2817 = vmul.f32 %v2337, %v2337
      %v2818 = vmul.f32 %v2338, %v2338
      %v2819 = vmul.f32 %v2339, %v2339
      %v2820 = vmul.f32 %v2340, %v2340
      %v2821 = vmul.f32 %v2341, %v2341
      %v2822 = vmul.f32 %v2342, %v2342
      %v2823 = vmul.f32 %v2343, %v2343
      %v2824 = vmul.f32 %v2344, %v2344
      %v2825 = vmul.f32 %v2345, %v2345
      %v2826 = vmul.f32 %v2346, %v2346
      %v2827 = vmul.f32 %v2347, %v2347
      %v2828 = vmul.f32 %v2348, %v2348
      %v2829 = vmul.f32 %v2349, %v2349
      %v2830 = vmul.f32 %v2350, %v2350
      %v2831 = vmul.f32 %v2351, %v2351
      %v2832 = vmul.f32 %v2352, %v2352
      %v2833 = vmul.f32 %v2353, %v2353
      %v2834 = vmul.f32 %v2354, %v2354
      %v2835 = vmul.f32 %v2355, %v2355
      %v2836 = vmul.f32 %v2356, %v2356
      %v2837 = vmul.f32 %v2357, %v2357
      %v2838 = vmul.f32 %v2358, %v2358
      %v2839 = vmul.f32 %v2359, %v2359
      %v2840 = vmul.f32 %v2360, %v2360
      %v2841 = vmul.f32 %v2361, %v2361
      %v2842 = vmul.f32 %v2362, %v2362
      %v2843 = vmul.f32 %v2363, %v2363
      %v2844 = vmul.f32 %v2364, %v2364
      %v2845 = vmul.f32 %v2365, %v2365
      %v2846 = vmul.f32 %v2366, %v2366
      %v2847 = vmul.f32 %v2367, %v2367
      %v2848 = vmul.f32 %v2368, %v2368
      %v2849 = vmul.f32 %v2369, %v2369
      %v2850 = vmul.f32 %v2370, %v2370
      %v2851 = vmul.f32 %v2371, %v2371
      %v2852 = vmul.f32 %v2372, %v2372
      %v2853 = vmul.f32 %v2373, %v2373
      %v2854 = vmul.f32 %v2374, %v2374
      %v2855 = vmul.f32 %v2375, %v2375
      %v2856 = vmul.f32 %v2376, %v2376
      %v2857 = vmul.f32 %v2377, %v2377
      %v2858 = vmul.f32 %v2378, %v2378
      %v2859 = vsub.f32 %v2379, %v2619
      %v2860 = vsub.f32 %v2380, %v2620
      %v2861 = vsub.f32 %v2381, %v2621
      %v2862 = vsub.f32 %v2382, %v2622
      %v2863 = vsub.f32 %v2383, %v2623
      %v2864 = vsub.f32 %v2384, %v2624
      %v2865 = vsub.f32 %v2385, %v2625
      %v2866 = vsub.f32 %v2386, %v2626
      %v2867 = vsub.f32 %v2387, %v2627
      %v2868 = vsub.f32 %v2388, %v2628
      %v2869 = vsub.f32 %v2389, %v2629
      %v2870 = vsub.f32 %v2390, %v2630
      %v2871 = vsub.f32 %v2391, %v2631
      %v2872 = vsub.f32 %v2392, %v2632
      %v2873 = vsub.f32 %v2393, %v2633
      %v2874 = vsub.f32 %v2394, %v2634
      %v2875 = vsub.f32 %v2395, %v2635
      %v2876 = vsub.f32 %v2396, %v2636
      %v2877 = vsub.f32 %v2397, %v2637
      %v2878 = vsub.f32 %v2398, %v2638
      %v2879 = vsub.f32 %v2399, %v2639
      %v2880 = vsub.f32 %v2400, %v2640
      %v2881 = vsub.f32 %v2401, %v2641
      %v2882 = vsub.f32 %v2402, %v2642
      %v2883 = vsub.f32 %v2403, %v2643
      %v2884 = vsub.f32 %v2404, %v2644
      %v2885 = vsub.f32 %v2405, %v2645
      %v2886 = vsub.f32 %v2406, %v2646
      %v2887 = vsub.f32 %v2407, %v2647
      %v2888 = vsub.f32 %v2408, %v2648
      %v2889 = vsub.f32 %v2409, %v2649
      %v2890 = vsub.f32 %v2410, %v2650
      %v2891 = vsub.f32 %v2411, %v2651
      %v2892 = vsub.f32 %v2412, %v2652
      %v2893 = vsub.f32 %v2413, %v2653
      %v2894 = vsub.f32 %v2414, %v2654
      %v2895 = vsub.f32 %v2415, %v2655
      %v2896 = vsub.f32 %v2416, %v2656
      %v2897 = vsub.f32 %v2417, %v2657
      %v2898 = vsub.f32 %v2418, %v2658
      %v2899 = vsub.f32 %v2419, %v2659
      %v2900 = vsub.f32 %v2420, %v2660
      %v2901 = vsub.f32 %v2421, %v2661
      %v2902 = vsub.f32 %v2422, %v2662
      %v2903 = vsub.f32 %v2423, %v2663
      %v2904 = vsub.f32 %v2424, %v2664
      %v2905 = vsub.f32 %v2425, %v2665
      %v2906 = vsub.f32 %v2426, %v2666
      %v2907 = vsub.f32 %v2427, %v2667
      %v2908 = vsub.f32 %v2428, %v2668
      %v2909 = vsub.f32 %v2429, %v2669
      %v2910 = vsub.f32 %v2430, %v2670
      %v2911 = vsub.f32 %v2431, %v2671
      %v2912 = vsub.f32 %v2432, %v2672
      %v2913 = vsub.f32 %v2433, %v2673
      %v2914 = vsub.f32 %v2434, %v2674
      %v2915 = vsub.f32 %v2435, %v2675
      %v2916 = vsub.f32 %v2436, %v2676
      %v2917 = vsub.f32 %v2437, %v2677
      %v2918 = vsub.f32 %v2438, %v2678
      %v2919 = vsub.f32 %v2439, %v2679
      %v2920 = vsub.f32 %v2440, %v2680
      %v2921 = vsub.f32 %v2441, %v2681
      %v2922 = vsub.f32 %v2442, %v2682
      %v2923 = vsub.f32 %v2443, %v2683
      %v2924 = vsub.f32 %v2444, %v2684
      %v2925 = vsub.f32 %v2445, %v2685
      %v2926 = vsub.f32 %v2446, %v2686
      %v2927 = vsub.f32 %v2447, %v2687
      %v2928 = vsub.f32 %v2448, %v2688
      %v2929 = vsub.f32 %v2449, %v2689
      %v2930 = vsub.f32 %v2450, %v2690
      %v2931 = vsub.f32 %v2451, %v2691
      %v2932 = vsub.f32 %v2452, %v2692
      %v2933 = vsub.f32 %v2453, %v2693
      %v2934 = vsub.f32 %v2454, %v2694
      %v2935 = vsub.f32 %v2455, %v2695
      %v2936 = vsub.f32 %v2456, %v2696
      %v2937 = vsub.f32 %v2457, %v2697
      %v2938 = vsub.f32 %v2458, %v2698
      %v2939 = vsub.f32 %v2459, %v2699
      %v2940 = vsub.f32 %v2460, %v2700
      %v2941 = vsub.f32 %v2461, %v2701
      %v2942 = vsub.f32 %v2462, %v2702
      %v2943 = vsub.f32 %v2463, %v2703
      %v2944 = vsub.f32 %v2464, %v2704
      %v2945 = vsub.f32 %v2465, %v2705
      %v2946 = vsub.f32 %v2466, %v2706
      %v2947 = vsub.f32 %v2467, %v2707
      %v2948 = vsub.f32 %v2468, %v2708
      %v2949 = vsub.f32 %v2469, %v2709
      %v2950 = vsub.f32 %v2470, %v2710
      %v2951 = vsub.f32 %v2471, %v2711
      %v2952 = vsub.f32 %v2472, %v2712
      %v2953 = vsub.f32 %v2473, %v2713
      %v2954 = vsub.f32 %v2474, %v2714
      %v2955 = vsub.f32 %v2475, %v2715
      %v2956 = vsub.f32 %v2476, %v2716
      %v2957 = vsub.f32 %v2477, %v2717
      %v2958 = vsub.f32 %v2478, %v2718
      %v2959 = vsub.f32 %v2479, %v2719
      %v2960 = vsub.f32 %v2480, %v2720
      %v2961 = vsub.f32 %v2481, %v2721
      %v2962 = vsub.f32 %v2482, %v2722
      %v2963 = vsub.f32 %v2483, %v2723
      %v2964 = vsub.f32 %v2484, %v2724
      %v2965 = vsub.f32 %v2485, %v2725
      %v2966 = vsub.f32 %v2486, %v2726
      %v2967 = vsub.f32 %v2487, %v2727
      %v2968 = vsub.f32 %v2488, %v2728
      %v2969 = vsub.f32 %v2489, %v2729
      %v2970 = vsub.f32 %v2490, %v2730
      %v2971 = vsub.f32 %v2491, %v2731
      %v2972 = vsub.f32 %v2492, %v2732
      %v2973 = vsub.f32 %v2493, %v2733
      %v2974 = vsub.f32 %v2494, %v2734
      %v2975 = vsub.f32 %v2495, %v2735
      %v2976 = vsub.f32 %v2496, %v2736
      %v2977 = vsub.f32 %v2497, %v2737
      %v2978 = vsub.f32 %v2498, %v2738
      %v2979 = vsub.f32 %v2499, %v2739
      %v2980 = vsub.f32 %v2500, %v2740
      %v2981 = vsub.f32 %v2501, %v2741
      %v2982 = vsub.f32 %v2502, %v2742
      %v2983 = vsub.f32 %v2503, %v2743
      %v2984 = vsub.f32 %v2504, %v2744
      %v2985 = vsub.f32 %v2505, %v2745
      %v2986 = vsub.f32 %v2506, %v2746
      %v2987 = vsub.f32 %v2507, %v2747
      %v2988 = vsub.f32 %v2508, %v2748
      %v2989 = vsub.f32 %v2509, %v2749
      %v2990 = vsub.f32 %v2510, %v2750
      %v2991 = vsub.f32 %v2511, %v2751
      %v2992 = vsub.f32 %v2512, %v2752
      %v2993 = vsub.f32 %v2513, %v2753
      %v2994 = vsub.f32 %v2514, %v2754
      %v2995 = vsub.f32 %v2515, %v2755
      %v2996 = vsub.f32 %v2516, %v2756
      %v2997 = vsub.f32 %v2517, %v2757
      %v2998 = vsub.f32 %v2518, %v2758
      %v2999 = vsub.f32 %v2519, %v2759
      %v3000 = vsub.f32 %v2520, %v2760
      %v3001 = vsub.f32 %v2521, %v2761
      %v3002 = vsub.f32 %v2522, %v2762
      %v3003 = vsub.f32 %v2523, %v2763
      %v3004 = vsub.f32 %v2524, %v2764
      %v3005 = vsub.f32 %v2525, %v2765
      %v3006 = vsub.f32 %v2526, %v2766
      %v3007 = vsub.f32 %v2527, %v2767
      %v3008 = vsub.f32 %v2528, %v2768
      %v3009 = vsub.f32 %v2529, %v2769
      %v3010 = vsub.f32 %v2530, %v2770
      %v3011 = vsub.f32 %v2531, %v2771
      %v3012 = vsub.f32 %v2532, %v2772
      %v3013 = vsub.f32 %v2533, %v2773
      %v3014 = vsub.f32 %v2534, %v2774
      %v3015 = vsub.f32 %v2535, %v2775
      %v3016 = vsub.f32 %v2536, %v2776
      %v3017 = vsub.f32 %v2537, %v2777
      %v3018 = vsub.f32 %v2538, %v2778
      %v3019 = vsub.f32 %v2539, %v2779
      %v3020 = vsub.f32 %v2540, %v2780
      %v3021 = vsub.f32 %v2541, %v2781
      %v3022 = vsub.f32 %v2542, %v2782
      %v3023 = vsub.f32 %v2543, %v2783
      %v3024 = vsub.f32 %v2544, %v2784
      %v3025 = vsub.f32 %v2545, %v2785
      %v3026 = vsub.f32 %v2546, %v2786
      %v3027 = vsub.f32 %v2547, %v2787
      %v3028 = vsub.f32 %v2548, %v2788
      %v3029 = vsub.f32 %v2549, %v2789
      %v3030 = vsub.f32 %v2550, %v2790
      %v3031 = vsub.f32 %v2551, %v2791
      %v3032 = vsub.f32 %v2552, %v2792
      %v3033 = vsub.f32 %v2553, %v2793
      %v3034 = vsub.f32 %v2554, %v2794
      %v3035 = vsub.f32 %v2555, %v2795
      %v3036 = vsub.f32 %v2556, %v2796
      %v3037 = vsub.f32 %v2557, %v2797
      %v3038 = vsub.f32 %v2558, %v2798
      %v3039 = vsub.f32 %v2559, %v2799
      %v3040 = vsub.f32 %v2560, %v2800
      %v3041 = vsub.f32 %v2561, %v2801
      %v3042 = vsub.f32 %v2562, %v2802
      %v3043 = vsub.f32 %v2563, %v2803
      %v3044 = vsub.f32 %v2564, %v2804
      %v3045 = vsub.f32 %v2565, %v2805
      %v3046 = vsub.f32 %v2566, %v2806
      %v3047 = vsub.f32 %v2567, %v2807
      %v3048 = vsub.f32 %v2568, %v2808
      %v3049 = vsub.f32 %v2569, %v2809
      %v3050 = vsub.f32 %v2570, %v2810
      %v3051 = vsub.f32 %v2571, %v2811
      %v3052 = vsub.f32 %v2572, %v2812
      %v3053 = vsub.f32 %v2573, %v2813
      %v3054 = vsub.f32 %v2574, %v2814
      %v3055 = vsub.f32 %v2575, %v2815
      %v3056 = vsub.f32 %v2576, %v2816
      %v3057 = vsub.f32 %v2577, %v2817
      %v3058 = vsub.f32 %v2578, %v2818
      %v3059 = vsub.f32 %v2579, %v2819
      %v3060 = vsub.f32 %v2580, %v2820
      %v3061 = vsub.f32 %v2581, %v2821
      %v3062 = vsub.f32 %v2582, %v2822
      %v3063 = vsub.f32 %v2583, %v2823
      %v3064 = vsub.f32 %v2584, %v2824
      %v3065 = vsub.f32 %v2585, %v2825
      %v3066 = vsub.f32 %v2586, %v2826
      %v3067 = vsub.f32 %v2587, %v2827
      %v3068 = vsub.f32 %v2588, %v2828
      %v3069 = vsub.f32 %v2589, %v2829
      %v3070 = vsub.f32 %v2590, %v2830
      %v3071 = vsub.f32 %v2591, %v2831
      %v3072 = vsub.f32 %v2592, %v2832
      %v3073 = vsub.f32 %v2593, %v2833
      %v3074 = vsub.f32 %v2594, %v2834
      %v3075 = vsub.f32 %v2595, %v2835
      %v3076 = vsub.f32 %v2596, %v2836
      %v3077 = vsub.f32 %v2597, %v2837
      %v3078 = vsub.f32 %v2598, %v2838
      %v3079 = vsub.f32 %v2599, %v2839
      %v3080 = vsub.f32 %v2600, %v2840
      %v3081 = vsub.f32 %v2601, %v2841
      %v3082 = vsub.f32 %v2602, %v2842
      %v3083 = vsub.f32 %v2603, %v2843
      %v3084 = vsub.f32 %v2604, %v2844
      %v3085 = vsub.f32 %v2605, %v2845
      %v3086 = vsub.f32 %v2606, %v2846
      %v3087 = vsub.f32 %v2607, %v2847
      %v3088 = vsub.f32 %v2608, %v2848
      %v3089 = vsub.f32 %v2609, %v2849
      %v3090 = vsub.f32 %v2610, %v2850
      %v3091 = vsub.f32 %v2611, %v2851
      %v3092 = vsub.f32 %v2612, %v2852
      %v3093 = vsub.f32 %v2613, %v2853
      %v3094 = vsub.f32 %v2614, %v2854
      %v3095 = vsub.f32 %v2615, %v2855
      %v3096 = vsub.f32 %v2616, %v2856
      %v3097 = vsub.f32 %v2617, %v2857
      %v3098 = vsub.f32 %v2618, %v2858
      %v3099 = vadd.f32 %v2859, 0.001
      %v3100 = vadd.f32 %v2860, 0.001
      %v3101 = vadd.f32 %v2861, 0.001
      %v3102 = vadd.f32 %v2862, 0.001
      %v3103 = vadd.f32 %v2863, 0.001
      %v3104 = vadd.f32 %v2864, 0.001
      %v3105 = vadd.f32 %v2865, 0.001
      %v3106 = vadd.f32 %v2866, 0.001
      %v3107 = vadd.f32 %v2867, 0.001
      %v3108 = vadd.f32 %v2868, 0.001
      %v3109 = vadd.f32 %v2869, 0.001
      %v3110 = vadd.f32 %v2870, 0.001
      %v3111 = vadd.f32 %v2871, 0.001
      %v3112 = vadd.f32 %v2872, 0.001
      %v3113 = vadd.f32 %v2873, 0.001
      %v3114 = vadd.f32 %v2874, 0.001
      %v3115 = vadd.f32 %v2875, 0.001
      %v3116 = vadd.f32 %v2876, 0.001
      %v3117 = vadd.f32 %v2877, 0.001
      %v3118 = vadd.f32 %v2878, 0.001
      %v3119 = vadd.f32 %v2879, 0.001
      %v3120 = vadd.f32 %v2880, 0.001
      %v3121 = vadd.f32 %v2881, 0.001
      %v3122 = vadd.f32 %v2882, 0.001
      %v3123 = vadd.f32 %v2883, 0.001
      %v3124 = vadd.f32 %v2884, 0.001
      %v3125 = vadd.f32 %v2885, 0.001
      %v3126 = vadd.f32 %v2886, 0.001
      %v3127 = vadd.f32 %v2887, 0.001
      %v3128 = vadd.f32 %v2888, 0.001
      %v3129 = vadd.f32 %v2889, 0.001
      %v3130 = vadd.f32 %v2890, 0.001
      %v3131 = vadd.f32 %v2891, 0.001
      %v3132 = vadd.f32 %v2892, 0.001
      %v3133 = vadd.f32 %v2893, 0.001
      %v3134 = vadd.f32 %v2894, 0.001
      %v3135 = vadd.f32 %v2895, 0.001
      %v3136 = vadd.f32 %v2896, 0.001
      %v3137 = vadd.f32 %v2897, 0.001
      %v3138 = vadd.f32 %v2898, 0.001
      %v3139 = vadd.f32 %v2899, 0.001
      %v3140 = vadd.f32 %v2900, 0.001
      %v3141 = vadd.f32 %v2901, 0.001
      %v3142 = vadd.f32 %v2902, 0.001
      %v3143 = vadd.f32 %v2903, 0.001
      %v3144 = vadd.f32 %v2904, 0.001
      %v3145 = vadd.f32 %v2905, 0.001
      %v3146 = vadd.f32 %v2906, 0.001
      %v3147 = vadd.f32 %v2907, 0.001
      %v3148 = vadd.f32 %v2908, 0.001
      %v3149 = vadd.f32 %v2909, 0.001
      %v3150 = vadd.f32 %v2910, 0.001
      %v3151 = vadd.f32 %v2911, 0.001
      %v3152 = vadd.f32 %v2912, 0.001
      %v3153 = vadd.f32 %v2913, 0.001
      %v3154 = vadd.f32 %v2914, 0.001
      %v3155 = vadd.f32 %v2915, 0.001
      %v3156 = vadd.f32 %v2916, 0.001
      %v3157 = vadd.f32 %v2917, 0.001
      %v3158 = vadd.f32 %v2918, 0.001
      %v3159 = vadd.f32 %v2919, 0.001
      %v3160 = vadd.f32 %v2920, 0.001
      %v3161 = vadd.f32 %v2921, 0.001
      %v3162 = vadd.f32 %v2922, 0.001
      %v3163 = vadd.f32 %v2923, 0.001
      %v3164 = vadd.f32 %v2924, 0.001
      %v3165 = vadd.f32 %v2925, 0.001
      %v3166 = vadd.f32 %v2926, 0.001
      %v3167 = vadd.f32 %v2927, 0.001
      %v3168 = vadd.f32 %v2928, 0.001
      %v3169 = vadd.f32 %v2929, 0.001
      %v3170 = vadd.f32 %v2930, 0.001
      %v3171 = vadd.f32 %v2931, 0.001
      %v3172 = vadd.f32 %v2932, 0.001
      %v3173 = vadd.f32 %v2933, 0.001
      %v3174 = vadd.f32 %v2934, 0.001
      %v3175 = vadd.f32 %v2935, 0.001
      %v3176 = vadd.f32 %v2936, 0.001
      %v3177 = vadd.f32 %v2937, 0.001
      %v3178 = vadd.f32 %v2938, 0.001
      %v3179 = vadd.f32 %v2939, 0.001
      %v3180 = vadd.f32 %v2940, 0.001
      %v3181 = vadd.f32 %v2941, 0.001
      %v3182 = vadd.f32 %v2942, 0.001
      %v3183 = vadd.f32 %v2943, 0.001
      %v3184 = vadd.f32 %v2944, 0.001
      %v3185 = vadd.f32 %v2945, 0.001
      %v3186 = vadd.f32 %v2946, 0.001
      %v3187 = vadd.f32 %v2947, 0.001
      %v3188 = vadd.f32 %v2948, 0.001
      %v3189 = vadd.f32 %v2949, 0.001
      %v3190 = vadd.f32 %v2950, 0.001
      %v3191 = vadd.f32 %v2951, 0.001
      %v3192 = vadd.f32 %v2952, 0.001
      %v3193 = vadd.f32 %v2953, 0.001
      %v3194 = vadd.f32 %v2954, 0.001
      %v3195 = vadd.f32 %v2955, 0.001
      %v3196 = vadd.f32 %v2956, 0.001
      %v3197 = vadd.f32 %v2957, 0.001
      %v3198 = vadd.f32 %v2958, 0.001
      %v3199 = vadd.f32 %v2959, 0.001
      %v3200 = vadd.f32 %v2960, 0.001
      %v3201 = vadd.f32 %v2961, 0.001
      %v3202 = vadd.f32 %v2962, 0.001
      %v3203 = vadd.f32 %v2963, 0.001
      %v3204 = vadd.f32 %v2964, 0.001
      %v3205 = vadd.f32 %v2965, 0.001
      %v3206 = vadd.f32 %v2966, 0.001
      %v3207 = vadd.f32 %v2967, 0.001
      %v3208 = vadd.f32 %v2968, 0.001
      %v3209 = vadd.f32 %v2969, 0.001
      %v3210 = vadd.f32 %v2970, 0.001
      %v3211 = vadd.f32 %v2971, 0.001
      %v3212 = vadd.f32 %v2972, 0.001
      %v3213 = vadd.f32 %v2973, 0.001
      %v3214 = vadd.f32 %v2974, 0.001
      %v3215 = vadd.f32 %v2975, 0.001
      %v3216 = vadd.f32 %v2976, 0.001
      %v3217 = vadd.f32 %v2977, 0.001
      %v3218 = vadd.f32 %v2978, 0.001
      %v3219 = vadd.f32 %v2979, 0.001
      %v3220 = vadd.f32 %v2980, 0.001
      %v3221 = vadd.f32 %v2981, 0.001
      %v3222 = vadd.f32 %v2982, 0.001
      %v3223 = vadd.f32 %v2983, 0.001
      %v3224 = vadd.f32 %v2984, 0.001
      %v3225 = vadd.f32 %v2985, 0.001
      %v3226 = vadd.f32 %v2986, 0.001
      %v3227 = vadd.f32 %v2987, 0.001
      %v3228 = vadd.f32 %v2988, 0.001
      %v3229 = vadd.f32 %v2989, 0.001
      %v3230 = vadd.f32 %v2990, 0.001
      %v3231 = vadd.f32 %v2991, 0.001
      %v3232 = vadd.f32 %v2992, 0.001
      %v3233 = vadd.f32 %v2993, 0.001
      %v3234 = vadd.f32 %v2994, 0.001
      %v3235 = vadd.f32 %v2995, 0.001
      %v3236 = vadd.f32 %v2996, 0.001
      %v3237 = vadd.f32 %v2997, 0.001
      %v3238 = vadd.f32 %v2998, 0.001
      %v3239 = vadd.f32 %v2999, 0.001
      %v3240 = vadd.f32 %v3000, 0.001
      %v3241 = vadd.f32 %v3001, 0.001
      %v3242 = vadd.f32 %v3002, 0.001
      %v3243 = vadd.f32 %v3003, 0.001
      %v3244 = vadd.f32 %v3004, 0.001
      %v3245 = vadd.f32 %v3005, 0.001
      %v3246 = vadd.f32 %v3006, 0.001
      %v3247 = vadd.f32 %v3007, 0.001
      %v3248 = vadd.f32 %v3008, 0.001
      %v3249 = vadd.f32 %v3009, 0.001
      %v3250 = vadd.f32 %v3010, 0.001
      %v3251 = vadd.f32 %v3011, 0.001
      %v3252 = vadd.f32 %v3012, 0.001
      %v3253 = vadd.f32 %v3013, 0.001
      %v3254 = vadd.f32 %v3014, 0.001
      %v3255 = vadd.f32 %v3015, 0.001
      %v3256 = vadd.f32 %v3016, 0.001
      %v3257 = vadd.f32 %v3017, 0.001
      %v3258 = vadd.f32 %v3018, 0.001
      %v3259 = vadd.f32 %v3019, 0.001
      %v3260 = vadd.f32 %v3020, 0.001
      %v3261 = vadd.f32 %v3021, 0.001
      %v3262 = vadd.f32 %v3022, 0.001
      %v3263 = vadd.f32 %v3023, 0.001
      %v3264 = vadd.f32 %v3024, 0.001
      %v3265 = vadd.f32 %v3025, 0.001
      %v3266 = vadd.f32 %v3026, 0.001
      %v3267 = vadd.f32 %v3027, 0.001
      %v3268 = vadd.f32 %v3028, 0.001
      %v3269 = vadd.f32 %v3029, 0.001
      %v3270 = vadd.f32 %v3030, 0.001
      %v3271 = vadd.f32 %v3031, 0.001
      %v3272 = vadd.f32 %v3032, 0.001
      %v3273 = vadd.f32 %v3033, 0.001
      %v3274 = vadd.f32 %v3034, 0.001
      %v3275 = vadd.f32 %v3035, 0.001
      %v3276 = vadd.f32 %v3036, 0.001
      %v3277 = vadd.f32 %v3037, 0.001
      %v3278 = vadd.f32 %v3038, 0.001
      %v3279 = vadd.f32 %v3039, 0.001
      %v3280 = vadd.f32 %v3040, 0.001
      %v3281 = vadd.f32 %v3041, 0.001
      %v3282 = vadd.f32 %v3042, 0.001
      %v3283 = vadd.f32 %v3043, 0.001
      %v3284 = vadd.f32 %v3044, 0.001
      %v3285 = vadd.f32 %v3045, 0.001
      %v3286 = vadd.f32 %v3046, 0.001
      %v3287 = vadd.f32 %v3047, 0.001
      %v3288 = vadd.f32 %v3048, 0.001
      %v3289 = vadd.f32 %v3049, 0.001
      %v3290 = vadd.f32 %v3050, 0.001
      %v3291 = vadd.f32 %v3051, 0.001
      %v3292 = vadd.f32 %v3052, 0.001
      %v3293 = vadd.f32 %v3053, 0.001
      %v3294 = vadd.f32 %v3054, 0.001
      %v3295 = vadd.f32 %v3055, 0.001
      %v3296 = vadd.f32 %v3056, 0.001
      %v3297 = vadd.f32 %v3057, 0.001
      %v3298 = vadd.f32 %v3058, 0.001
      %v3299 = vadd.f32 %v3059, 0.001
      %v3300 = vadd.f32 %v3060, 0.001
      %v3301 = vadd.f32 %v3061, 0.001
      %v3302 = vadd.f32 %v3062, 0.001
      %v3303 = vadd.f32 %v3063, 0.001
      %v3304 = vadd.f32 %v3064, 0.001
      %v3305 = vadd.f32 %v3065, 0.001
      %v3306 = vadd.f32 %v3066, 0.001
      %v3307 = vadd.f32 %v3067, 0.001
      %v3308 = vadd.f32 %v3068, 0.001
      %v3309 = vadd.f32 %v3069, 0.001
      %v3310 = vadd.f32 %v3070, 0.001
      %v3311 = vadd.f32 %v3071, 0.001
      %v3312 = vadd.f32 %v3072, 0.001
      %v3313 = vadd.f32 %v3073, 0.001
      %v3314 = vadd.f32 %v3074, 0.001
      %v3315 = vadd.f32 %v3075, 0.001
      %v3316 = vadd.f32 %v3076, 0.001
      %v3317 = vadd.f32 %v3077, 0.001
      %v3318 = vadd.f32 %v3078, 0.001
      %v3319 = vadd.f32 %v3079, 0.001
      %v3320 = vadd.f32 %v3080, 0.001
      %v3321 = vadd.f32 %v3081, 0.001
      %v3322 = vadd.f32 %v3082, 0.001
      %v3323 = vadd.f32 %v3083, 0.001
      %v3324 = vadd.f32 %v3084, 0.001
      %v3325 = vadd.f32 %v3085, 0.001
      %v3326 = vadd.f32 %v3086, 0.001
      %v3327 = vadd.f32 %v3087, 0.001
      %v3328 = vadd.f32 %v3088, 0.001
      %v3329 = vadd.f32 %v3089, 0.001
      %v3330 = vadd.f32 %v3090, 0.001
      %v3331 = vadd.f32 %v3091, 0.001
      %v3332 = vadd.f32 %v3092, 0.001
      %v3333 = vadd.f32 %v3093, 0.001
      %v3334 = vadd.f32 %v3094, 0.001
      %v3335 = vadd.f32 %v3095, 0.001
      %v3336 = vadd.f32 %v3096, 0.001
      %v3337 = vadd.f32 %v3097, 0.001
      %v3338 = vadd.f32 %v3098, 0.001
      %v3339 = vrsqrt.pop %v3099
      %v3340 = vrsqrt.pop %v3100
      %v3341 = vrsqrt.pop %v3101
      %v3342 = vrsqrt.pop %v3102
      %v3343 = vrsqrt.pop %v3103
      %v3344 = vrsqrt.pop %v3104
      %v3345 = vrsqrt.pop %v3105
      %v3346 = vrsqrt.pop %v3106
      %v3347 = vrsqrt.pop %v3107
      %v3348 = vrsqrt.pop %v3108
      %v3349 = vrsqrt.pop %v3109
      %v3350 = vrsqrt.pop %v3110
      %v3351 = vrsqrt.pop %v3111
      %v3352 = vrsqrt.pop %v3112
      %v3353 = vrsqrt.pop %v3113
      %v3354 = vrsqrt.pop %v3114
      %v3355 = vrsqrt.pop %v3115
      %v3356 = vrsqrt.pop %v3116
      %v3357 = vrsqrt.pop %v3117
      %v3358 = vrsqrt.pop %v3118
      %v3359 = vrsqrt.pop %v3119
      %v3360 = vrsqrt.pop %v3120
      %v3361 = vrsqrt.pop %v3121
      %v3362 = vrsqrt.pop %v3122
      %v3363 = vrsqrt.pop %v3123
      %v3364 = vrsqrt.pop %v3124
      %v3365 = vrsqrt.pop %v3125
      %v3366 = vrsqrt.pop %v3126
      %v3367 = vrsqrt.pop %v3127
      %v3368 = vrsqrt.pop %v3128
      %v3369 = vrsqrt.pop %v3129
      %v3370 = vrsqrt.pop %v3130
      %v3371 = vrsqrt.pop %v3131
      %v3372 = vrsqrt.pop %v3132
      %v3373 = vrsqrt.pop %v3133
      %v3374 = vrsqrt.pop %v3134
      %v3375 = vrsqrt.pop %v3135
      %v3376 = vrsqrt.pop %v3136
      %v3377 = vrsqrt.pop %v3137
      %v3378 = vrsqrt.pop %v3138
      %v3379 = vrsqrt.pop %v3139
      %v3380 = vrsqrt.pop %v3140
      %v3381 = vrsqrt.pop %v3141
      %v3382 = vrsqrt.pop %v3142
      %v3383 = vrsqrt.pop %v3143
      %v3384 = vrsqrt.pop %v3144
      %v3385 = vrsqrt.pop %v3145
      %v3386 = vrsqrt.pop %v3146
      %v3387 = vrsqrt.pop %v3147
      %v3388 = vrsqrt.pop %v3148
      %v3389 = vrsqrt.pop %v3149
      %v3390 = vrsqrt.pop %v3150
      %v3391 = vrsqrt.pop %v3151
      %v3392 = vrsqrt.pop %v3152
      %v3393 = vrsqrt.pop %v3153
      %v3394 = vrsqrt.pop %v3154
      %v3395 = vrsqrt.pop %v3155
      %v3396 = vrsqrt.pop %v3156
      %v3397 = vrsqrt.pop %v3157
      %v3398 = vrsqrt.pop %v3158
      %v3399 = vrsqrt.pop %v3159
      %v3400 = vrsqrt.pop %v3160
      %v3401 = vrsqrt.pop %v3161
      %v3402 = vrsqrt.pop %v3162
      %v3403 = vrsqrt.pop %v3163
      %v3404 = vrsqrt.pop %v3164
      %v3405 = vrsqrt.pop %v3165
      %v3406 = vrsqrt.pop %v3166
      %v3407 = vrsqrt.pop %v3167
      %v3408 = vrsqrt.pop %v3168
      %v3409 = vrsqrt.pop %v3169
      %v3410 = vrsqrt.pop %v3170
      %v3411 = vrsqrt.pop %v3171
      %v3412 = vrsqrt.pop %v3172
      %v3413 = vrsqrt.pop %v3173
      %v3414 = vrsqrt.pop %v3174
      %v3415 = vrsqrt.pop %v3175
      %v3416 = vrsqrt.pop %v3176
      %v3417 = vrsqrt.pop %v3177
      %v3418 = vrsqrt.pop %v3178
      %v3419 = vrsqrt.pop %v3179
      %v3420 = vrsqrt.pop %v3180
      %v3421 = vrsqrt.pop %v3181
      %v3422 = vrsqrt.pop %v3182
      %v3423 = vrsqrt.pop %v3183
      %v3424 = vrsqrt.pop %v3184
      %v3425 = vrsqrt.pop %v3185
      %v3426 = vrsqrt.pop %v3186
      %v3427 = vrsqrt.pop %v3187
      %v3428 = vrsqrt.pop %v3188
      %v3429 = vrsqrt.pop %v3189
      %v3430 = vrsqrt.pop %v3190
      %v3431 = vrsqrt.pop %v3191
      %v3432 = vrsqrt.pop %v3192
      %v3433 = vrsqrt.pop %v3193
      %v3434 = vrsqrt.pop %v3194
      %v3435 = vrsqrt.pop %v3195
      %v3436 = vrsqrt.pop %v3196
      %v3437 = vrsqrt.pop %v3197
      %v3438 = vrsqrt.pop %v3198
      %v3439 = vrsqrt.pop %v3199
      %v3440 = vrsqrt.pop %v3200
      %v3441 = vrsqrt.pop %v3201
      %v3442 = vrsqrt.pop %v3202
      %v3443 = vrsqrt.pop %v3203
      %v3444 = vrsqrt.pop %v3204
      %v3445 = vrsqrt.pop %v3205
      %v3446 = vrsqrt.pop %v3206
      %v3447 = vrsqrt.pop %v3207
      %v3448 = vrsqrt.pop %v3208
      %v3449 = vrsqrt.pop %v3209
      %v3450 = vrsqrt.pop %v3210
      %v3451 = vrsqrt.pop %v3211
      %v3452 = vrsqrt.pop %v3212
      %v3453 = vrsqrt.pop %v3213
      %v3454 = vrsqrt.pop %v3214
      %v3455 = vrsqrt.pop %v3215
      %v3456 = vrsqrt.pop %v3216
      %v3457 = vrsqrt.pop %v3217
      %v3458 = vrsqrt.pop %v3218
      %v3459 = vrsqrt.pop %v3219
      %v3460 = vrsqrt.pop %v3220
      %v3461 = vrsqrt.pop %v3221
      %v3462 = vrsqrt.pop %v3222
      %v3463 = vrsqrt.pop %v3223
      %v3464 = vrsqrt.pop %v3224
      %v3465 = vrsqrt.pop %v3225
      %v3466 = vrsqrt.pop %v3226
      %v3467 = vrsqrt.pop %v3227
      %v3468 = vrsqrt.pop %v3228
      %v3469 = vrsqrt.pop %v3229
      %v3470 = vrsqrt.pop %v3230
      %v3471 = vrsqrt.pop %v3231
      %v3472 = vrsqrt.pop %v3232
      %v3473 = vrsqrt.pop %v3233
      %v3474 = vrsqrt.pop %v3234
      %v3475 = vrsqrt.pop %v3235
      %v3476 = vrsqrt.pop %v3236
      %v3477 = vrsqrt.pop %v3237
      %v3478 = vrsqrt.pop %v3238
      %v3479 = vrsqrt.pop %v3239
      %v3480 = vrsqrt.pop %v3240
      %v3481 = vrsqrt.pop %v3241
      %v3482 = vrsqrt.pop %v3242
      %v3483 = vrsqrt.pop %v3243
      %v3484 = vrsqrt.pop %v3244
      %v3485 = vrsqrt.pop %v3245
      %v3486 = vrsqrt.pop %v3246
      %v3487 = vrsqrt.pop %v3247
      %v3488 = vrsqrt.pop %v3248
      %v3489 = vrsqrt.pop %v3249
      %v3490 = vrsqrt.pop %v3250
      %v3491 = vrsqrt.pop %v3251
      %v3492 = vrsqrt.pop %v3252
      %v3493 = vrsqrt.pop %v3253
      %v3494 = vrsqrt.pop %v3254
      %v3495 = vrsqrt.pop %v3255
      %v3496 = vrsqrt.pop %v3256
      %v3497 = vrsqrt.pop %v3257
      %v3498 = vrsqrt.pop %v3258
      %v3499 = vrsqrt.pop %v3259
      %v3500 = vrsqrt.pop %v3260
      %v3501 = vrsqrt.pop %v3261
      %v3502 = vrsqrt.pop %v3262
      %v3503 = vrsqrt.pop %v3263
      %v3504 = vrsqrt.pop %v3264
      %v3505 = vrsqrt.pop %v3265
      %v3506 = vrsqrt.pop %v3266
      %v3507 = vrsqrt.pop %v3267
      %v3508 = vrsqrt.pop %v3268
      %v3509 = vrsqrt.pop %v3269
      %v3510 = vrsqrt.pop %v3270
      %v3511 = vrsqrt.pop %v3271
      %v3512 = vrsqrt.pop %v3272
      %v3513 = vrsqrt.pop %v3273
      %v3514 = vrsqrt.pop %v3274
      %v3515 = vrsqrt.pop %v3275
      %v3516 = vrsqrt.pop %v3276
      %v3517 = vrsqrt.pop %v3277
      %v3518 = vrsqrt.pop %v3278
      %v3519 = vrsqrt.pop %v3279
      %v3520 = vrsqrt.pop %v3280
      %v3521 = vrsqrt.pop %v3281
      %v3522 = vrsqrt.pop %v3282
      %v3523 = vrsqrt.pop %v3283
      %v3524 = vrsqrt.pop %v3284
      %v3525 = vrsqrt.pop %v3285
      %v3526 = vrsqrt.pop %v3286
      %v3527 = vrsqrt.pop %v3287
      %v3528 = vrsqrt.pop %v3288
      %v3529 = vrsqrt.pop %v3289
      %v3530 = vrsqrt.pop %v3290
      %v3531 = vrsqrt.pop %v3291
      %v3532 = vrsqrt.pop %v3292
      %v3533 = vrsqrt.pop %v3293
      %v3534 = vrsqrt.pop %v3294
      %v3535 = vrsqrt.pop %v3295
      %v3536 = vrsqrt.pop %v3296
      %v3537 = vrsqrt.pop %v3297
      %v3538 = vrsqrt.pop %v3298
      %v3539 = vrsqrt.pop %v3299
      %v3540 = vrsqrt.pop %v3300
      %v3541 = vrsqrt.pop %v3301
      %v3542 = vrsqrt.pop %v3302
      %v3543 = vrsqrt.pop %v3303
      %v3544 = vrsqrt.pop %v3304
      %v3545 = vrsqrt.pop %v3305
      %v3546 = vrsqrt.pop %v3306
      %v3547 = vrsqrt.pop %v3307
      %v3548 = vrsqrt.pop %v3308
      %v3549 = vrsqrt.pop %v3309
      %v3550 = vrsqrt.pop %v3310
      %v3551 = vrsqrt.pop %v3311
      %v3552 = vrsqrt.pop %v3312
      %v3553 = vrsqrt.pop %v3313
      %v3554 = vrsqrt.pop %v3314
      %v3555 = vrsqrt.pop %v3315
      %v3556 = vrsqrt.pop %v3316
      %v3557 = vrsqrt.pop %v3317
      %v3558 = vrsqrt.pop %v3318
      %v3559 = vrsqrt.pop %v3319
      %v3560 = vrsqrt.pop %v3320
      %v3561 = vrsqrt.pop %v3321
      %v3562 = vrsqrt.pop %v3322
      %v3563 = vrsqrt.pop %v3323
      %v3564 = vrsqrt.pop %v3324
      %v3565 = vrsqrt.pop %v3325
      %v3566 = vrsqrt.pop %v3326
      %v3567 = vrsqrt.pop %v3327
      %v3568 = vrsqrt.pop %v3328
      %v3569 = vrsqrt.pop %v3329
      %v3570 = vrsqrt.pop %v3330
      %v3571 = vrsqrt.pop %v3331
      %v3572 = vrsqrt.pop %v3332
      %v3573 = vrsqrt.pop %v3333
      %v3574 = vrsqrt.pop %v3334
      %v3575 = vrsqrt.pop %v3335
      %v3576 = vrsqrt.pop %v3336
      %v3577 = vrsqrt.pop %v3337
      %v3578 = vrsqrt.pop %v3338
      %v3579 = vld [vmem:[%s204] sm:$0xff]
      %v3580 = vld [vmem:[%s204 + $0x8] sm:$0xff]
      %v3581 = vld [vmem:[%s204 + $0x10] sm:$0xff]
      %v3582 = vld [vmem:[%s204 + $0x18] sm:$0xff]
      %v3583 = vld [vmem:[%s204 + $0x20] sm:$0xff]
      %v3584 = vld [vmem:[%s204 + $0x28] sm:$0xff]
      %v3585 = vld [vmem:[%s204 + $0x30] sm:$0xff]
      %v3586 = vld [vmem:[%s204 + $0x38] sm:$0xff]
      %v3587 = vld [vmem:[%s204 + $0x40] sm:$0xff]
      %v3588 = vld [vmem:[%s204 + $0x48] sm:$0xff]
      %v3589 = vld [vmem:[%s204 + $0x50] sm:$0xff]
      %v3590 = vld [vmem:[%s204 + $0x58] sm:$0xff]
      %v3591 = vld [vmem:[%s204 + $0x60] sm:$0xff]
      %v3592 = vld [vmem:[%s204 + $0x68] sm:$0xff]
      %v3593 = vld [vmem:[%s204 + $0x70] sm:$0xff]
      %v3594 = vld [vmem:[%s204 + $0x78] sm:$0xff]
      %v3595 = vld [vmem:[%s204 + $0x80] sm:$0xff]
      %v3596 = vld [vmem:[%s204 + $0x88] sm:$0xff]
      %v3597 = vld [vmem:[%s204 + $0x90] sm:$0xff]
      %v3598 = vld [vmem:[%s204 + $0x98] sm:$0xff]
      %v3599 = vld [vmem:[%s204 + $0xa0] sm:$0xff]
      %v3600 = vld [vmem:[%s204 + $0xa8] sm:$0xff]
      %v3601 = vld [vmem:[%s204 + $0xb0] sm:$0xff]
      %v3602 = vld [vmem:[%s204 + $0xb8] sm:$0xff]
      %v3603 = vld [vmem:[%s204 + $0xc0] sm:$0xff]
      %v3604 = vld [vmem:[%s204 + $0xc8] sm:$0xff]
      %v3605 = vld [vmem:[%s204 + $0xd0] sm:$0xff]
      %v3606 = vld [vmem:[%s204 + $0xd8] sm:$0xff]
      %v3607 = vld [vmem:[%s204 + $0xe0] sm:$0xff]
      %v3608 = vld [vmem:[%s204 + $0xe8] sm:$0xff]
      %v3609 = vld [vmem:[%s204 + $0xf0] sm:$0xff]
      %v3610 = vld [vmem:[%s204 + $0xf8] sm:$0xff]
      %v3611 = vld [vmem:[%s204 + $0x100] sm:$0xff]
      %v3612 = vld [vmem:[%s204 + $0x108] sm:$0xff]
      %v3613 = vld [vmem:[%s204 + $0x110] sm:$0xff]
      %v3614 = vld [vmem:[%s204 + $0x118] sm:$0xff]
      %v3615 = vld [vmem:[%s204 + $0x120] sm:$0xff]
      %v3616 = vld [vmem:[%s204 + $0x128] sm:$0xff]
      %v3617 = vld [vmem:[%s204 + $0x130] sm:$0xff]
      %v3618 = vld [vmem:[%s204 + $0x138] sm:$0xff]
      %v3619 = vld [vmem:[%s204 + $0x140] sm:$0xff]
      %v3620 = vld [vmem:[%s204 + $0x148] sm:$0xff]
      %v3621 = vld [vmem:[%s204 + $0x150] sm:$0xff]
      %v3622 = vld [vmem:[%s204 + $0x158] sm:$0xff]
      %v3623 = vld [vmem:[%s204 + $0x160] sm:$0xff]
      %v3624 = vld [vmem:[%s204 + $0x168] sm:$0xff]
      %v3625 = vld [vmem:[%s204 + $0x170] sm:$0xff]
      %v3626 = vld [vmem:[%s204 + $0x178] sm:$0xff]
      %v3627 = vld [vmem:[%s204 + $0x180] sm:$0xff]
      %v3628 = vld [vmem:[%s204 + $0x188] sm:$0xff]
      %v3629 = vld [vmem:[%s204 + $0x190] sm:$0xff]
      %v3630 = vld [vmem:[%s204 + $0x198] sm:$0xff]
      %v3631 = vld [vmem:[%s204 + $0x1a0] sm:$0xff]
      %v3632 = vld [vmem:[%s204 + $0x1a8] sm:$0xff]
      %v3633 = vld [vmem:[%s204 + $0x1b0] sm:$0xff]
      %v3634 = vld [vmem:[%s204 + $0x1b8] sm:$0xff]
      %v3635 = vld [vmem:[%s204 + $0x1c0] sm:$0xff]
      %v3636 = vld [vmem:[%s204 + $0x1c8] sm:$0xff]
      %v3637 = vld [vmem:[%s204 + $0x1d0] sm:$0xff]
      %v3638 = vld [vmem:[%s204 + $0x1d8] sm:$0xff]
      %v3639 = vld [vmem:[%s204 + $0x1e0] sm:$0xff]
      %v3640 = vld [vmem:[%s204 + $0x1e8] sm:$0xff]
      %v3641 = vld [vmem:[%s204 + $0x1f0] sm:$0xff]
      %v3642 = vld [vmem:[%s204 + $0x1f8] sm:$0xff]
      %v3643 = vld [vmem:[%s204 + $0x200] sm:$0xff]
      %v3644 = vld [vmem:[%s204 + $0x208] sm:$0xff]
      %v3645 = vld [vmem:[%s204 + $0x210] sm:$0xff]
      %v3646 = vld [vmem:[%s204 + $0x218] sm:$0xff]
      %v3647 = vld [vmem:[%s204 + $0x220] sm:$0xff]
      %v3648 = vld [vmem:[%s204 + $0x228] sm:$0xff]
      %v3649 = vld [vmem:[%s204 + $0x230] sm:$0xff]
      %v3650 = vld [vmem:[%s204 + $0x238] sm:$0xff]
      %v3651 = vld [vmem:[%s204 + $0x240] sm:$0xff]
      %v3652 = vld [vmem:[%s204 + $0x248] sm:$0xff]
      %v3653 = vld [vmem:[%s204 + $0x250] sm:$0xff]
      %v3654 = vld [vmem:[%s204 + $0x258] sm:$0xff]
      %v3655 = vld [vmem:[%s204 + $0x260] sm:$0xff]
      %v3656 = vld [vmem:[%s204 + $0x268] sm:$0xff]
      %v3657 = vld [vmem:[%s204 + $0x270] sm:$0xff]
      %v3658 = vld [vmem:[%s204 + $0x278] sm:$0xff]
      %v3659 = vld [vmem:[%s204 + $0x280] sm:$0xff]
      %v3660 = vld [vmem:[%s204 + $0x288] sm:$0xff]
      %v3661 = vld [vmem:[%s204 + $0x290] sm:$0xff]
      %v3662 = vld [vmem:[%s204 + $0x298] sm:$0xff]
      %v3663 = vld [vmem:[%s204 + $0x2a0] sm:$0xff]
      %v3664 = vld [vmem:[%s204 + $0x2a8] sm:$0xff]
      %v3665 = vld [vmem:[%s204 + $0x2b0] sm:$0xff]
      %v3666 = vld [vmem:[%s204 + $0x2b8] sm:$0xff]
      %v3667 = vld [vmem:[%s204 + $0x2c0] sm:$0xff]
      %v3668 = vld [vmem:[%s204 + $0x2c8] sm:$0xff]
      %v3669 = vld [vmem:[%s204 + $0x2d0] sm:$0xff]
      %v3670 = vld [vmem:[%s204 + $0x2d8] sm:$0xff]
      %v3671 = vld [vmem:[%s204 + $0x2e0] sm:$0xff]
      %v3672 = vld [vmem:[%s204 + $0x2e8] sm:$0xff]
      %v3673 = vld [vmem:[%s204 + $0x2f0] sm:$0xff]
      %v3674 = vld [vmem:[%s204 + $0x2f8] sm:$0xff]
      %v3675 = vld [vmem:[%s204 + $0x300] sm:$0xff]
      %v3676 = vld [vmem:[%s204 + $0x308] sm:$0xff]
      %v3677 = vld [vmem:[%s204 + $0x310] sm:$0xff]
      %v3678 = vld [vmem:[%s204 + $0x318] sm:$0xff]
      %v3679 = vld [vmem:[%s204 + $0x320] sm:$0xff]
      %v3680 = vld [vmem:[%s204 + $0x328] sm:$0xff]
      %v3681 = vld [vmem:[%s204 + $0x330] sm:$0xff]
      %v3682 = vld [vmem:[%s204 + $0x338] sm:$0xff]
      %v3683 = vld [vmem:[%s204 + $0x340] sm:$0xff]
      %v3684 = vld [vmem:[%s204 + $0x348] sm:$0xff]
      %v3685 = vld [vmem:[%s204 + $0x350] sm:$0xff]
      %v3686 = vld [vmem:[%s204 + $0x358] sm:$0xff]
      %v3687 = vld [vmem:[%s204 + $0x360] sm:$0xff]
      %v3688 = vld [vmem:[%s204 + $0x368] sm:$0xff]
      %v3689 = vld [vmem:[%s204 + $0x370] sm:$0xff]
      %v3690 = vld [vmem:[%s204 + $0x378] sm:$0xff]
      %v3691 = vld [vmem:[%s204 + $0x380] sm:$0xff]
      %v3692 = vld [vmem:[%s204 + $0x388] sm:$0xff]
      %v3693 = vld [vmem:[%s204 + $0x390] sm:$0xff]
      %v3694 = vld [vmem:[%s204 + $0x398] sm:$0xff]
      %v3695 = vld [vmem:[%s204 + $0x3a0] sm:$0xff]
      %v3696 = vld [vmem:[%s204 + $0x3a8] sm:$0xff]
      %v3697 = vld [vmem:[%s204 + $0x3b0] sm:$0xff]
      %v3698 = vld [vmem:[%s204 + $0x3b8] sm:$0xff]
      %v3699 = vld [vmem:[%s204 + $0x3c0] sm:$0xff]
      %v3700 = vld [vmem:[%s204 + $0x3c8] sm:$0xff]
      %v3701 = vld [vmem:[%s204 + $0x3d0] sm:$0xff]
      %v3702 = vld [vmem:[%s204 + $0x3d8] sm:$0xff]
      %v3703 = vld [vmem:[%s204 + $0x3e0] sm:$0xff]
      %v3704 = vld [vmem:[%s204 + $0x3e8] sm:$0xff]
      %v3705 = vld [vmem:[%s204 + $0x3f0] sm:$0xff]
      %v3706 = vld [vmem:[%s204 + $0x3f8] sm:$0xff]
      %v3707 = vld [vmem:[%s204 + $0x400] sm:$0xff]
      %v3708 = vld [vmem:[%s204 + $0x408] sm:$0xff]
      %v3709 = vld [vmem:[%s204 + $0x410] sm:$0xff]
      %v3710 = vld [vmem:[%s204 + $0x418] sm:$0xff]
      %v3711 = vld [vmem:[%s204 + $0x420] sm:$0xff]
      %v3712 = vld [vmem:[%s204 + $0x428] sm:$0xff]
      %v3713 = vld [vmem:[%s204 + $0x430] sm:$0xff]
      %v3714 = vld [vmem:[%s204 + $0x438] sm:$0xff]
      %v3715 = vld [vmem:[%s204 + $0x440] sm:$0xff]
      %v3716 = vld [vmem:[%s204 + $0x448] sm:$0xff]
      %v3717 = vld [vmem:[%s204 + $0x450] sm:$0xff]
      %v3718 = vld [vmem:[%s204 + $0x458] sm:$0xff]
      %v3719 = vld [vmem:[%s204 + $0x460] sm:$0xff]
      %v3720 = vld [vmem:[%s204 + $0x468] sm:$0xff]
      %v3721 = vld [vmem:[%s204 + $0x470] sm:$0xff]
      %v3722 = vld [vmem:[%s204 + $0x478] sm:$0xff]
      %v3723 = vld [vmem:[%s204 + $0x480] sm:$0xff]
      %v3724 = vld [vmem:[%s204 + $0x488] sm:$0xff]
      %v3725 = vld [vmem:[%s204 + $0x490] sm:$0xff]
      %v3726 = vld [vmem:[%s204 + $0x498] sm:$0xff]
      %v3727 = vld [vmem:[%s204 + $0x4a0] sm:$0xff]
      %v3728 = vld [vmem:[%s204 + $0x4a8] sm:$0xff]
      %v3729 = vld [vmem:[%s204 + $0x4b0] sm:$0xff]
      %v3730 = vld [vmem:[%s204 + $0x4b8] sm:$0xff]
      %v3731 = vld [vmem:[%s204 + $0x4c0] sm:$0xff]
      %v3732 = vld [vmem:[%s204 + $0x4c8] sm:$0xff]
      %v3733 = vld [vmem:[%s204 + $0x4d0] sm:$0xff]
      %v3734 = vld [vmem:[%s204 + $0x4d8] sm:$0xff]
      %v3735 = vld [vmem:[%s204 + $0x4e0] sm:$0xff]
      %v3736 = vld [vmem:[%s204 + $0x4e8] sm:$0xff]
      %v3737 = vld [vmem:[%s204 + $0x4f0] sm:$0xff]
      %v3738 = vld [vmem:[%s204 + $0x4f8] sm:$0xff]
      %v3739 = vld [vmem:[%s204 + $0x500] sm:$0xff]
      %v3740 = vld [vmem:[%s204 + $0x508] sm:$0xff]
      %v3741 = vld [vmem:[%s204 + $0x510] sm:$0xff]
      %v3742 = vld [vmem:[%s204 + $0x518] sm:$0xff]
      %v3743 = vld [vmem:[%s204 + $0x520] sm:$0xff]
      %v3744 = vld [vmem:[%s204 + $0x528] sm:$0xff]
      %v3745 = vld [vmem:[%s204 + $0x530] sm:$0xff]
      %v3746 = vld [vmem:[%s204 + $0x538] sm:$0xff]
      %v3747 = vld [vmem:[%s204 + $0x540] sm:$0xff]
      %v3748 = vld [vmem:[%s204 + $0x548] sm:$0xff]
      %v3749 = vld [vmem:[%s204 + $0x550] sm:$0xff]
      %v3750 = vld [vmem:[%s204 + $0x558] sm:$0xff]
      %v3751 = vld [vmem:[%s204 + $0x560] sm:$0xff]
      %v3752 = vld [vmem:[%s204 + $0x568] sm:$0xff]
      %v3753 = vld [vmem:[%s204 + $0x570] sm:$0xff]
      %v3754 = vld [vmem:[%s204 + $0x578] sm:$0xff]
      %v3755 = vld [vmem:[%s204 + $0x580] sm:$0xff]
      %v3756 = vld [vmem:[%s204 + $0x588] sm:$0xff]
      %v3757 = vld [vmem:[%s204 + $0x590] sm:$0xff]
      %v3758 = vld [vmem:[%s204 + $0x598] sm:$0xff]
      %v3759 = vld [vmem:[%s204 + $0x5a0] sm:$0xff]
      %v3760 = vld [vmem:[%s204 + $0x5a8] sm:$0xff]
      %v3761 = vld [vmem:[%s204 + $0x5b0] sm:$0xff]
      %v3762 = vld [vmem:[%s204 + $0x5b8] sm:$0xff]
      %v3763 = vld [vmem:[%s204 + $0x5c0] sm:$0xff]
      %v3764 = vld [vmem:[%s204 + $0x5c8] sm:$0xff]
      %v3765 = vld [vmem:[%s204 + $0x5d0] sm:$0xff]
      %v3766 = vld [vmem:[%s204 + $0x5d8] sm:$0xff]
      %v3767 = vld [vmem:[%s204 + $0x5e0] sm:$0xff]
      %v3768 = vld [vmem:[%s204 + $0x5e8] sm:$0xff]
      %v3769 = vld [vmem:[%s204 + $0x5f0] sm:$0xff]
      %v3770 = vld [vmem:[%s204 + $0x5f8] sm:$0xff]
      %v3771 = vld [vmem:[%s204 + $0x600] sm:$0xff]
      %v3772 = vld [vmem:[%s204 + $0x608] sm:$0xff]
      %v3773 = vld [vmem:[%s204 + $0x610] sm:$0xff]
      %v3774 = vld [vmem:[%s204 + $0x618] sm:$0xff]
      %v3775 = vld [vmem:[%s204 + $0x620] sm:$0xff]
      %v3776 = vld [vmem:[%s204 + $0x628] sm:$0xff]
      %v3777 = vld [vmem:[%s204 + $0x630] sm:$0xff]
      %v3778 = vld [vmem:[%s204 + $0x638] sm:$0xff]
      %v3779 = vld [vmem:[%s204 + $0x640] sm:$0xff]
      %v3780 = vld [vmem:[%s204 + $0x648] sm:$0xff]
      %v3781 = vld [vmem:[%s204 + $0x650] sm:$0xff]
      %v3782 = vld [vmem:[%s204 + $0x658] sm:$0xff]
      %v3783 = vld [vmem:[%s204 + $0x660] sm:$0xff]
      %v3784 = vld [vmem:[%s204 + $0x668] sm:$0xff]
      %v3785 = vld [vmem:[%s204 + $0x670] sm:$0xff]
      %v3786 = vld [vmem:[%s204 + $0x678] sm:$0xff]
      %v3787 = vld [vmem:[%s204 + $0x680] sm:$0xff]
      %v3788 = vld [vmem:[%s204 + $0x688] sm:$0xff]
      %v3789 = vld [vmem:[%s204 + $0x690] sm:$0xff]
      %v3790 = vld [vmem:[%s204 + $0x698] sm:$0xff]
      %v3791 = vld [vmem:[%s204 + $0x6a0] sm:$0xff]
      %v3792 = vld [vmem:[%s204 + $0x6a8] sm:$0xff]
      %v3793 = vld [vmem:[%s204 + $0x6b0] sm:$0xff]
      %v3794 = vld [vmem:[%s204 + $0x6b8] sm:$0xff]
      %v3795 = vld [vmem:[%s204 + $0x6c0] sm:$0xff]
      %v3796 = vld [vmem:[%s204 + $0x6c8] sm:$0xff]
      %v3797 = vld [vmem:[%s204 + $0x6d0] sm:$0xff]
      %v3798 = vld [vmem:[%s204 + $0x6d8] sm:$0xff]
      %v3799 = vld [vmem:[%s204 + $0x6e0] sm:$0xff]
      %v3800 = vld [vmem:[%s204 + $0x6e8] sm:$0xff]
      %v3801 = vld [vmem:[%s204 + $0x6f0] sm:$0xff]
      %v3802 = vld [vmem:[%s204 + $0x6f8] sm:$0xff]
      %v3803 = vld [vmem:[%s204 + $0x700] sm:$0xff]
      %v3804 = vld [vmem:[%s204 + $0x708] sm:$0xff]
      %v3805 = vld [vmem:[%s204 + $0x710] sm:$0xff]
      %v3806 = vld [vmem:[%s204 + $0x718] sm:$0xff]
      %v3807 = vld [vmem:[%s204 + $0x720] sm:$0xff]
      %v3808 = vld [vmem:[%s204 + $0x728] sm:$0xff]
      %v3809 = vld [vmem:[%s204 + $0x730] sm:$0xff]
      %v3810 = vld [vmem:[%s204 + $0x738] sm:$0xff]
      %v3811 = vld [vmem:[%s204 + $0x740] sm:$0xff]
      %v3812 = vld [vmem:[%s204 + $0x748] sm:$0xff]
      %v3813 = vld [vmem:[%s204 + $0x750] sm:$0xff]
      %v3814 = vld [vmem:[%s204 + $0x758] sm:$0xff]
      %v3815 = vld [vmem:[%s204 + $0x760] sm:$0xff]
      %v3816 = vld [vmem:[%s204 + $0x768] sm:$0xff]
      %v3817 = vld [vmem:[%s204 + $0x770] sm:$0xff]
      %v3818 = vld [vmem:[%s204 + $0x778] sm:$0xff]
      %v3819 = vmul.f32 %v3339, %v3579
      %v3820 = vmul.f32 %v3340, %v3580
      %v3821 = vmul.f32 %v3341, %v3581
      %v3822 = vmul.f32 %v3342, %v3582
      %v3823 = vmul.f32 %v3343, %v3583
      %v3824 = vmul.f32 %v3344, %v3584
      %v3825 = vmul.f32 %v3345, %v3585
      %v3826 = vmul.f32 %v3346, %v3586
      %v3827 = vmul.f32 %v3347, %v3587
      %v3828 = vmul.f32 %v3348, %v3588
      %v3829 = vmul.f32 %v3349, %v3589
      %v3830 = vmul.f32 %v3350, %v3590
      %v3831 = vmul.f32 %v3351, %v3591
      %v3832 = vmul.f32 %v3352, %v3592
      %v3833 = vmul.f32 %v3353, %v3593
      %v3834 = vmul.f32 %v3354, %v3594
      %v3835 = vmul.f32 %v3355, %v3595
      %v3836 = vmul.f32 %v3356, %v3596
      %v3837 = vmul.f32 %v3357, %v3597
      %v3838 = vmul.f32 %v3358, %v3598
      %v3839 = vmul.f32 %v3359, %v3599
      %v3840 = vmul.f32 %v3360, %v3600
      %v3841 = vmul.f32 %v3361, %v3601
      %v3842 = vmul.f32 %v3362, %v3602
      %v3843 = vmul.f32 %v3363, %v3603
      %v3844 = vmul.f32 %v3364, %v3604
      %v3845 = vmul.f32 %v3365, %v3605
      %v3846 = vmul.f32 %v3366, %v3606
      %v3847 = vmul.f32 %v3367, %v3607
      %v3848 = vmul.f32 %v3368, %v3608
      %v3849 = vmul.f32 %v3369, %v3609
      %v3850 = vmul.f32 %v3370, %v3610
      %v3851 = vmul.f32 %v3371, %v3611
      %v3852 = vmul.f32 %v3372, %v3612
      %v3853 = vmul.f32 %v3373, %v3613
      %v3854 = vmul.f32 %v3374, %v3614
      %v3855 = vmul.f32 %v3375, %v3615
      %v3856 = vmul.f32 %v3376, %v3616
      %v3857 = vmul.f32 %v3377, %v3617
      %v3858 = vmul.f32 %v3378, %v3618
      %v3859 = vmul.f32 %v3379, %v3619
      %v3860 = vmul.f32 %v3380, %v3620
      %v3861 = vmul.f32 %v3381, %v3621
      %v3862 = vmul.f32 %v3382, %v3622
      %v3863 = vmul.f32 %v3383, %v3623
      %v3864 = vmul.f32 %v3384, %v3624
      %v3865 = vmul.f32 %v3385, %v3625
      %v3866 = vmul.f32 %v3386, %v3626
      %v3867 = vmul.f32 %v3387, %v3627
      %v3868 = vmul.f32 %v3388, %v3628
      %v3869 = vmul.f32 %v3389, %v3629
      %v3870 = vmul.f32 %v3390, %v3630
      %v3871 = vmul.f32 %v3391, %v3631
      %v3872 = vmul.f32 %v3392, %v3632
      %v3873 = vmul.f32 %v3393, %v3633
      %v3874 = vmul.f32 %v3394, %v3634
      %v3875 = vmul.f32 %v3395, %v3635
      %v3876 = vmul.f32 %v3396, %v3636
      %v3877 = vmul.f32 %v3397, %v3637
      %v3878 = vmul.f32 %v3398, %v3638
      %v3879 = vmul.f32 %v3399, %v3639
      %v3880 = vmul.f32 %v3400, %v3640
      %v3881 = vmul.f32 %v3401, %v3641
      %v3882 = vmul.f32 %v3402, %v3642
      %v3883 = vmul.f32 %v3403, %v3643
      %v3884 = vmul.f32 %v3404, %v3644
      %v3885 = vmul.f32 %v3405, %v3645
      %v3886 = vmul.f32 %v3406, %v3646
      %v3887 = vmul.f32 %v3407, %v3647
      %v3888 = vmul.f32 %v3408, %v3648
      %v3889 = vmul.f32 %v3409, %v3649
      %v3890 = vmul.f32 %v3410, %v3650
      %v3891 = vmul.f32 %v3411, %v3651
      %v3892 = vmul.f32 %v3412, %v3652
      %v3893 = vmul.f32 %v3413, %v3653
      %v3894 = vmul.f32 %v3414, %v3654
      %v3895 = vmul.f32 %v3415, %v3655
      %v3896 = vmul.f32 %v3416, %v3656
      %v3897 = vmul.f32 %v3417, %v3657
      %v3898 = vmul.f32 %v3418, %v3658
      %v3899 = vmul.f32 %v3419, %v3659
      %v3900 = vmul.f32 %v3420, %v3660
      %v3901 = vmul.f32 %v3421, %v3661
      %v3902 = vmul.f32 %v3422, %v3662
      %v3903 = vmul.f32 %v3423, %v3663
      %v3904 = vmul.f32 %v3424, %v3664
      %v3905 = vmul.f32 %v3425, %v3665
      %v3906 = vmul.f32 %v3426, %v3666
      %v3907 = vmul.f32 %v3427, %v3667
      %v3908 = vmul.f32 %v3428, %v3668
      %v3909 = vmul.f32 %v3429, %v3669
      %v3910 = vmul.f32 %v3430, %v3670
      %v3911 = vmul.f32 %v3431, %v3671
      %v3912 = vmul.f32 %v3432, %v3672
      %v3913 = vmul.f32 %v3433, %v3673
      %v3914 = vmul.f32 %v3434, %v3674
      %v3915 = vmul.f32 %v3435, %v3675
      %v3916 = vmul.f32 %v3436, %v3676
      %v3917 = vmul.f32 %v3437, %v3677
      %v3918 = vmul.f32 %v3438, %v3678
      %v3919 = vmul.f32 %v3439, %v3679
      %v3920 = vmul.f32 %v3440, %v3680
      %v3921 = vmul.f32 %v3441, %v3681
      %v3922 = vmul.f32 %v3442, %v3682
      %v3923 = vmul.f32 %v3443, %v3683
      %v3924 = vmul.f32 %v3444, %v3684
      %v3925 = vmul.f32 %v3445, %v3685
      %v3926 = vmul.f32 %v3446, %v3686
      %v3927 = vmul.f32 %v3447, %v3687
      %v3928 = vmul.f32 %v3448, %v3688
      %v3929 = vmul.f32 %v3449, %v3689
      %v3930 = vmul.f32 %v3450, %v3690
      %v3931 = vmul.f32 %v3451, %v3691
      %v3932 = vmul.f32 %v3452, %v3692
      %v3933 = vmul.f32 %v3453, %v3693
      %v3934 = vmul.f32 %v3454, %v3694
      %v3935 = vmul.f32 %v3455, %v3695
      %v3936 = vmul.f32 %v3456, %v3696
      %v3937 = vmul.f32 %v3457, %v3697
      %v3938 = vmul.f32 %v3458, %v3698
      %v3939 = vmul.f32 %v3459, %v3699
      %v3940 = vmul.f32 %v3460, %v3700
      %v3941 = vmul.f32 %v3461, %v3701
      %v3942 = vmul.f32 %v3462, %v3702
      %v3943 = vmul.f32 %v3463, %v3703
      %v3944 = vmul.f32 %v3464, %v3704
      %v3945 = vmul.f32 %v3465, %v3705
      %v3946 = vmul.f32 %v3466, %v3706
      %v3947 = vmul.f32 %v3467, %v3707
      %v3948 = vmul.f32 %v3468, %v3708
      %v3949 = vmul.f32 %v3469, %v3709
      %v3950 = vmul.f32 %v3470, %v3710
      %v3951 = vmul.f32 %v3471, %v3711
      %v3952 = vmul.f32 %v3472, %v3712
      %v3953 = vmul.f32 %v3473, %v3713
      %v3954 = vmul.f32 %v3474, %v3714
      %v3955 = vmul.f32 %v3475, %v3715
      %v3956 = vmul.f32 %v3476, %v3716
      %v3957 = vmul.f32 %v3477, %v3717
      %v3958 = vmul.f32 %v3478, %v3718
      %v3959 = vmul.f32 %v3479, %v3719
      %v3960 = vmul.f32 %v3480, %v3720
      %v3961 = vmul.f32 %v3481, %v3721
      %v3962 = vmul.f32 %v3482, %v3722
      %v3963 = vmul.f32 %v3483, %v3723
      %v3964 = vmul.f32 %v3484, %v3724
      %v3965 = vmul.f32 %v3485, %v3725
      %v3966 = vmul.f32 %v3486, %v3726
      %v3967 = vmul.f32 %v3487, %v3727
      %v3968 = vmul.f32 %v3488, %v3728
      %v3969 = vmul.f32 %v3489, %v3729
      %v3970 = vmul.f32 %v3490, %v3730
      %v3971 = vmul.f32 %v3491, %v3731
      %v3972 = vmul.f32 %v3492, %v3732
      %v3973 = vmul.f32 %v3493, %v3733
      %v3974 = vmul.f32 %v3494, %v3734
      %v3975 = vmul.f32 %v3495, %v3735
      %v3976 = vmul.f32 %v3496, %v3736
      %v3977 = vmul.f32 %v3497, %v3737
      %v3978 = vmul.f32 %v3498, %v3738
      %v3979 = vmul.f32 %v3499, %v3739
      %v3980 = vmul.f32 %v3500, %v3740
      %v3981 = vmul.f32 %v3501, %v3741
      %v3982 = vmul.f32 %v3502, %v3742
      %v3983 = vmul.f32 %v3503, %v3743
      %v3984 = vmul.f32 %v3504, %v3744
      %v3985 = vmul.f32 %v3505, %v3745
      %v3986 = vmul.f32 %v3506, %v3746
      %v3987 = vmul.f32 %v3507, %v3747
      %v3988 = vmul.f32 %v3508, %v3748
      %v3989 = vmul.f32 %v3509, %v3749
      %v3990 = vmul.f32 %v3510, %v3750
      %v3991 = vmul.f32 %v3511, %v3751
      %v3992 = vmul.f32 %v3512, %v3752
      %v3993 = vmul.f32 %v3513, %v3753
      %v3994 = vmul.f32 %v3514, %v3754
      %v3995 = vmul.f32 %v3515, %v3755
      %v3996 = vmul.f32 %v3516, %v3756
      %v3997 = vmul.f32 %v3517, %v3757
      %v3998 = vmul.f32 %v3518, %v3758
      %v3999 = vmul.f32 %v3519, %v3759
      %v4000 = vmul.f32 %v3520, %v3760
      %v4001 = vmul.f32 %v3521, %v3761
      %v4002 = vmul.f32 %v3522, %v3762
      %v4003 = vmul.f32 %v3523, %v3763
      %v4004 = vmul.f32 %v3524, %v3764
      %v4005 = vmul.f32 %v3525, %v3765
      %v4006 = vmul.f32 %v3526, %v3766
      %v4007 = vmul.f32 %v3527, %v3767
      %v4008 = vmul.f32 %v3528, %v3768
      %v4009 = vmul.f32 %v3529, %v3769
      %v4010 = vmul.f32 %v3530, %v3770
      %v4011 = vmul.f32 %v3531, %v3771
      %v4012 = vmul.f32 %v3532, %v3772
      %v4013 = vmul.f32 %v3533, %v3773
      %v4014 = vmul.f32 %v3534, %v3774
      %v4015 = vmul.f32 %v3535, %v3775
      %v4016 = vmul.f32 %v3536, %v3776
      %v4017 = vmul.f32 %v3537, %v3777
      %v4018 = vmul.f32 %v3538, %v3778
      %v4019 = vmul.f32 %v3539, %v3779
      %v4020 = vmul.f32 %v3540, %v3780
      %v4021 = vmul.f32 %v3541, %v3781
      %v4022 = vmul.f32 %v3542, %v3782
      %v4023 = vmul.f32 %v3543, %v3783
      %v4024 = vmul.f32 %v3544, %v3784
      %v4025 = vmul.f32 %v3545, %v3785
      %v4026 = vmul.f32 %v3546, %v3786
      %v4027 = vmul.f32 %v3547, %v3787
      %v4028 = vmul.f32 %v3548, %v3788
      %v4029 = vmul.f32 %v3549, %v3789
      %v4030 = vmul.f32 %v3550, %v3790
      %v4031 = vmul.f32 %v3551, %v3791
      %v4032 = vmul.f32 %v3552, %v3792
      %v4033 = vmul.f32 %v3553, %v3793
      %v4034 = vmul.f32 %v3554, %v3794
      %v4035 = vmul.f32 %v3555, %v3795
      %v4036 = vmul.f32 %v3556, %v3796
      %v4037 = vmul.f32 %v3557, %v3797
      %v4038 = vmul.f32 %v3558, %v3798
      %v4039 = vmul.f32 %v3559, %v3799
      %v4040 = vmul.f32 %v3560, %v3800
      %v4041 = vmul.f32 %v3561, %v3801
      %v4042 = vmul.f32 %v3562, %v3802
      %v4043 = vmul.f32 %v3563, %v3803
      %v4044 = vmul.f32 %v3564, %v3804
      %v4045 = vmul.f32 %v3565, %v3805
      %v4046 = vmul.f32 %v3566, %v3806
      %v4047 = vmul.f32 %v3567, %v3807
      %v4048 = vmul.f32 %v3568, %v3808
      %v4049 = vmul.f32 %v3569, %v3809
      %v4050 = vmul.f32 %v3570, %v3810
      %v4051 = vmul.f32 %v3571, %v3811
      %v4052 = vmul.f32 %v3572, %v3812
      %v4053 = vmul.f32 %v3573, %v3813
      %v4054 = vmul.f32 %v3574, %v3814
      %v4055 = vmul.f32 %v3575, %v3815
      %v4056 = vmul.f32 %v3576, %v3816
      %v4057 = vmul.f32 %v3577, %v3817
      %v4058 = vmul.f32 %v3578, %v3818
      %v4059 = vld [vmem:[%s210] sm:$0xff]
      %v4060 = vld [vmem:[%s210 + $0x8] sm:$0xff]
      %v4061 = vld [vmem:[%s210 + $0x10] sm:$0xff]
      %v4062 = vld [vmem:[%s210 + $0x18] sm:$0xff]
      %v4063 = vld [vmem:[%s210 + $0x20] sm:$0xff]
      %v4064 = vld [vmem:[%s210 + $0x28] sm:$0xff]
      %v4065 = vld [vmem:[%s210 + $0x30] sm:$0xff]
      %v4066 = vld [vmem:[%s210 + $0x38] sm:$0xff]
      %v4067 = vld [vmem:[%s210 + $0x40] sm:$0xff]
      %v4068 = vld [vmem:[%s210 + $0x48] sm:$0xff]
      %v4069 = vld [vmem:[%s210 + $0x50] sm:$0xff]
      %v4070 = vld [vmem:[%s210 + $0x58] sm:$0xff]
      %v4071 = vld [vmem:[%s210 + $0x60] sm:$0xff]
      %v4072 = vld [vmem:[%s210 + $0x68] sm:$0xff]
      %v4073 = vld [vmem:[%s210 + $0x70] sm:$0xff]
      %v4074 = vld [vmem:[%s210 + $0x78] sm:$0xff]
      %v4075 = vld [vmem:[%s210 + $0x80] sm:$0xff]
      %v4076 = vld [vmem:[%s210 + $0x88] sm:$0xff]
      %v4077 = vld [vmem:[%s210 + $0x90] sm:$0xff]
      %v4078 = vld [vmem:[%s210 + $0x98] sm:$0xff]
      %v4079 = vld [vmem:[%s210 + $0xa0] sm:$0xff]
      %v4080 = vld [vmem:[%s210 + $0xa8] sm:$0xff]
      %v4081 = vld [vmem:[%s210 + $0xb0] sm:$0xff]
      %v4082 = vld [vmem:[%s210 + $0xb8] sm:$0xff]
      %v4083 = vld [vmem:[%s210 + $0xc0] sm:$0xff]
      %v4084 = vld [vmem:[%s210 + $0xc8] sm:$0xff]
      %v4085 = vld [vmem:[%s210 + $0xd0] sm:$0xff]
      %v4086 = vld [vmem:[%s210 + $0xd8] sm:$0xff]
      %v4087 = vld [vmem:[%s210 + $0xe0] sm:$0xff]
      %v4088 = vld [vmem:[%s210 + $0xe8] sm:$0xff]
      %v4089 = vld [vmem:[%s210 + $0xf0] sm:$0xff]
      %v4090 = vld [vmem:[%s210 + $0xf8] sm:$0xff]
      %v4091 = vld [vmem:[%s210 + $0x100] sm:$0xff]
      %v4092 = vld [vmem:[%s210 + $0x108] sm:$0xff]
      %v4093 = vld [vmem:[%s210 + $0x110] sm:$0xff]
      %v4094 = vld [vmem:[%s210 + $0x118] sm:$0xff]
      %v4095 = vld [vmem:[%s210 + $0x120] sm:$0xff]
      %v4096 = vld [vmem:[%s210 + $0x128] sm:$0xff]
      %v4097 = vld [vmem:[%s210 + $0x130] sm:$0xff]
      %v4098 = vld [vmem:[%s210 + $0x138] sm:$0xff]
      %v4099 = vld [vmem:[%s210 + $0x140] sm:$0xff]
      %v4100 = vld [vmem:[%s210 + $0x148] sm:$0xff]
      %v4101 = vld [vmem:[%s210 + $0x150] sm:$0xff]
      %v4102 = vld [vmem:[%s210 + $0x158] sm:$0xff]
      %v4103 = vld [vmem:[%s210 + $0x160] sm:$0xff]
      %v4104 = vld [vmem:[%s210 + $0x168] sm:$0xff]
      %v4105 = vld [vmem:[%s210 + $0x170] sm:$0xff]
      %v4106 = vld [vmem:[%s210 + $0x178] sm:$0xff]
      %v4107 = vld [vmem:[%s210 + $0x180] sm:$0xff]
      %v4108 = vld [vmem:[%s210 + $0x188] sm:$0xff]
      %v4109 = vld [vmem:[%s210 + $0x190] sm:$0xff]
      %v4110 = vld [vmem:[%s210 + $0x198] sm:$0xff]
      %v4111 = vld [vmem:[%s210 + $0x1a0] sm:$0xff]
      %v4112 = vld [vmem:[%s210 + $0x1a8] sm:$0xff]
      %v4113 = vld [vmem:[%s210 + $0x1b0] sm:$0xff]
      %v4114 = vld [vmem:[%s210 + $0x1b8] sm:$0xff]
      %v4115 = vld [vmem:[%s210 + $0x1c0] sm:$0xff]
      %v4116 = vld [vmem:[%s210 + $0x1c8] sm:$0xff]
      %v4117 = vld [vmem:[%s210 + $0x1d0] sm:$0xff]
      %v4118 = vld [vmem:[%s210 + $0x1d8] sm:$0xff]
      %v4119 = vld [vmem:[%s210 + $0x1e0] sm:$0xff]
      %v4120 = vld [vmem:[%s210 + $0x1e8] sm:$0xff]
      %v4121 = vld [vmem:[%s210 + $0x1f0] sm:$0xff]
      %v4122 = vld [vmem:[%s210 + $0x1f8] sm:$0xff]
      %v4123 = vld [vmem:[%s210 + $0x200] sm:$0xff]
      %v4124 = vld [vmem:[%s210 + $0x208] sm:$0xff]
      %v4125 = vld [vmem:[%s210 + $0x210] sm:$0xff]
      %v4126 = vld [vmem:[%s210 + $0x218] sm:$0xff]
      %v4127 = vld [vmem:[%s210 + $0x220] sm:$0xff]
      %v4128 = vld [vmem:[%s210 + $0x228] sm:$0xff]
      %v4129 = vld [vmem:[%s210 + $0x230] sm:$0xff]
      %v4130 = vld [vmem:[%s210 + $0x238] sm:$0xff]
      %v4131 = vld [vmem:[%s210 + $0x240] sm:$0xff]
      %v4132 = vld [vmem:[%s210 + $0x248] sm:$0xff]
      %v4133 = vld [vmem:[%s210 + $0x250] sm:$0xff]
      %v4134 = vld [vmem:[%s210 + $0x258] sm:$0xff]
      %v4135 = vld [vmem:[%s210 + $0x260] sm:$0xff]
      %v4136 = vld [vmem:[%s210 + $0x268] sm:$0xff]
      %v4137 = vld [vmem:[%s210 + $0x270] sm:$0xff]
      %v4138 = vld [vmem:[%s210 + $0x278] sm:$0xff]
      %v4139 = vld [vmem:[%s210 + $0x280] sm:$0xff]
      %v4140 = vld [vmem:[%s210 + $0x288] sm:$0xff]
      %v4141 = vld [vmem:[%s210 + $0x290] sm:$0xff]
      %v4142 = vld [vmem:[%s210 + $0x298] sm:$0xff]
      %v4143 = vld [vmem:[%s210 + $0x2a0] sm:$0xff]
      %v4144 = vld [vmem:[%s210 + $0x2a8] sm:$0xff]
      %v4145 = vld [vmem:[%s210 + $0x2b0] sm:$0xff]
      %v4146 = vld [vmem:[%s210 + $0x2b8] sm:$0xff]
      %v4147 = vld [vmem:[%s210 + $0x2c0] sm:$0xff]
      %v4148 = vld [vmem:[%s210 + $0x2c8] sm:$0xff]
      %v4149 = vld [vmem:[%s210 + $0x2d0] sm:$0xff]
      %v4150 = vld [vmem:[%s210 + $0x2d8] sm:$0xff]
      %v4151 = vld [vmem:[%s210 + $0x2e0] sm:$0xff]
      %v4152 = vld [vmem:[%s210 + $0x2e8] sm:$0xff]
      %v4153 = vld [vmem:[%s210 + $0x2f0] sm:$0xff]
      %v4154 = vld [vmem:[%s210 + $0x2f8] sm:$0xff]
      %v4155 = vld [vmem:[%s210 + $0x300] sm:$0xff]
      %v4156 = vld [vmem:[%s210 + $0x308] sm:$0xff]
      %v4157 = vld [vmem:[%s210 + $0x310] sm:$0xff]
      %v4158 = vld [vmem:[%s210 + $0x318] sm:$0xff]
      %v4159 = vld [vmem:[%s210 + $0x320] sm:$0xff]
      %v4160 = vld [vmem:[%s210 + $0x328] sm:$0xff]
      %v4161 = vld [vmem:[%s210 + $0x330] sm:$0xff]
      %v4162 = vld [vmem:[%s210 + $0x338] sm:$0xff]
      %v4163 = vld [vmem:[%s210 + $0x340] sm:$0xff]
      %v4164 = vld [vmem:[%s210 + $0x348] sm:$0xff]
      %v4165 = vld [vmem:[%s210 + $0x350] sm:$0xff]
      %v4166 = vld [vmem:[%s210 + $0x358] sm:$0xff]
      %v4167 = vld [vmem:[%s210 + $0x360] sm:$0xff]
      %v4168 = vld [vmem:[%s210 + $0x368] sm:$0xff]
      %v4169 = vld [vmem:[%s210 + $0x370] sm:$0xff]
      %v4170 = vld [vmem:[%s210 + $0x378] sm:$0xff]
      %v4171 = vld [vmem:[%s210 + $0x380] sm:$0xff]
      %v4172 = vld [vmem:[%s210 + $0x388] sm:$0xff]
      %v4173 = vld [vmem:[%s210 + $0x390] sm:$0xff]
      %v4174 = vld [vmem:[%s210 + $0x398] sm:$0xff]
      %v4175 = vld [vmem:[%s210 + $0x3a0] sm:$0xff]
      %v4176 = vld [vmem:[%s210 + $0x3a8] sm:$0xff]
      %v4177 = vld [vmem:[%s210 + $0x3b0] sm:$0xff]
      %v4178 = vld [vmem:[%s210 + $0x3b8] sm:$0xff]
      %v4179 = vld [vmem:[%s210 + $0x3c0] sm:$0xff]
      %v4180 = vld [vmem:[%s210 + $0x3c8] sm:$0xff]
      %v4181 = vld [vmem:[%s210 + $0x3d0] sm:$0xff]
      %v4182 = vld [vmem:[%s210 + $0x3d8] sm:$0xff]
      %v4183 = vld [vmem:[%s210 + $0x3e0] sm:$0xff]
      %v4184 = vld [vmem:[%s210 + $0x3e8] sm:$0xff]
      %v4185 = vld [vmem:[%s210 + $0x3f0] sm:$0xff]
      %v4186 = vld [vmem:[%s210 + $0x3f8] sm:$0xff]
      %v4187 = vld [vmem:[%s210 + $0x400] sm:$0xff]
      %v4188 = vld [vmem:[%s210 + $0x408] sm:$0xff]
      %v4189 = vld [vmem:[%s210 + $0x410] sm:$0xff]
      %v4190 = vld [vmem:[%s210 + $0x418] sm:$0xff]
      %v4191 = vld [vmem:[%s210 + $0x420] sm:$0xff]
      %v4192 = vld [vmem:[%s210 + $0x428] sm:$0xff]
      %v4193 = vld [vmem:[%s210 + $0x430] sm:$0xff]
      %v4194 = vld [vmem:[%s210 + $0x438] sm:$0xff]
      %v4195 = vld [vmem:[%s210 + $0x440] sm:$0xff]
      %v4196 = vld [vmem:[%s210 + $0x448] sm:$0xff]
      %v4197 = vld [vmem:[%s210 + $0x450] sm:$0xff]
      %v4198 = vld [vmem:[%s210 + $0x458] sm:$0xff]
      %v4199 = vld [vmem:[%s210 + $0x460] sm:$0xff]
      %v4200 = vld [vmem:[%s210 + $0x468] sm:$0xff]
      %v4201 = vld [vmem:[%s210 + $0x470] sm:$0xff]
      %v4202 = vld [vmem:[%s210 + $0x478] sm:$0xff]
      %v4203 = vld [vmem:[%s210 + $0x480] sm:$0xff]
      %v4204 = vld [vmem:[%s210 + $0x488] sm:$0xff]
      %v4205 = vld [vmem:[%s210 + $0x490] sm:$0xff]
      %v4206 = vld [vmem:[%s210 + $0x498] sm:$0xff]
      %v4207 = vld [vmem:[%s210 + $0x4a0] sm:$0xff]
      %v4208 = vld [vmem:[%s210 + $0x4a8] sm:$0xff]
      %v4209 = vld [vmem:[%s210 + $0x4b0] sm:$0xff]
      %v4210 = vld [vmem:[%s210 + $0x4b8] sm:$0xff]
      %v4211 = vld [vmem:[%s210 + $0x4c0] sm:$0xff]
      %v4212 = vld [vmem:[%s210 + $0x4c8] sm:$0xff]
      %v4213 = vld [vmem:[%s210 + $0x4d0] sm:$0xff]
      %v4214 = vld [vmem:[%s210 + $0x4d8] sm:$0xff]
      %v4215 = vld [vmem:[%s210 + $0x4e0] sm:$0xff]
      %v4216 = vld [vmem:[%s210 + $0x4e8] sm:$0xff]
      %v4217 = vld [vmem:[%s210 + $0x4f0] sm:$0xff]
      %v4218 = vld [vmem:[%s210 + $0x4f8] sm:$0xff]
      %v4219 = vld [vmem:[%s210 + $0x500] sm:$0xff]
      %v4220 = vld [vmem:[%s210 + $0x508] sm:$0xff]
      %v4221 = vld [vmem:[%s210 + $0x510] sm:$0xff]
      %v4222 = vld [vmem:[%s210 + $0x518] sm:$0xff]
      %v4223 = vld [vmem:[%s210 + $0x520] sm:$0xff]
      %v4224 = vld [vmem:[%s210 + $0x528] sm:$0xff]
      %v4225 = vld [vmem:[%s210 + $0x530] sm:$0xff]
      %v4226 = vld [vmem:[%s210 + $0x538] sm:$0xff]
      %v4227 = vld [vmem:[%s210 + $0x540] sm:$0xff]
      %v4228 = vld [vmem:[%s210 + $0x548] sm:$0xff]
      %v4229 = vld [vmem:[%s210 + $0x550] sm:$0xff]
      %v4230 = vld [vmem:[%s210 + $0x558] sm:$0xff]
      %v4231 = vld [vmem:[%s210 + $0x560] sm:$0xff]
      %v4232 = vld [vmem:[%s210 + $0x568] sm:$0xff]
      %v4233 = vld [vmem:[%s210 + $0x570] sm:$0xff]
      %v4234 = vld [vmem:[%s210 + $0x578] sm:$0xff]
      %v4235 = vld [vmem:[%s210 + $0x580] sm:$0xff]
      %v4236 = vld [vmem:[%s210 + $0x588] sm:$0xff]
      %v4237 = vld [vmem:[%s210 + $0x590] sm:$0xff]
      %v4238 = vld [vmem:[%s210 + $0x598] sm:$0xff]
      %v4239 = vld [vmem:[%s210 + $0x5a0] sm:$0xff]
      %v4240 = vld [vmem:[%s210 + $0x5a8] sm:$0xff]
      %v4241 = vld [vmem:[%s210 + $0x5b0] sm:$0xff]
      %v4242 = vld [vmem:[%s210 + $0x5b8] sm:$0xff]
      %v4243 = vld [vmem:[%s210 + $0x5c0] sm:$0xff]
      %v4244 = vld [vmem:[%s210 + $0x5c8] sm:$0xff]
      %v4245 = vld [vmem:[%s210 + $0x5d0] sm:$0xff]
      %v4246 = vld [vmem:[%s210 + $0x5d8] sm:$0xff]
      %v4247 = vld [vmem:[%s210 + $0x5e0] sm:$0xff]
      %v4248 = vld [vmem:[%s210 + $0x5e8] sm:$0xff]
      %v4249 = vld [vmem:[%s210 + $0x5f0] sm:$0xff]
      %v4250 = vld [vmem:[%s210 + $0x5f8] sm:$0xff]
      %v4251 = vld [vmem:[%s210 + $0x600] sm:$0xff]
      %v4252 = vld [vmem:[%s210 + $0x608] sm:$0xff]
      %v4253 = vld [vmem:[%s210 + $0x610] sm:$0xff]
      %v4254 = vld [vmem:[%s210 + $0x618] sm:$0xff]
      %v4255 = vld [vmem:[%s210 + $0x620] sm:$0xff]
      %v4256 = vld [vmem:[%s210 + $0x628] sm:$0xff]
      %v4257 = vld [vmem:[%s210 + $0x630] sm:$0xff]
      %v4258 = vld [vmem:[%s210 + $0x638] sm:$0xff]
      %v4259 = vld [vmem:[%s210 + $0x640] sm:$0xff]
      %v4260 = vld [vmem:[%s210 + $0x648] sm:$0xff]
      %v4261 = vld [vmem:[%s210 + $0x650] sm:$0xff]
      %v4262 = vld [vmem:[%s210 + $0x658] sm:$0xff]
      %v4263 = vld [vmem:[%s210 + $0x660] sm:$0xff]
      %v4264 = vld [vmem:[%s210 + $0x668] sm:$0xff]
      %v4265 = vld [vmem:[%s210 + $0x670] sm:$0xff]
      %v4266 = vld [vmem:[%s210 + $0x678] sm:$0xff]
      %v4267 = vld [vmem:[%s210 + $0x680] sm:$0xff]
      %v4268 = vld [vmem:[%s210 + $0x688] sm:$0xff]
      %v4269 = vld [vmem:[%s210 + $0x690] sm:$0xff]
      %v4270 = vld [vmem:[%s210 + $0x698] sm:$0xff]
      %v4271 = vld [vmem:[%s210 + $0x6a0] sm:$0xff]
      %v4272 = vld [vmem:[%s210 + $0x6a8] sm:$0xff]
      %v4273 = vld [vmem:[%s210 + $0x6b0] sm:$0xff]
      %v4274 = vld [vmem:[%s210 + $0x6b8] sm:$0xff]
      %v4275 = vld [vmem:[%s210 + $0x6c0] sm:$0xff]
      %v4276 = vld [vmem:[%s210 + $0x6c8] sm:$0xff]
      %v4277 = vld [vmem:[%s210 + $0x6d0] sm:$0xff]
      %v4278 = vld [vmem:[%s210 + $0x6d8] sm:$0xff]
      %v4279 = vld [vmem:[%s210 + $0x6e0] sm:$0xff]
      %v4280 = vld [vmem:[%s210 + $0x6e8] sm:$0xff]
      %v4281 = vld [vmem:[%s210 + $0x6f0] sm:$0xff]
      %v4282 = vld [vmem:[%s210 + $0x6f8] sm:$0xff]
      %v4283 = vld [vmem:[%s210 + $0x700] sm:$0xff]
      %v4284 = vld [vmem:[%s210 + $0x708] sm:$0xff]
      %v4285 = vld [vmem:[%s210 + $0x710] sm:$0xff]
      %v4286 = vld [vmem:[%s210 + $0x718] sm:$0xff]
      %v4287 = vld [vmem:[%s210 + $0x720] sm:$0xff]
      %v4288 = vld [vmem:[%s210 + $0x728] sm:$0xff]
      %v4289 = vld [vmem:[%s210 + $0x730] sm:$0xff]
      %v4290 = vld [vmem:[%s210 + $0x738] sm:$0xff]
      %v4291 = vld [vmem:[%s210 + $0x740] sm:$0xff]
      %v4292 = vld [vmem:[%s210 + $0x748] sm:$0xff]
      %v4293 = vld [vmem:[%s210 + $0x750] sm:$0xff]
      %v4294 = vld [vmem:[%s210 + $0x758] sm:$0xff]
      %v4295 = vld [vmem:[%s210 + $0x760] sm:$0xff]
      %v4296 = vld [vmem:[%s210 + $0x768] sm:$0xff]
      %v4297 = vld [vmem:[%s210 + $0x770] sm:$0xff]
      %v4298 = vld [vmem:[%s210 + $0x778] sm:$0xff]
      %v4299 = vmul.f32 %v2139, %v3819
      %v4300 = vmul.f32 %v2140, %v3820
      %v4301 = vmul.f32 %v2141, %v3821
      %v4302 = vmul.f32 %v2142, %v3822
      %v4303 = vmul.f32 %v2143, %v3823
      %v4304 = vmul.f32 %v2144, %v3824
      %v4305 = vmul.f32 %v2145, %v3825
      %v4306 = vmul.f32 %v2146, %v3826
      %v4307 = vmul.f32 %v2147, %v3827
      %v4308 = vmul.f32 %v2148, %v3828
      %v4309 = vmul.f32 %v2149, %v3829
      %v4310 = vmul.f32 %v2150, %v3830
      %v4311 = vmul.f32 %v2151, %v3831
      %v4312 = vmul.f32 %v2152, %v3832
      %v4313 = vmul.f32 %v2153, %v3833
      %v4314 = vmul.f32 %v2154, %v3834
      %v4315 = vmul.f32 %v2155, %v3835
      %v4316 = vmul.f32 %v2156, %v3836
      %v4317 = vmul.f32 %v2157, %v3837
      %v4318 = vmul.f32 %v2158, %v3838
      %v4319 = vmul.f32 %v2159, %v3839
      %v4320 = vmul.f32 %v2160, %v3840
      %v4321 = vmul.f32 %v2161, %v3841
      %v4322 = vmul.f32 %v2162, %v3842
      %v4323 = vmul.f32 %v2163, %v3843
      %v4324 = vmul.f32 %v2164, %v3844
      %v4325 = vmul.f32 %v2165, %v3845
      %v4326 = vmul.f32 %v2166, %v3846
      %v4327 = vmul.f32 %v2167, %v3847
      %v4328 = vmul.f32 %v2168, %v3848
      %v4329 = vmul.f32 %v2169, %v3849
      %v4330 = vmul.f32 %v2170, %v3850
      %v4331 = vmul.f32 %v2171, %v3851
      %v4332 = vmul.f32 %v2172, %v3852
      %v4333 = vmul.f32 %v2173, %v3853
      %v4334 = vmul.f32 %v2174, %v3854
      %v4335 = vmul.f32 %v2175, %v3855
      %v4336 = vmul.f32 %v2176, %v3856
      %v4337 = vmul.f32 %v2177, %v3857
      %v4338 = vmul.f32 %v2178, %v3858
      %v4339 = vmul.f32 %v2179, %v3859
      %v4340 = vmul.f32 %v2180, %v3860
      %v4341 = vmul.f32 %v2181, %v3861
      %v4342 = vmul.f32 %v2182, %v3862
      %v4343 = vmul.f32 %v2183, %v3863
      %v4344 = vmul.f32 %v2184, %v3864
      %v4345 = vmul.f32 %v2185, %v3865
      %v4346 = vmul.f32 %v2186, %v3866
      %v4347 = vmul.f32 %v2187, %v3867
      %v4348 = vmul.f32 %v2188, %v3868
      %v4349 = vmul.f32 %v2189, %v3869
      %v4350 = vmul.f32 %v2190, %v3870
      %v4351 = vmul.f32 %v2191, %v3871
      %v4352 = vmul.f32 %v2192, %v3872
      %v4353 = vmul.f32 %v2193, %v3873
      %v4354 = vmul.f32 %v2194, %v3874
      %v4355 = vmul.f32 %v2195, %v3875
      %v4356 = vmul.f32 %v2196, %v3876
      %v4357 = vmul.f32 %v2197, %v3877
      %v4358 = vmul.f32 %v2198, %v3878
      %v4359 = vmul.f32 %v2199, %v3879
      %v4360 = vmul.f32 %v2200, %v3880
      %v4361 = vmul.f32 %v2201, %v3881
      %v4362 = vmul.f32 %v2202, %v3882
      %v4363 = vmul.f32 %v2203, %v3883
      %v4364 = vmul.f32 %v2204, %v3884
      %v4365 = vmul.f32 %v2205, %v3885
      %v4366 = vmul.f32 %v2206, %v3886
      %v4367 = vmul.f32 %v2207, %v3887
      %v4368 = vmul.f32 %v2208, %v3888
      %v4369 = vmul.f32 %v2209, %v3889
      %v4370 = vmul.f32 %v2210, %v3890
      %v4371 = vmul.f32 %v2211, %v3891
      %v4372 = vmul.f32 %v2212, %v3892
      %v4373 = vmul.f32 %v2213, %v3893
      %v4374 = vmul.f32 %v2214, %v3894
      %v4375 = vmul.f32 %v2215, %v3895
      %v4376 = vmul.f32 %v2216, %v3896
      %v4377 = vmul.f32 %v2217, %v3897
      %v4378 = vmul.f32 %v2218, %v3898
      %v4379 = vmul.f32 %v2219, %v3899
      %v4380 = vmul.f32 %v2220, %v3900
      %v4381 = vmul.f32 %v2221, %v3901
      %v4382 = vmul.f32 %v2222, %v3902
      %v4383 = vmul.f32 %v2223, %v3903
      %v4384 = vmul.f32 %v2224, %v3904
      %v4385 = vmul.f32 %v2225, %v3905
      %v4386 = vmul.f32 %v2226, %v3906
      %v4387 = vmul.f32 %v2227, %v3907
      %v4388 = vmul.f32 %v2228, %v3908
      %v4389 = vmul.f32 %v2229, %v3909
      %v4390 = vmul.f32 %v2230, %v3910
      %v4391 = vmul.f32 %v2231, %v3911
      %v4392 = vmul.f32 %v2232, %v3912
      %v4393 = vmul.f32 %v2233, %v3913
      %v4394 = vmul.f32 %v2234, %v3914
      %v4395 = vmul.f32 %v2235, %v3915
      %v4396 = vmul.f32 %v2236, %v3916
      %v4397 = vmul.f32 %v2237, %v3917
      %v4398 = vmul.f32 %v2238, %v3918
      %v4399 = vmul.f32 %v2239, %v3919
      %v4400 = vmul.f32 %v2240, %v3920
      %v4401 = vmul.f32 %v2241, %v3921
      %v4402 = vmul.f32 %v2242, %v3922
      %v4403 = vmul.f32 %v2243, %v3923
      %v4404 = vmul.f32 %v2244, %v3924
      %v4405 = vmul.f32 %v2245, %v3925
      %v4406 = vmul.f32 %v2246, %v3926
      %v4407 = vmul.f32 %v2247, %v3927
      %v4408 = vmul.f32 %v2248, %v3928
      %v4409 = vmul.f32 %v2249, %v3929
      %v4410 = vmul.f32 %v2250, %v3930
      %v4411 = vmul.f32 %v2251, %v3931
      %v4412 = vmul.f32 %v2252, %v3932
      %v4413 = vmul.f32 %v2253, %v3933
      %v4414 = vmul.f32 %v2254, %v3934
      %v4415 = vmul.f32 %v2255, %v3935
      %v4416 = vmul.f32 %v2256, %v3936
      %v4417 = vmul.f32 %v2257, %v3937
      %v4418 = vmul.f32 %v2258, %v3938
      %v4419 = vmul.f32 %v2259, %v3939
      %v4420 = vmul.f32 %v2260, %v3940
      %v4421 = vmul.f32 %v2261, %v3941
      %v4422 = vmul.f32 %v2262, %v3942
      %v4423 = vmul.f32 %v2263, %v3943
      %v4424 = vmul.f32 %v2264, %v3944
      %v4425 = vmul.f32 %v2265, %v3945
      %v4426 = vmul.f32 %v2266, %v3946
      %v4427 = vmul.f32 %v2267, %v3947
      %v4428 = vmul.f32 %v2268, %v3948
      %v4429 = vmul.f32 %v2269, %v3949
      %v4430 = vmul.f32 %v2270, %v3950
      %v4431 = vmul.f32 %v2271, %v3951
      %v4432 = vmul.f32 %v2272, %v3952
      %v4433 = vmul.f32 %v2273, %v3953
      %v4434 = vmul.f32 %v2274, %v3954
      %v4435 = vmul.f32 %v2275, %v3955
      %v4436 = vmul.f32 %v2276, %v3956
      %v4437 = vmul.f32 %v2277, %v3957
      %v4438 = vmul.f32 %v2278, %v3958
      %v4439 = vmul.f32 %v2279, %v3959
      %v4440 = vmul.f32 %v2280, %v3960
      %v4441 = vmul.f32 %v2281, %v3961
      %v4442 = vmul.f32 %v2282, %v3962
      %v4443 = vmul.f32 %v2283, %v3963
      %v4444 = vmul.f32 %v2284, %v3964
      %v4445 = vmul.f32 %v2285, %v3965
      %v4446 = vmul.f32 %v2286, %v3966
      %v4447 = vmul.f32 %v2287, %v3967
      %v4448 = vmul.f32 %v2288, %v3968
      %v4449 = vmul.f32 %v2289, %v3969
      %v4450 = vmul.f32 %v2290, %v3970
      %v4451 = vmul.f32 %v2291, %v3971
      %v4452 = vmul.f32 %v2292, %v3972
      %v4453 = vmul.f32 %v2293, %v3973
      %v4454 = vmul.f32 %v2294, %v3974
      %v4455 = vmul.f32 %v2295, %v3975
      %v4456 = vmul.f32 %v2296, %v3976
      %v4457 = vmul.f32 %v2297, %v3977
      %v4458 = vmul.f32 %v2298, %v3978
      %v4459 = vmul.f32 %v2299, %v3979
      %v4460 = vmul.f32 %v2300, %v3980
      %v4461 = vmul.f32 %v2301, %v3981
      %v4462 = vmul.f32 %v2302, %v3982
      %v4463 = vmul.f32 %v2303, %v3983
      %v4464 = vmul.f32 %v2304, %v3984
      %v4465 = vmul.f32 %v2305, %v3985
      %v4466 = vmul.f32 %v2306, %v3986
      %v4467 = vmul.f32 %v2307, %v3987
      %v4468 = vmul.f32 %v2308, %v3988
      %v4469 = vmul.f32 %v2309, %v3989
      %v4470 = vmul.f32 %v2310, %v3990
      %v4471 = vmul.f32 %v2311, %v3991
      %v4472 = vmul.f32 %v2312, %v3992
      %v4473 = vmul.f32 %v2313, %v3993
      %v4474 = vmul.f32 %v2314, %v3994
      %v4475 = vmul.f32 %v2315, %v3995
      %v4476 = vmul.f32 %v2316, %v3996
      %v4477 = vmul.f32 %v2317, %v3997
      %v4478 = vmul.f32 %v2318, %v3998
      %v4479 = vmul.f32 %v2319, %v3999
      %v4480 = vmul.f32 %v2320, %v4000
      %v4481 = vmul.f32 %v2321, %v4001
      %v4482 = vmul.f32 %v2322, %v4002
      %v4483 = vmul.f32 %v2323, %v4003
      %v4484 = vmul.f32 %v2324, %v4004
      %v4485 = vmul.f32 %v2325, %v4005
      %v4486 = vmul.f32 %v2326, %v4006
      %v4487 = vmul.f32 %v2327, %v4007
      %v4488 = vmul.f32 %v2328, %v4008
      %v4489 = vmul.f32 %v2329, %v4009
      %v4490 = vmul.f32 %v2330, %v4010
      %v4491 = vmul.f32 %v2331, %v4011
      %v4492 = vmul.f32 %v2332, %v4012
      %v4493 = vmul.f32 %v2333, %v4013
      %v4494 = vmul.f32 %v2334, %v4014
      %v4495 = vmul.f32 %v2335, %v4015
      %v4496 = vmul.f32 %v2336, %v4016
      %v4497 = vmul.f32 %v2337, %v4017
      %v4498 = vmul.f32 %v2338, %v4018
      %v4499 = vmul.f32 %v2339, %v4019
      %v4500 = vmul.f32 %v2340, %v4020
      %v4501 = vmul.f32 %v2341, %v4021
      %v4502 = vmul.f32 %v2342, %v4022
      %v4503 = vmul.f32 %v2343, %v4023
      %v4504 = vmul.f32 %v2344, %v4024
      %v4505 = vmul.f32 %v2345, %v4025
      %v4506 = vmul.f32 %v2346, %v4026
      %v4507 = vmul.f32 %v2347, %v4027
      %v4508 = vmul.f32 %v2348, %v4028
      %v4509 = vmul.f32 %v2349, %v4029
      %v4510 = vmul.f32 %v2350, %v4030
      %v4511 = vmul.f32 %v2351, %v4031
      %v4512 = vmul.f32 %v2352, %v4032
      %v4513 = vmul.f32 %v2353, %v4033
      %v4514 = vmul.f32 %v2354, %v4034
      %v4515 = vmul.f32 %v2355, %v4035
      %v4516 = vmul.f32 %v2356, %v4036
      %v4517 = vmul.f32 %v2357, %v4037
      %v4518 = vmul.f32 %v2358, %v4038
      %v4519 = vmul.f32 %v2359, %v4039
      %v4520 = vmul.f32 %v2360, %v4040
      %v4521 = vmul.f32 %v2361, %v4041
      %v4522 = vmul.f32 %v2362, %v4042
      %v4523 = vmul.f32 %v2363, %v4043
      %v4524 = vmul.f32 %v2364, %v4044
      %v4525 = vmul.f32 %v2365, %v4045
      %v4526 = vmul.f32 %v2366, %v4046
      %v4527 = vmul.f32 %v2367, %v4047
      %v4528 = vmul.f32 %v2368, %v4048
      %v4529 = vmul.f32 %v2369, %v4049
      %v4530 = vmul.f32 %v2370, %v4050
      %v4531 = vmul.f32 %v2371, %v4051
      %v4532 = vmul.f32 %v2372, %v4052
      %v4533 = vmul.f32 %v2373, %v4053
      %v4534 = vmul.f32 %v2374, %v4054
      %v4535 = vmul.f32 %v2375, %v4055
      %v4536 = vmul.f32 %v2376, %v4056
      %v4537 = vmul.f32 %v2377, %v4057
      %v4538 = vmul.f32 %v2378, %v4058
      %v4539 = vsub.f32 %v4059, %v4299
      %v4540 = vsub.f32 %v4060, %v4300
      %v4541 = vsub.f32 %v4061, %v4301
      %v4542 = vsub.f32 %v4062, %v4302
      %v4543 = vsub.f32 %v4063, %v4303
      %v4544 = vsub.f32 %v4064, %v4304
      %v4545 = vsub.f32 %v4065, %v4305
      %v4546 = vsub.f32 %v4066, %v4306
      %v4547 = vsub.f32 %v4067, %v4307
      %v4548 = vsub.f32 %v4068, %v4308
      %v4549 = vsub.f32 %v4069, %v4309
      %v4550 = vsub.f32 %v4070, %v4310
      %v4551 = vsub.f32 %v4071, %v4311
      %v4552 = vsub.f32 %v4072, %v4312
      %v4553 = vsub.f32 %v4073, %v4313
      %v4554 = vsub.f32 %v4074, %v4314
      %v4555 = vsub.f32 %v4075, %v4315
      %v4556 = vsub.f32 %v4076, %v4316
      %v4557 = vsub.f32 %v4077, %v4317
      %v4558 = vsub.f32 %v4078, %v4318
      %v4559 = vsub.f32 %v4079, %v4319
      %v4560 = vsub.f32 %v4080, %v4320
      %v4561 = vsub.f32 %v4081, %v4321
      %v4562 = vsub.f32 %v4082, %v4322
      %v4563 = vsub.f32 %v4083, %v4323
      %v4564 = vsub.f32 %v4084, %v4324
      %v4565 = vsub.f32 %v4085, %v4325
      %v4566 = vsub.f32 %v4086, %v4326
      %v4567 = vsub.f32 %v4087, %v4327
      %v4568 = vsub.f32 %v4088, %v4328
      %v4569 = vsub.f32 %v4089, %v4329
      %v4570 = vsub.f32 %v4090, %v4330
      %v4571 = vsub.f32 %v4091, %v4331
      %v4572 = vsub.f32 %v4092, %v4332
      %v4573 = vsub.f32 %v4093, %v4333
      %v4574 = vsub.f32 %v4094, %v4334
      %v4575 = vsub.f32 %v4095, %v4335
      %v4576 = vsub.f32 %v4096, %v4336
      %v4577 = vsub.f32 %v4097, %v4337
      %v4578 = vsub.f32 %v4098, %v4338
      %v4579 = vsub.f32 %v4099, %v4339
      %v4580 = vsub.f32 %v4100, %v4340
      %v4581 = vsub.f32 %v4101, %v4341
      %v4582 = vsub.f32 %v4102, %v4342
      %v4583 = vsub.f32 %v4103, %v4343
      %v4584 = vsub.f32 %v4104, %v4344
      %v4585 = vsub.f32 %v4105, %v4345
      %v4586 = vsub.f32 %v4106, %v4346
      %v4587 = vsub.f32 %v4107, %v4347
      %v4588 = vsub.f32 %v4108, %v4348
      %v4589 = vsub.f32 %v4109, %v4349
      %v4590 = vsub.f32 %v4110, %v4350
      %v4591 = vsub.f32 %v4111, %v4351
      %v4592 = vsub.f32 %v4112, %v4352
      %v4593 = vsub.f32 %v4113, %v4353
      %v4594 = vsub.f32 %v4114, %v4354
      %v4595 = vsub.f32 %v4115, %v4355
      %v4596 = vsub.f32 %v4116, %v4356
      %v4597 = vsub.f32 %v4117, %v4357
      %v4598 = vsub.f32 %v4118, %v4358
      %v4599 = vsub.f32 %v4119, %v4359
      %v4600 = vsub.f32 %v4120, %v4360
      %v4601 = vsub.f32 %v4121, %v4361
      %v4602 = vsub.f32 %v4122, %v4362
      %v4603 = vsub.f32 %v4123, %v4363
      %v4604 = vsub.f32 %v4124, %v4364
      %v4605 = vsub.f32 %v4125, %v4365
      %v4606 = vsub.f32 %v4126, %v4366
      %v4607 = vsub.f32 %v4127, %v4367
      %v4608 = vsub.f32 %v4128, %v4368
      %v4609 = vsub.f32 %v4129, %v4369
      %v4610 = vsub.f32 %v4130, %v4370
      %v4611 = vsub.f32 %v4131, %v4371
      %v4612 = vsub.f32 %v4132, %v4372
      %v4613 = vsub.f32 %v4133, %v4373
      %v4614 = vsub.f32 %v4134, %v4374
      %v4615 = vsub.f32 %v4135, %v4375
      %v4616 = vsub.f32 %v4136, %v4376
      %v4617 = vsub.f32 %v4137, %v4377
      %v4618 = vsub.f32 %v4138, %v4378
      %v4619 = vsub.f32 %v4139, %v4379
      %v4620 = vsub.f32 %v4140, %v4380
      %v4621 = vsub.f32 %v4141, %v4381
      %v4622 = vsub.f32 %v4142, %v4382
      %v4623 = vsub.f32 %v4143, %v4383
      %v4624 = vsub.f32 %v4144, %v4384
      %v4625 = vsub.f32 %v4145, %v4385
      %v4626 = vsub.f32 %v4146, %v4386
      %v4627 = vsub.f32 %v4147, %v4387
      %v4628 = vsub.f32 %v4148, %v4388
      %v4629 = vsub.f32 %v4149, %v4389
      %v4630 = vsub.f32 %v4150, %v4390
      %v4631 = vsub.f32 %v4151, %v4391
      %v4632 = vsub.f32 %v4152, %v4392
      %v4633 = vsub.f32 %v4153, %v4393
      %v4634 = vsub.f32 %v4154, %v4394
      %v4635 = vsub.f32 %v4155, %v4395
      %v4636 = vsub.f32 %v4156, %v4396
      %v4637 = vsub.f32 %v4157, %v4397
      %v4638 = vsub.f32 %v4158, %v4398
      %v4639 = vsub.f32 %v4159, %v4399
      %v4640 = vsub.f32 %v4160, %v4400
      %v4641 = vsub.f32 %v4161, %v4401
      %v4642 = vsub.f32 %v4162, %v4402
      %v4643 = vsub.f32 %v4163, %v4403
      %v4644 = vsub.f32 %v4164, %v4404
      %v4645 = vsub.f32 %v4165, %v4405
      %v4646 = vsub.f32 %v4166, %v4406
      %v4647 = vsub.f32 %v4167, %v4407
      %v4648 = vsub.f32 %v4168, %v4408
      %v4649 = vsub.f32 %v4169, %v4409
      %v4650 = vsub.f32 %v4170, %v4410
      %v4651 = vsub.f32 %v4171, %v4411
      %v4652 = vsub.f32 %v4172, %v4412
      %v4653 = vsub.f32 %v4173, %v4413
      %v4654 = vsub.f32 %v4174, %v4414
      %v4655 = vsub.f32 %v4175, %v4415
      %v4656 = vsub.f32 %v4176, %v4416
      %v4657 = vsub.f32 %v4177, %v4417
      %v4658 = vsub.f32 %v4178, %v4418
      %v4659 = vsub.f32 %v4179, %v4419
      %v4660 = vsub.f32 %v4180, %v4420
      %v4661 = vsub.f32 %v4181, %v4421
      %v4662 = vsub.f32 %v4182, %v4422
      %v4663 = vsub.f32 %v4183, %v4423
      %v4664 = vsub.f32 %v4184, %v4424
      %v4665 = vsub.f32 %v4185, %v4425
      %v4666 = vsub.f32 %v4186, %v4426
      %v4667 = vsub.f32 %v4187, %v4427
      %v4668 = vsub.f32 %v4188, %v4428
      %v4669 = vsub.f32 %v4189, %v4429
      %v4670 = vsub.f32 %v4190, %v4430
      %v4671 = vsub.f32 %v4191, %v4431
      %v4672 = vsub.f32 %v4192, %v4432
      %v4673 = vsub.f32 %v4193, %v4433
      %v4674 = vsub.f32 %v4194, %v4434
      %v4675 = vsub.f32 %v4195, %v4435
      %v4676 = vsub.f32 %v4196, %v4436
      %v4677 = vsub.f32 %v4197, %v4437
      %v4678 = vsub.f32 %v4198, %v4438
      %v4679 = vsub.f32 %v4199, %v4439
      %v4680 = vsub.f32 %v4200, %v4440
      %v4681 = vsub.f32 %v4201, %v4441
      %v4682 = vsub.f32 %v4202, %v4442
      %v4683 = vsub.f32 %v4203, %v4443
      %v4684 = vsub.f32 %v4204, %v4444
      %v4685 = vsub.f32 %v4205, %v4445
      %v4686 = vsub.f32 %v4206, %v4446
      %v4687 = vsub.f32 %v4207, %v4447
      %v4688 = vsub.f32 %v4208, %v4448
      %v4689 = vsub.f32 %v4209, %v4449
      %v4690 = vsub.f32 %v4210, %v4450
      %v4691 = vsub.f32 %v4211, %v4451
      %v4692 = vsub.f32 %v4212, %v4452
      %v4693 = vsub.f32 %v4213, %v4453
      %v4694 = vsub.f32 %v4214, %v4454
      %v4695 = vsub.f32 %v4215, %v4455
      %v4696 = vsub.f32 %v4216, %v4456
      %v4697 = vsub.f32 %v4217, %v4457
      %v4698 = vsub.f32 %v4218, %v4458
      %v4699 = vsub.f32 %v4219, %v4459
      %v4700 = vsub.f32 %v4220, %v4460
      %v4701 = vsub.f32 %v4221, %v4461
      %v4702 = vsub.f32 %v4222, %v4462
      %v4703 = vsub.f32 %v4223, %v4463
      %v4704 = vsub.f32 %v4224, %v4464
      %v4705 = vsub.f32 %v4225, %v4465
      %v4706 = vsub.f32 %v4226, %v4466
      %v4707 = vsub.f32 %v4227, %v4467
      %v4708 = vsub.f32 %v4228, %v4468
      %v4709 = vsub.f32 %v4229, %v4469
      %v4710 = vsub.f32 %v4230, %v4470
      %v4711 = vsub.f32 %v4231, %v4471
      %v4712 = vsub.f32 %v4232, %v4472
      %v4713 = vsub.f32 %v4233, %v4473
      %v4714 = vsub.f32 %v4234, %v4474
      %v4715 = vsub.f32 %v4235, %v4475
      %v4716 = vsub.f32 %v4236, %v4476
      %v4717 = vsub.f32 %v4237, %v4477
      %v4718 = vsub.f32 %v4238, %v4478
      %v4719 = vsub.f32 %v4239, %v4479
      %v4720 = vsub.f32 %v4240, %v4480
      %v4721 = vsub.f32 %v4241, %v4481
      %v4722 = vsub.f32 %v4242, %v4482
      %v4723 = vsub.f32 %v4243, %v4483
      %v4724 = vsub.f32 %v4244, %v4484
      %v4725 = vsub.f32 %v4245, %v4485
      %v4726 = vsub.f32 %v4246, %v4486
      %v4727 = vsub.f32 %v4247, %v4487
      %v4728 = vsub.f32 %v4248, %v4488
      %v4729 = vsub.f32 %v4249, %v4489
      %v4730 = vsub.f32 %v4250, %v4490
      %v4731 = vsub.f32 %v4251, %v4491
      %v4732 = vsub.f32 %v4252, %v4492
      %v4733 = vsub.f32 %v4253, %v4493
      %v4734 = vsub.f32 %v4254, %v4494
      %v4735 = vsub.f32 %v4255, %v4495
      %v4736 = vsub.f32 %v4256, %v4496
      %v4737 = vsub.f32 %v4257, %v4497
      %v4738 = vsub.f32 %v4258, %v4498
      %v4739 = vsub.f32 %v4259, %v4499
      %v4740 = vsub.f32 %v4260, %v4500
      %v4741 = vsub.f32 %v4261, %v4501
      %v4742 = vsub.f32 %v4262, %v4502
      %v4743 = vsub.f32 %v4263, %v4503
      %v4744 = vsub.f32 %v4264, %v4504
      %v4745 = vsub.f32 %v4265, %v4505
      %v4746 = vsub.f32 %v4266, %v4506
      %v4747 = vsub.f32 %v4267, %v4507
      %v4748 = vsub.f32 %v4268, %v4508
      %v4749 = vsub.f32 %v4269, %v4509
      %v4750 = vsub.f32 %v4270, %v4510
      %v4751 = vsub.f32 %v4271, %v4511
      %v4752 = vsub.f32 %v4272, %v4512
      %v4753 = vsub.f32 %v4273, %v4513
      %v4754 = vsub.f32 %v4274, %v4514
      %v4755 = vsub.f32 %v4275, %v4515
      %v4756 = vsub.f32 %v4276, %v4516
      %v4757 = vsub.f32 %v4277, %v4517
      %v4758 = vsub.f32 %v4278, %v4518
      %v4759 = vsub.f32 %v4279, %v4519
      %v4760 = vsub.f32 %v4280, %v4520
      %v4761 = vsub.f32 %v4281, %v4521
      %v4762 = vsub.f32 %v4282, %v4522
      %v4763 = vsub.f32 %v4283, %v4523
      %v4764 = vsub.f32 %v4284, %v4524
      %v4765 = vsub.f32 %v4285, %v4525
      %v4766 = vsub.f32 %v4286, %v4526
      %v4767 = vsub.f32 %v4287, %v4527
      %v4768 = vsub.f32 %v4288, %v4528
      %v4769 = vsub.f32 %v4289, %v4529
      %v4770 = vsub.f32 %v4290, %v4530
      %v4771 = vsub.f32 %v4291, %v4531
      %v4772 = vsub.f32 %v4292, %v4532
      %v4773 = vsub.f32 %v4293, %v4533
      %v4774 = vsub.f32 %v4294, %v4534
      %v4775 = vsub.f32 %v4295, %v4535
      %v4776 = vsub.f32 %v4296, %v4536
      %v4777 = vsub.f32 %v4297, %v4537
      %v4778 = vsub.f32 %v4298, %v4538
      %4780 = vset.pattern.permute.xlu0 0
      %4781 = vperm.xlu0 %4780, %v3819
      %v4782 = vpop.permute.xlu0 %4781
      %4785 = vset.pattern.permute.xlu0 0
      %4786 = vperm.xlu0 %4785, %v3820
      %v4787 = vpop.permute.xlu0 %4786
      %4790 = vset.pattern.permute.xlu0 0
      %4791 = vperm.xlu0 %4790, %v3821
      %v4792 = vpop.permute.xlu0 %4791
      %4795 = vset.pattern.permute.xlu0 0
      %4796 = vperm.xlu0 %4795, %v3822
      %v4797 = vpop.permute.xlu0 %4796
      %4800 = vset.pattern.permute.xlu0 0
      %4801 = vperm.xlu0 %4800, %v3823
      %v4802 = vpop.permute.xlu0 %4801
      %4805 = vset.pattern.permute.xlu0 0
      %4806 = vperm.xlu0 %4805, %v3824
      %v4807 = vpop.permute.xlu0 %4806
      %4810 = vset.pattern.permute.xlu0 0
      %4811 = vperm.xlu0 %4810, %v3825
      %v4812 = vpop.permute.xlu0 %4811
      %4815 = vset.pattern.permute.xlu0 0
      %4816 = vperm.xlu0 %4815, %v3826
      %v4817 = vpop.permute.xlu0 %4816
      %4820 = vset.pattern.permute.xlu0 0
      %4821 = vperm.xlu0 %4820, %v3827
      %v4822 = vpop.permute.xlu0 %4821
      %4825 = vset.pattern.permute.xlu0 0
      %4826 = vperm.xlu0 %4825, %v3828
      %v4827 = vpop.permute.xlu0 %4826
      %4830 = vset.pattern.permute.xlu0 0
      %4831 = vperm.xlu0 %4830, %v3829
      %v4832 = vpop.permute.xlu0 %4831
      %4835 = vset.pattern.permute.xlu0 0
      %4836 = vperm.xlu0 %4835, %v3830
      %v4837 = vpop.permute.xlu0 %4836
      %4840 = vset.pattern.permute.xlu0 0
      %4841 = vperm.xlu0 %4840, %v3831
      %v4842 = vpop.permute.xlu0 %4841
      %4845 = vset.pattern.permute.xlu0 0
      %4846 = vperm.xlu0 %4845, %v3832
      %v4847 = vpop.permute.xlu0 %4846
      %4850 = vset.pattern.permute.xlu0 0
      %4851 = vperm.xlu0 %4850, %v3833
      %v4852 = vpop.permute.xlu0 %4851
      %4855 = vset.pattern.permute.xlu0 0
      %4856 = vperm.xlu0 %4855, %v3834
      %v4857 = vpop.permute.xlu0 %4856
      %4860 = vset.pattern.permute.xlu0 0
      %4861 = vperm.xlu0 %4860, %v3835
      %v4862 = vpop.permute.xlu0 %4861
      %4865 = vset.pattern.permute.xlu0 0
      %4866 = vperm.xlu0 %4865, %v3836
      %v4867 = vpop.permute.xlu0 %4866
      %4870 = vset.pattern.permute.xlu0 0
      %4871 = vperm.xlu0 %4870, %v3837
      %v4872 = vpop.permute.xlu0 %4871
      %4875 = vset.pattern.permute.xlu0 0
      %4876 = vperm.xlu0 %4875, %v3838
      %v4877 = vpop.permute.xlu0 %4876
      %4880 = vset.pattern.permute.xlu0 0
      %4881 = vperm.xlu0 %4880, %v3839
      %v4882 = vpop.permute.xlu0 %4881
      %4885 = vset.pattern.permute.xlu0 0
      %4886 = vperm.xlu0 %4885, %v3840
      %v4887 = vpop.permute.xlu0 %4886
      %4890 = vset.pattern.permute.xlu0 0
      %4891 = vperm.xlu0 %4890, %v3841
      %v4892 = vpop.permute.xlu0 %4891
      %4895 = vset.pattern.permute.xlu0 0
      %4896 = vperm.xlu0 %4895, %v3842
      %v4897 = vpop.permute.xlu0 %4896
      %4900 = vset.pattern.permute.xlu0 0
      %4901 = vperm.xlu0 %4900, %v3843
      %v4902 = vpop.permute.xlu0 %4901
      %4905 = vset.pattern.permute.xlu0 0
      %4906 = vperm.xlu0 %4905, %v3844
      %v4907 = vpop.permute.xlu0 %4906
      %4910 = vset.pattern.permute.xlu0 0
      %4911 = vperm.xlu0 %4910, %v3845
      %v4912 = vpop.permute.xlu0 %4911
      %4915 = vset.pattern.permute.xlu0 0
      %4916 = vperm.xlu0 %4915, %v3846
      %v4917 = vpop.permute.xlu0 %4916
      %4920 = vset.pattern.permute.xlu0 0
      %4921 = vperm.xlu0 %4920, %v3847
      %v4922 = vpop.permute.xlu0 %4921
      %4925 = vset.pattern.permute.xlu0 0
      %4926 = vperm.xlu0 %4925, %v3848
      %v4927 = vpop.permute.xlu0 %4926
      %4930 = vset.pattern.permute.xlu0 0
      %4931 = vperm.xlu0 %4930, %v3849
      %v4932 = vpop.permute.xlu0 %4931
      %4935 = vset.pattern.permute.xlu0 0
      %4936 = vperm.xlu0 %4935, %v3850
      %v4937 = vpop.permute.xlu0 %4936
      %4940 = vset.pattern.permute.xlu0 0
      %4941 = vperm.xlu0 %4940, %v3851
      %v4942 = vpop.permute.xlu0 %4941
      %4945 = vset.pattern.permute.xlu0 0
      %4946 = vperm.xlu0 %4945, %v3852
      %v4947 = vpop.permute.xlu0 %4946
      %4950 = vset.pattern.permute.xlu0 0
      %4951 = vperm.xlu0 %4950, %v3853
      %v4952 = vpop.permute.xlu0 %4951
      %4955 = vset.pattern.permute.xlu0 0
      %4956 = vperm.xlu0 %4955, %v3854
      %v4957 = vpop.permute.xlu0 %4956
      %4960 = vset.pattern.permute.xlu0 0
      %4961 = vperm.xlu0 %4960, %v3855
      %v4962 = vpop.permute.xlu0 %4961
      %4965 = vset.pattern.permute.xlu0 0
      %4966 = vperm.xlu0 %4965, %v3856
      %v4967 = vpop.permute.xlu0 %4966
      %4970 = vset.pattern.permute.xlu0 0
      %4971 = vperm.xlu0 %4970, %v3857
      %v4972 = vpop.permute.xlu0 %4971
      %4975 = vset.pattern.permute.xlu0 0
      %4976 = vperm.xlu0 %4975, %v3858
      %v4977 = vpop.permute.xlu0 %4976
      %4980 = vset.pattern.permute.xlu0 0
      %4981 = vperm.xlu0 %4980, %v3859
      %v4982 = vpop.permute.xlu0 %4981
      %4985 = vset.pattern.permute.xlu0 0
      %4986 = vperm.xlu0 %4985, %v3860
      %v4987 = vpop.permute.xlu0 %4986
      %4990 = vset.pattern.permute.xlu0 0
      %4991 = vperm.xlu0 %4990, %v3861
      %v4992 = vpop.permute.xlu0 %4991
      %4995 = vset.pattern.permute.xlu0 0
      %4996 = vperm.xlu0 %4995, %v3862
      %v4997 = vpop.permute.xlu0 %4996
      %5000 = vset.pattern.permute.xlu0 0
      %5001 = vperm.xlu0 %5000, %v3863
      %v5002 = vpop.permute.xlu0 %5001
      %5005 = vset.pattern.permute.xlu0 0
      %5006 = vperm.xlu0 %5005, %v3864
      %v5007 = vpop.permute.xlu0 %5006
      %5010 = vset.pattern.permute.xlu0 0
      %5011 = vperm.xlu0 %5010, %v3865
      %v5012 = vpop.permute.xlu0 %5011
      %5015 = vset.pattern.permute.xlu0 0
      %5016 = vperm.xlu0 %5015, %v3866
      %v5017 = vpop.permute.xlu0 %5016
      %5020 = vset.pattern.permute.xlu0 0
      %5021 = vperm.xlu0 %5020, %v3867
      %v5022 = vpop.permute.xlu0 %5021
      %5025 = vset.pattern.permute.xlu0 0
      %5026 = vperm.xlu0 %5025, %v3868
      %v5027 = vpop.permute.xlu0 %5026
      %5030 = vset.pattern.permute.xlu0 0
      %5031 = vperm.xlu0 %5030, %v3869
      %v5032 = vpop.permute.xlu0 %5031
      %5035 = vset.pattern.permute.xlu0 0
      %5036 = vperm.xlu0 %5035, %v3870
      %v5037 = vpop.permute.xlu0 %5036
      %5040 = vset.pattern.permute.xlu0 0
      %5041 = vperm.xlu0 %5040, %v3871
      %v5042 = vpop.permute.xlu0 %5041
      %5045 = vset.pattern.permute.xlu0 0
      %5046 = vperm.xlu0 %5045, %v3872
      %v5047 = vpop.permute.xlu0 %5046
      %5050 = vset.pattern.permute.xlu0 0
      %5051 = vperm.xlu0 %5050, %v3873
      %v5052 = vpop.permute.xlu0 %5051
      %5055 = vset.pattern.permute.xlu0 0
      %5056 = vperm.xlu0 %5055, %v3874
      %v5057 = vpop.permute.xlu0 %5056
      %5060 = vset.pattern.permute.xlu0 0
      %5061 = vperm.xlu0 %5060, %v3875
      %v5062 = vpop.permute.xlu0 %5061
      %5065 = vset.pattern.permute.xlu0 0
      %5066 = vperm.xlu0 %5065, %v3876
      %v5067 = vpop.permute.xlu0 %5066
      %5070 = vset.pattern.permute.xlu0 0
      %5071 = vperm.xlu0 %5070, %v3877
      %v5072 = vpop.permute.xlu0 %5071
      %5075 = vset.pattern.permute.xlu0 0
      %5076 = vperm.xlu0 %5075, %v3878
      %v5077 = vpop.permute.xlu0 %5076
      %5080 = vset.pattern.permute.xlu0 0
      %5081 = vperm.xlu0 %5080, %v3879
      %v5082 = vpop.permute.xlu0 %5081
      %5085 = vset.pattern.permute.xlu0 0
      %5086 = vperm.xlu0 %5085, %v3880
      %v5087 = vpop.permute.xlu0 %5086
      %5090 = vset.pattern.permute.xlu0 0
      %5091 = vperm.xlu0 %5090, %v3881
      %v5092 = vpop.permute.xlu0 %5091
      %5095 = vset.pattern.permute.xlu0 0
      %5096 = vperm.xlu0 %5095, %v3882
      %v5097 = vpop.permute.xlu0 %5096
      %5100 = vset.pattern.permute.xlu0 0
      %5101 = vperm.xlu0 %5100, %v3883
      %v5102 = vpop.permute.xlu0 %5101
      %5105 = vset.pattern.permute.xlu0 0
      %5106 = vperm.xlu0 %5105, %v3884
      %v5107 = vpop.permute.xlu0 %5106
      %5110 = vset.pattern.permute.xlu0 0
      %5111 = vperm.xlu0 %5110, %v3885
      %v5112 = vpop.permute.xlu0 %5111
      %5115 = vset.pattern.permute.xlu0 0
      %5116 = vperm.xlu0 %5115, %v3886
      %v5117 = vpop.permute.xlu0 %5116
      %5120 = vset.pattern.permute.xlu0 0
      %5121 = vperm.xlu0 %5120, %v3887
      %v5122 = vpop.permute.xlu0 %5121
      %5125 = vset.pattern.permute.xlu0 0
      %5126 = vperm.xlu0 %5125, %v3888
      %v5127 = vpop.permute.xlu0 %5126
      %5130 = vset.pattern.permute.xlu0 0
      %5131 = vperm.xlu0 %5130, %v3889
      %v5132 = vpop.permute.xlu0 %5131
      %5135 = vset.pattern.permute.xlu0 0
      %5136 = vperm.xlu0 %5135, %v3890
      %v5137 = vpop.permute.xlu0 %5136
      %5140 = vset.pattern.permute.xlu0 0
      %5141 = vperm.xlu0 %5140, %v3891
      %v5142 = vpop.permute.xlu0 %5141
      %5145 = vset.pattern.permute.xlu0 0
      %5146 = vperm.xlu0 %5145, %v3892
      %v5147 = vpop.permute.xlu0 %5146
      %5150 = vset.pattern.permute.xlu0 0
      %5151 = vperm.xlu0 %5150, %v3893
      %v5152 = vpop.permute.xlu0 %5151
      %5155 = vset.pattern.permute.xlu0 0
      %5156 = vperm.xlu0 %5155, %v3894
      %v5157 = vpop.permute.xlu0 %5156
      %5160 = vset.pattern.permute.xlu0 0
      %5161 = vperm.xlu0 %5160, %v3895
      %v5162 = vpop.permute.xlu0 %5161
      %5165 = vset.pattern.permute.xlu0 0
      %5166 = vperm.xlu0 %5165, %v3896
      %v5167 = vpop.permute.xlu0 %5166
      %5170 = vset.pattern.permute.xlu0 0
      %5171 = vperm.xlu0 %5170, %v3897
      %v5172 = vpop.permute.xlu0 %5171
      %5175 = vset.pattern.permute.xlu0 0
      %5176 = vperm.xlu0 %5175, %v3898
      %v5177 = vpop.permute.xlu0 %5176
      %5180 = vset.pattern.permute.xlu0 0
      %5181 = vperm.xlu0 %5180, %v3899
      %v5182 = vpop.permute.xlu0 %5181
      %5185 = vset.pattern.permute.xlu0 0
      %5186 = vperm.xlu0 %5185, %v3900
      %v5187 = vpop.permute.xlu0 %5186
      %5190 = vset.pattern.permute.xlu0 0
      %5191 = vperm.xlu0 %5190, %v3901
      %v5192 = vpop.permute.xlu0 %5191
      %5195 = vset.pattern.permute.xlu0 0
      %5196 = vperm.xlu0 %5195, %v3902
      %v5197 = vpop.permute.xlu0 %5196
      %5200 = vset.pattern.permute.xlu0 0
      %5201 = vperm.xlu0 %5200, %v3903
      %v5202 = vpop.permute.xlu0 %5201
      %5205 = vset.pattern.permute.xlu0 0
      %5206 = vperm.xlu0 %5205, %v3904
      %v5207 = vpop.permute.xlu0 %5206
      %5210 = vset.pattern.permute.xlu0 0
      %5211 = vperm.xlu0 %5210, %v3905
      %v5212 = vpop.permute.xlu0 %5211
      %5215 = vset.pattern.permute.xlu0 0
      %5216 = vperm.xlu0 %5215, %v3906
      %v5217 = vpop.permute.xlu0 %5216
      %5220 = vset.pattern.permute.xlu0 0
      %5221 = vperm.xlu0 %5220, %v3907
      %v5222 = vpop.permute.xlu0 %5221
      %5225 = vset.pattern.permute.xlu0 0
      %5226 = vperm.xlu0 %5225, %v3908
      %v5227 = vpop.permute.xlu0 %5226
      %5230 = vset.pattern.permute.xlu0 0
      %5231 = vperm.xlu0 %5230, %v3909
      %v5232 = vpop.permute.xlu0 %5231
      %5235 = vset.pattern.permute.xlu0 0
      %5236 = vperm.xlu0 %5235, %v3910
      %v5237 = vpop.permute.xlu0 %5236
      %5240 = vset.pattern.permute.xlu0 0
      %5241 = vperm.xlu0 %5240, %v3911
      %v5242 = vpop.permute.xlu0 %5241
      %5245 = vset.pattern.permute.xlu0 0
      %5246 = vperm.xlu0 %5245, %v3912
      %v5247 = vpop.permute.xlu0 %5246
      %5250 = vset.pattern.permute.xlu0 0
      %5251 = vperm.xlu0 %5250, %v3913
      %v5252 = vpop.permute.xlu0 %5251
      %5255 = vset.pattern.permute.xlu0 0
      %5256 = vperm.xlu0 %5255, %v3914
      %v5257 = vpop.permute.xlu0 %5256
      %5260 = vset.pattern.permute.xlu0 0
      %5261 = vperm.xlu0 %5260, %v3915
      %v5262 = vpop.permute.xlu0 %5261
      %5265 = vset.pattern.permute.xlu0 0
      %5266 = vperm.xlu0 %5265, %v3916
      %v5267 = vpop.permute.xlu0 %5266
      %5270 = vset.pattern.permute.xlu0 0
      %5271 = vperm.xlu0 %5270, %v3917
      %v5272 = vpop.permute.xlu0 %5271
      %5275 = vset.pattern.permute.xlu0 0
      %5276 = vperm.xlu0 %5275, %v3918
      %v5277 = vpop.permute.xlu0 %5276
      %5280 = vset.pattern.permute.xlu0 0
      %5281 = vperm.xlu0 %5280, %v3919
      %v5282 = vpop.permute.xlu0 %5281
      %5285 = vset.pattern.permute.xlu0 0
      %5286 = vperm.xlu0 %5285, %v3920
      %v5287 = vpop.permute.xlu0 %5286
      %5290 = vset.pattern.permute.xlu0 0
      %5291 = vperm.xlu0 %5290, %v3921
      %v5292 = vpop.permute.xlu0 %5291
      %5295 = vset.pattern.permute.xlu0 0
      %5296 = vperm.xlu0 %5295, %v3922
      %v5297 = vpop.permute.xlu0 %5296
      %5300 = vset.pattern.permute.xlu0 0
      %5301 = vperm.xlu0 %5300, %v3923
      %v5302 = vpop.permute.xlu0 %5301
      %5305 = vset.pattern.permute.xlu0 0
      %5306 = vperm.xlu0 %5305, %v3924
      %v5307 = vpop.permute.xlu0 %5306
      %5310 = vset.pattern.permute.xlu0 0
      %5311 = vperm.xlu0 %5310, %v3925
      %v5312 = vpop.permute.xlu0 %5311
      %5315 = vset.pattern.permute.xlu0 0
      %5316 = vperm.xlu0 %5315, %v3926
      %v5317 = vpop.permute.xlu0 %5316
      %5320 = vset.pattern.permute.xlu0 0
      %5321 = vperm.xlu0 %5320, %v3927
      %v5322 = vpop.permute.xlu0 %5321
      %5325 = vset.pattern.permute.xlu0 0
      %5326 = vperm.xlu0 %5325, %v3928
      %v5327 = vpop.permute.xlu0 %5326
      %5330 = vset.pattern.permute.xlu0 0
      %5331 = vperm.xlu0 %5330, %v3929
      %v5332 = vpop.permute.xlu0 %5331
      %5335 = vset.pattern.permute.xlu0 0
      %5336 = vperm.xlu0 %5335, %v3930
      %v5337 = vpop.permute.xlu0 %5336
      %5340 = vset.pattern.permute.xlu0 0
      %5341 = vperm.xlu0 %5340, %v3931
      %v5342 = vpop.permute.xlu0 %5341
      %5345 = vset.pattern.permute.xlu0 0
      %5346 = vperm.xlu0 %5345, %v3932
      %v5347 = vpop.permute.xlu0 %5346
      %5350 = vset.pattern.permute.xlu0 0
      %5351 = vperm.xlu0 %5350, %v3933
      %v5352 = vpop.permute.xlu0 %5351
      %5355 = vset.pattern.permute.xlu0 0
      %5356 = vperm.xlu0 %5355, %v3934
      %v5357 = vpop.permute.xlu0 %5356
      %5360 = vset.pattern.permute.xlu0 0
      %5361 = vperm.xlu0 %5360, %v3935
      %v5362 = vpop.permute.xlu0 %5361
      %5365 = vset.pattern.permute.xlu0 0
      %5366 = vperm.xlu0 %5365, %v3936
      %v5367 = vpop.permute.xlu0 %5366
      %5370 = vset.pattern.permute.xlu0 0
      %5371 = vperm.xlu0 %5370, %v3937
      %v5372 = vpop.permute.xlu0 %5371
      %5375 = vset.pattern.permute.xlu0 0
      %5376 = vperm.xlu0 %5375, %v3938
      %v5377 = vpop.permute.xlu0 %5376
      %5380 = vset.pattern.permute.xlu0 0
      %5381 = vperm.xlu0 %5380, %v3939
      %v5382 = vpop.permute.xlu0 %5381
      %5385 = vset.pattern.permute.xlu0 0
      %5386 = vperm.xlu0 %5385, %v3940
      %v5387 = vpop.permute.xlu0 %5386
      %5390 = vset.pattern.permute.xlu0 0
      %5391 = vperm.xlu0 %5390, %v3941
      %v5392 = vpop.permute.xlu0 %5391
      %5395 = vset.pattern.permute.xlu0 0
      %5396 = vperm.xlu0 %5395, %v3942
      %v5397 = vpop.permute.xlu0 %5396
      %5400 = vset.pattern.permute.xlu0 0
      %5401 = vperm.xlu0 %5400, %v3943
      %v5402 = vpop.permute.xlu0 %5401
      %5405 = vset.pattern.permute.xlu0 0
      %5406 = vperm.xlu0 %5405, %v3944
      %v5407 = vpop.permute.xlu0 %5406
      %5410 = vset.pattern.permute.xlu0 0
      %5411 = vperm.xlu0 %5410, %v3945
      %v5412 = vpop.permute.xlu0 %5411
      %5415 = vset.pattern.permute.xlu0 0
      %5416 = vperm.xlu0 %5415, %v3946
      %v5417 = vpop.permute.xlu0 %5416
      %5420 = vset.pattern.permute.xlu0 0
      %5421 = vperm.xlu0 %5420, %v3947
      %v5422 = vpop.permute.xlu0 %5421
      %5425 = vset.pattern.permute.xlu0 0
      %5426 = vperm.xlu0 %5425, %v3948
      %v5427 = vpop.permute.xlu0 %5426
      %5430 = vset.pattern.permute.xlu0 0
      %5431 = vperm.xlu0 %5430, %v3949
      %v5432 = vpop.permute.xlu0 %5431
      %5435 = vset.pattern.permute.xlu0 0
      %5436 = vperm.xlu0 %5435, %v3950
      %v5437 = vpop.permute.xlu0 %5436
      %5440 = vset.pattern.permute.xlu0 0
      %5441 = vperm.xlu0 %5440, %v3951
      %v5442 = vpop.permute.xlu0 %5441
      %5445 = vset.pattern.permute.xlu0 0
      %5446 = vperm.xlu0 %5445, %v3952
      %v5447 = vpop.permute.xlu0 %5446
      %5450 = vset.pattern.permute.xlu0 0
      %5451 = vperm.xlu0 %5450, %v3953
      %v5452 = vpop.permute.xlu0 %5451
      %5455 = vset.pattern.permute.xlu0 0
      %5456 = vperm.xlu0 %5455, %v3954
      %v5457 = vpop.permute.xlu0 %5456
      %5460 = vset.pattern.permute.xlu0 0
      %5461 = vperm.xlu0 %5460, %v3955
      %v5462 = vpop.permute.xlu0 %5461
      %5465 = vset.pattern.permute.xlu0 0
      %5466 = vperm.xlu0 %5465, %v3956
      %v5467 = vpop.permute.xlu0 %5466
      %5470 = vset.pattern.permute.xlu0 0
      %5471 = vperm.xlu0 %5470, %v3957
      %v5472 = vpop.permute.xlu0 %5471
      %5475 = vset.pattern.permute.xlu0 0
      %5476 = vperm.xlu0 %5475, %v3958
      %v5477 = vpop.permute.xlu0 %5476
      %5480 = vset.pattern.permute.xlu0 0
      %5481 = vperm.xlu0 %5480, %v3959
      %v5482 = vpop.permute.xlu0 %5481
      %5485 = vset.pattern.permute.xlu0 0
      %5486 = vperm.xlu0 %5485, %v3960
      %v5487 = vpop.permute.xlu0 %5486
      %5490 = vset.pattern.permute.xlu0 0
      %5491 = vperm.xlu0 %5490, %v3961
      %v5492 = vpop.permute.xlu0 %5491
      %5495 = vset.pattern.permute.xlu0 0
      %5496 = vperm.xlu0 %5495, %v3962
      %v5497 = vpop.permute.xlu0 %5496
      %5500 = vset.pattern.permute.xlu0 0
      %5501 = vperm.xlu0 %5500, %v3963
      %v5502 = vpop.permute.xlu0 %5501
      %5505 = vset.pattern.permute.xlu0 0
      %5506 = vperm.xlu0 %5505, %v3964
      %v5507 = vpop.permute.xlu0 %5506
      %5510 = vset.pattern.permute.xlu0 0
      %5511 = vperm.xlu0 %5510, %v3965
      %v5512 = vpop.permute.xlu0 %5511
      %5515 = vset.pattern.permute.xlu0 0
      %5516 = vperm.xlu0 %5515, %v3966
      %v5517 = vpop.permute.xlu0 %5516
      %5520 = vset.pattern.permute.xlu0 0
      %5521 = vperm.xlu0 %5520, %v3967
      %v5522 = vpop.permute.xlu0 %5521
      %5525 = vset.pattern.permute.xlu0 0
      %5526 = vperm.xlu0 %5525, %v3968
      %v5527 = vpop.permute.xlu0 %5526
      %5530 = vset.pattern.permute.xlu0 0
      %5531 = vperm.xlu0 %5530, %v3969
      %v5532 = vpop.permute.xlu0 %5531
      %5535 = vset.pattern.permute.xlu0 0
      %5536 = vperm.xlu0 %5535, %v3970
      %v5537 = vpop.permute.xlu0 %5536
      %5540 = vset.pattern.permute.xlu0 0
      %5541 = vperm.xlu0 %5540, %v3971
      %v5542 = vpop.permute.xlu0 %5541
      %5545 = vset.pattern.permute.xlu0 0
      %5546 = vperm.xlu0 %5545, %v3972
      %v5547 = vpop.permute.xlu0 %5546
      %5550 = vset.pattern.permute.xlu0 0
      %5551 = vperm.xlu0 %5550, %v3973
      %v5552 = vpop.permute.xlu0 %5551
      %5555 = vset.pattern.permute.xlu0 0
      %5556 = vperm.xlu0 %5555, %v3974
      %v5557 = vpop.permute.xlu0 %5556
      %5560 = vset.pattern.permute.xlu0 0
      %5561 = vperm.xlu0 %5560, %v3975
      %v5562 = vpop.permute.xlu0 %5561
      %5565 = vset.pattern.permute.xlu0 0
      %5566 = vperm.xlu0 %5565, %v3976
      %v5567 = vpop.permute.xlu0 %5566
      %5570 = vset.pattern.permute.xlu0 0
      %5571 = vperm.xlu0 %5570, %v3977
      %v5572 = vpop.permute.xlu0 %5571
      %5575 = vset.pattern.permute.xlu0 0
      %5576 = vperm.xlu0 %5575, %v3978
      %v5577 = vpop.permute.xlu0 %5576
      %5580 = vset.pattern.permute.xlu0 0
      %5581 = vperm.xlu0 %5580, %v3979
      %v5582 = vpop.permute.xlu0 %5581
      %5585 = vset.pattern.permute.xlu0 0
      %5586 = vperm.xlu0 %5585, %v3980
      %v5587 = vpop.permute.xlu0 %5586
      %5590 = vset.pattern.permute.xlu0 0
      %5591 = vperm.xlu0 %5590, %v3981
      %v5592 = vpop.permute.xlu0 %5591
      %5595 = vset.pattern.permute.xlu0 0
      %5596 = vperm.xlu0 %5595, %v3982
      %v5597 = vpop.permute.xlu0 %5596
      %5600 = vset.pattern.permute.xlu0 0
      %5601 = vperm.xlu0 %5600, %v3983
      %v5602 = vpop.permute.xlu0 %5601
      %5605 = vset.pattern.permute.xlu0 0
      %5606 = vperm.xlu0 %5605, %v3984
      %v5607 = vpop.permute.xlu0 %5606
      %5610 = vset.pattern.permute.xlu0 0
      %5611 = vperm.xlu0 %5610, %v3985
      %v5612 = vpop.permute.xlu0 %5611
      %5615 = vset.pattern.permute.xlu0 0
      %5616 = vperm.xlu0 %5615, %v3986
      %v5617 = vpop.permute.xlu0 %5616
      %5620 = vset.pattern.permute.xlu0 0
      %5621 = vperm.xlu0 %5620, %v3987
      %v5622 = vpop.permute.xlu0 %5621
      %5625 = vset.pattern.permute.xlu0 0
      %5626 = vperm.xlu0 %5625, %v3988
      %v5627 = vpop.permute.xlu0 %5626
      %5630 = vset.pattern.permute.xlu0 0
      %5631 = vperm.xlu0 %5630, %v3989
      %v5632 = vpop.permute.xlu0 %5631
      %5635 = vset.pattern.permute.xlu0 0
      %5636 = vperm.xlu0 %5635, %v3990
      %v5637 = vpop.permute.xlu0 %5636
      %5640 = vset.pattern.permute.xlu0 0
      %5641 = vperm.xlu0 %5640, %v3991
      %v5642 = vpop.permute.xlu0 %5641
      %5645 = vset.pattern.permute.xlu0 0
      %5646 = vperm.xlu0 %5645, %v3992
      %v5647 = vpop.permute.xlu0 %5646
      %5650 = vset.pattern.permute.xlu0 0
      %5651 = vperm.xlu0 %5650, %v3993
      %v5652 = vpop.permute.xlu0 %5651
      %5655 = vset.pattern.permute.xlu0 0
      %5656 = vperm.xlu0 %5655, %v3994
      %v5657 = vpop.permute.xlu0 %5656
      %5660 = vset.pattern.permute.xlu0 0
      %5661 = vperm.xlu0 %5660, %v3995
      %v5662 = vpop.permute.xlu0 %5661
      %5665 = vset.pattern.permute.xlu0 0
      %5666 = vperm.xlu0 %5665, %v3996
      %v5667 = vpop.permute.xlu0 %5666
      %5670 = vset.pattern.permute.xlu0 0
      %5671 = vperm.xlu0 %5670, %v3997
      %v5672 = vpop.permute.xlu0 %5671
      %5675 = vset.pattern.permute.xlu0 0
      %5676 = vperm.xlu0 %5675, %v3998
      %v5677 = vpop.permute.xlu0 %5676
      %5680 = vset.pattern.permute.xlu0 0
      %5681 = vperm.xlu0 %5680, %v3999
      %v5682 = vpop.permute.xlu0 %5681
      %5685 = vset.pattern.permute.xlu0 0
      %5686 = vperm.xlu0 %5685, %v4000
      %v5687 = vpop.permute.xlu0 %5686
      %5690 = vset.pattern.permute.xlu0 0
      %5691 = vperm.xlu0 %5690, %v4001
      %v5692 = vpop.permute.xlu0 %5691
      %5695 = vset.pattern.permute.xlu0 0
      %5696 = vperm.xlu0 %5695, %v4002
      %v5697 = vpop.permute.xlu0 %5696
      %5700 = vset.pattern.permute.xlu0 0
      %5701 = vperm.xlu0 %5700, %v4003
      %v5702 = vpop.permute.xlu0 %5701
      %5705 = vset.pattern.permute.xlu0 0
      %5706 = vperm.xlu0 %5705, %v4004
      %v5707 = vpop.permute.xlu0 %5706
      %5710 = vset.pattern.permute.xlu0 0
      %5711 = vperm.xlu0 %5710, %v4005
      %v5712 = vpop.permute.xlu0 %5711
      %5715 = vset.pattern.permute.xlu0 0
      %5716 = vperm.xlu0 %5715, %v4006
      %v5717 = vpop.permute.xlu0 %5716
      %5720 = vset.pattern.permute.xlu0 0
      %5721 = vperm.xlu0 %5720, %v4007
      %v5722 = vpop.permute.xlu0 %5721
      %5725 = vset.pattern.permute.xlu0 0
      %5726 = vperm.xlu0 %5725, %v4008
      %v5727 = vpop.permute.xlu0 %5726
      %5730 = vset.pattern.permute.xlu0 0
      %5731 = vperm.xlu0 %5730, %v4009
      %v5732 = vpop.permute.xlu0 %5731
      %5735 = vset.pattern.permute.xlu0 0
      %5736 = vperm.xlu0 %5735, %v4010
      %v5737 = vpop.permute.xlu0 %5736
      %5740 = vset.pattern.permute.xlu0 0
      %5741 = vperm.xlu0 %5740, %v4011
      %v5742 = vpop.permute.xlu0 %5741
      %5745 = vset.pattern.permute.xlu0 0
      %5746 = vperm.xlu0 %5745, %v4012
      %v5747 = vpop.permute.xlu0 %5746
      %5750 = vset.pattern.permute.xlu0 0
      %5751 = vperm.xlu0 %5750, %v4013
      %v5752 = vpop.permute.xlu0 %5751
      %5755 = vset.pattern.permute.xlu0 0
      %5756 = vperm.xlu0 %5755, %v4014
      %v5757 = vpop.permute.xlu0 %5756
      %5760 = vset.pattern.permute.xlu0 0
      %5761 = vperm.xlu0 %5760, %v4015
      %v5762 = vpop.permute.xlu0 %5761
      %5765 = vset.pattern.permute.xlu0 0
      %5766 = vperm.xlu0 %5765, %v4016
      %v5767 = vpop.permute.xlu0 %5766
      %5770 = vset.pattern.permute.xlu0 0
      %5771 = vperm.xlu0 %5770, %v4017
      %v5772 = vpop.permute.xlu0 %5771
      %5775 = vset.pattern.permute.xlu0 0
      %5776 = vperm.xlu0 %5775, %v4018
      %v5777 = vpop.permute.xlu0 %5776
      %5780 = vset.pattern.permute.xlu0 0
      %5781 = vperm.xlu0 %5780, %v4019
      %v5782 = vpop.permute.xlu0 %5781
      %5785 = vset.pattern.permute.xlu0 0
      %5786 = vperm.xlu0 %5785, %v4020
      %v5787 = vpop.permute.xlu0 %5786
      %5790 = vset.pattern.permute.xlu0 0
      %5791 = vperm.xlu0 %5790, %v4021
      %v5792 = vpop.permute.xlu0 %5791
      %5795 = vset.pattern.permute.xlu0 0
      %5796 = vperm.xlu0 %5795, %v4022
      %v5797 = vpop.permute.xlu0 %5796
      %5800 = vset.pattern.permute.xlu0 0
      %5801 = vperm.xlu0 %5800, %v4023
      %v5802 = vpop.permute.xlu0 %5801
      %5805 = vset.pattern.permute.xlu0 0
      %5806 = vperm.xlu0 %5805, %v4024
      %v5807 = vpop.permute.xlu0 %5806
      %5810 = vset.pattern.permute.xlu0 0
      %5811 = vperm.xlu0 %5810, %v4025
      %v5812 = vpop.permute.xlu0 %5811
      %5815 = vset.pattern.permute.xlu0 0
      %5816 = vperm.xlu0 %5815, %v4026
      %v5817 = vpop.permute.xlu0 %5816
      %5820 = vset.pattern.permute.xlu0 0
      %5821 = vperm.xlu0 %5820, %v4027
      %v5822 = vpop.permute.xlu0 %5821
      %5825 = vset.pattern.permute.xlu0 0
      %5826 = vperm.xlu0 %5825, %v4028
      %v5827 = vpop.permute.xlu0 %5826
      %5830 = vset.pattern.permute.xlu0 0
      %5831 = vperm.xlu0 %5830, %v4029
      %v5832 = vpop.permute.xlu0 %5831
      %5835 = vset.pattern.permute.xlu0 0
      %5836 = vperm.xlu0 %5835, %v4030
      %v5837 = vpop.permute.xlu0 %5836
      %5840 = vset.pattern.permute.xlu0 0
      %5841 = vperm.xlu0 %5840, %v4031
      %v5842 = vpop.permute.xlu0 %5841
      %5845 = vset.pattern.permute.xlu0 0
      %5846 = vperm.xlu0 %5845, %v4032
      %v5847 = vpop.permute.xlu0 %5846
      %5850 = vset.pattern.permute.xlu0 0
      %5851 = vperm.xlu0 %5850, %v4033
      %v5852 = vpop.permute.xlu0 %5851
      %5855 = vset.pattern.permute.xlu0 0
      %5856 = vperm.xlu0 %5855, %v4034
      %v5857 = vpop.permute.xlu0 %5856
      %5860 = vset.pattern.permute.xlu0 0
      %5861 = vperm.xlu0 %5860, %v4035
      %v5862 = vpop.permute.xlu0 %5861
      %5865 = vset.pattern.permute.xlu0 0
      %5866 = vperm.xlu0 %5865, %v4036
      %v5867 = vpop.permute.xlu0 %5866
      %5870 = vset.pattern.permute.xlu0 0
      %5871 = vperm.xlu0 %5870, %v4037
      %v5872 = vpop.permute.xlu0 %5871
      %5875 = vset.pattern.permute.xlu0 0
      %5876 = vperm.xlu0 %5875, %v4038
      %v5877 = vpop.permute.xlu0 %5876
      %5880 = vset.pattern.permute.xlu0 0
      %5881 = vperm.xlu0 %5880, %v4039
      %v5882 = vpop.permute.xlu0 %5881
      %5885 = vset.pattern.permute.xlu0 0
      %5886 = vperm.xlu0 %5885, %v4040
      %v5887 = vpop.permute.xlu0 %5886
      %5890 = vset.pattern.permute.xlu0 0
      %5891 = vperm.xlu0 %5890, %v4041
      %v5892 = vpop.permute.xlu0 %5891
      %5895 = vset.pattern.permute.xlu0 0
      %5896 = vperm.xlu0 %5895, %v4042
      %v5897 = vpop.permute.xlu0 %5896
      %5900 = vset.pattern.permute.xlu0 0
      %5901 = vperm.xlu0 %5900, %v4043
      %v5902 = vpop.permute.xlu0 %5901
      %5905 = vset.pattern.permute.xlu0 0
      %5906 = vperm.xlu0 %5905, %v4044
      %v5907 = vpop.permute.xlu0 %5906
      %5910 = vset.pattern.permute.xlu0 0
      %5911 = vperm.xlu0 %5910, %v4045
      %v5912 = vpop.permute.xlu0 %5911
      %5915 = vset.pattern.permute.xlu0 0
      %5916 = vperm.xlu0 %5915, %v4046
      %v5917 = vpop.permute.xlu0 %5916
      %5920 = vset.pattern.permute.xlu0 0
      %5921 = vperm.xlu0 %5920, %v4047
      %v5922 = vpop.permute.xlu0 %5921
      %5925 = vset.pattern.permute.xlu0 0
      %5926 = vperm.xlu0 %5925, %v4048
      %v5927 = vpop.permute.xlu0 %5926
      %5930 = vset.pattern.permute.xlu0 0
      %5931 = vperm.xlu0 %5930, %v4049
      %v5932 = vpop.permute.xlu0 %5931
      %5935 = vset.pattern.permute.xlu0 0
      %5936 = vperm.xlu0 %5935, %v4050
      %v5937 = vpop.permute.xlu0 %5936
      %5940 = vset.pattern.permute.xlu0 0
      %5941 = vperm.xlu0 %5940, %v4051
      %v5942 = vpop.permute.xlu0 %5941
      %5945 = vset.pattern.permute.xlu0 0
      %5946 = vperm.xlu0 %5945, %v4052
      %v5947 = vpop.permute.xlu0 %5946
      %5950 = vset.pattern.permute.xlu0 0
      %5951 = vperm.xlu0 %5950, %v4053
      %v5952 = vpop.permute.xlu0 %5951
      %5955 = vset.pattern.permute.xlu0 0
      %5956 = vperm.xlu0 %5955, %v4054
      %v5957 = vpop.permute.xlu0 %5956
      %5960 = vset.pattern.permute.xlu0 0
      %5961 = vperm.xlu0 %5960, %v4055
      %v5962 = vpop.permute.xlu0 %5961
      %5965 = vset.pattern.permute.xlu0 0
      %5966 = vperm.xlu0 %5965, %v4056
      %v5967 = vpop.permute.xlu0 %5966
      %5970 = vset.pattern.permute.xlu0 0
      %5971 = vperm.xlu0 %5970, %v4057
      %v5972 = vpop.permute.xlu0 %5971
      %5975 = vset.pattern.permute.xlu0 0
      %5976 = vperm.xlu0 %5975, %v4058
      %v5977 = vpop.permute.xlu0 %5976
      %v5979 = vmul.f32 %v218, %v4782
      %v5980 = vmul.f32 %v219, %v4787
      %v5981 = vmul.f32 %v220, %v4792
      %v5982 = vmul.f32 %v221, %v4797
      %v5983 = vmul.f32 %v222, %v4802
      %v5984 = vmul.f32 %v223, %v4807
      %v5985 = vmul.f32 %v224, %v4812
      %v5986 = vmul.f32 %v225, %v4817
      %v5987 = vmul.f32 %v226, %v4822
      %v5988 = vmul.f32 %v227, %v4827
      %v5989 = vmul.f32 %v228, %v4832
      %v5990 = vmul.f32 %v229, %v4837
      %v5991 = vmul.f32 %v230, %v4842
      %v5992 = vmul.f32 %v231, %v4847
      %v5993 = vmul.f32 %v232, %v4852
      %v5994 = vmul.f32 %v233, %v4857
      %v5995 = vmul.f32 %v234, %v4862
      %v5996 = vmul.f32 %v235, %v4867
      %v5997 = vmul.f32 %v236, %v4872
      %v5998 = vmul.f32 %v237, %v4877
      %v5999 = vmul.f32 %v238, %v4882
      %v6000 = vmul.f32 %v239, %v4887
      %v6001 = vmul.f32 %v240, %v4892
      %v6002 = vmul.f32 %v241, %v4897
      %v6003 = vmul.f32 %v242, %v4902
      %v6004 = vmul.f32 %v243, %v4907
      %v6005 = vmul.f32 %v244, %v4912
      %v6006 = vmul.f32 %v245, %v4917
      %v6007 = vmul.f32 %v246, %v4922
      %v6008 = vmul.f32 %v247, %v4927
      %v6009 = vmul.f32 %v248, %v4932
      %v6010 = vmul.f32 %v249, %v4937
      %v6011 = vmul.f32 %v250, %v4942
      %v6012 = vmul.f32 %v251, %v4947
      %v6013 = vmul.f32 %v252, %v4952
      %v6014 = vmul.f32 %v253, %v4957
      %v6015 = vmul.f32 %v254, %v4962
      %v6016 = vmul.f32 %v255, %v4967
      %v6017 = vmul.f32 %v256, %v4972
      %v6018 = vmul.f32 %v257, %v4977
      %v6019 = vmul.f32 %v258, %v4982
      %v6020 = vmul.f32 %v259, %v4987
      %v6021 = vmul.f32 %v260, %v4992
      %v6022 = vmul.f32 %v261, %v4997
      %v6023 = vmul.f32 %v262, %v5002
      %v6024 = vmul.f32 %v263, %v5007
      %v6025 = vmul.f32 %v264, %v5012
      %v6026 = vmul.f32 %v265, %v5017
      %v6027 = vmul.f32 %v266, %v5022
      %v6028 = vmul.f32 %v267, %v5027
      %v6029 = vmul.f32 %v268, %v5032
      %v6030 = vmul.f32 %v269, %v5037
      %v6031 = vmul.f32 %v270, %v5042
      %v6032 = vmul.f32 %v271, %v5047
      %v6033 = vmul.f32 %v272, %v5052
      %v6034 = vmul.f32 %v273, %v5057
      %v6035 = vmul.f32 %v274, %v5062
      %v6036 = vmul.f32 %v275, %v5067
      %v6037 = vmul.f32 %v276, %v5072
      %v6038 = vmul.f32 %v277, %v5077
      %v6039 = vmul.f32 %v278, %v5082
      %v6040 = vmul.f32 %v279, %v5087
      %v6041 = vmul.f32 %v280, %v5092
      %v6042 = vmul.f32 %v281, %v5097
      %v6043 = vmul.f32 %v282, %v5102
      %v6044 = vmul.f32 %v283, %v5107
      %v6045 = vmul.f32 %v284, %v5112
      %v6046 = vmul.f32 %v285, %v5117
      %v6047 = vmul.f32 %v286, %v5122
      %v6048 = vmul.f32 %v287, %v5127
      %v6049 = vmul.f32 %v288, %v5132
      %v6050 = vmul.f32 %v289, %v5137
      %v6051 = vmul.f32 %v290, %v5142
      %v6052 = vmul.f32 %v291, %v5147
      %v6053 = vmul.f32 %v292, %v5152
      %v6054 = vmul.f32 %v293, %v5157
      %v6055 = vmul.f32 %v294, %v5162
      %v6056 = vmul.f32 %v295, %v5167
      %v6057 = vmul.f32 %v296, %v5172
      %v6058 = vmul.f32 %v297, %v5177
      %v6059 = vmul.f32 %v298, %v5182
      %v6060 = vmul.f32 %v299, %v5187
      %v6061 = vmul.f32 %v300, %v5192
      %v6062 = vmul.f32 %v301, %v5197
      %v6063 = vmul.f32 %v302, %v5202
      %v6064 = vmul.f32 %v303, %v5207
      %v6065 = vmul.f32 %v304, %v5212
      %v6066 = vmul.f32 %v305, %v5217
      %v6067 = vmul.f32 %v306, %v5222
      %v6068 = vmul.f32 %v307, %v5227
      %v6069 = vmul.f32 %v308, %v5232
      %v6070 = vmul.f32 %v309, %v5237
      %v6071 = vmul.f32 %v310, %v5242
      %v6072 = vmul.f32 %v311, %v5247
      %v6073 = vmul.f32 %v312, %v5252
      %v6074 = vmul.f32 %v313, %v5257
      %v6075 = vmul.f32 %v314, %v5262
      %v6076 = vmul.f32 %v315, %v5267
      %v6077 = vmul.f32 %v316, %v5272
      %v6078 = vmul.f32 %v317, %v5277
      %v6079 = vmul.f32 %v318, %v5282
      %v6080 = vmul.f32 %v319, %v5287
      %v6081 = vmul.f32 %v320, %v5292
      %v6082 = vmul.f32 %v321, %v5297
      %v6083 = vmul.f32 %v322, %v5302
      %v6084 = vmul.f32 %v323, %v5307
      %v6085 = vmul.f32 %v324, %v5312
      %v6086 = vmul.f32 %v325, %v5317
      %v6087 = vmul.f32 %v326, %v5322
      %v6088 = vmul.f32 %v327, %v5327
      %v6089 = vmul.f32 %v328, %v5332
      %v6090 = vmul.f32 %v329, %v5337
      %v6091 = vmul.f32 %v330, %v5342
      %v6092 = vmul.f32 %v331, %v5347
      %v6093 = vmul.f32 %v332, %v5352
      %v6094 = vmul.f32 %v333, %v5357
      %v6095 = vmul.f32 %v334, %v5362
      %v6096 = vmul.f32 %v335, %v5367
      %v6097 = vmul.f32 %v336, %v5372
      %v6098 = vmul.f32 %v337, %v5377
      %v6099 = vmul.f32 %v338, %v5382
      %v6100 = vmul.f32 %v339, %v5387
      %v6101 = vmul.f32 %v340, %v5392
      %v6102 = vmul.f32 %v341, %v5397
      %v6103 = vmul.f32 %v342, %v5402
      %v6104 = vmul.f32 %v343, %v5407
      %v6105 = vmul.f32 %v344, %v5412
      %v6106 = vmul.f32 %v345, %v5417
      %v6107 = vmul.f32 %v346, %v5422
      %v6108 = vmul.f32 %v347, %v5427
      %v6109 = vmul.f32 %v348, %v5432
      %v6110 = vmul.f32 %v349, %v5437
      %v6111 = vmul.f32 %v350, %v5442
      %v6112 = vmul.f32 %v351, %v5447
      %v6113 = vmul.f32 %v352, %v5452
      %v6114 = vmul.f32 %v353, %v5457
      %v6115 = vmul.f32 %v354, %v5462
      %v6116 = vmul.f32 %v355, %v5467
      %v6117 = vmul.f32 %v356, %v5472
      %v6118 = vmul.f32 %v357, %v5477
      %v6119 = vmul.f32 %v358, %v5482
      %v6120 = vmul.f32 %v359, %v5487
      %v6121 = vmul.f32 %v360, %v5492
      %v6122 = vmul.f32 %v361, %v5497
      %v6123 = vmul.f32 %v362, %v5502
      %v6124 = vmul.f32 %v363, %v5507
      %v6125 = vmul.f32 %v364, %v5512
      %v6126 = vmul.f32 %v365, %v5517
      %v6127 = vmul.f32 %v366, %v5522
      %v6128 = vmul.f32 %v367, %v5527
      %v6129 = vmul.f32 %v368, %v5532
      %v6130 = vmul.f32 %v369, %v5537
      %v6131 = vmul.f32 %v370, %v5542
      %v6132 = vmul.f32 %v371, %v5547
      %v6133 = vmul.f32 %v372, %v5552
      %v6134 = vmul.f32 %v373, %v5557
      %v6135 = vmul.f32 %v374, %v5562
      %v6136 = vmul.f32 %v375, %v5567
      %v6137 = vmul.f32 %v376, %v5572
      %v6138 = vmul.f32 %v377, %v5577
      %v6139 = vmul.f32 %v378, %v5582
      %v6140 = vmul.f32 %v379, %v5587
      %v6141 = vmul.f32 %v380, %v5592
      %v6142 = vmul.f32 %v381, %v5597
      %v6143 = vmul.f32 %v382, %v5602
      %v6144 = vmul.f32 %v383, %v5607
      %v6145 = vmul.f32 %v384, %v5612
      %v6146 = vmul.f32 %v385, %v5617
      %v6147 = vmul.f32 %v386, %v5622
      %v6148 = vmul.f32 %v387, %v5627
      %v6149 = vmul.f32 %v388, %v5632
      %v6150 = vmul.f32 %v389, %v5637
      %v6151 = vmul.f32 %v390, %v5642
      %v6152 = vmul.f32 %v391, %v5647
      %v6153 = vmul.f32 %v392, %v5652
      %v6154 = vmul.f32 %v393, %v5657
      %v6155 = vmul.f32 %v394, %v5662
      %v6156 = vmul.f32 %v395, %v5667
      %v6157 = vmul.f32 %v396, %v5672
      %v6158 = vmul.f32 %v397, %v5677
      %v6159 = vmul.f32 %v398, %v5682
      %v6160 = vmul.f32 %v399, %v5687
      %v6161 = vmul.f32 %v400, %v5692
      %v6162 = vmul.f32 %v401, %v5697
      %v6163 = vmul.f32 %v402, %v5702
      %v6164 = vmul.f32 %v403, %v5707
      %v6165 = vmul.f32 %v404, %v5712
      %v6166 = vmul.f32 %v405, %v5717
      %v6167 = vmul.f32 %v406, %v5722
      %v6168 = vmul.f32 %v407, %v5727
      %v6169 = vmul.f32 %v408, %v5732
      %v6170 = vmul.f32 %v409, %v5737
      %v6171 = vmul.f32 %v410, %v5742
      %v6172 = vmul.f32 %v411, %v5747
      %v6173 = vmul.f32 %v412, %v5752
      %v6174 = vmul.f32 %v413, %v5757
      %v6175 = vmul.f32 %v414, %v5762
      %v6176 = vmul.f32 %v415, %v5767
      %v6177 = vmul.f32 %v416, %v5772
      %v6178 = vmul.f32 %v417, %v5777
      %v6179 = vmul.f32 %v418, %v5782
      %v6180 = vmul.f32 %v419, %v5787
      %v6181 = vmul.f32 %v420, %v5792
      %v6182 = vmul.f32 %v421, %v5797
      %v6183 = vmul.f32 %v422, %v5802
      %v6184 = vmul.f32 %v423, %v5807
      %v6185 = vmul.f32 %v424, %v5812
      %v6186 = vmul.f32 %v425, %v5817
      %v6187 = vmul.f32 %v426, %v5822
      %v6188 = vmul.f32 %v427, %v5827
      %v6189 = vmul.f32 %v428, %v5832
      %v6190 = vmul.f32 %v429, %v5837
      %v6191 = vmul.f32 %v430, %v5842
      %v6192 = vmul.f32 %v431, %v5847
      %v6193 = vmul.f32 %v432, %v5852
      %v6194 = vmul.f32 %v433, %v5857
      %v6195 = vmul.f32 %v434, %v5862
      %v6196 = vmul.f32 %v435, %v5867
      %v6197 = vmul.f32 %v436, %v5872
      %v6198 = vmul.f32 %v437, %v5877
      %v6199 = vmul.f32 %v438, %v5882
      %v6200 = vmul.f32 %v439, %v5887
      %v6201 = vmul.f32 %v440, %v5892
      %v6202 = vmul.f32 %v441, %v5897
      %v6203 = vmul.f32 %v442, %v5902
      %v6204 = vmul.f32 %v443, %v5907
      %v6205 = vmul.f32 %v444, %v5912
      %v6206 = vmul.f32 %v445, %v5917
      %v6207 = vmul.f32 %v446, %v5922
      %v6208 = vmul.f32 %v447, %v5927
      %v6209 = vmul.f32 %v448, %v5932
      %v6210 = vmul.f32 %v449, %v5937
      %v6211 = vmul.f32 %v450, %v5942
      %v6212 = vmul.f32 %v451, %v5947
      %v6213 = vmul.f32 %v452, %v5952
      %v6214 = vmul.f32 %v453, %v5957
      %v6215 = vmul.f32 %v454, %v5962
      %v6216 = vmul.f32 %v455, %v5967
      %v6217 = vmul.f32 %v456, %v5972
      %v6218 = vmul.f32 %v457, %v5977
      %6220 = vset.pattern.permute.xlu0 0
      %6221 = vperm.xlu0 %6220, %v4539
      %v6222 = vpop.permute.xlu0 %6221
      %6225 = vset.pattern.permute.xlu0 0
      %6226 = vperm.xlu0 %6225, %v4540
      %v6227 = vpop.permute.xlu0 %6226
      %6230 = vset.pattern.permute.xlu0 0
      %6231 = vperm.xlu0 %6230, %v4541
      %v6232 = vpop.permute.xlu0 %6231
      %6235 = vset.pattern.permute.xlu0 0
      %6236 = vperm.xlu0 %6235, %v4542
      %v6237 = vpop.permute.xlu0 %6236
      %6240 = vset.pattern.permute.xlu0 0
      %6241 = vperm.xlu0 %6240, %v4543
      %v6242 = vpop.permute.xlu0 %6241
      %6245 = vset.pattern.permute.xlu0 0
      %6246 = vperm.xlu0 %6245, %v4544
      %v6247 = vpop.permute.xlu0 %6246
      %6250 = vset.pattern.permute.xlu0 0
      %6251 = vperm.xlu0 %6250, %v4545
      %v6252 = vpop.permute.xlu0 %6251
      %6255 = vset.pattern.permute.xlu0 0
      %6256 = vperm.xlu0 %6255, %v4546
      %v6257 = vpop.permute.xlu0 %6256
      %6260 = vset.pattern.permute.xlu0 0
      %6261 = vperm.xlu0 %6260, %v4547
      %v6262 = vpop.permute.xlu0 %6261
      %6265 = vset.pattern.permute.xlu0 0
      %6266 = vperm.xlu0 %6265, %v4548
      %v6267 = vpop.permute.xlu0 %6266
      %6270 = vset.pattern.permute.xlu0 0
      %6271 = vperm.xlu0 %6270, %v4549
      %v6272 = vpop.permute.xlu0 %6271
      %6275 = vset.pattern.permute.xlu0 0
      %6276 = vperm.xlu0 %6275, %v4550
      %v6277 = vpop.permute.xlu0 %6276
      %6280 = vset.pattern.permute.xlu0 0
      %6281 = vperm.xlu0 %6280, %v4551
      %v6282 = vpop.permute.xlu0 %6281
      %6285 = vset.pattern.permute.xlu0 0
      %6286 = vperm.xlu0 %6285, %v4552
      %v6287 = vpop.permute.xlu0 %6286
      %6290 = vset.pattern.permute.xlu0 0
      %6291 = vperm.xlu0 %6290, %v4553
      %v6292 = vpop.permute.xlu0 %6291
      %6295 = vset.pattern.permute.xlu0 0
      %6296 = vperm.xlu0 %6295, %v4554
      %v6297 = vpop.permute.xlu0 %6296
      %6300 = vset.pattern.permute.xlu0 0
      %6301 = vperm.xlu0 %6300, %v4555
      %v6302 = vpop.permute.xlu0 %6301
      %6305 = vset.pattern.permute.xlu0 0
      %6306 = vperm.xlu0 %6305, %v4556
      %v6307 = vpop.permute.xlu0 %6306
      %6310 = vset.pattern.permute.xlu0 0
      %6311 = vperm.xlu0 %6310, %v4557
      %v6312 = vpop.permute.xlu0 %6311
      %6315 = vset.pattern.permute.xlu0 0
      %6316 = vperm.xlu0 %6315, %v4558
      %v6317 = vpop.permute.xlu0 %6316
      %6320 = vset.pattern.permute.xlu0 0
      %6321 = vperm.xlu0 %6320, %v4559
      %v6322 = vpop.permute.xlu0 %6321
      %6325 = vset.pattern.permute.xlu0 0
      %6326 = vperm.xlu0 %6325, %v4560
      %v6327 = vpop.permute.xlu0 %6326
      %6330 = vset.pattern.permute.xlu0 0
      %6331 = vperm.xlu0 %6330, %v4561
      %v6332 = vpop.permute.xlu0 %6331
      %6335 = vset.pattern.permute.xlu0 0
      %6336 = vperm.xlu0 %6335, %v4562
      %v6337 = vpop.permute.xlu0 %6336
      %6340 = vset.pattern.permute.xlu0 0
      %6341 = vperm.xlu0 %6340, %v4563
      %v6342 = vpop.permute.xlu0 %6341
      %6345 = vset.pattern.permute.xlu0 0
      %6346 = vperm.xlu0 %6345, %v4564
      %v6347 = vpop.permute.xlu0 %6346
      %6350 = vset.pattern.permute.xlu0 0
      %6351 = vperm.xlu0 %6350, %v4565
      %v6352 = vpop.permute.xlu0 %6351
      %6355 = vset.pattern.permute.xlu0 0
      %6356 = vperm.xlu0 %6355, %v4566
      %v6357 = vpop.permute.xlu0 %6356
      %6360 = vset.pattern.permute.xlu0 0
      %6361 = vperm.xlu0 %6360, %v4567
      %v6362 = vpop.permute.xlu0 %6361
      %6365 = vset.pattern.permute.xlu0 0
      %6366 = vperm.xlu0 %6365, %v4568
      %v6367 = vpop.permute.xlu0 %6366
      %6370 = vset.pattern.permute.xlu0 0
      %6371 = vperm.xlu0 %6370, %v4569
      %v6372 = vpop.permute.xlu0 %6371
      %6375 = vset.pattern.permute.xlu0 0
      %6376 = vperm.xlu0 %6375, %v4570
      %v6377 = vpop.permute.xlu0 %6376
      %6380 = vset.pattern.permute.xlu0 0
      %6381 = vperm.xlu0 %6380, %v4571
      %v6382 = vpop.permute.xlu0 %6381
      %6385 = vset.pattern.permute.xlu0 0
      %6386 = vperm.xlu0 %6385, %v4572
      %v6387 = vpop.permute.xlu0 %6386
      %6390 = vset.pattern.permute.xlu0 0
      %6391 = vperm.xlu0 %6390, %v4573
      %v6392 = vpop.permute.xlu0 %6391
      %6395 = vset.pattern.permute.xlu0 0
      %6396 = vperm.xlu0 %6395, %v4574
      %v6397 = vpop.permute.xlu0 %6396
      %6400 = vset.pattern.permute.xlu0 0
      %6401 = vperm.xlu0 %6400, %v4575
      %v6402 = vpop.permute.xlu0 %6401
      %6405 = vset.pattern.permute.xlu0 0
      %6406 = vperm.xlu0 %6405, %v4576
      %v6407 = vpop.permute.xlu0 %6406
      %6410 = vset.pattern.permute.xlu0 0
      %6411 = vperm.xlu0 %6410, %v4577
      %v6412 = vpop.permute.xlu0 %6411
      %6415 = vset.pattern.permute.xlu0 0
      %6416 = vperm.xlu0 %6415, %v4578
      %v6417 = vpop.permute.xlu0 %6416
      %6420 = vset.pattern.permute.xlu0 0
      %6421 = vperm.xlu0 %6420, %v4579
      %v6422 = vpop.permute.xlu0 %6421
      %6425 = vset.pattern.permute.xlu0 0
      %6426 = vperm.xlu0 %6425, %v4580
      %v6427 = vpop.permute.xlu0 %6426
      %6430 = vset.pattern.permute.xlu0 0
      %6431 = vperm.xlu0 %6430, %v4581
      %v6432 = vpop.permute.xlu0 %6431
      %6435 = vset.pattern.permute.xlu0 0
      %6436 = vperm.xlu0 %6435, %v4582
      %v6437 = vpop.permute.xlu0 %6436
      %6440 = vset.pattern.permute.xlu0 0
      %6441 = vperm.xlu0 %6440, %v4583
      %v6442 = vpop.permute.xlu0 %6441
      %6445 = vset.pattern.permute.xlu0 0
      %6446 = vperm.xlu0 %6445, %v4584
      %v6447 = vpop.permute.xlu0 %6446
      %6450 = vset.pattern.permute.xlu0 0
      %6451 = vperm.xlu0 %6450, %v4585
      %v6452 = vpop.permute.xlu0 %6451
      %6455 = vset.pattern.permute.xlu0 0
      %6456 = vperm.xlu0 %6455, %v4586
      %v6457 = vpop.permute.xlu0 %6456
      %6460 = vset.pattern.permute.xlu0 0
      %6461 = vperm.xlu0 %6460, %v4587
      %v6462 = vpop.permute.xlu0 %6461
      %6465 = vset.pattern.permute.xlu0 0
      %6466 = vperm.xlu0 %6465, %v4588
      %v6467 = vpop.permute.xlu0 %6466
      %6470 = vset.pattern.permute.xlu0 0
      %6471 = vperm.xlu0 %6470, %v4589
      %v6472 = vpop.permute.xlu0 %6471
      %6475 = vset.pattern.permute.xlu0 0
      %6476 = vperm.xlu0 %6475, %v4590
      %v6477 = vpop.permute.xlu0 %6476
      %6480 = vset.pattern.permute.xlu0 0
      %6481 = vperm.xlu0 %6480, %v4591
      %v6482 = vpop.permute.xlu0 %6481
      %6485 = vset.pattern.permute.xlu0 0
      %6486 = vperm.xlu0 %6485, %v4592
      %v6487 = vpop.permute.xlu0 %6486
      %6490 = vset.pattern.permute.xlu0 0
      %6491 = vperm.xlu0 %6490, %v4593
      %v6492 = vpop.permute.xlu0 %6491
      %6495 = vset.pattern.permute.xlu0 0
      %6496 = vperm.xlu0 %6495, %v4594
      %v6497 = vpop.permute.xlu0 %6496
      %6500 = vset.pattern.permute.xlu0 0
      %6501 = vperm.xlu0 %6500, %v4595
      %v6502 = vpop.permute.xlu0 %6501
      %6505 = vset.pattern.permute.xlu0 0
      %6506 = vperm.xlu0 %6505, %v4596
      %v6507 = vpop.permute.xlu0 %6506
      %6510 = vset.pattern.permute.xlu0 0
      %6511 = vperm.xlu0 %6510, %v4597
      %v6512 = vpop.permute.xlu0 %6511
      %6515 = vset.pattern.permute.xlu0 0
      %6516 = vperm.xlu0 %6515, %v4598
      %v6517 = vpop.permute.xlu0 %6516
      %6520 = vset.pattern.permute.xlu0 0
      %6521 = vperm.xlu0 %6520, %v4599
      %v6522 = vpop.permute.xlu0 %6521
      %6525 = vset.pattern.permute.xlu0 0
      %6526 = vperm.xlu0 %6525, %v4600
      %v6527 = vpop.permute.xlu0 %6526
      %6530 = vset.pattern.permute.xlu0 0
      %6531 = vperm.xlu0 %6530, %v4601
      %v6532 = vpop.permute.xlu0 %6531
      %6535 = vset.pattern.permute.xlu0 0
      %6536 = vperm.xlu0 %6535, %v4602
      %v6537 = vpop.permute.xlu0 %6536
      %6540 = vset.pattern.permute.xlu0 0
      %6541 = vperm.xlu0 %6540, %v4603
      %v6542 = vpop.permute.xlu0 %6541
      %6545 = vset.pattern.permute.xlu0 0
      %6546 = vperm.xlu0 %6545, %v4604
      %v6547 = vpop.permute.xlu0 %6546
      %6550 = vset.pattern.permute.xlu0 0
      %6551 = vperm.xlu0 %6550, %v4605
      %v6552 = vpop.permute.xlu0 %6551
      %6555 = vset.pattern.permute.xlu0 0
      %6556 = vperm.xlu0 %6555, %v4606
      %v6557 = vpop.permute.xlu0 %6556
      %6560 = vset.pattern.permute.xlu0 0
      %6561 = vperm.xlu0 %6560, %v4607
      %v6562 = vpop.permute.xlu0 %6561
      %6565 = vset.pattern.permute.xlu0 0
      %6566 = vperm.xlu0 %6565, %v4608
      %v6567 = vpop.permute.xlu0 %6566
      %6570 = vset.pattern.permute.xlu0 0
      %6571 = vperm.xlu0 %6570, %v4609
      %v6572 = vpop.permute.xlu0 %6571
      %6575 = vset.pattern.permute.xlu0 0
      %6576 = vperm.xlu0 %6575, %v4610
      %v6577 = vpop.permute.xlu0 %6576
      %6580 = vset.pattern.permute.xlu0 0
      %6581 = vperm.xlu0 %6580, %v4611
      %v6582 = vpop.permute.xlu0 %6581
      %6585 = vset.pattern.permute.xlu0 0
      %6586 = vperm.xlu0 %6585, %v4612
      %v6587 = vpop.permute.xlu0 %6586
      %6590 = vset.pattern.permute.xlu0 0
      %6591 = vperm.xlu0 %6590, %v4613
      %v6592 = vpop.permute.xlu0 %6591
      %6595 = vset.pattern.permute.xlu0 0
      %6596 = vperm.xlu0 %6595, %v4614
      %v6597 = vpop.permute.xlu0 %6596
      %6600 = vset.pattern.permute.xlu0 0
      %6601 = vperm.xlu0 %6600, %v4615
      %v6602 = vpop.permute.xlu0 %6601
      %6605 = vset.pattern.permute.xlu0 0
      %6606 = vperm.xlu0 %6605, %v4616
      %v6607 = vpop.permute.xlu0 %6606
      %6610 = vset.pattern.permute.xlu0 0
      %6611 = vperm.xlu0 %6610, %v4617
      %v6612 = vpop.permute.xlu0 %6611
      %6615 = vset.pattern.permute.xlu0 0
      %6616 = vperm.xlu0 %6615, %v4618
      %v6617 = vpop.permute.xlu0 %6616
      %6620 = vset.pattern.permute.xlu0 0
      %6621 = vperm.xlu0 %6620, %v4619
      %v6622 = vpop.permute.xlu0 %6621
      %6625 = vset.pattern.permute.xlu0 0
      %6626 = vperm.xlu0 %6625, %v4620
      %v6627 = vpop.permute.xlu0 %6626
      %6630 = vset.pattern.permute.xlu0 0
      %6631 = vperm.xlu0 %6630, %v4621
      %v6632 = vpop.permute.xlu0 %6631
      %6635 = vset.pattern.permute.xlu0 0
      %6636 = vperm.xlu0 %6635, %v4622
      %v6637 = vpop.permute.xlu0 %6636
      %6640 = vset.pattern.permute.xlu0 0
      %6641 = vperm.xlu0 %6640, %v4623
      %v6642 = vpop.permute.xlu0 %6641
      %6645 = vset.pattern.permute.xlu0 0
      %6646 = vperm.xlu0 %6645, %v4624
      %v6647 = vpop.permute.xlu0 %6646
      %6650 = vset.pattern.permute.xlu0 0
      %6651 = vperm.xlu0 %6650, %v4625
      %v6652 = vpop.permute.xlu0 %6651
      %6655 = vset.pattern.permute.xlu0 0
      %6656 = vperm.xlu0 %6655, %v4626
      %v6657 = vpop.permute.xlu0 %6656
      %6660 = vset.pattern.permute.xlu0 0
      %6661 = vperm.xlu0 %6660, %v4627
      %v6662 = vpop.permute.xlu0 %6661
      %6665 = vset.pattern.permute.xlu0 0
      %6666 = vperm.xlu0 %6665, %v4628
      %v6667 = vpop.permute.xlu0 %6666
      %6670 = vset.pattern.permute.xlu0 0
      %6671 = vperm.xlu0 %6670, %v4629
      %v6672 = vpop.permute.xlu0 %6671
      %6675 = vset.pattern.permute.xlu0 0
      %6676 = vperm.xlu0 %6675, %v4630
      %v6677 = vpop.permute.xlu0 %6676
      %6680 = vset.pattern.permute.xlu0 0
      %6681 = vperm.xlu0 %6680, %v4631
      %v6682 = vpop.permute.xlu0 %6681
      %6685 = vset.pattern.permute.xlu0 0
      %6686 = vperm.xlu0 %6685, %v4632
      %v6687 = vpop.permute.xlu0 %6686
      %6690 = vset.pattern.permute.xlu0 0
      %6691 = vperm.xlu0 %6690, %v4633
      %v6692 = vpop.permute.xlu0 %6691
      %6695 = vset.pattern.permute.xlu0 0
      %6696 = vperm.xlu0 %6695, %v4634
      %v6697 = vpop.permute.xlu0 %6696
      %6700 = vset.pattern.permute.xlu0 0
      %6701 = vperm.xlu0 %6700, %v4635
      %v6702 = vpop.permute.xlu0 %6701
      %6705 = vset.pattern.permute.xlu0 0
      %6706 = vperm.xlu0 %6705, %v4636
      %v6707 = vpop.permute.xlu0 %6706
      %6710 = vset.pattern.permute.xlu0 0
      %6711 = vperm.xlu0 %6710, %v4637
      %v6712 = vpop.permute.xlu0 %6711
      %6715 = vset.pattern.permute.xlu0 0
      %6716 = vperm.xlu0 %6715, %v4638
      %v6717 = vpop.permute.xlu0 %6716
      %6720 = vset.pattern.permute.xlu0 0
      %6721 = vperm.xlu0 %6720, %v4639
      %v6722 = vpop.permute.xlu0 %6721
      %6725 = vset.pattern.permute.xlu0 0
      %6726 = vperm.xlu0 %6725, %v4640
      %v6727 = vpop.permute.xlu0 %6726
      %6730 = vset.pattern.permute.xlu0 0
      %6731 = vperm.xlu0 %6730, %v4641
      %v6732 = vpop.permute.xlu0 %6731
      %6735 = vset.pattern.permute.xlu0 0
      %6736 = vperm.xlu0 %6735, %v4642
      %v6737 = vpop.permute.xlu0 %6736
      %6740 = vset.pattern.permute.xlu0 0
      %6741 = vperm.xlu0 %6740, %v4643
      %v6742 = vpop.permute.xlu0 %6741
      %6745 = vset.pattern.permute.xlu0 0
      %6746 = vperm.xlu0 %6745, %v4644
      %v6747 = vpop.permute.xlu0 %6746
      %6750 = vset.pattern.permute.xlu0 0
      %6751 = vperm.xlu0 %6750, %v4645
      %v6752 = vpop.permute.xlu0 %6751
      %6755 = vset.pattern.permute.xlu0 0
      %6756 = vperm.xlu0 %6755, %v4646
      %v6757 = vpop.permute.xlu0 %6756
      %6760 = vset.pattern.permute.xlu0 0
      %6761 = vperm.xlu0 %6760, %v4647
      %v6762 = vpop.permute.xlu0 %6761
      %6765 = vset.pattern.permute.xlu0 0
      %6766 = vperm.xlu0 %6765, %v4648
      %v6767 = vpop.permute.xlu0 %6766
      %6770 = vset.pattern.permute.xlu0 0
      %6771 = vperm.xlu0 %6770, %v4649
      %v6772 = vpop.permute.xlu0 %6771
      %6775 = vset.pattern.permute.xlu0 0
      %6776 = vperm.xlu0 %6775, %v4650
      %v6777 = vpop.permute.xlu0 %6776
      %6780 = vset.pattern.permute.xlu0 0
      %6781 = vperm.xlu0 %6780, %v4651
      %v6782 = vpop.permute.xlu0 %6781
      %6785 = vset.pattern.permute.xlu0 0
      %6786 = vperm.xlu0 %6785, %v4652
      %v6787 = vpop.permute.xlu0 %6786
      %6790 = vset.pattern.permute.xlu0 0
      %6791 = vperm.xlu0 %6790, %v4653
      %v6792 = vpop.permute.xlu0 %6791
      %6795 = vset.pattern.permute.xlu0 0
      %6796 = vperm.xlu0 %6795, %v4654
      %v6797 = vpop.permute.xlu0 %6796
      %6800 = vset.pattern.permute.xlu0 0
      %6801 = vperm.xlu0 %6800, %v4655
      %v6802 = vpop.permute.xlu0 %6801
      %6805 = vset.pattern.permute.xlu0 0
      %6806 = vperm.xlu0 %6805, %v4656
      %v6807 = vpop.permute.xlu0 %6806
      %6810 = vset.pattern.permute.xlu0 0
      %6811 = vperm.xlu0 %6810, %v4657
      %v6812 = vpop.permute.xlu0 %6811
      %6815 = vset.pattern.permute.xlu0 0
      %6816 = vperm.xlu0 %6815, %v4658
      %v6817 = vpop.permute.xlu0 %6816
      %6820 = vset.pattern.permute.xlu0 0
      %6821 = vperm.xlu0 %6820, %v4659
      %v6822 = vpop.permute.xlu0 %6821
      %6825 = vset.pattern.permute.xlu0 0
      %6826 = vperm.xlu0 %6825, %v4660
      %v6827 = vpop.permute.xlu0 %6826
      %6830 = vset.pattern.permute.xlu0 0
      %6831 = vperm.xlu0 %6830, %v4661
      %v6832 = vpop.permute.xlu0 %6831
      %6835 = vset.pattern.permute.xlu0 0
      %6836 = vperm.xlu0 %6835, %v4662
      %v6837 = vpop.permute.xlu0 %6836
      %6840 = vset.pattern.permute.xlu0 0
      %6841 = vperm.xlu0 %6840, %v4663
      %v6842 = vpop.permute.xlu0 %6841
      %6845 = vset.pattern.permute.xlu0 0
      %6846 = vperm.xlu0 %6845, %v4664
      %v6847 = vpop.permute.xlu0 %6846
      %6850 = vset.pattern.permute.xlu0 0
      %6851 = vperm.xlu0 %6850, %v4665
      %v6852 = vpop.permute.xlu0 %6851
      %6855 = vset.pattern.permute.xlu0 0
      %6856 = vperm.xlu0 %6855, %v4666
      %v6857 = vpop.permute.xlu0 %6856
      %6860 = vset.pattern.permute.xlu0 0
      %6861 = vperm.xlu0 %6860, %v4667
      %v6862 = vpop.permute.xlu0 %6861
      %6865 = vset.pattern.permute.xlu0 0
      %6866 = vperm.xlu0 %6865, %v4668
      %v6867 = vpop.permute.xlu0 %6866
      %6870 = vset.pattern.permute.xlu0 0
      %6871 = vperm.xlu0 %6870, %v4669
      %v6872 = vpop.permute.xlu0 %6871
      %6875 = vset.pattern.permute.xlu0 0
      %6876 = vperm.xlu0 %6875, %v4670
      %v6877 = vpop.permute.xlu0 %6876
      %6880 = vset.pattern.permute.xlu0 0
      %6881 = vperm.xlu0 %6880, %v4671
      %v6882 = vpop.permute.xlu0 %6881
      %6885 = vset.pattern.permute.xlu0 0
      %6886 = vperm.xlu0 %6885, %v4672
      %v6887 = vpop.permute.xlu0 %6886
      %6890 = vset.pattern.permute.xlu0 0
      %6891 = vperm.xlu0 %6890, %v4673
      %v6892 = vpop.permute.xlu0 %6891
      %6895 = vset.pattern.permute.xlu0 0
      %6896 = vperm.xlu0 %6895, %v4674
      %v6897 = vpop.permute.xlu0 %6896
      %6900 = vset.pattern.permute.xlu0 0
      %6901 = vperm.xlu0 %6900, %v4675
      %v6902 = vpop.permute.xlu0 %6901
      %6905 = vset.pattern.permute.xlu0 0
      %6906 = vperm.xlu0 %6905, %v4676
      %v6907 = vpop.permute.xlu0 %6906
      %6910 = vset.pattern.permute.xlu0 0
      %6911 = vperm.xlu0 %6910, %v4677
      %v6912 = vpop.permute.xlu0 %6911
      %6915 = vset.pattern.permute.xlu0 0
      %6916 = vperm.xlu0 %6915, %v4678
      %v6917 = vpop.permute.xlu0 %6916
      %6920 = vset.pattern.permute.xlu0 0
      %6921 = vperm.xlu0 %6920, %v4679
      %v6922 = vpop.permute.xlu0 %6921
      %6925 = vset.pattern.permute.xlu0 0
      %6926 = vperm.xlu0 %6925, %v4680
      %v6927 = vpop.permute.xlu0 %6926
      %6930 = vset.pattern.permute.xlu0 0
      %6931 = vperm.xlu0 %6930, %v4681
      %v6932 = vpop.permute.xlu0 %6931
      %6935 = vset.pattern.permute.xlu0 0
      %6936 = vperm.xlu0 %6935, %v4682
      %v6937 = vpop.permute.xlu0 %6936
      %6940 = vset.pattern.permute.xlu0 0
      %6941 = vperm.xlu0 %6940, %v4683
      %v6942 = vpop.permute.xlu0 %6941
      %6945 = vset.pattern.permute.xlu0 0
      %6946 = vperm.xlu0 %6945, %v4684
      %v6947 = vpop.permute.xlu0 %6946
      %6950 = vset.pattern.permute.xlu0 0
      %6951 = vperm.xlu0 %6950, %v4685
      %v6952 = vpop.permute.xlu0 %6951
      %6955 = vset.pattern.permute.xlu0 0
      %6956 = vperm.xlu0 %6955, %v4686
      %v6957 = vpop.permute.xlu0 %6956
      %6960 = vset.pattern.permute.xlu0 0
      %6961 = vperm.xlu0 %6960, %v4687
      %v6962 = vpop.permute.xlu0 %6961
      %6965 = vset.pattern.permute.xlu0 0
      %6966 = vperm.xlu0 %6965, %v4688
      %v6967 = vpop.permute.xlu0 %6966
      %6970 = vset.pattern.permute.xlu0 0
      %6971 = vperm.xlu0 %6970, %v4689
      %v6972 = vpop.permute.xlu0 %6971
      %6975 = vset.pattern.permute.xlu0 0
      %6976 = vperm.xlu0 %6975, %v4690
      %v6977 = vpop.permute.xlu0 %6976
      %6980 = vset.pattern.permute.xlu0 0
      %6981 = vperm.xlu0 %6980, %v4691
      %v6982 = vpop.permute.xlu0 %6981
      %6985 = vset.pattern.permute.xlu0 0
      %6986 = vperm.xlu0 %6985, %v4692
      %v6987 = vpop.permute.xlu0 %6986
      %6990 = vset.pattern.permute.xlu0 0
      %6991 = vperm.xlu0 %6990, %v4693
      %v6992 = vpop.permute.xlu0 %6991
      %6995 = vset.pattern.permute.xlu0 0
      %6996 = vperm.xlu0 %6995, %v4694
      %v6997 = vpop.permute.xlu0 %6996
      %7000 = vset.pattern.permute.xlu0 0
      %7001 = vperm.xlu0 %7000, %v4695
      %v7002 = vpop.permute.xlu0 %7001
      %7005 = vset.pattern.permute.xlu0 0
      %7006 = vperm.xlu0 %7005, %v4696
      %v7007 = vpop.permute.xlu0 %7006
      %7010 = vset.pattern.permute.xlu0 0
      %7011 = vperm.xlu0 %7010, %v4697
      %v7012 = vpop.permute.xlu0 %7011
      %7015 = vset.pattern.permute.xlu0 0
      %7016 = vperm.xlu0 %7015, %v4698
      %v7017 = vpop.permute.xlu0 %7016
      %7020 = vset.pattern.permute.xlu0 0
      %7021 = vperm.xlu0 %7020, %v4699
      %v7022 = vpop.permute.xlu0 %7021
      %7025 = vset.pattern.permute.xlu0 0
      %7026 = vperm.xlu0 %7025, %v4700
      %v7027 = vpop.permute.xlu0 %7026
      %7030 = vset.pattern.permute.xlu0 0
      %7031 = vperm.xlu0 %7030, %v4701
      %v7032 = vpop.permute.xlu0 %7031
      %7035 = vset.pattern.permute.xlu0 0
      %7036 = vperm.xlu0 %7035, %v4702
      %v7037 = vpop.permute.xlu0 %7036
      %7040 = vset.pattern.permute.xlu0 0
      %7041 = vperm.xlu0 %7040, %v4703
      %v7042 = vpop.permute.xlu0 %7041
      %7045 = vset.pattern.permute.xlu0 0
      %7046 = vperm.xlu0 %7045, %v4704
      %v7047 = vpop.permute.xlu0 %7046
      %7050 = vset.pattern.permute.xlu0 0
      %7051 = vperm.xlu0 %7050, %v4705
      %v7052 = vpop.permute.xlu0 %7051
      %7055 = vset.pattern.permute.xlu0 0
      %7056 = vperm.xlu0 %7055, %v4706
      %v7057 = vpop.permute.xlu0 %7056
      %7060 = vset.pattern.permute.xlu0 0
      %7061 = vperm.xlu0 %7060, %v4707
      %v7062 = vpop.permute.xlu0 %7061
      %7065 = vset.pattern.permute.xlu0 0
      %7066 = vperm.xlu0 %7065, %v4708
      %v7067 = vpop.permute.xlu0 %7066
      %7070 = vset.pattern.permute.xlu0 0
      %7071 = vperm.xlu0 %7070, %v4709
      %v7072 = vpop.permute.xlu0 %7071
      %7075 = vset.pattern.permute.xlu0 0
      %7076 = vperm.xlu0 %7075, %v4710
      %v7077 = vpop.permute.xlu0 %7076
      %7080 = vset.pattern.permute.xlu0 0
      %7081 = vperm.xlu0 %7080, %v4711
      %v7082 = vpop.permute.xlu0 %7081
      %7085 = vset.pattern.permute.xlu0 0
      %7086 = vperm.xlu0 %7085, %v4712
      %v7087 = vpop.permute.xlu0 %7086
      %7090 = vset.pattern.permute.xlu0 0
      %7091 = vperm.xlu0 %7090, %v4713
      %v7092 = vpop.permute.xlu0 %7091
      %7095 = vset.pattern.permute.xlu0 0
      %7096 = vperm.xlu0 %7095, %v4714
      %v7097 = vpop.permute.xlu0 %7096
      %7100 = vset.pattern.permute.xlu0 0
      %7101 = vperm.xlu0 %7100, %v4715
      %v7102 = vpop.permute.xlu0 %7101
      %7105 = vset.pattern.permute.xlu0 0
      %7106 = vperm.xlu0 %7105, %v4716
      %v7107 = vpop.permute.xlu0 %7106
      %7110 = vset.pattern.permute.xlu0 0
      %7111 = vperm.xlu0 %7110, %v4717
      %v7112 = vpop.permute.xlu0 %7111
      %7115 = vset.pattern.permute.xlu0 0
      %7116 = vperm.xlu0 %7115, %v4718
      %v7117 = vpop.permute.xlu0 %7116
      %7120 = vset.pattern.permute.xlu0 0
      %7121 = vperm.xlu0 %7120, %v4719
      %v7122 = vpop.permute.xlu0 %7121
      %7125 = vset.pattern.permute.xlu0 0
      %7126 = vperm.xlu0 %7125, %v4720
      %v7127 = vpop.permute.xlu0 %7126
      %7130 = vset.pattern.permute.xlu0 0
      %7131 = vperm.xlu0 %7130, %v4721
      %v7132 = vpop.permute.xlu0 %7131
      %7135 = vset.pattern.permute.xlu0 0
      %7136 = vperm.xlu0 %7135, %v4722
      %v7137 = vpop.permute.xlu0 %7136
      %7140 = vset.pattern.permute.xlu0 0
      %7141 = vperm.xlu0 %7140, %v4723
      %v7142 = vpop.permute.xlu0 %7141
      %7145 = vset.pattern.permute.xlu0 0
      %7146 = vperm.xlu0 %7145, %v4724
      %v7147 = vpop.permute.xlu0 %7146
      %7150 = vset.pattern.permute.xlu0 0
      %7151 = vperm.xlu0 %7150, %v4725
      %v7152 = vpop.permute.xlu0 %7151
      %7155 = vset.pattern.permute.xlu0 0
      %7156 = vperm.xlu0 %7155, %v4726
      %v7157 = vpop.permute.xlu0 %7156
      %7160 = vset.pattern.permute.xlu0 0
      %7161 = vperm.xlu0 %7160, %v4727
      %v7162 = vpop.permute.xlu0 %7161
      %7165 = vset.pattern.permute.xlu0 0
      %7166 = vperm.xlu0 %7165, %v4728
      %v7167 = vpop.permute.xlu0 %7166
      %7170 = vset.pattern.permute.xlu0 0
      %7171 = vperm.xlu0 %7170, %v4729
      %v7172 = vpop.permute.xlu0 %7171
      %7175 = vset.pattern.permute.xlu0 0
      %7176 = vperm.xlu0 %7175, %v4730
      %v7177 = vpop.permute.xlu0 %7176
      %7180 = vset.pattern.permute.xlu0 0
      %7181 = vperm.xlu0 %7180, %v4731
      %v7182 = vpop.permute.xlu0 %7181
      %7185 = vset.pattern.permute.xlu0 0
      %7186 = vperm.xlu0 %7185, %v4732
      %v7187 = vpop.permute.xlu0 %7186
      %7190 = vset.pattern.permute.xlu0 0
      %7191 = vperm.xlu0 %7190, %v4733
      %v7192 = vpop.permute.xlu0 %7191
      %7195 = vset.pattern.permute.xlu0 0
      %7196 = vperm.xlu0 %7195, %v4734
      %v7197 = vpop.permute.xlu0 %7196
      %7200 = vset.pattern.permute.xlu0 0
      %7201 = vperm.xlu0 %7200, %v4735
      %v7202 = vpop.permute.xlu0 %7201
      %7205 = vset.pattern.permute.xlu0 0
      %7206 = vperm.xlu0 %7205, %v4736
      %v7207 = vpop.permute.xlu0 %7206
      %7210 = vset.pattern.permute.xlu0 0
      %7211 = vperm.xlu0 %7210, %v4737
      %v7212 = vpop.permute.xlu0 %7211
      %7215 = vset.pattern.permute.xlu0 0
      %7216 = vperm.xlu0 %7215, %v4738
      %v7217 = vpop.permute.xlu0 %7216
      %7220 = vset.pattern.permute.xlu0 0
      %7221 = vperm.xlu0 %7220, %v4739
      %v7222 = vpop.permute.xlu0 %7221
      %7225 = vset.pattern.permute.xlu0 0
      %7226 = vperm.xlu0 %7225, %v4740
      %v7227 = vpop.permute.xlu0 %7226
      %7230 = vset.pattern.permute.xlu0 0
      %7231 = vperm.xlu0 %7230, %v4741
      %v7232 = vpop.permute.xlu0 %7231
      %7235 = vset.pattern.permute.xlu0 0
      %7236 = vperm.xlu0 %7235, %v4742
      %v7237 = vpop.permute.xlu0 %7236
      %7240 = vset.pattern.permute.xlu0 0
      %7241 = vperm.xlu0 %7240, %v4743
      %v7242 = vpop.permute.xlu0 %7241
      %7245 = vset.pattern.permute.xlu0 0
      %7246 = vperm.xlu0 %7245, %v4744
      %v7247 = vpop.permute.xlu0 %7246
      %7250 = vset.pattern.permute.xlu0 0
      %7251 = vperm.xlu0 %7250, %v4745
      %v7252 = vpop.permute.xlu0 %7251
      %7255 = vset.pattern.permute.xlu0 0
      %7256 = vperm.xlu0 %7255, %v4746
      %v7257 = vpop.permute.xlu0 %7256
      %7260 = vset.pattern.permute.xlu0 0
      %7261 = vperm.xlu0 %7260, %v4747
      %v7262 = vpop.permute.xlu0 %7261
      %7265 = vset.pattern.permute.xlu0 0
      %7266 = vperm.xlu0 %7265, %v4748
      %v7267 = vpop.permute.xlu0 %7266
      %7270 = vset.pattern.permute.xlu0 0
      %7271 = vperm.xlu0 %7270, %v4749
      %v7272 = vpop.permute.xlu0 %7271
      %7275 = vset.pattern.permute.xlu0 0
      %7276 = vperm.xlu0 %7275, %v4750
      %v7277 = vpop.permute.xlu0 %7276
      %7280 = vset.pattern.permute.xlu0 0
      %7281 = vperm.xlu0 %7280, %v4751
      %v7282 = vpop.permute.xlu0 %7281
      %7285 = vset.pattern.permute.xlu0 0
      %7286 = vperm.xlu0 %7285, %v4752
      %v7287 = vpop.permute.xlu0 %7286
      %7290 = vset.pattern.permute.xlu0 0
      %7291 = vperm.xlu0 %7290, %v4753
      %v7292 = vpop.permute.xlu0 %7291
      %7295 = vset.pattern.permute.xlu0 0
      %7296 = vperm.xlu0 %7295, %v4754
      %v7297 = vpop.permute.xlu0 %7296
      %7300 = vset.pattern.permute.xlu0 0
      %7301 = vperm.xlu0 %7300, %v4755
      %v7302 = vpop.permute.xlu0 %7301
      %7305 = vset.pattern.permute.xlu0 0
      %7306 = vperm.xlu0 %7305, %v4756
      %v7307 = vpop.permute.xlu0 %7306
      %7310 = vset.pattern.permute.xlu0 0
      %7311 = vperm.xlu0 %7310, %v4757
      %v7312 = vpop.permute.xlu0 %7311
      %7315 = vset.pattern.permute.xlu0 0
      %7316 = vperm.xlu0 %7315, %v4758
      %v7317 = vpop.permute.xlu0 %7316
      %7320 = vset.pattern.permute.xlu0 0
      %7321 = vperm.xlu0 %7320, %v4759
      %v7322 = vpop.permute.xlu0 %7321
      %7325 = vset.pattern.permute.xlu0 0
      %7326 = vperm.xlu0 %7325, %v4760
      %v7327 = vpop.permute.xlu0 %7326
      %7330 = vset.pattern.permute.xlu0 0
      %7331 = vperm.xlu0 %7330, %v4761
      %v7332 = vpop.permute.xlu0 %7331
      %7335 = vset.pattern.permute.xlu0 0
      %7336 = vperm.xlu0 %7335, %v4762
      %v7337 = vpop.permute.xlu0 %7336
      %7340 = vset.pattern.permute.xlu0 0
      %7341 = vperm.xlu0 %7340, %v4763
      %v7342 = vpop.permute.xlu0 %7341
      %7345 = vset.pattern.permute.xlu0 0
      %7346 = vperm.xlu0 %7345, %v4764
      %v7347 = vpop.permute.xlu0 %7346
      %7350 = vset.pattern.permute.xlu0 0
      %7351 = vperm.xlu0 %7350, %v4765
      %v7352 = vpop.permute.xlu0 %7351
      %7355 = vset.pattern.permute.xlu0 0
      %7356 = vperm.xlu0 %7355, %v4766
      %v7357 = vpop.permute.xlu0 %7356
      %7360 = vset.pattern.permute.xlu0 0
      %7361 = vperm.xlu0 %7360, %v4767
      %v7362 = vpop.permute.xlu0 %7361
      %7365 = vset.pattern.permute.xlu0 0
      %7366 = vperm.xlu0 %7365, %v4768
      %v7367 = vpop.permute.xlu0 %7366
      %7370 = vset.pattern.permute.xlu0 0
      %7371 = vperm.xlu0 %7370, %v4769
      %v7372 = vpop.permute.xlu0 %7371
      %7375 = vset.pattern.permute.xlu0 0
      %7376 = vperm.xlu0 %7375, %v4770
      %v7377 = vpop.permute.xlu0 %7376
      %7380 = vset.pattern.permute.xlu0 0
      %7381 = vperm.xlu0 %7380, %v4771
      %v7382 = vpop.permute.xlu0 %7381
      %7385 = vset.pattern.permute.xlu0 0
      %7386 = vperm.xlu0 %7385, %v4772
      %v7387 = vpop.permute.xlu0 %7386
      %7390 = vset.pattern.permute.xlu0 0
      %7391 = vperm.xlu0 %7390, %v4773
      %v7392 = vpop.permute.xlu0 %7391
      %7395 = vset.pattern.permute.xlu0 0
      %7396 = vperm.xlu0 %7395, %v4774
      %v7397 = vpop.permute.xlu0 %7396
      %7400 = vset.pattern.permute.xlu0 0
      %7401 = vperm.xlu0 %7400, %v4775
      %v7402 = vpop.permute.xlu0 %7401
      %7405 = vset.pattern.permute.xlu0 0
      %7406 = vperm.xlu0 %7405, %v4776
      %v7407 = vpop.permute.xlu0 %7406
      %7410 = vset.pattern.permute.xlu0 0
      %7411 = vperm.xlu0 %7410, %v4777
      %v7412 = vpop.permute.xlu0 %7411
      %7415 = vset.pattern.permute.xlu0 0
      %7416 = vperm.xlu0 %7415, %v4778
      %v7417 = vpop.permute.xlu0 %7416
      %v7419 = vadd.f32 %v5979, %v6222
      %v7420 = vadd.f32 %v5980, %v6227
      %v7421 = vadd.f32 %v5981, %v6232
      %v7422 = vadd.f32 %v5982, %v6237
      %v7423 = vadd.f32 %v5983, %v6242
      %v7424 = vadd.f32 %v5984, %v6247
      %v7425 = vadd.f32 %v5985, %v6252
      %v7426 = vadd.f32 %v5986, %v6257
      %v7427 = vadd.f32 %v5987, %v6262
      %v7428 = vadd.f32 %v5988, %v6267
      %v7429 = vadd.f32 %v5989, %v6272
      %v7430 = vadd.f32 %v5990, %v6277
      %v7431 = vadd.f32 %v5991, %v6282
      %v7432 = vadd.f32 %v5992, %v6287
      %v7433 = vadd.f32 %v5993, %v6292
      %v7434 = vadd.f32 %v5994, %v6297
      %v7435 = vadd.f32 %v5995, %v6302
      %v7436 = vadd.f32 %v5996, %v6307
      %v7437 = vadd.f32 %v5997, %v6312
      %v7438 = vadd.f32 %v5998, %v6317
      %v7439 = vadd.f32 %v5999, %v6322
      %v7440 = vadd.f32 %v6000, %v6327
      %v7441 = vadd.f32 %v6001, %v6332
      %v7442 = vadd.f32 %v6002, %v6337
      %v7443 = vadd.f32 %v6003, %v6342
      %v7444 = vadd.f32 %v6004, %v6347
      %v7445 = vadd.f32 %v6005, %v6352
      %v7446 = vadd.f32 %v6006, %v6357
      %v7447 = vadd.f32 %v6007, %v6362
      %v7448 = vadd.f32 %v6008, %v6367
      %v7449 = vadd.f32 %v6009, %v6372
      %v7450 = vadd.f32 %v6010, %v6377
      %v7451 = vadd.f32 %v6011, %v6382
      %v7452 = vadd.f32 %v6012, %v6387
      %v7453 = vadd.f32 %v6013, %v6392
      %v7454 = vadd.f32 %v6014, %v6397
      %v7455 = vadd.f32 %v6015, %v6402
      %v7456 = vadd.f32 %v6016, %v6407
      %v7457 = vadd.f32 %v6017, %v6412
      %v7458 = vadd.f32 %v6018, %v6417
      %v7459 = vadd.f32 %v6019, %v6422
      %v7460 = vadd.f32 %v6020, %v6427
      %v7461 = vadd.f32 %v6021, %v6432
      %v7462 = vadd.f32 %v6022, %v6437
      %v7463 = vadd.f32 %v6023, %v6442
      %v7464 = vadd.f32 %v6024, %v6447
      %v7465 = vadd.f32 %v6025, %v6452
      %v7466 = vadd.f32 %v6026, %v6457
      %v7467 = vadd.f32 %v6027, %v6462
      %v7468 = vadd.f32 %v6028, %v6467
      %v7469 = vadd.f32 %v6029, %v6472
      %v7470 = vadd.f32 %v6030, %v6477
      %v7471 = vadd.f32 %v6031, %v6482
      %v7472 = vadd.f32 %v6032, %v6487
      %v7473 = vadd.f32 %v6033, %v6492
      %v7474 = vadd.f32 %v6034, %v6497
      %v7475 = vadd.f32 %v6035, %v6502
      %v7476 = vadd.f32 %v6036, %v6507
      %v7477 = vadd.f32 %v6037, %v6512
      %v7478 = vadd.f32 %v6038, %v6517
      %v7479 = vadd.f32 %v6039, %v6522
      %v7480 = vadd.f32 %v6040, %v6527
      %v7481 = vadd.f32 %v6041, %v6532
      %v7482 = vadd.f32 %v6042, %v6537
      %v7483 = vadd.f32 %v6043, %v6542
      %v7484 = vadd.f32 %v6044, %v6547
      %v7485 = vadd.f32 %v6045, %v6552
      %v7486 = vadd.f32 %v6046, %v6557
      %v7487 = vadd.f32 %v6047, %v6562
      %v7488 = vadd.f32 %v6048, %v6567
      %v7489 = vadd.f32 %v6049, %v6572
      %v7490 = vadd.f32 %v6050, %v6577
      %v7491 = vadd.f32 %v6051, %v6582
      %v7492 = vadd.f32 %v6052, %v6587
      %v7493 = vadd.f32 %v6053, %v6592
      %v7494 = vadd.f32 %v6054, %v6597
      %v7495 = vadd.f32 %v6055, %v6602
      %v7496 = vadd.f32 %v6056, %v6607
      %v7497 = vadd.f32 %v6057, %v6612
      %v7498 = vadd.f32 %v6058, %v6617
      %v7499 = vadd.f32 %v6059, %v6622
      %v7500 = vadd.f32 %v6060, %v6627
      %v7501 = vadd.f32 %v6061, %v6632
      %v7502 = vadd.f32 %v6062, %v6637
      %v7503 = vadd.f32 %v6063, %v6642
      %v7504 = vadd.f32 %v6064, %v6647
      %v7505 = vadd.f32 %v6065, %v6652
      %v7506 = vadd.f32 %v6066, %v6657
      %v7507 = vadd.f32 %v6067, %v6662
      %v7508 = vadd.f32 %v6068, %v6667
      %v7509 = vadd.f32 %v6069, %v6672
      %v7510 = vadd.f32 %v6070, %v6677
      %v7511 = vadd.f32 %v6071, %v6682
      %v7512 = vadd.f32 %v6072, %v6687
      %v7513 = vadd.f32 %v6073, %v6692
      %v7514 = vadd.f32 %v6074, %v6697
      %v7515 = vadd.f32 %v6075, %v6702
      %v7516 = vadd.f32 %v6076, %v6707
      %v7517 = vadd.f32 %v6077, %v6712
      %v7518 = vadd.f32 %v6078, %v6717
      %v7519 = vadd.f32 %v6079, %v6722
      %v7520 = vadd.f32 %v6080, %v6727
      %v7521 = vadd.f32 %v6081, %v6732
      %v7522 = vadd.f32 %v6082, %v6737
      %v7523 = vadd.f32 %v6083, %v6742
      %v7524 = vadd.f32 %v6084, %v6747
      %v7525 = vadd.f32 %v6085, %v6752
      %v7526 = vadd.f32 %v6086, %v6757
      %v7527 = vadd.f32 %v6087, %v6762
      %v7528 = vadd.f32 %v6088, %v6767
      %v7529 = vadd.f32 %v6089, %v6772
      %v7530 = vadd.f32 %v6090, %v6777
      %v7531 = vadd.f32 %v6091, %v6782
      %v7532 = vadd.f32 %v6092, %v6787
      %v7533 = vadd.f32 %v6093, %v6792
      %v7534 = vadd.f32 %v6094, %v6797
      %v7535 = vadd.f32 %v6095, %v6802
      %v7536 = vadd.f32 %v6096, %v6807
      %v7537 = vadd.f32 %v6097, %v6812
      %v7538 = vadd.f32 %v6098, %v6817
      %v7539 = vadd.f32 %v6099, %v6822
      %v7540 = vadd.f32 %v6100, %v6827
      %v7541 = vadd.f32 %v6101, %v6832
      %v7542 = vadd.f32 %v6102, %v6837
      %v7543 = vadd.f32 %v6103, %v6842
      %v7544 = vadd.f32 %v6104, %v6847
      %v7545 = vadd.f32 %v6105, %v6852
      %v7546 = vadd.f32 %v6106, %v6857
      %v7547 = vadd.f32 %v6107, %v6862
      %v7548 = vadd.f32 %v6108, %v6867
      %v7549 = vadd.f32 %v6109, %v6872
      %v7550 = vadd.f32 %v6110, %v6877
      %v7551 = vadd.f32 %v6111, %v6882
      %v7552 = vadd.f32 %v6112, %v6887
      %v7553 = vadd.f32 %v6113, %v6892
      %v7554 = vadd.f32 %v6114, %v6897
      %v7555 = vadd.f32 %v6115, %v6902
      %v7556 = vadd.f32 %v6116, %v6907
      %v7557 = vadd.f32 %v6117, %v6912
      %v7558 = vadd.f32 %v6118, %v6917
      %v7559 = vadd.f32 %v6119, %v6922
      %v7560 = vadd.f32 %v6120, %v6927
      %v7561 = vadd.f32 %v6121, %v6932
      %v7562 = vadd.f32 %v6122, %v6937
      %v7563 = vadd.f32 %v6123, %v6942
      %v7564 = vadd.f32 %v6124, %v6947
      %v7565 = vadd.f32 %v6125, %v6952
      %v7566 = vadd.f32 %v6126, %v6957
      %v7567 = vadd.f32 %v6127, %v6962
      %v7568 = vadd.f32 %v6128, %v6967
      %v7569 = vadd.f32 %v6129, %v6972
      %v7570 = vadd.f32 %v6130, %v6977
      %v7571 = vadd.f32 %v6131, %v6982
      %v7572 = vadd.f32 %v6132, %v6987
      %v7573 = vadd.f32 %v6133, %v6992
      %v7574 = vadd.f32 %v6134, %v6997
      %v7575 = vadd.f32 %v6135, %v7002
      %v7576 = vadd.f32 %v6136, %v7007
      %v7577 = vadd.f32 %v6137, %v7012
      %v7578 = vadd.f32 %v6138, %v7017
      %v7579 = vadd.f32 %v6139, %v7022
      %v7580 = vadd.f32 %v6140, %v7027
      %v7581 = vadd.f32 %v6141, %v7032
      %v7582 = vadd.f32 %v6142, %v7037
      %v7583 = vadd.f32 %v6143, %v7042
      %v7584 = vadd.f32 %v6144, %v7047
      %v7585 = vadd.f32 %v6145, %v7052
      %v7586 = vadd.f32 %v6146, %v7057
      %v7587 = vadd.f32 %v6147, %v7062
      %v7588 = vadd.f32 %v6148, %v7067
      %v7589 = vadd.f32 %v6149, %v7072
      %v7590 = vadd.f32 %v6150, %v7077
      %v7591 = vadd.f32 %v6151, %v7082
      %v7592 = vadd.f32 %v6152, %v7087
      %v7593 = vadd.f32 %v6153, %v7092
      %v7594 = vadd.f32 %v6154, %v7097
      %v7595 = vadd.f32 %v6155, %v7102
      %v7596 = vadd.f32 %v6156, %v7107
      %v7597 = vadd.f32 %v6157, %v7112
      %v7598 = vadd.f32 %v6158, %v7117
      %v7599 = vadd.f32 %v6159, %v7122
      %v7600 = vadd.f32 %v6160, %v7127
      %v7601 = vadd.f32 %v6161, %v7132
      %v7602 = vadd.f32 %v6162, %v7137
      %v7603 = vadd.f32 %v6163, %v7142
      %v7604 = vadd.f32 %v6164, %v7147
      %v7605 = vadd.f32 %v6165, %v7152
      %v7606 = vadd.f32 %v6166, %v7157
      %v7607 = vadd.f32 %v6167, %v7162
      %v7608 = vadd.f32 %v6168, %v7167
      %v7609 = vadd.f32 %v6169, %v7172
      %v7610 = vadd.f32 %v6170, %v7177
      %v7611 = vadd.f32 %v6171, %v7182
      %v7612 = vadd.f32 %v6172, %v7187
      %v7613 = vadd.f32 %v6173, %v7192
      %v7614 = vadd.f32 %v6174, %v7197
      %v7615 = vadd.f32 %v6175, %v7202
      %v7616 = vadd.f32 %v6176, %v7207
      %v7617 = vadd.f32 %v6177, %v7212
      %v7618 = vadd.f32 %v6178, %v7217
      %v7619 = vadd.f32 %v6179, %v7222
      %v7620 = vadd.f32 %v6180, %v7227
      %v7621 = vadd.f32 %v6181, %v7232
      %v7622 = vadd.f32 %v6182, %v7237
      %v7623 = vadd.f32 %v6183, %v7242
      %v7624 = vadd.f32 %v6184, %v7247
      %v7625 = vadd.f32 %v6185, %v7252
      %v7626 = vadd.f32 %v6186, %v7257
      %v7627 = vadd.f32 %v6187, %v7262
      %v7628 = vadd.f32 %v6188, %v7267
      %v7629 = vadd.f32 %v6189, %v7272
      %v7630 = vadd.f32 %v6190, %v7277
      %v7631 = vadd.f32 %v6191, %v7282
      %v7632 = vadd.f32 %v6192, %v7287
      %v7633 = vadd.f32 %v6193, %v7292
      %v7634 = vadd.f32 %v6194, %v7297
      %v7635 = vadd.f32 %v6195, %v7302
      %v7636 = vadd.f32 %v6196, %v7307
      %v7637 = vadd.f32 %v6197, %v7312
      %v7638 = vadd.f32 %v6198, %v7317
      %v7639 = vadd.f32 %v6199, %v7322
      %v7640 = vadd.f32 %v6200, %v7327
      %v7641 = vadd.f32 %v6201, %v7332
      %v7642 = vadd.f32 %v6202, %v7337
      %v7643 = vadd.f32 %v6203, %v7342
      %v7644 = vadd.f32 %v6204, %v7347
      %v7645 = vadd.f32 %v6205, %v7352
      %v7646 = vadd.f32 %v6206, %v7357
      %v7647 = vadd.f32 %v6207, %v7362
      %v7648 = vadd.f32 %v6208, %v7367
      %v7649 = vadd.f32 %v6209, %v7372
      %v7650 = vadd.f32 %v6210, %v7377
      %v7651 = vadd.f32 %v6211, %v7382
      %v7652 = vadd.f32 %v6212, %v7387
      %v7653 = vadd.f32 %v6213, %v7392
      %v7654 = vadd.f32 %v6214, %v7397
      %v7655 = vadd.f32 %v6215, %v7402
      %v7656 = vadd.f32 %v6216, %v7407
      %v7657 = vadd.f32 %v6217, %v7412
      %v7658 = vadd.f32 %v6218, %v7417
      %7659 = vst.msk [vmem:[%s216] sm:$0xff] %vm458, %v7419
      %7660 = vst.msk [vmem:[%s216 + $0x8] sm:$0xff] %vm458, %v7420
      %7661 = vst.msk [vmem:[%s216 + $0x10] sm:$0xff] %vm458, %v7421
      %7662 = vst.msk [vmem:[%s216 + $0x18] sm:$0xff] %vm458, %v7422
      %7663 = vst.msk [vmem:[%s216 + $0x20] sm:$0xff] %vm458, %v7423
      %7664 = vst.msk [vmem:[%s216 + $0x28] sm:$0xff] %vm458, %v7424
      %7665 = vst.msk [vmem:[%s216 + $0x30] sm:$0xff] %vm458, %v7425
      %7666 = vst.msk [vmem:[%s216 + $0x38] sm:$0xff] %vm458, %v7426
      %7667 = vst.msk [vmem:[%s216 + $0x40] sm:$0xff] %vm458, %v7427
      %7668 = vst.msk [vmem:[%s216 + $0x48] sm:$0xff] %vm458, %v7428
      %7669 = vst.msk [vmem:[%s216 + $0x50] sm:$0xff] %vm458, %v7429
      %7670 = vst.msk [vmem:[%s216 + $0x58] sm:$0xff] %vm458, %v7430
      %7671 = vst.msk [vmem:[%s216 + $0x60] sm:$0xff] %vm458, %v7431
      %7672 = vst.msk [vmem:[%s216 + $0x68] sm:$0xff] %vm458, %v7432
      %7673 = vst.msk [vmem:[%s216 + $0x70] sm:$0xff] %vm458, %v7433
      %7674 = vst.msk [vmem:[%s216 + $0x78] sm:$0xff] %vm458, %v7434
      %7675 = vst.msk [vmem:[%s216 + $0x80] sm:$0xff] %vm458, %v7435
      %7676 = vst.msk [vmem:[%s216 + $0x88] sm:$0xff] %vm458, %v7436
      %7677 = vst.msk [vmem:[%s216 + $0x90] sm:$0xff] %vm458, %v7437
      %7678 = vst.msk [vmem:[%s216 + $0x98] sm:$0xff] %vm458, %v7438
      %7679 = vst.msk [vmem:[%s216 + $0xa0] sm:$0xff] %vm458, %v7439
      %7680 = vst.msk [vmem:[%s216 + $0xa8] sm:$0xff] %vm458, %v7440
      %7681 = vst.msk [vmem:[%s216 + $0xb0] sm:$0xff] %vm458, %v7441
      %7682 = vst.msk [vmem:[%s216 + $0xb8] sm:$0xff] %vm458, %v7442
      %7683 = vst.msk [vmem:[%s216 + $0xc0] sm:$0xff] %vm458, %v7443
      %7684 = vst.msk [vmem:[%s216 + $0xc8] sm:$0xff] %vm458, %v7444
      %7685 = vst.msk [vmem:[%s216 + $0xd0] sm:$0xff] %vm458, %v7445
      %7686 = vst.msk [vmem:[%s216 + $0xd8] sm:$0xff] %vm458, %v7446
      %7687 = vst.msk [vmem:[%s216 + $0xe0] sm:$0xff] %vm458, %v7447
      %7688 = vst.msk [vmem:[%s216 + $0xe8] sm:$0xff] %vm458, %v7448
      %7689 = vst.msk [vmem:[%s216 + $0xf0] sm:$0xff] %vm458, %v7449
      %7690 = vst.msk [vmem:[%s216 + $0xf8] sm:$0xff] %vm458, %v7450
      %7691 = vst.msk [vmem:[%s216 + $0x100] sm:$0xff] %vm458, %v7451
      %7692 = vst.msk [vmem:[%s216 + $0x108] sm:$0xff] %vm458, %v7452
      %7693 = vst.msk [vmem:[%s216 + $0x110] sm:$0xff] %vm458, %v7453
      %7694 = vst.msk [vmem:[%s216 + $0x118] sm:$0xff] %vm458, %v7454
      %7695 = vst.msk [vmem:[%s216 + $0x120] sm:$0xff] %vm458, %v7455
      %7696 = vst.msk [vmem:[%s216 + $0x128] sm:$0xff] %vm458, %v7456
      %7697 = vst.msk [vmem:[%s216 + $0x130] sm:$0xff] %vm458, %v7457
      %7698 = vst.msk [vmem:[%s216 + $0x138] sm:$0xff] %vm458, %v7458
      %7699 = vst.msk [vmem:[%s216 + $0x140] sm:$0xff] %vm458, %v7459
      %7700 = vst.msk [vmem:[%s216 + $0x148] sm:$0xff] %vm458, %v7460
      %7701 = vst.msk [vmem:[%s216 + $0x150] sm:$0xff] %vm458, %v7461
      %7702 = vst.msk [vmem:[%s216 + $0x158] sm:$0xff] %vm458, %v7462
      %7703 = vst.msk [vmem:[%s216 + $0x160] sm:$0xff] %vm458, %v7463
      %7704 = vst.msk [vmem:[%s216 + $0x168] sm:$0xff] %vm458, %v7464
      %7705 = vst.msk [vmem:[%s216 + $0x170] sm:$0xff] %vm458, %v7465
      %7706 = vst.msk [vmem:[%s216 + $0x178] sm:$0xff] %vm458, %v7466
      %7707 = vst.msk [vmem:[%s216 + $0x180] sm:$0xff] %vm458, %v7467
      %7708 = vst.msk [vmem:[%s216 + $0x188] sm:$0xff] %vm458, %v7468
      %7709 = vst.msk [vmem:[%s216 + $0x190] sm:$0xff] %vm458, %v7469
      %7710 = vst.msk [vmem:[%s216 + $0x198] sm:$0xff] %vm458, %v7470
      %7711 = vst.msk [vmem:[%s216 + $0x1a0] sm:$0xff] %vm458, %v7471
      %7712 = vst.msk [vmem:[%s216 + $0x1a8] sm:$0xff] %vm458, %v7472
      %7713 = vst.msk [vmem:[%s216 + $0x1b0] sm:$0xff] %vm458, %v7473
      %7714 = vst.msk [vmem:[%s216 + $0x1b8] sm:$0xff] %vm458, %v7474
      %7715 = vst.msk [vmem:[%s216 + $0x1c0] sm:$0xff] %vm458, %v7475
      %7716 = vst.msk [vmem:[%s216 + $0x1c8] sm:$0xff] %vm458, %v7476
      %7717 = vst.msk [vmem:[%s216 + $0x1d0] sm:$0xff] %vm458, %v7477
      %7718 = vst.msk [vmem:[%s216 + $0x1d8] sm:$0xff] %vm458, %v7478
      %7719 = vst.msk [vmem:[%s216 + $0x1e0] sm:$0xff] %vm458, %v7479
      %7720 = vst.msk [vmem:[%s216 + $0x1e8] sm:$0xff] %vm458, %v7480
      %7721 = vst.msk [vmem:[%s216 + $0x1f0] sm:$0xff] %vm458, %v7481
      %7722 = vst.msk [vmem:[%s216 + $0x1f8] sm:$0xff] %vm458, %v7482
      %7723 = vst.msk [vmem:[%s216 + $0x200] sm:$0xff] %vm458, %v7483
      %7724 = vst.msk [vmem:[%s216 + $0x208] sm:$0xff] %vm458, %v7484
      %7725 = vst.msk [vmem:[%s216 + $0x210] sm:$0xff] %vm458, %v7485
      %7726 = vst.msk [vmem:[%s216 + $0x218] sm:$0xff] %vm458, %v7486
      %7727 = vst.msk [vmem:[%s216 + $0x220] sm:$0xff] %vm458, %v7487
      %7728 = vst.msk [vmem:[%s216 + $0x228] sm:$0xff] %vm458, %v7488
      %7729 = vst.msk [vmem:[%s216 + $0x230] sm:$0xff] %vm458, %v7489
      %7730 = vst.msk [vmem:[%s216 + $0x238] sm:$0xff] %vm458, %v7490
      %7731 = vst.msk [vmem:[%s216 + $0x240] sm:$0xff] %vm458, %v7491
      %7732 = vst.msk [vmem:[%s216 + $0x248] sm:$0xff] %vm458, %v7492
      %7733 = vst.msk [vmem:[%s216 + $0x250] sm:$0xff] %vm458, %v7493
      %7734 = vst.msk [vmem:[%s216 + $0x258] sm:$0xff] %vm458, %v7494
      %7735 = vst.msk [vmem:[%s216 + $0x260] sm:$0xff] %vm458, %v7495
      %7736 = vst.msk [vmem:[%s216 + $0x268] sm:$0xff] %vm458, %v7496
      %7737 = vst.msk [vmem:[%s216 + $0x270] sm:$0xff] %vm458, %v7497
      %7738 = vst.msk [vmem:[%s216 + $0x278] sm:$0xff] %vm458, %v7498
      %7739 = vst.msk [vmem:[%s216 + $0x280] sm:$0xff] %vm458, %v7499
      %7740 = vst.msk [vmem:[%s216 + $0x288] sm:$0xff] %vm458, %v7500
      %7741 = vst.msk [vmem:[%s216 + $0x290] sm:$0xff] %vm458, %v7501
      %7742 = vst.msk [vmem:[%s216 + $0x298] sm:$0xff] %vm458, %v7502
      %7743 = vst.msk [vmem:[%s216 + $0x2a0] sm:$0xff] %vm458, %v7503
      %7744 = vst.msk [vmem:[%s216 + $0x2a8] sm:$0xff] %vm458, %v7504
      %7745 = vst.msk [vmem:[%s216 + $0x2b0] sm:$0xff] %vm458, %v7505
      %7746 = vst.msk [vmem:[%s216 + $0x2b8] sm:$0xff] %vm458, %v7506
      %7747 = vst.msk [vmem:[%s216 + $0x2c0] sm:$0xff] %vm458, %v7507
      %7748 = vst.msk [vmem:[%s216 + $0x2c8] sm:$0xff] %vm458, %v7508
      %7749 = vst.msk [vmem:[%s216 + $0x2d0] sm:$0xff] %vm458, %v7509
      %7750 = vst.msk [vmem:[%s216 + $0x2d8] sm:$0xff] %vm458, %v7510
      %7751 = vst.msk [vmem:[%s216 + $0x2e0] sm:$0xff] %vm458, %v7511
      %7752 = vst.msk [vmem:[%s216 + $0x2e8] sm:$0xff] %vm458, %v7512
      %7753 = vst.msk [vmem:[%s216 + $0x2f0] sm:$0xff] %vm458, %v7513
      %7754 = vst.msk [vmem:[%s216 + $0x2f8] sm:$0xff] %vm458, %v7514
      %7755 = vst.msk [vmem:[%s216 + $0x300] sm:$0xff] %vm458, %v7515
      %7756 = vst.msk [vmem:[%s216 + $0x308] sm:$0xff] %vm458, %v7516
      %7757 = vst.msk [vmem:[%s216 + $0x310] sm:$0xff] %vm458, %v7517
      %7758 = vst.msk [vmem:[%s216 + $0x318] sm:$0xff] %vm458, %v7518
      %7759 = vst.msk [vmem:[%s216 + $0x320] sm:$0xff] %vm458, %v7519
      %7760 = vst.msk [vmem:[%s216 + $0x328] sm:$0xff] %vm458, %v7520
      %7761 = vst.msk [vmem:[%s216 + $0x330] sm:$0xff] %vm458, %v7521
      %7762 = vst.msk [vmem:[%s216 + $0x338] sm:$0xff] %vm458, %v7522
      %7763 = vst.msk [vmem:[%s216 + $0x340] sm:$0xff] %vm458, %v7523
      %7764 = vst.msk [vmem:[%s216 + $0x348] sm:$0xff] %vm458, %v7524
      %7765 = vst.msk [vmem:[%s216 + $0x350] sm:$0xff] %vm458, %v7525
      %7766 = vst.msk [vmem:[%s216 + $0x358] sm:$0xff] %vm458, %v7526
      %7767 = vst.msk [vmem:[%s216 + $0x360] sm:$0xff] %vm458, %v7527
      %7768 = vst.msk [vmem:[%s216 + $0x368] sm:$0xff] %vm458, %v7528
      %7769 = vst.msk [vmem:[%s216 + $0x370] sm:$0xff] %vm458, %v7529
      %7770 = vst.msk [vmem:[%s216 + $0x378] sm:$0xff] %vm458, %v7530
      %7771 = vst.msk [vmem:[%s216 + $0x380] sm:$0xff] %vm458, %v7531
      %7772 = vst.msk [vmem:[%s216 + $0x388] sm:$0xff] %vm458, %v7532
      %7773 = vst.msk [vmem:[%s216 + $0x390] sm:$0xff] %vm458, %v7533
      %7774 = vst.msk [vmem:[%s216 + $0x398] sm:$0xff] %vm458, %v7534
      %7775 = vst.msk [vmem:[%s216 + $0x3a0] sm:$0xff] %vm458, %v7535
      %7776 = vst.msk [vmem:[%s216 + $0x3a8] sm:$0xff] %vm458, %v7536
      %7777 = vst.msk [vmem:[%s216 + $0x3b0] sm:$0xff] %vm458, %v7537
      %7778 = vst.msk [vmem:[%s216 + $0x3b8] sm:$0xff] %vm458, %v7538
      %7779 = vst.msk [vmem:[%s216 + $0x3c0] sm:$0xff] %vm458, %v7539
      %7780 = vst.msk [vmem:[%s216 + $0x3c8] sm:$0xff] %vm458, %v7540
      %7781 = vst.msk [vmem:[%s216 + $0x3d0] sm:$0xff] %vm458, %v7541
      %7782 = vst.msk [vmem:[%s216 + $0x3d8] sm:$0xff] %vm458, %v7542
      %7783 = vst.msk [vmem:[%s216 + $0x3e0] sm:$0xff] %vm458, %v7543
      %7784 = vst.msk [vmem:[%s216 + $0x3e8] sm:$0xff] %vm458, %v7544
      %7785 = vst.msk [vmem:[%s216 + $0x3f0] sm:$0xff] %vm458, %v7545
      %7786 = vst.msk [vmem:[%s216 + $0x3f8] sm:$0xff] %vm458, %v7546
      %7787 = vst.msk [vmem:[%s216 + $0x400] sm:$0xff] %vm458, %v7547
      %7788 = vst.msk [vmem:[%s216 + $0x408] sm:$0xff] %vm458, %v7548
      %7789 = vst.msk [vmem:[%s216 + $0x410] sm:$0xff] %vm458, %v7549
      %7790 = vst.msk [vmem:[%s216 + $0x418] sm:$0xff] %vm458, %v7550
      %7791 = vst.msk [vmem:[%s216 + $0x420] sm:$0xff] %vm458, %v7551
      %7792 = vst.msk [vmem:[%s216 + $0x428] sm:$0xff] %vm458, %v7552
      %7793 = vst.msk [vmem:[%s216 + $0x430] sm:$0xff] %vm458, %v7553
      %7794 = vst.msk [vmem:[%s216 + $0x438] sm:$0xff] %vm458, %v7554
      %7795 = vst.msk [vmem:[%s216 + $0x440] sm:$0xff] %vm458, %v7555
      %7796 = vst.msk [vmem:[%s216 + $0x448] sm:$0xff] %vm458, %v7556
      %7797 = vst.msk [vmem:[%s216 + $0x450] sm:$0xff] %vm458, %v7557
      %7798 = vst.msk [vmem:[%s216 + $0x458] sm:$0xff] %vm458, %v7558
      %7799 = vst.msk [vmem:[%s216 + $0x460] sm:$0xff] %vm458, %v7559
      %7800 = vst.msk [vmem:[%s216 + $0x468] sm:$0xff] %vm458, %v7560
      %7801 = vst.msk [vmem:[%s216 + $0x470] sm:$0xff] %vm458, %v7561
      %7802 = vst.msk [vmem:[%s216 + $0x478] sm:$0xff] %vm458, %v7562
      %7803 = vst.msk [vmem:[%s216 + $0x480] sm:$0xff] %vm458, %v7563
      %7804 = vst.msk [vmem:[%s216 + $0x488] sm:$0xff] %vm458, %v7564
      %7805 = vst.msk [vmem:[%s216 + $0x490] sm:$0xff] %vm458, %v7565
      %7806 = vst.msk [vmem:[%s216 + $0x498] sm:$0xff] %vm458, %v7566
      %7807 = vst.msk [vmem:[%s216 + $0x4a0] sm:$0xff] %vm458, %v7567
      %7808 = vst.msk [vmem:[%s216 + $0x4a8] sm:$0xff] %vm458, %v7568
      %7809 = vst.msk [vmem:[%s216 + $0x4b0] sm:$0xff] %vm458, %v7569
      %7810 = vst.msk [vmem:[%s216 + $0x4b8] sm:$0xff] %vm458, %v7570
      %7811 = vst.msk [vmem:[%s216 + $0x4c0] sm:$0xff] %vm458, %v7571
      %7812 = vst.msk [vmem:[%s216 + $0x4c8] sm:$0xff] %vm458, %v7572
      %7813 = vst.msk [vmem:[%s216 + $0x4d0] sm:$0xff] %vm458, %v7573
      %7814 = vst.msk [vmem:[%s216 + $0x4d8] sm:$0xff] %vm458, %v7574
      %7815 = vst.msk [vmem:[%s216 + $0x4e0] sm:$0xff] %vm458, %v7575
      %7816 = vst.msk [vmem:[%s216 + $0x4e8] sm:$0xff] %vm458, %v7576
      %7817 = vst.msk [vmem:[%s216 + $0x4f0] sm:$0xff] %vm458, %v7577
      %7818 = vst.msk [vmem:[%s216 + $0x4f8] sm:$0xff] %vm458, %v7578
      %7819 = vst.msk [vmem:[%s216 + $0x500] sm:$0xff] %vm458, %v7579
      %7820 = vst.msk [vmem:[%s216 + $0x508] sm:$0xff] %vm458, %v7580
      %7821 = vst.msk [vmem:[%s216 + $0x510] sm:$0xff] %vm458, %v7581
      %7822 = vst.msk [vmem:[%s216 + $0x518] sm:$0xff] %vm458, %v7582
      %7823 = vst.msk [vmem:[%s216 + $0x520] sm:$0xff] %vm458, %v7583
      %7824 = vst.msk [vmem:[%s216 + $0x528] sm:$0xff] %vm458, %v7584
      %7825 = vst.msk [vmem:[%s216 + $0x530] sm:$0xff] %vm458, %v7585
      %7826 = vst.msk [vmem:[%s216 + $0x538] sm:$0xff] %vm458, %v7586
      %7827 = vst.msk [vmem:[%s216 + $0x540] sm:$0xff] %vm458, %v7587
      %7828 = vst.msk [vmem:[%s216 + $0x548] sm:$0xff] %vm458, %v7588
      %7829 = vst.msk [vmem:[%s216 + $0x550] sm:$0xff] %vm458, %v7589
      %7830 = vst.msk [vmem:[%s216 + $0x558] sm:$0xff] %vm458, %v7590
      %7831 = vst.msk [vmem:[%s216 + $0x560] sm:$0xff] %vm458, %v7591
      %7832 = vst.msk [vmem:[%s216 + $0x568] sm:$0xff] %vm458, %v7592
      %7833 = vst.msk [vmem:[%s216 + $0x570] sm:$0xff] %vm458, %v7593
      %7834 = vst.msk [vmem:[%s216 + $0x578] sm:$0xff] %vm458, %v7594
      %7835 = vst.msk [vmem:[%s216 + $0x580] sm:$0xff] %vm458, %v7595
      %7836 = vst.msk [vmem:[%s216 + $0x588] sm:$0xff] %vm458, %v7596
      %7837 = vst.msk [vmem:[%s216 + $0x590] sm:$0xff] %vm458, %v7597
      %7838 = vst.msk [vmem:[%s216 + $0x598] sm:$0xff] %vm458, %v7598
      %7839 = vst.msk [vmem:[%s216 + $0x5a0] sm:$0xff] %vm458, %v7599
      %7840 = vst.msk [vmem:[%s216 + $0x5a8] sm:$0xff] %vm458, %v7600
      %7841 = vst.msk [vmem:[%s216 + $0x5b0] sm:$0xff] %vm458, %v7601
      %7842 = vst.msk [vmem:[%s216 + $0x5b8] sm:$0xff] %vm458, %v7602
      %7843 = vst.msk [vmem:[%s216 + $0x5c0] sm:$0xff] %vm458, %v7603
      %7844 = vst.msk [vmem:[%s216 + $0x5c8] sm:$0xff] %vm458, %v7604
      %7845 = vst.msk [vmem:[%s216 + $0x5d0] sm:$0xff] %vm458, %v7605
      %7846 = vst.msk [vmem:[%s216 + $0x5d8] sm:$0xff] %vm458, %v7606
      %7847 = vst.msk [vmem:[%s216 + $0x5e0] sm:$0xff] %vm458, %v7607
      %7848 = vst.msk [vmem:[%s216 + $0x5e8] sm:$0xff] %vm458, %v7608
      %7849 = vst.msk [vmem:[%s216 + $0x5f0] sm:$0xff] %vm458, %v7609
      %7850 = vst.msk [vmem:[%s216 + $0x5f8] sm:$0xff] %vm458, %v7610
      %7851 = vst.msk [vmem:[%s216 + $0x600] sm:$0xff] %vm458, %v7611
      %7852 = vst.msk [vmem:[%s216 + $0x608] sm:$0xff] %vm458, %v7612
      %7853 = vst.msk [vmem:[%s216 + $0x610] sm:$0xff] %vm458, %v7613
      %7854 = vst.msk [vmem:[%s216 + $0x618] sm:$0xff] %vm458, %v7614
      %7855 = vst.msk [vmem:[%s216 + $0x620] sm:$0xff] %vm458, %v7615
      %7856 = vst.msk [vmem:[%s216 + $0x628] sm:$0xff] %vm458, %v7616
      %7857 = vst.msk [vmem:[%s216 + $0x630] sm:$0xff] %vm458, %v7617
      %7858 = vst.msk [vmem:[%s216 + $0x638] sm:$0xff] %vm458, %v7618
      %7859 = vst.msk [vmem:[%s216 + $0x640] sm:$0xff] %vm458, %v7619
      %7860 = vst.msk [vmem:[%s216 + $0x648] sm:$0xff] %vm458, %v7620
      %7861 = vst.msk [vmem:[%s216 + $0x650] sm:$0xff] %vm458, %v7621
      %7862 = vst.msk [vmem:[%s216 + $0x658] sm:$0xff] %vm458, %v7622
      %7863 = vst.msk [vmem:[%s216 + $0x660] sm:$0xff] %vm458, %v7623
      %7864 = vst.msk [vmem:[%s216 + $0x668] sm:$0xff] %vm458, %v7624
      %7865 = vst.msk [vmem:[%s216 + $0x670] sm:$0xff] %vm458, %v7625
      %7866 = vst.msk [vmem:[%s216 + $0x678] sm:$0xff] %vm458, %v7626
      %7867 = vst.msk [vmem:[%s216 + $0x680] sm:$0xff] %vm458, %v7627
      %7868 = vst.msk [vmem:[%s216 + $0x688] sm:$0xff] %vm458, %v7628
      %7869 = vst.msk [vmem:[%s216 + $0x690] sm:$0xff] %vm458, %v7629
      %7870 = vst.msk [vmem:[%s216 + $0x698] sm:$0xff] %vm458, %v7630
      %7871 = vst.msk [vmem:[%s216 + $0x6a0] sm:$0xff] %vm458, %v7631
      %7872 = vst.msk [vmem:[%s216 + $0x6a8] sm:$0xff] %vm458, %v7632
      %7873 = vst.msk [vmem:[%s216 + $0x6b0] sm:$0xff] %vm458, %v7633
      %7874 = vst.msk [vmem:[%s216 + $0x6b8] sm:$0xff] %vm458, %v7634
      %7875 = vst.msk [vmem:[%s216 + $0x6c0] sm:$0xff] %vm458, %v7635
      %7876 = vst.msk [vmem:[%s216 + $0x6c8] sm:$0xff] %vm458, %v7636
      %7877 = vst.msk [vmem:[%s216 + $0x6d0] sm:$0xff] %vm458, %v7637
      %7878 = vst.msk [vmem:[%s216 + $0x6d8] sm:$0xff] %vm458, %v7638
      %7879 = vst.msk [vmem:[%s216 + $0x6e0] sm:$0xff] %vm458, %v7639
      %7880 = vst.msk [vmem:[%s216 + $0x6e8] sm:$0xff] %vm458, %v7640
      %7881 = vst.msk [vmem:[%s216 + $0x6f0] sm:$0xff] %vm458, %v7641
      %7882 = vst.msk [vmem:[%s216 + $0x6f8] sm:$0xff] %vm458, %v7642
      %7883 = vst.msk [vmem:[%s216 + $0x700] sm:$0xff] %vm458, %v7643
      %7884 = vst.msk [vmem:[%s216 + $0x708] sm:$0xff] %vm458, %v7644
      %7885 = vst.msk [vmem:[%s216 + $0x710] sm:$0xff] %vm458, %v7645
      %7886 = vst.msk [vmem:[%s216 + $0x718] sm:$0xff] %vm458, %v7646
      %7887 = vst.msk [vmem:[%s216 + $0x720] sm:$0xff] %vm458, %v7647
      %7888 = vst.msk [vmem:[%s216 + $0x728] sm:$0xff] %vm458, %v7648
      %7889 = vst.msk [vmem:[%s216 + $0x730] sm:$0xff] %vm458, %v7649
      %7890 = vst.msk [vmem:[%s216 + $0x738] sm:$0xff] %vm458, %v7650
      %7891 = vst.msk [vmem:[%s216 + $0x740] sm:$0xff] %vm458, %v7651
      %7892 = vst.msk [vmem:[%s216 + $0x748] sm:$0xff] %vm458, %v7652
      %7893 = vst.msk [vmem:[%s216 + $0x750] sm:$0xff] %vm458, %v7653
      %7894 = vst.msk [vmem:[%s216 + $0x758] sm:$0xff] %vm458, %v7654
      %7895 = vst.msk [vmem:[%s216 + $0x760] sm:$0xff] %vm458, %v7655
      %7896 = vst.msk [vmem:[%s216 + $0x768] sm:$0xff] %vm458, %v7656
      %7897 = vst.msk [vmem:[%s216 + $0x770] sm:$0xff] %vm458, %v7657
      %7898 = vst.msk [vmem:[%s216 + $0x778] sm:$0xff] %vm458, %v7658
      %s7899 = smul.u32 240, %s14
      %p7900 = scmp.lt.s32.totalorder %s7899, 479
      %s7901 = scalar_select %p7900, %s7899, 479
      %s7902 = smul.addr %s7901, 8
      %s7903 = scalar_lea.vmem %s3, %s7902
      // Predicated region
      $region33: #{tpu_custom_call.1} parent=31 // pred_check
        %p7904 = pneg %p110
      $region34: #{tpu_custom_call.1} parent=31 // pred_check_branch
        %7906 = sbr.rel (%p7904) target = $region36
      $region35: #{tpu_custom_call.1} parent=31 // pred_region
        %s7907 = smul.u32 240, %s14
      $region36: #{tpu_custom_call.1} parent=31 // pred_fallthru
        _
    $region32: #{tpu_custom_call.1} parent=5 // pred_fallthru
      _
    %p7908 = scmp.le.s32.totalorder 2, %s9
    // Predicated region
    $region37: #{tpu_custom_call.1} parent=5 // pred_check
      %p7909 = pneg %p7908
    $region38: #{tpu_custom_call.1} parent=5 // pred_check_branch
      %7911 = sbr.rel (%p7909) target = $region40
    $region39: #{tpu_custom_call.1} parent=5 // pred_region
      %s7912 = ssub.s32 %s9, 2
      // Predicated region
      $region41: #{tpu_custom_call.1} parent=39 // pred_check
        %p7913 = pneg %p116
      $region42: #{tpu_custom_call.1} parent=39 // pred_check_branch
        %7915 = sbr.rel (%p7913) target = $region44
      $region43: #{tpu_custom_call.1} parent=39 // pred_region
        %s7916 = smul.u32 240, %s15
        %p7917 = scmp.lt.s32.totalorder %s7916, 479
        %s7918 = scalar_select %p7917, %s7916, 479
        %s7919 = smul.addr %s7918, 8
        %s7920 = scalar_lea.vmem %s3, %s7919
      $region44: #{tpu_custom_call.1} parent=39 // pred_fallthru
        _
    $region40: #{tpu_custom_call.1} parent=5 // pred_fallthru
      _
  $region6: #{tpu_custom_call.1} parent=0 // loop_footer
    %s13 = sadd.s32 1, %s9
  $region7: #{tpu_custom_call.1} parent=0 // loop_footer_branch
    %8 = sbr.rel target = $region3
  $region8: #{tpu_custom_call.1} parent=0 // loop_exit
    _

</llo_original>
